<compile_context>
chip_gen: v6e
topology: v6e:2x2x1
jax: 0.10.0
libtpu: 0.0.40
codegen_flags: <defaults>
</compile_context>

<pallas_src>
import functools

import jax
import jax.numpy as jnp
import numpy as np
from jax.experimental import pallas as pl
from jax.experimental.pallas import tpu as pltpu

EPS = 1e-5


def _round_up(v, m):
    return (v + m - 1) // m * m


def _en_dwconv_kernel(x_ref, xs_ref,
                      s1_ref, t1_ref, w1_ref, b1_ref,
                      s2_ref, t2_ref, w2_ref, b2_ref,
                      s3_ref, t3_ref, wdw_ref, bdw_ref,
                      o_ref, *, H, W, TH, Wc1):
    Cout = o_ref.shape[0]
    r0 = pl.multiple_of(pl.program_id(1) * TH, TH)   # first global output row

    def valid_mask(shape, row0, col0):
        # element (i, j, c) corresponds to global pixel (row0 + i, col0 + j)
        gr = jax.lax.broadcasted_iota(jnp.int32, shape, 0) + row0
        gc = jax.lax.broadcasted_iota(jnp.int32, shape, 1) + col0
        return (gr >= 0) & (gr < H) & (gc >= 0) & (gc < W)

    def bn_relu_masked(v, s_ref, t_ref, row0, col0):
        # eval-mode BN folded to per-channel affine, ReLU, then zero everything
        # outside the real image (this realizes the convs' zero padding).
        a = jnp.maximum(v * s_ref[...] + t_ref[...], 0.0)
        return jnp.where(valid_mask(v.shape, row0, col0), a, 0.0)

    def conv_mxu(act, w_ref, b_ref, K, out_rows, out_cols):
        # im2col -> single MXU matmul; bf16 operands, f32 accumulation.
        c = act.shape[-1]
        taps = [act[kh:kh + out_rows, kw:kw + out_cols, :]
                for kh in range(K) for kw in range(K)]
        p = jnp.concatenate(taps, axis=-1)                  # (rows, cols, K*K*c)
        p2 = p.reshape(out_rows * out_cols, K * K * c)      # layout no-op (cols % 8 == 0)
        y = jnp.dot(p2.astype(jnp.bfloat16), w_ref[...],
                    preferred_element_type=jnp.float32)
        return y + b_ref[...]                               # (rows*cols, Cout)

    # ---------------- main branch: BN1+ReLU -> 3x3 -> BN2+ReLU -> 3x3 --------
    # slab covers global rows [r0-2, r0+TH+2), cols [-2, Wc1)
    xm = x_ref[pl.ds(r0 + 1, TH + 4), :, :]
    xm = xm[:, 1:1 + Wc1 + 2, :].astype(jnp.float32)
    a1 = bn_relu_masked(xm, s1_ref, t1_ref, r0 - 2, -2)
    y1 = conv_mxu(a1, w1_ref, b1_ref, 3, TH + 2, Wc1)
    y1 = y1.reshape(TH + 2, Wc1, Cout)       # rows -> global r0-1+i, cols -> j-1
    a2 = bn_relu_masked(y1, s2_ref, t2_ref, r0 - 1, -1)
    y2 = conv_mxu(a2, w2_ref, b2_ref, 3, TH, W)             # (TH*W, Cout)

    # ------------- shortcut: BN3+ReLU -> depthwise 7x7 on the VPU ------------
    # slab covers global rows [r0-3, r0+TH+3), cols [-3, W+3)
    xs = xs_ref[pl.ds(r0, TH + 6), :, :]
    xs = xs[:, :W + 6, :].astype(jnp.float32)
    a3 = bn_relu_masked(xs, s3_ref, t3_ref, r0 - 3, -3)
    wdw = wdw_ref[...]                                      # (7, 7, Cout) f32
    acc = jnp.zeros((TH, W, Cout), jnp.float32)
    for kh in range(7):
        for kw in range(7):
            acc = acc + a3[kh:kh + TH, kw:kw + W, :] * wdw[kh:kh + 1, kw:kw + 1, :]
    y3 = acc.reshape(TH * W, Cout) + bdw_ref[...]

    # lane-dense, NCHW-flat store: (Cout, TH*W)
    out = (y2 + y3).astype(o_ref.dtype)
    o_ref[...] = jnp.transpose(out, (1, 0))


def en_dwconv_forward(x_nchw, params, *, tile_h=8):
    B, Cin, H, W = x_nchw.shape
    Cout = params["w1"].shape[0]
    assert Cout % Cin == 0, "grouped conv (groups=Cin) requires Cout % Cin == 0"
    assert W % 8 == 0, "this kernel assumes the image width is a multiple of 8"
    mult = Cout // Cin
    TH = tile_h if H % tile_h == 0 else H
    R = H // TH
    Wc1 = _round_up(W + 2, 8)            # conv1 is computed over Wc1 columns
    RPAD = max(3, Wc1 - W)               # right zero-pad so the widened slab fits
    Hp, Wp = H + 6, W + 3 + RPAD

    def bn_fold(gamma, beta, mean, var):
        scale = gamma / jnp.sqrt(var + EPS)
        shift = beta - mean * scale
        return scale.astype(jnp.float32), shift.astype(jnp.float32)

    s1, t1 = bn_fold(*params["bn1"])
    s2, t2 = bn_fold(*params["bn2"])
    s3, t3 = bn_fold(*params["bn3"])
    # shortcut has one input channel per group: expand its BN params (and the
    # input, below) to Cout "virtual" channels so the conv is purely depthwise.
    s3 = jnp.repeat(s3, mult)
    t3 = jnp.repeat(t3, mult)

    s1 = s1.reshape(1, Cin); t1 = t1.reshape(1, Cin)
    s2 = s2.reshape(1, Cout); t2 = t2.reshape(1, Cout)
    s3 = s3.reshape(1, Cout); t3 = t3.reshape(1, Cout)

    # dense 3x3 weights (Cout, Cin, 3, 3) -> im2col layout (9*Cin, Cout), bf16
    w1 = jnp.transpose(params["w1"], (2, 3, 1, 0)).reshape(9 * Cin, Cout).astype(jnp.bfloat16)
    w2 = jnp.transpose(params["w2"], (2, 3, 1, 0)).reshape(9 * Cout, Cout).astype(jnp.bfloat16)
    b1 = params["b1"].reshape(1, Cout).astype(jnp.float32)
    b2 = params["b2"].reshape(1, Cout).astype(jnp.float32)

    # depthwise 7x7 weights (Cout, 1, 7, 7) -> (7, 7, Cout), f32 (VPU path)
    wdw = jnp.transpose(params["w_dw"][:, 0], (1, 2, 0)).astype(jnp.float32)
    bdw = params["b_dw"].reshape(1, Cout).astype(jnp.float32)

    x_nhwc = jnp.transpose(x_nchw, (0, 2, 3, 1)).astype(jnp.float32)
    # channel-repeated copy for the depthwise shortcut: output channel o reads
    # input channel o // mult.
    xs_nhwc = jnp.repeat(x_nhwc, mult, axis=-1)

    pad_cfg = ((0, 0), (3, 3), (3, RPAD), (0, 0))
    x_pad = jnp.pad(x_nhwc, pad_cfg)
    xs_pad = jnp.pad(xs_nhwc, pad_cfg)

    kernel = functools.partial(_en_dwconv_kernel, H=H, W=W, TH=TH, Wc1=Wc1)
    c2 = lambda b, r: (0, 0)
    c3 = lambda b, r: (0, 0, 0)

    out_flat = pl.pallas_call(
        kernel,
        out_shape=jax.ShapeDtypeStruct((B, Cout, H * W), x_nhwc.dtype),
        grid_spec=pltpu.PrefetchScalarGridSpec(
            num_scalar_prefetch=0,
            grid=(B, R),
            in_specs=[
                pl.BlockSpec((None, Hp, Wp, Cin), lambda b, r: (b, 0, 0, 0)),   # x (padded)
                pl.BlockSpec((None, Hp, Wp, Cout), lambda b, r: (b, 0, 0, 0)),  # x repeated (padded)
                pl.BlockSpec((1, Cin), c2),            # bn1 scale
                pl.BlockSpec((1, Cin), c2),            # bn1 shift
                pl.BlockSpec((9 * Cin, Cout), c2),     # w1 (im2col, bf16)
                pl.BlockSpec((1, Cout), c2),           # b1
                pl.BlockSpec((1, Cout), c2),           # bn2 scale
                pl.BlockSpec((1, Cout), c2),           # bn2 shift
                pl.BlockSpec((9 * Cout, Cout), c2),    # w2 (im2col, bf16)
                pl.BlockSpec((1, Cout), c2),           # b2
                pl.BlockSpec((1, Cout), c2),           # bn3 scale (expanded)
                pl.BlockSpec((1, Cout), c2),           # bn3 shift (expanded)
                pl.BlockSpec((7, 7, Cout), c3),        # depthwise weight
                pl.BlockSpec((1, Cout), c2),           # depthwise bias
            ],
            out_specs=pl.BlockSpec((None, Cout, TH * W), lambda b, r: (b, 0, r)),
        ),
        compiler_params=pltpu.CompilerParams(
            dimension_semantics=("parallel", "parallel"),
            vmem_limit_bytes=32 * 1024 * 1024,
        ),
    )(x_pad, xs_pad, s1, t1, w1, b1, s2, t2, w2, b2, s3, t3, wdw, bdw)

    return out_flat.reshape(B, Cout, H, W)          # already NCHW


def reference_forward(x, params):
    """Pure-JAX (XLA) reference for correctness checking (NCHW, eval-mode BN)."""
    dn = ("NCHW", "OIHW", "NCHW")

    def bn(v, gamma, beta, mean, var):
        g = gamma[None, :, None, None]
        b = beta[None, :, None, None]
        m = mean[None, :, None, None]
        s = var[None, :, None, None]
        return g * (v - m) / jnp.sqrt(s + EPS) + b

    relu = lambda v: jnp.maximum(v, 0.0)
    prec = jax.lax.Precision.HIGHEST

    a = relu(bn(x, *params["bn1"]))
    y = jax.lax.conv_general_dilated(a, params["w1"], (1, 1), "SAME",
                                     dimension_numbers=dn, precision=prec)
    y = y + params["b1"][None, :, None, None]
    a = relu(bn(y, *params["bn2"]))
    y = jax.lax.conv_general_dilated(a, params["w2"], (1, 1), "SAME",
                                     dimension_numbers=dn, precision=prec)
    y = y + params["b2"][None, :, None, None]

    a3 = relu(bn(x, *params["bn3"]))
    y3 = jax.lax.conv_general_dilated(a3, params["w_dw"], (1, 1), "SAME",
                                      dimension_numbers=dn,
                                      feature_group_count=x.shape[1],
                                      precision=prec)
    y3 = y3 + params["b_dw"][None, :, None, None]
    return y + y3


def make_params(key, cin, cout):
    ks = jax.random.split(key, 20)

    def bn_params(k0, k1, k2, k3, c):
        gamma = 1.0 + 0.1 * jax.random.normal(k0, (c,), jnp.float32)
        beta = 0.1 * jax.random.normal(k1, (c,), jnp.float32)
        mean = 0.1 * jax.random.normal(k2, (c,), jnp.float32)
        var = 1.0 + 0.1 * jnp.abs(jax.random.normal(k3, (c,), jnp.float32))
        return (gamma, beta, mean, var)

    return {
        "bn1": bn_params(ks[0], ks[1], ks[2], ks[3], cin),
        "w1": 0.1 * jax.random.normal(ks[4], (cout, cin, 3, 3), jnp.float32),
        "b1": 0.1 * jax.random.normal(ks[5], (cout,), jnp.float32),
        "bn2": bn_params(ks[6], ks[7], ks[8], ks[9], cout),
        "w2": 0.1 * jax.random.normal(ks[10], (cout, cout, 3, 3), jnp.float32),
        "b2": 0.1 * jax.random.normal(ks[11], (cout,), jnp.float32),
        "bn3": bn_params(ks[12], ks[13], ks[14], ks[15], cin),
        "w_dw": 0.1 * jax.random.normal(ks[16], (cout, 1, 7, 7), jnp.float32),
        "b_dw": 0.1 * jax.random.normal(ks[17], (cout,), jnp.float32),
    }


if __name__ == "__main__":
    B, Cin, Cout, H, W = 2, 4, 8, 16, 16   # Cout % Cin == 0 (required by groups=Cin)
    key = jax.random.PRNGKey(0)
    kx, kp = jax.random.split(key)
    x = jax.random.normal(kx, (B, Cin, H, W), jnp.float32)
    params = make_params(kp, Cin, Cout)

    out = en_dwconv_forward(x, params)
    out = jax.block_until_ready(out)

    ref = reference_forward(x, params)
    # tolerance sized for bf16 MXU matmuls (f32 accumulation) vs the f32 reference
    np.testing.assert_allclose(np.asarray(out), np.asarray(ref), rtol=2e-2, atol=2e-2)

    print("KERNEL_OK")
</pallas_src>

<mosaic_0001>
module attributes {stable_mosaic.version = 11 : i64} {
  func.func @_en_dwconv_kernel(%arg0: i32, %arg1: i32, %arg2: memref<1x22x27x4xf32, #tpu.memory_space<vmem>>, %arg3: memref<1x22x27x8xf32, #tpu.memory_space<vmem>>, %arg4: memref<1x4xf32, #tpu.memory_space<vmem>>, %arg5: memref<1x4xf32, #tpu.memory_space<vmem>>, %arg6: memref<36x8xbf16, #tpu.memory_space<vmem>>, %arg7: memref<1x8xf32, #tpu.memory_space<vmem>>, %arg8: memref<1x8xf32, #tpu.memory_space<vmem>>, %arg9: memref<1x8xf32, #tpu.memory_space<vmem>>, %arg10: memref<72x8xbf16, #tpu.memory_space<vmem>>, %arg11: memref<1x8xf32, #tpu.memory_space<vmem>>, %arg12: memref<1x8xf32, #tpu.memory_space<vmem>>, %arg13: memref<1x8xf32, #tpu.memory_space<vmem>>, %arg14: memref<7x7x8xf32, #tpu.memory_space<vmem>>, %arg15: memref<1x8xf32, #tpu.memory_space<vmem>>, %arg16: memref<1x8x128xf32, #tpu.memory_space<vmem>>) attributes {dimension_semantics = [#tpu.dimension_semantics<parallel>, #tpu.dimension_semantics<parallel>], iteration_bounds = array<i64: 2, 2>, scalar_prefetch = 0 : i64, scratch_operands = 0 : i64, tpu.core_type = #tpu.core_type<tc>, window_params = [{transform_indices = @transform_0, window_bounds = array<i64: 1, 22, 27, 4>}, {transform_indices = @transform_1, window_bounds = array<i64: 1, 22, 27, 8>}, {pipeline_mode = #tpu.pipeline_mode<synchronous>, transform_indices = @transform_2, window_bounds = array<i64: 1, 4>}, {pipeline_mode = #tpu.pipeline_mode<synchronous>, transform_indices = @transform_3, window_bounds = array<i64: 1, 4>}, {pipeline_mode = #tpu.pipeline_mode<synchronous>, transform_indices = @transform_4, window_bounds = array<i64: 36, 8>}, {pipeline_mode = #tpu.pipeline_mode<synchronous>, transform_indices = @transform_5, window_bounds = array<i64: 1, 8>}, {pipeline_mode = #tpu.pipeline_mode<synchronous>, transform_indices = @transform_6, window_bounds = array<i64: 1, 8>}, {pipeline_mode = #tpu.pipeline_mode<synchronous>, transform_indices = @transform_7, window_bounds = array<i64: 1, 8>}, {pipeline_mode = #tpu.pipeline_mode<synchronous>, transform_indices = @transform_8, window_bounds = array<i64: 72, 8>}, {pipeline_mode = #tpu.pipeline_mode<synchronous>, transform_indices = @transform_9, window_bounds = array<i64: 1, 8>}, {pipeline_mode = #tpu.pipeline_mode<synchronous>, transform_indices = @transform_10, window_bounds = array<i64: 1, 8>}, {pipeline_mode = #tpu.pipeline_mode<synchronous>, transform_indices = @transform_11, window_bounds = array<i64: 1, 8>}, {pipeline_mode = #tpu.pipeline_mode<synchronous>, transform_indices = @transform_12, window_bounds = array<i64: 7, 7, 8>}, {pipeline_mode = #tpu.pipeline_mode<synchronous>, transform_indices = @transform_13, window_bounds = array<i64: 1, 8>}, {transform_indices = @transform_14, window_bounds = array<i64: 1, 8, 128>}]} {
    %c8_i32 = arith.constant 8 : i32
    %0 = arith.muli %arg1, %c8_i32 : i32
    %1 = tpu.assume_multiple %0, 8 : i32
    %c1_i32 = arith.constant 1 : i32
    %2 = arith.addi %1, %c1_i32 : i32
    %c0 = arith.constant 0 : index
    %3 = arith.index_cast %2 : i32 to index
    %c0_0 = arith.constant 0 : index
    %c0_1 = arith.constant 0 : index
    %4 = vector.load %arg2[%c0, %3, %c0_0, %c0_1] : memref<1x22x27x4xf32, #tpu.memory_space<vmem>>, vector<1x12x27x4xf32>
    %5 = vector.shape_cast %4 : vector<1x12x27x4xf32> to vector<12x27x4xf32>
    %6 = vector.extract_strided_slice %5 {offsets = [0, 1, 0], sizes = [12, 26, 4], strides = [1, 1, 1]} : vector<12x27x4xf32> to vector<12x26x4xf32>
    %c2_i32 = arith.constant 2 : i32
    %7 = arith.subi %1, %c2_i32 : i32
    %c0_2 = arith.constant 0 : index
    %c0_3 = arith.constant 0 : index
    %8 = vector.load %arg4[%c0_2, %c0_3] : memref<1x4xf32, #tpu.memory_space<vmem>>, vector<1x4xf32>
    %9 = vector.shape_cast %8 : vector<1x4xf32> to vector<1x1x4xf32>
    %10 = vector.broadcast %9 : vector<1x1x4xf32> to vector<12x26x4xf32>
    %11 = arith.mulf %6, %10 : vector<12x26x4xf32>
    %c0_4 = arith.constant 0 : index
    %c0_5 = arith.constant 0 : index
    %12 = vector.load %arg5[%c0_4, %c0_5] : memref<1x4xf32, #tpu.memory_space<vmem>>, vector<1x4xf32>
    %13 = vector.shape_cast %12 : vector<1x4xf32> to vector<1x1x4xf32>
    %14 = vector.broadcast %13 : vector<1x1x4xf32> to vector<12x26x4xf32>
    %15 = arith.addf %11, %14 : vector<12x26x4xf32>
    %cst = arith.constant 0.000000e+00 : f32
    %16 = vector.broadcast %cst : f32 to vector<12x26x4xf32>
    %17 = arith.maximumf %15, %16 : vector<12x26x4xf32>
    %18 = tpu.iota {dimensions = array<i32: 0>} : vector<12x26x4xi32>
    %19 = vector.broadcast %7 : i32 to vector<12x26x4xi32>
    %20 = arith.addi %18, %19 : vector<12x26x4xi32>
    %21 = tpu.iota {dimensions = array<i32: 1>} : vector<12x26x4xi32>
    %c-2_i32 = arith.constant -2 : i32
    %22 = vector.broadcast %c-2_i32 : i32 to vector<12x26x4xi32>
    %23 = arith.addi %21, %22 : vector<12x26x4xi32>
    %c0_i32 = arith.constant 0 : i32
    %24 = vector.broadcast %c0_i32 : i32 to vector<12x26x4xi32>
    %25 = arith.cmpi sge, %20, %24 : vector<12x26x4xi32>
    %c16_i32 = arith.constant 16 : i32
    %26 = vector.broadcast %c16_i32 : i32 to vector<12x26x4xi32>
    %27 = arith.cmpi slt, %20, %26 : vector<12x26x4xi32>
    %28 = arith.andi %25, %27 : vector<12x26x4xi1>
    %c0_i32_6 = arith.constant 0 : i32
    %29 = vector.broadcast %c0_i32_6 : i32 to vector<12x26x4xi32>
    %30 = arith.cmpi sge, %23, %29 : vector<12x26x4xi32>
    %31 = arith.andi %28, %30 : vector<12x26x4xi1>
    %c16_i32_7 = arith.constant 16 : i32
    %32 = vector.broadcast %c16_i32_7 : i32 to vector<12x26x4xi32>
    %33 = arith.cmpi slt, %23, %32 : vector<12x26x4xi32>
    %34 = arith.andi %31, %33 : vector<12x26x4xi1>
    %cst_8 = arith.constant 0.000000e+00 : f32
    %35 = vector.broadcast %cst_8 : f32 to vector<12x26x4xf32>
    %36 = arith.select %34, %17, %35 : vector<12x26x4xi1>, vector<12x26x4xf32>
    %37 = vector.extract_strided_slice %36 {offsets = [0, 0, 0], sizes = [10, 24, 4], strides = [1, 1, 1]} : vector<12x26x4xf32> to vector<10x24x4xf32>
    %38 = vector.extract_strided_slice %36 {offsets = [0, 1, 0], sizes = [10, 24, 4], strides = [1, 1, 1]} : vector<12x26x4xf32> to vector<10x24x4xf32>
    %39 = vector.extract_strided_slice %36 {offsets = [0, 2, 0], sizes = [10, 24, 4], strides = [1, 1, 1]} : vector<12x26x4xf32> to vector<10x24x4xf32>
    %40 = vector.extract_strided_slice %36 {offsets = [1, 0, 0], sizes = [10, 24, 4], strides = [1, 1, 1]} : vector<12x26x4xf32> to vector<10x24x4xf32>
    %41 = vector.extract_strided_slice %36 {offsets = [1, 1, 0], sizes = [10, 24, 4], strides = [1, 1, 1]} : vector<12x26x4xf32> to vector<10x24x4xf32>
    %42 = vector.extract_strided_slice %36 {offsets = [1, 2, 0], sizes = [10, 24, 4], strides = [1, 1, 1]} : vector<12x26x4xf32> to vector<10x24x4xf32>
    %43 = vector.extract_strided_slice %36 {offsets = [2, 0, 0], sizes = [10, 24, 4], strides = [1, 1, 1]} : vector<12x26x4xf32> to vector<10x24x4xf32>
    %44 = vector.extract_strided_slice %36 {offsets = [2, 1, 0], sizes = [10, 24, 4], strides = [1, 1, 1]} : vector<12x26x4xf32> to vector<10x24x4xf32>
    %45 = vector.extract_strided_slice %36 {offsets = [2, 2, 0], sizes = [10, 24, 4], strides = [1, 1, 1]} : vector<12x26x4xf32> to vector<10x24x4xf32>
    %46 = tpu.concatenate %37, %38, %39, %40, %41, %42, %43, %44, %45 in 2 : vector<10x24x4xf32>, vector<10x24x4xf32>, vector<10x24x4xf32>, vector<10x24x4xf32>, vector<10x24x4xf32>, vector<10x24x4xf32>, vector<10x24x4xf32>, vector<10x24x4xf32>, vector<10x24x4xf32> -> vector<10x24x36xf32>
    %47 = vector.shape_cast %46 : vector<10x24x36xf32> to vector<240x36xf32>
    %48 = arith.truncf %47 : vector<240x36xf32> to vector<240x36xbf16>
    %c0_9 = arith.constant 0 : index
    %c0_10 = arith.constant 0 : index
    %49 = vector.load %arg6[%c0_9, %c0_10] : memref<36x8xbf16, #tpu.memory_space<vmem>>, vector<36x8xbf16>
    %cst_11 = arith.constant dense<0.000000e+00> : vector<240x8xf32>
    %50 = tpu.matmul %48, %49, %cst_11 {dimension_numbers = #tpu.dot_dimension_numbers<[1], [0], [0], [1], [0, 0, 1, 1], [], []>} : vector<240x36xbf16>, vector<36x8xbf16>, vector<240x8xf32> -> vector<240x8xf32>
    %c0_12 = arith.constant 0 : index
    %c0_13 = arith.constant 0 : index
    %51 = vector.load %arg7[%c0_12, %c0_13] : memref<1x8xf32, #tpu.memory_space<vmem>>, vector<1x8xf32>
    %52 = vector.broadcast %51 : vector<1x8xf32> to vector<240x8xf32>
    %53 = arith.addf %50, %52 : vector<240x8xf32>
    %54 = vector.shape_cast %53 : vector<240x8xf32> to vector<10x24x8xf32>
    %c1_i32_14 = arith.constant 1 : i32
    %55 = arith.subi %1, %c1_i32_14 : i32
    %c0_15 = arith.constant 0 : index
    %c0_16 = arith.constant 0 : index
    %56 = vector.load %arg8[%c0_15, %c0_16] : memref<1x8xf32, #tpu.memory_space<vmem>>, vector<1x8xf32>
    %57 = vector.shape_cast %56 : vector<1x8xf32> to vector<1x1x8xf32>
    %58 = vector.broadcast %57 : vector<1x1x8xf32> to vector<10x24x8xf32>
    %59 = arith.mulf %54, %58 : vector<10x24x8xf32>
    %c0_17 = arith.constant 0 : index
    %c0_18 = arith.constant 0 : index
    %60 = vector.load %arg9[%c0_17, %c0_18] : memref<1x8xf32, #tpu.memory_space<vmem>>, vector<1x8xf32>
    %61 = vector.shape_cast %60 : vector<1x8xf32> to vector<1x1x8xf32>
    %62 = vector.broadcast %61 : vector<1x1x8xf32> to vector<10x24x8xf32>
    %63 = arith.addf %59, %62 : vector<10x24x8xf32>
    %cst_19 = arith.constant 0.000000e+00 : f32
    %64 = vector.broadcast %cst_19 : f32 to vector<10x24x8xf32>
    %65 = arith.maximumf %63, %64 : vector<10x24x8xf32>
    %66 = tpu.iota {dimensions = array<i32: 0>} : vector<10x24x8xi32>
    %67 = vector.broadcast %55 : i32 to vector<10x24x8xi32>
    %68 = arith.addi %66, %67 : vector<10x24x8xi32>
    %69 = tpu.iota {dimensions = array<i32: 1>} : vector<10x24x8xi32>
    %c-1_i32 = arith.constant -1 : i32
    %70 = vector.broadcast %c-1_i32 : i32 to vector<10x24x8xi32>
    %71 = arith.addi %69, %70 : vector<10x24x8xi32>
    %c0_i32_20 = arith.constant 0 : i32
    %72 = vector.broadcast %c0_i32_20 : i32 to vector<10x24x8xi32>
    %73 = arith.cmpi sge, %68, %72 : vector<10x24x8xi32>
    %c16_i32_21 = arith.constant 16 : i32
    %74 = vector.broadcast %c16_i32_21 : i32 to vector<10x24x8xi32>
    %75 = arith.cmpi slt, %68, %74 : vector<10x24x8xi32>
    %76 = arith.andi %73, %75 : vector<10x24x8xi1>
    %c0_i32_22 = arith.constant 0 : i32
    %77 = vector.broadcast %c0_i32_22 : i32 to vector<10x24x8xi32>
    %78 = arith.cmpi sge, %71, %77 : vector<10x24x8xi32>
    %79 = arith.andi %76, %78 : vector<10x24x8xi1>
    %c16_i32_23 = arith.constant 16 : i32
    %80 = vector.broadcast %c16_i32_23 : i32 to vector<10x24x8xi32>
    %81 = arith.cmpi slt, %71, %80 : vector<10x24x8xi32>
    %82 = arith.andi %79, %81 : vector<10x24x8xi1>
    %cst_24 = arith.constant 0.000000e+00 : f32
    %83 = vector.broadcast %cst_24 : f32 to vector<10x24x8xf32>
    %84 = arith.select %82, %65, %83 : vector<10x24x8xi1>, vector<10x24x8xf32>
    %85 = vector.extract_strided_slice %84 {offsets = [0, 0, 0], sizes = [8, 16, 8], strides = [1, 1, 1]} : vector<10x24x8xf32> to vector<8x16x8xf32>
    %86 = vector.extract_strided_slice %84 {offsets = [0, 1, 0], sizes = [8, 16, 8], strides = [1, 1, 1]} : vector<10x24x8xf32> to vector<8x16x8xf32>
    %87 = vector.extract_strided_slice %84 {offsets = [0, 2, 0], sizes = [8, 16, 8], strides = [1, 1, 1]} : vector<10x24x8xf32> to vector<8x16x8xf32>
    %88 = vector.extract_strided_slice %84 {offsets = [1, 0, 0], sizes = [8, 16, 8], strides = [1, 1, 1]} : vector<10x24x8xf32> to vector<8x16x8xf32>
    %89 = vector.extract_strided_slice %84 {offsets = [1, 1, 0], sizes = [8, 16, 8], strides = [1, 1, 1]} : vector<10x24x8xf32> to vector<8x16x8xf32>
    %90 = vector.extract_strided_slice %84 {offsets = [1, 2, 0], sizes = [8, 16, 8], strides = [1, 1, 1]} : vector<10x24x8xf32> to vector<8x16x8xf32>
    %91 = vector.extract_strided_slice %84 {offsets = [2, 0, 0], sizes = [8, 16, 8], strides = [1, 1, 1]} : vector<10x24x8xf32> to vector<8x16x8xf32>
    %92 = vector.extract_strided_slice %84 {offsets = [2, 1, 0], sizes = [8, 16, 8], strides = [1, 1, 1]} : vector<10x24x8xf32> to vector<8x16x8xf32>
    %93 = vector.extract_strided_slice %84 {offsets = [2, 2, 0], sizes = [8, 16, 8], strides = [1, 1, 1]} : vector<10x24x8xf32> to vector<8x16x8xf32>
    %94 = tpu.concatenate %85, %86, %87, %88, %89, %90, %91, %92, %93 in 2 : vector<8x16x8xf32>, vector<8x16x8xf32>, vector<8x16x8xf32>, vector<8x16x8xf32>, vector<8x16x8xf32>, vector<8x16x8xf32>, vector<8x16x8xf32>, vector<8x16x8xf32>, vector<8x16x8xf32> -> vector<8x16x72xf32>
    %95 = vector.shape_cast %94 : vector<8x16x72xf32> to vector<128x72xf32>
    %96 = arith.truncf %95 : vector<128x72xf32> to vector<128x72xbf16>
    %c0_25 = arith.constant 0 : index
    %c0_26 = arith.constant 0 : index
    %97 = vector.load %arg10[%c0_25, %c0_26] : memref<72x8xbf16, #tpu.memory_space<vmem>>, vector<72x8xbf16>
    %cst_27 = arith.constant dense<0.000000e+00> : vector<128x8xf32>
    %98 = tpu.matmul %96, %97, %cst_27 {dimension_numbers = #tpu.dot_dimension_numbers<[1], [0], [0], [1], [0, 0, 1, 1], [], []>} : vector<128x72xbf16>, vector<72x8xbf16>, vector<128x8xf32> -> vector<128x8xf32>
    %c0_28 = arith.constant 0 : index
    %c0_29 = arith.constant 0 : index
    %99 = vector.load %arg11[%c0_28, %c0_29] : memref<1x8xf32, #tpu.memory_space<vmem>>, vector<1x8xf32>
    %100 = vector.broadcast %99 : vector<1x8xf32> to vector<128x8xf32>
    %101 = arith.addf %98, %100 : vector<128x8xf32>
    %c0_30 = arith.constant 0 : index
    %102 = arith.index_cast %1 : i32 to index
    %c0_31 = arith.constant 0 : index
    %c0_32 = arith.constant 0 : index
    %103 = vector.load %arg3[%c0_30, %102, %c0_31, %c0_32] : memref<1x22x27x8xf32, #tpu.memory_space<vmem>>, vector<1x14x27x8xf32>
    %104 = vector.shape_cast %103 : vector<1x14x27x8xf32> to vector<14x27x8xf32>
    %105 = vector.extract_strided_slice %104 {offsets = [0, 0, 0], sizes = [14, 22, 8], strides = [1, 1, 1]} : vector<14x27x8xf32> to vector<14x22x8xf32>
    %c3_i32 = arith.constant 3 : i32
    %106 = arith.subi %1, %c3_i32 : i32
    %c0_33 = arith.constant 0 : index
    %c0_34 = arith.constant 0 : index
    %107 = vector.load %arg12[%c0_33, %c0_34] : memref<1x8xf32, #tpu.memory_space<vmem>>, vector<1x8xf32>
    %108 = vector.shape_cast %107 : vector<1x8xf32> to vector<1x1x8xf32>
    %109 = vector.broadcast %108 : vector<1x1x8xf32> to vector<14x22x8xf32>
    %110 = arith.mulf %105, %109 : vector<14x22x8xf32>
    %c0_35 = arith.constant 0 : index
    %c0_36 = arith.constant 0 : index
    %111 = vector.load %arg13[%c0_35, %c0_36] : memref<1x8xf32, #tpu.memory_space<vmem>>, vector<1x8xf32>
    %112 = vector.shape_cast %111 : vector<1x8xf32> to vector<1x1x8xf32>
    %113 = vector.broadcast %112 : vector<1x1x8xf32> to vector<14x22x8xf32>
    %114 = arith.addf %110, %113 : vector<14x22x8xf32>
    %cst_37 = arith.constant 0.000000e+00 : f32
    %115 = vector.broadcast %cst_37 : f32 to vector<14x22x8xf32>
    %116 = arith.maximumf %114, %115 : vector<14x22x8xf32>
    %117 = tpu.iota {dimensions = array<i32: 0>} : vector<14x22x8xi32>
    %118 = vector.broadcast %106 : i32 to vector<14x22x8xi32>
    %119 = arith.addi %117, %118 : vector<14x22x8xi32>
    %120 = tpu.iota {dimensions = array<i32: 1>} : vector<14x22x8xi32>
    %c-3_i32 = arith.constant -3 : i32
    %121 = vector.broadcast %c-3_i32 : i32 to vector<14x22x8xi32>
    %122 = arith.addi %120, %121 : vector<14x22x8xi32>
    %c0_i32_38 = arith.constant 0 : i32
    %123 = vector.broadcast %c0_i32_38 : i32 to vector<14x22x8xi32>
    %124 = arith.cmpi sge, %119, %123 : vector<14x22x8xi32>
    %c16_i32_39 = arith.constant 16 : i32
    %125 = vector.broadcast %c16_i32_39 : i32 to vector<14x22x8xi32>
    %126 = arith.cmpi slt, %119, %125 : vector<14x22x8xi32>
    %127 = arith.andi %124, %126 : vector<14x22x8xi1>
    %c0_i32_40 = arith.constant 0 : i32
    %128 = vector.broadcast %c0_i32_40 : i32 to vector<14x22x8xi32>
    %129 = arith.cmpi sge, %122, %128 : vector<14x22x8xi32>
    %130 = arith.andi %127, %129 : vector<14x22x8xi1>
    %c16_i32_41 = arith.constant 16 : i32
    %131 = vector.broadcast %c16_i32_41 : i32 to vector<14x22x8xi32>
    %132 = arith.cmpi slt, %122, %131 : vector<14x22x8xi32>
    %133 = arith.andi %130, %132 : vector<14x22x8xi1>
    %cst_42 = arith.constant 0.000000e+00 : f32
    %134 = vector.broadcast %cst_42 : f32 to vector<14x22x8xf32>
    %135 = arith.select %133, %116, %134 : vector<14x22x8xi1>, vector<14x22x8xf32>
    %c0_43 = arith.constant 0 : index
    %c0_44 = arith.constant 0 : index
    %c0_45 = arith.constant 0 : index
    %136 = vector.load %arg14[%c0_43, %c0_44, %c0_45] : memref<7x7x8xf32, #tpu.memory_space<vmem>>, vector<7x7x8xf32>
    %cst_46 = arith.constant 0.000000e+00 : f32
    %137 = vector.broadcast %cst_46 : f32 to vector<8x16x8xf32>
    %138 = vector.extract_strided_slice %135 {offsets = [0, 0, 0], sizes = [8, 16, 8], strides = [1, 1, 1]} : vector<14x22x8xf32> to vector<8x16x8xf32>
    %139 = vector.extract_strided_slice %136 {offsets = [0, 0, 0], sizes = [1, 1, 8], strides = [1, 1, 1]} : vector<7x7x8xf32> to vector<1x1x8xf32>
    %140 = vector.broadcast %139 : vector<1x1x8xf32> to vector<8x16x8xf32>
    %141 = arith.mulf %138, %140 : vector<8x16x8xf32>
    %142 = arith.addf %137, %141 : vector<8x16x8xf32>
    %143 = vector.extract_strided_slice %135 {offsets = [0, 1, 0], sizes = [8, 16, 8], strides = [1, 1, 1]} : vector<14x22x8xf32> to vector<8x16x8xf32>
    %144 = vector.extract_strided_slice %136 {offsets = [0, 1, 0], sizes = [1, 1, 8], strides = [1, 1, 1]} : vector<7x7x8xf32> to vector<1x1x8xf32>
    %145 = vector.broadcast %144 : vector<1x1x8xf32> to vector<8x16x8xf32>
    %146 = arith.mulf %143, %145 : vector<8x16x8xf32>
    %147 = arith.addf %142, %146 : vector<8x16x8xf32>
    %148 = vector.extract_strided_slice %135 {offsets = [0, 2, 0], sizes = [8, 16, 8], strides = [1, 1, 1]} : vector<14x22x8xf32> to vector<8x16x8xf32>
    %149 = vector.extract_strided_slice %136 {offsets = [0, 2, 0], sizes = [1, 1, 8], strides = [1, 1, 1]} : vector<7x7x8xf32> to vector<1x1x8xf32>
    %150 = vector.broadcast %149 : vector<1x1x8xf32> to vector<8x16x8xf32>
    %151 = arith.mulf %148, %150 : vector<8x16x8xf32>
    %152 = arith.addf %147, %151 : vector<8x16x8xf32>
    %153 = vector.extract_strided_slice %135 {offsets = [0, 3, 0], sizes = [8, 16, 8], strides = [1, 1, 1]} : vector<14x22x8xf32> to vector<8x16x8xf32>
    %154 = vector.extract_strided_slice %136 {offsets = [0, 3, 0], sizes = [1, 1, 8], strides = [1, 1, 1]} : vector<7x7x8xf32> to vector<1x1x8xf32>
    %155 = vector.broadcast %154 : vector<1x1x8xf32> to vector<8x16x8xf32>
    %156 = arith.mulf %153, %155 : vector<8x16x8xf32>
    %157 = arith.addf %152, %156 : vector<8x16x8xf32>
    %158 = vector.extract_strided_slice %135 {offsets = [0, 4, 0], sizes = [8, 16, 8], strides = [1, 1, 1]} : vector<14x22x8xf32> to vector<8x16x8xf32>
    %159 = vector.extract_strided_slice %136 {offsets = [0, 4, 0], sizes = [1, 1, 8], strides = [1, 1, 1]} : vector<7x7x8xf32> to vector<1x1x8xf32>
    %160 = vector.broadcast %159 : vector<1x1x8xf32> to vector<8x16x8xf32>
    %161 = arith.mulf %158, %160 : vector<8x16x8xf32>
    %162 = arith.addf %157, %161 : vector<8x16x8xf32>
    %163 = vector.extract_strided_slice %135 {offsets = [0, 5, 0], sizes = [8, 16, 8], strides = [1, 1, 1]} : vector<14x22x8xf32> to vector<8x16x8xf32>
    %164 = vector.extract_strided_slice %136 {offsets = [0, 5, 0], sizes = [1, 1, 8], strides = [1, 1, 1]} : vector<7x7x8xf32> to vector<1x1x8xf32>
    %165 = vector.broadcast %164 : vector<1x1x8xf32> to vector<8x16x8xf32>
    %166 = arith.mulf %163, %165 : vector<8x16x8xf32>
    %167 = arith.addf %162, %166 : vector<8x16x8xf32>
    %168 = vector.extract_strided_slice %135 {offsets = [0, 6, 0], sizes = [8, 16, 8], strides = [1, 1, 1]} : vector<14x22x8xf32> to vector<8x16x8xf32>
    %169 = vector.extract_strided_slice %136 {offsets = [0, 6, 0], sizes = [1, 1, 8], strides = [1, 1, 1]} : vector<7x7x8xf32> to vector<1x1x8xf32>
    %170 = vector.broadcast %169 : vector<1x1x8xf32> to vector<8x16x8xf32>
    %171 = arith.mulf %168, %170 : vector<8x16x8xf32>
    %172 = arith.addf %167, %171 : vector<8x16x8xf32>
    %173 = vector.extract_strided_slice %135 {offsets = [1, 0, 0], sizes = [8, 16, 8], strides = [1, 1, 1]} : vector<14x22x8xf32> to vector<8x16x8xf32>
    %174 = vector.extract_strided_slice %136 {offsets = [1, 0, 0], sizes = [1, 1, 8], strides = [1, 1, 1]} : vector<7x7x8xf32> to vector<1x1x8xf32>
    %175 = vector.broadcast %174 : vector<1x1x8xf32> to vector<8x16x8xf32>
    %176 = arith.mulf %173, %175 : vector<8x16x8xf32>
    %177 = arith.addf %172, %176 : vector<8x16x8xf32>
    %178 = vector.extract_strided_slice %135 {offsets = [1, 1, 0], sizes = [8, 16, 8], strides = [1, 1, 1]} : vector<14x22x8xf32> to vector<8x16x8xf32>
    %179 = vector.extract_strided_slice %136 {offsets = [1, 1, 0], sizes = [1, 1, 8], strides = [1, 1, 1]} : vector<7x7x8xf32> to vector<1x1x8xf32>
    %180 = vector.broadcast %179 : vector<1x1x8xf32> to vector<8x16x8xf32>
    %181 = arith.mulf %178, %180 : vector<8x16x8xf32>
    %182 = arith.addf %177, %181 : vector<8x16x8xf32>
    %183 = vector.extract_strided_slice %135 {offsets = [1, 2, 0], sizes = [8, 16, 8], strides = [1, 1, 1]} : vector<14x22x8xf32> to vector<8x16x8xf32>
    %184 = vector.extract_strided_slice %136 {offsets = [1, 2, 0], sizes = [1, 1, 8], strides = [1, 1, 1]} : vector<7x7x8xf32> to vector<1x1x8xf32>
    %185 = vector.broadcast %184 : vector<1x1x8xf32> to vector<8x16x8xf32>
    %186 = arith.mulf %183, %185 : vector<8x16x8xf32>
    %187 = arith.addf %182, %186 : vector<8x16x8xf32>
    %188 = vector.extract_strided_slice %135 {offsets = [1, 3, 0], sizes = [8, 16, 8], strides = [1, 1, 1]} : vector<14x22x8xf32> to vector<8x16x8xf32>
    %189 = vector.extract_strided_slice %136 {offsets = [1, 3, 0], sizes = [1, 1, 8], strides = [1, 1, 1]} : vector<7x7x8xf32> to vector<1x1x8xf32>
    %190 = vector.broadcast %189 : vector<1x1x8xf32> to vector<8x16x8xf32>
    %191 = arith.mulf %188, %190 : vector<8x16x8xf32>
    %192 = arith.addf %187, %191 : vector<8x16x8xf32>
    %193 = vector.extract_strided_slice %135 {offsets = [1, 4, 0], sizes = [8, 16, 8], strides = [1, 1, 1]} : vector<14x22x8xf32> to vector<8x16x8xf32>
    %194 = vector.extract_strided_slice %136 {offsets = [1, 4, 0], sizes = [1, 1, 8], strides = [1, 1, 1]} : vector<7x7x8xf32> to vector<1x1x8xf32>
    %195 = vector.broadcast %194 : vector<1x1x8xf32> to vector<8x16x8xf32>
    %196 = arith.mulf %193, %195 : vector<8x16x8xf32>
    %197 = arith.addf %192, %196 : vector<8x16x8xf32>
    %198 = vector.extract_strided_slice %135 {offsets = [1, 5, 0], sizes = [8, 16, 8], strides = [1, 1, 1]} : vector<14x22x8xf32> to vector<8x16x8xf32>
    %199 = vector.extract_strided_slice %136 {offsets = [1, 5, 0], sizes = [1, 1, 8], strides = [1, 1, 1]} : vector<7x7x8xf32> to vector<1x1x8xf32>
    %200 = vector.broadcast %199 : vector<1x1x8xf32> to vector<8x16x8xf32>
    %201 = arith.mulf %198, %200 : vector<8x16x8xf32>
    %202 = arith.addf %197, %201 : vector<8x16x8xf32>
    %203 = vector.extract_strided_slice %135 {offsets = [1, 6, 0], sizes = [8, 16, 8], strides = [1, 1, 1]} : vector<14x22x8xf32> to vector<8x16x8xf32>
    %204 = vector.extract_strided_slice %136 {offsets = [1, 6, 0], sizes = [1, 1, 8], strides = [1, 1, 1]} : vector<7x7x8xf32> to vector<1x1x8xf32>
    %205 = vector.broadcast %204 : vector<1x1x8xf32> to vector<8x16x8xf32>
    %206 = arith.mulf %203, %205 : vector<8x16x8xf32>
    %207 = arith.addf %202, %206 : vector<8x16x8xf32>
    %208 = vector.extract_strided_slice %135 {offsets = [2, 0, 0], sizes = [8, 16, 8], strides = [1, 1, 1]} : vector<14x22x8xf32> to vector<8x16x8xf32>
    %209 = vector.extract_strided_slice %136 {offsets = [2, 0, 0], sizes = [1, 1, 8], strides = [1, 1, 1]} : vector<7x7x8xf32> to vector<1x1x8xf32>
    %210 = vector.broadcast %209 : vector<1x1x8xf32> to vector<8x16x8xf32>
    %211 = arith.mulf %208, %210 : vector<8x16x8xf32>
    %212 = arith.addf %207, %211 : vector<8x16x8xf32>
    %213 = vector.extract_strided_slice %135 {offsets = [2, 1, 0], sizes = [8, 16, 8], strides = [1, 1, 1]} : vector<14x22x8xf32> to vector<8x16x8xf32>
    %214 = vector.extract_strided_slice %136 {offsets = [2, 1, 0], sizes = [1, 1, 8], strides = [1, 1, 1]} : vector<7x7x8xf32> to vector<1x1x8xf32>
    %215 = vector.broadcast %214 : vector<1x1x8xf32> to vector<8x16x8xf32>
    %216 = arith.mulf %213, %215 : vector<8x16x8xf32>
    %217 = arith.addf %212, %216 : vector<8x16x8xf32>
    %218 = vector.extract_strided_slice %135 {offsets = [2, 2, 0], sizes = [8, 16, 8], strides = [1, 1, 1]} : vector<14x22x8xf32> to vector<8x16x8xf32>
    %219 = vector.extract_strided_slice %136 {offsets = [2, 2, 0], sizes = [1, 1, 8], strides = [1, 1, 1]} : vector<7x7x8xf32> to vector<1x1x8xf32>
    %220 = vector.broadcast %219 : vector<1x1x8xf32> to vector<8x16x8xf32>
    %221 = arith.mulf %218, %220 : vector<8x16x8xf32>
    %222 = arith.addf %217, %221 : vector<8x16x8xf32>
    %223 = vector.extract_strided_slice %135 {offsets = [2, 3, 0], sizes = [8, 16, 8], strides = [1, 1, 1]} : vector<14x22x8xf32> to vector<8x16x8xf32>
    %224 = vector.extract_strided_slice %136 {offsets = [2, 3, 0], sizes = [1, 1, 8], strides = [1, 1, 1]} : vector<7x7x8xf32> to vector<1x1x8xf32>
    %225 = vector.broadcast %224 : vector<1x1x8xf32> to vector<8x16x8xf32>
    %226 = arith.mulf %223, %225 : vector<8x16x8xf32>
    %227 = arith.addf %222, %226 : vector<8x16x8xf32>
    %228 = vector.extract_strided_slice %135 {offsets = [2, 4, 0], sizes = [8, 16, 8], strides = [1, 1, 1]} : vector<14x22x8xf32> to vector<8x16x8xf32>
    %229 = vector.extract_strided_slice %136 {offsets = [2, 4, 0], sizes = [1, 1, 8], strides = [1, 1, 1]} : vector<7x7x8xf32> to vector<1x1x8xf32>
    %230 = vector.broadcast %229 : vector<1x1x8xf32> to vector<8x16x8xf32>
    %231 = arith.mulf %228, %230 : vector<8x16x8xf32>
    %232 = arith.addf %227, %231 : vector<8x16x8xf32>
    %233 = vector.extract_strided_slice %135 {offsets = [2, 5, 0], sizes = [8, 16, 8], strides = [1, 1, 1]} : vector<14x22x8xf32> to vector<8x16x8xf32>
    %234 = vector.extract_strided_slice %136 {offsets = [2, 5, 0], sizes = [1, 1, 8], strides = [1, 1, 1]} : vector<7x7x8xf32> to vector<1x1x8xf32>
    %235 = vector.broadcast %234 : vector<1x1x8xf32> to vector<8x16x8xf32>
    %236 = arith.mulf %233, %235 : vector<8x16x8xf32>
    %237 = arith.addf %232, %236 : vector<8x16x8xf32>
    %238 = vector.extract_strided_slice %135 {offsets = [2, 6, 0], sizes = [8, 16, 8], strides = [1, 1, 1]} : vector<14x22x8xf32> to vector<8x16x8xf32>
    %239 = vector.extract_strided_slice %136 {offsets = [2, 6, 0], sizes = [1, 1, 8], strides = [1, 1, 1]} : vector<7x7x8xf32> to vector<1x1x8xf32>
    %240 = vector.broadcast %239 : vector<1x1x8xf32> to vector<8x16x8xf32>
    %241 = arith.mulf %238, %240 : vector<8x16x8xf32>
    %242 = arith.addf %237, %241 : vector<8x16x8xf32>
    %243 = vector.extract_strided_slice %135 {offsets = [3, 0, 0], sizes = [8, 16, 8], strides = [1, 1, 1]} : vector<14x22x8xf32> to vector<8x16x8xf32>
    %244 = vector.extract_strided_slice %136 {offsets = [3, 0, 0], sizes = [1, 1, 8], strides = [1, 1, 1]} : vector<7x7x8xf32> to vector<1x1x8xf32>
    %245 = vector.broadcast %244 : vector<1x1x8xf32> to vector<8x16x8xf32>
    %246 = arith.mulf %243, %245 : vector<8x16x8xf32>
    %247 = arith.addf %242, %246 : vector<8x16x8xf32>
    %248 = vector.extract_strided_slice %135 {offsets = [3, 1, 0], sizes = [8, 16, 8], strides = [1, 1, 1]} : vector<14x22x8xf32> to vector<8x16x8xf32>
    %249 = vector.extract_strided_slice %136 {offsets = [3, 1, 0], sizes = [1, 1, 8], strides = [1, 1, 1]} : vector<7x7x8xf32> to vector<1x1x8xf32>
    %250 = vector.broadcast %249 : vector<1x1x8xf32> to vector<8x16x8xf32>
    %251 = arith.mulf %248, %250 : vector<8x16x8xf32>
    %252 = arith.addf %247, %251 : vector<8x16x8xf32>
    %253 = vector.extract_strided_slice %135 {offsets = [3, 2, 0], sizes = [8, 16, 8], strides = [1, 1, 1]} : vector<14x22x8xf32> to vector<8x16x8xf32>
    %254 = vector.extract_strided_slice %136 {offsets = [3, 2, 0], sizes = [1, 1, 8], strides = [1, 1, 1]} : vector<7x7x8xf32> to vector<1x1x8xf32>
    %255 = vector.broadcast %254 : vector<1x1x8xf32> to vector<8x16x8xf32>
    %256 = arith.mulf %253, %255 : vector<8x16x8xf32>
    %257 = arith.addf %252, %256 : vector<8x16x8xf32>
    %258 = vector.extract_strided_slice %135 {offsets = [3, 3, 0], sizes = [8, 16, 8], strides = [1, 1, 1]} : vector<14x22x8xf32> to vector<8x16x8xf32>
    %259 = vector.extract_strided_slice %136 {offsets = [3, 3, 0], sizes = [1, 1, 8], strides = [1, 1, 1]} : vector<7x7x8xf32> to vector<1x1x8xf32>
    %260 = vector.broadcast %259 : vector<1x1x8xf32> to vector<8x16x8xf32>
    %261 = arith.mulf %258, %260 : vector<8x16x8xf32>
    %262 = arith.addf %257, %261 : vector<8x16x8xf32>
    %263 = vector.extract_strided_slice %135 {offsets = [3, 4, 0], sizes = [8, 16, 8], strides = [1, 1, 1]} : vector<14x22x8xf32> to vector<8x16x8xf32>
    %264 = vector.extract_strided_slice %136 {offsets = [3, 4, 0], sizes = [1, 1, 8], strides = [1, 1, 1]} : vector<7x7x8xf32> to vector<1x1x8xf32>
    %265 = vector.broadcast %264 : vector<1x1x8xf32> to vector<8x16x8xf32>
    %266 = arith.mulf %263, %265 : vector<8x16x8xf32>
    %267 = arith.addf %262, %266 : vector<8x16x8xf32>
    %268 = vector.extract_strided_slice %135 {offsets = [3, 5, 0], sizes = [8, 16, 8], strides = [1, 1, 1]} : vector<14x22x8xf32> to vector<8x16x8xf32>
    %269 = vector.extract_strided_slice %136 {offsets = [3, 5, 0], sizes = [1, 1, 8], strides = [1, 1, 1]} : vector<7x7x8xf32> to vector<1x1x8xf32>
    %270 = vector.broadcast %269 : vector<1x1x8xf32> to vector<8x16x8xf32>
    %271 = arith.mulf %268, %270 : vector<8x16x8xf32>
    %272 = arith.addf %267, %271 : vector<8x16x8xf32>
    %273 = vector.extract_strided_slice %135 {offsets = [3, 6, 0], sizes = [8, 16, 8], strides = [1, 1, 1]} : vector<14x22x8xf32> to vector<8x16x8xf32>
    %274 = vector.extract_strided_slice %136 {offsets = [3, 6, 0], sizes = [1, 1, 8], strides = [1, 1, 1]} : vector<7x7x8xf32> to vector<1x1x8xf32>
    %275 = vector.broadcast %274 : vector<1x1x8xf32> to vector<8x16x8xf32>
    %276 = arith.mulf %273, %275 : vector<8x16x8xf32>
    %277 = arith.addf %272, %276 : vector<8x16x8xf32>
    %278 = vector.extract_strided_slice %135 {offsets = [4, 0, 0], sizes = [8, 16, 8], strides = [1, 1, 1]} : vector<14x22x8xf32> to vector<8x16x8xf32>
    %279 = vector.extract_strided_slice %136 {offsets = [4, 0, 0], sizes = [1, 1, 8], strides = [1, 1, 1]} : vector<7x7x8xf32> to vector<1x1x8xf32>
    %280 = vector.broadcast %279 : vector<1x1x8xf32> to vector<8x16x8xf32>
    %281 = arith.mulf %278, %280 : vector<8x16x8xf32>
    %282 = arith.addf %277, %281 : vector<8x16x8xf32>
    %283 = vector.extract_strided_slice %135 {offsets = [4, 1, 0], sizes = [8, 16, 8], strides = [1, 1, 1]} : vector<14x22x8xf32> to vector<8x16x8xf32>
    %284 = vector.extract_strided_slice %136 {offsets = [4, 1, 0], sizes = [1, 1, 8], strides = [1, 1, 1]} : vector<7x7x8xf32> to vector<1x1x8xf32>
    %285 = vector.broadcast %284 : vector<1x1x8xf32> to vector<8x16x8xf32>
    %286 = arith.mulf %283, %285 : vector<8x16x8xf32>
    %287 = arith.addf %282, %286 : vector<8x16x8xf32>
    %288 = vector.extract_strided_slice %135 {offsets = [4, 2, 0], sizes = [8, 16, 8], strides = [1, 1, 1]} : vector<14x22x8xf32> to vector<8x16x8xf32>
    %289 = vector.extract_strided_slice %136 {offsets = [4, 2, 0], sizes = [1, 1, 8], strides = [1, 1, 1]} : vector<7x7x8xf32> to vector<1x1x8xf32>
    %290 = vector.broadcast %289 : vector<1x1x8xf32> to vector<8x16x8xf32>
    %291 = arith.mulf %288, %290 : vector<8x16x8xf32>
    %292 = arith.addf %287, %291 : vector<8x16x8xf32>
    %293 = vector.extract_strided_slice %135 {offsets = [4, 3, 0], sizes = [8, 16, 8], strides = [1, 1, 1]} : vector<14x22x8xf32> to vector<8x16x8xf32>
    %294 = vector.extract_strided_slice %136 {offsets = [4, 3, 0], sizes = [1, 1, 8], strides = [1, 1, 1]} : vector<7x7x8xf32> to vector<1x1x8xf32>
    %295 = vector.broadcast %294 : vector<1x1x8xf32> to vector<8x16x8xf32>
    %296 = arith.mulf %293, %295 : vector<8x16x8xf32>
    %297 = arith.addf %292, %296 : vector<8x16x8xf32>
    %298 = vector.extract_strided_slice %135 {offsets = [4, 4, 0], sizes = [8, 16, 8], strides = [1, 1, 1]} : vector<14x22x8xf32> to vector<8x16x8xf32>
    %299 = vector.extract_strided_slice %136 {offsets = [4, 4, 0], sizes = [1, 1, 8], strides = [1, 1, 1]} : vector<7x7x8xf32> to vector<1x1x8xf32>
    %300 = vector.broadcast %299 : vector<1x1x8xf32> to vector<8x16x8xf32>
    %301 = arith.mulf %298, %300 : vector<8x16x8xf32>
    %302 = arith.addf %297, %301 : vector<8x16x8xf32>
    %303 = vector.extract_strided_slice %135 {offsets = [4, 5, 0], sizes = [8, 16, 8], strides = [1, 1, 1]} : vector<14x22x8xf32> to vector<8x16x8xf32>
    %304 = vector.extract_strided_slice %136 {offsets = [4, 5, 0], sizes = [1, 1, 8], strides = [1, 1, 1]} : vector<7x7x8xf32> to vector<1x1x8xf32>
    %305 = vector.broadcast %304 : vector<1x1x8xf32> to vector<8x16x8xf32>
    %306 = arith.mulf %303, %305 : vector<8x16x8xf32>
    %307 = arith.addf %302, %306 : vector<8x16x8xf32>
    %308 = vector.extract_strided_slice %135 {offsets = [4, 6, 0], sizes = [8, 16, 8], strides = [1, 1, 1]} : vector<14x22x8xf32> to vector<8x16x8xf32>
    %309 = vector.extract_strided_slice %136 {offsets = [4, 6, 0], sizes = [1, 1, 8], strides = [1, 1, 1]} : vector<7x7x8xf32> to vector<1x1x8xf32>
    %310 = vector.broadcast %309 : vector<1x1x8xf32> to vector<8x16x8xf32>
    %311 = arith.mulf %308, %310 : vector<8x16x8xf32>
    %312 = arith.addf %307, %311 : vector<8x16x8xf32>
    %313 = vector.extract_strided_slice %135 {offsets = [5, 0, 0], sizes = [8, 16, 8], strides = [1, 1, 1]} : vector<14x22x8xf32> to vector<8x16x8xf32>
    %314 = vector.extract_strided_slice %136 {offsets = [5, 0, 0], sizes = [1, 1, 8], strides = [1, 1, 1]} : vector<7x7x8xf32> to vector<1x1x8xf32>
    %315 = vector.broadcast %314 : vector<1x1x8xf32> to vector<8x16x8xf32>
    %316 = arith.mulf %313, %315 : vector<8x16x8xf32>
    %317 = arith.addf %312, %316 : vector<8x16x8xf32>
    %318 = vector.extract_strided_slice %135 {offsets = [5, 1, 0], sizes = [8, 16, 8], strides = [1, 1, 1]} : vector<14x22x8xf32> to vector<8x16x8xf32>
    %319 = vector.extract_strided_slice %136 {offsets = [5, 1, 0], sizes = [1, 1, 8], strides = [1, 1, 1]} : vector<7x7x8xf32> to vector<1x1x8xf32>
    %320 = vector.broadcast %319 : vector<1x1x8xf32> to vector<8x16x8xf32>
    %321 = arith.mulf %318, %320 : vector<8x16x8xf32>
    %322 = arith.addf %317, %321 : vector<8x16x8xf32>
    %323 = vector.extract_strided_slice %135 {offsets = [5, 2, 0], sizes = [8, 16, 8], strides = [1, 1, 1]} : vector<14x22x8xf32> to vector<8x16x8xf32>
    %324 = vector.extract_strided_slice %136 {offsets = [5, 2, 0], sizes = [1, 1, 8], strides = [1, 1, 1]} : vector<7x7x8xf32> to vector<1x1x8xf32>
    %325 = vector.broadcast %324 : vector<1x1x8xf32> to vector<8x16x8xf32>
    %326 = arith.mulf %323, %325 : vector<8x16x8xf32>
    %327 = arith.addf %322, %326 : vector<8x16x8xf32>
    %328 = vector.extract_strided_slice %135 {offsets = [5, 3, 0], sizes = [8, 16, 8], strides = [1, 1, 1]} : vector<14x22x8xf32> to vector<8x16x8xf32>
    %329 = vector.extract_strided_slice %136 {offsets = [5, 3, 0], sizes = [1, 1, 8], strides = [1, 1, 1]} : vector<7x7x8xf32> to vector<1x1x8xf32>
    %330 = vector.broadcast %329 : vector<1x1x8xf32> to vector<8x16x8xf32>
    %331 = arith.mulf %328, %330 : vector<8x16x8xf32>
    %332 = arith.addf %327, %331 : vector<8x16x8xf32>
    %333 = vector.extract_strided_slice %135 {offsets = [5, 4, 0], sizes = [8, 16, 8], strides = [1, 1, 1]} : vector<14x22x8xf32> to vector<8x16x8xf32>
    %334 = vector.extract_strided_slice %136 {offsets = [5, 4, 0], sizes = [1, 1, 8], strides = [1, 1, 1]} : vector<7x7x8xf32> to vector<1x1x8xf32>
    %335 = vector.broadcast %334 : vector<1x1x8xf32> to vector<8x16x8xf32>
    %336 = arith.mulf %333, %335 : vector<8x16x8xf32>
    %337 = arith.addf %332, %336 : vector<8x16x8xf32>
    %338 = vector.extract_strided_slice %135 {offsets = [5, 5, 0], sizes = [8, 16, 8], strides = [1, 1, 1]} : vector<14x22x8xf32> to vector<8x16x8xf32>
    %339 = vector.extract_strided_slice %136 {offsets = [5, 5, 0], sizes = [1, 1, 8], strides = [1, 1, 1]} : vector<7x7x8xf32> to vector<1x1x8xf32>
    %340 = vector.broadcast %339 : vector<1x1x8xf32> to vector<8x16x8xf32>
    %341 = arith.mulf %338, %340 : vector<8x16x8xf32>
    %342 = arith.addf %337, %341 : vector<8x16x8xf32>
    %343 = vector.extract_strided_slice %135 {offsets = [5, 6, 0], sizes = [8, 16, 8], strides = [1, 1, 1]} : vector<14x22x8xf32> to vector<8x16x8xf32>
    %344 = vector.extract_strided_slice %136 {offsets = [5, 6, 0], sizes = [1, 1, 8], strides = [1, 1, 1]} : vector<7x7x8xf32> to vector<1x1x8xf32>
    %345 = vector.broadcast %344 : vector<1x1x8xf32> to vector<8x16x8xf32>
    %346 = arith.mulf %343, %345 : vector<8x16x8xf32>
    %347 = arith.addf %342, %346 : vector<8x16x8xf32>
    %348 = vector.extract_strided_slice %135 {offsets = [6, 0, 0], sizes = [8, 16, 8], strides = [1, 1, 1]} : vector<14x22x8xf32> to vector<8x16x8xf32>
    %349 = vector.extract_strided_slice %136 {offsets = [6, 0, 0], sizes = [1, 1, 8], strides = [1, 1, 1]} : vector<7x7x8xf32> to vector<1x1x8xf32>
    %350 = vector.broadcast %349 : vector<1x1x8xf32> to vector<8x16x8xf32>
    %351 = arith.mulf %348, %350 : vector<8x16x8xf32>
    %352 = arith.addf %347, %351 : vector<8x16x8xf32>
    %353 = vector.extract_strided_slice %135 {offsets = [6, 1, 0], sizes = [8, 16, 8], strides = [1, 1, 1]} : vector<14x22x8xf32> to vector<8x16x8xf32>
    %354 = vector.extract_strided_slice %136 {offsets = [6, 1, 0], sizes = [1, 1, 8], strides = [1, 1, 1]} : vector<7x7x8xf32> to vector<1x1x8xf32>
    %355 = vector.broadcast %354 : vector<1x1x8xf32> to vector<8x16x8xf32>
    %356 = arith.mulf %353, %355 : vector<8x16x8xf32>
    %357 = arith.addf %352, %356 : vector<8x16x8xf32>
    %358 = vector.extract_strided_slice %135 {offsets = [6, 2, 0], sizes = [8, 16, 8], strides = [1, 1, 1]} : vector<14x22x8xf32> to vector<8x16x8xf32>
    %359 = vector.extract_strided_slice %136 {offsets = [6, 2, 0], sizes = [1, 1, 8], strides = [1, 1, 1]} : vector<7x7x8xf32> to vector<1x1x8xf32>
    %360 = vector.broadcast %359 : vector<1x1x8xf32> to vector<8x16x8xf32>
    %361 = arith.mulf %358, %360 : vector<8x16x8xf32>
    %362 = arith.addf %357, %361 : vector<8x16x8xf32>
    %363 = vector.extract_strided_slice %135 {offsets = [6, 3, 0], sizes = [8, 16, 8], strides = [1, 1, 1]} : vector<14x22x8xf32> to vector<8x16x8xf32>
    %364 = vector.extract_strided_slice %136 {offsets = [6, 3, 0], sizes = [1, 1, 8], strides = [1, 1, 1]} : vector<7x7x8xf32> to vector<1x1x8xf32>
    %365 = vector.broadcast %364 : vector<1x1x8xf32> to vector<8x16x8xf32>
    %366 = arith.mulf %363, %365 : vector<8x16x8xf32>
    %367 = arith.addf %362, %366 : vector<8x16x8xf32>
    %368 = vector.extract_strided_slice %135 {offsets = [6, 4, 0], sizes = [8, 16, 8], strides = [1, 1, 1]} : vector<14x22x8xf32> to vector<8x16x8xf32>
    %369 = vector.extract_strided_slice %136 {offsets = [6, 4, 0], sizes = [1, 1, 8], strides = [1, 1, 1]} : vector<7x7x8xf32> to vector<1x1x8xf32>
    %370 = vector.broadcast %369 : vector<1x1x8xf32> to vector<8x16x8xf32>
    %371 = arith.mulf %368, %370 : vector<8x16x8xf32>
    %372 = arith.addf %367, %371 : vector<8x16x8xf32>
    %373 = vector.extract_strided_slice %135 {offsets = [6, 5, 0], sizes = [8, 16, 8], strides = [1, 1, 1]} : vector<14x22x8xf32> to vector<8x16x8xf32>
    %374 = vector.extract_strided_slice %136 {offsets = [6, 5, 0], sizes = [1, 1, 8], strides = [1, 1, 1]} : vector<7x7x8xf32> to vector<1x1x8xf32>
    %375 = vector.broadcast %374 : vector<1x1x8xf32> to vector<8x16x8xf32>
    %376 = arith.mulf %373, %375 : vector<8x16x8xf32>
    %377 = arith.addf %372, %376 : vector<8x16x8xf32>
    %378 = vector.extract_strided_slice %135 {offsets = [6, 6, 0], sizes = [8, 16, 8], strides = [1, 1, 1]} : vector<14x22x8xf32> to vector<8x16x8xf32>
    %379 = vector.extract_strided_slice %136 {offsets = [6, 6, 0], sizes = [1, 1, 8], strides = [1, 1, 1]} : vector<7x7x8xf32> to vector<1x1x8xf32>
    %380 = vector.broadcast %379 : vector<1x1x8xf32> to vector<8x16x8xf32>
    %381 = arith.mulf %378, %380 : vector<8x16x8xf32>
    %382 = arith.addf %377, %381 : vector<8x16x8xf32>
    %383 = vector.shape_cast %382 : vector<8x16x8xf32> to vector<128x8xf32>
    %c0_47 = arith.constant 0 : index
    %c0_48 = arith.constant 0 : index
    %384 = vector.load %arg15[%c0_47, %c0_48] : memref<1x8xf32, #tpu.memory_space<vmem>>, vector<1x8xf32>
    %385 = vector.broadcast %384 : vector<1x8xf32> to vector<128x8xf32>
    %386 = arith.addf %383, %385 : vector<128x8xf32>
    %387 = arith.addf %101, %386 : vector<128x8xf32>
    %388 = tpu.transpose %387, [1, 0] : vector<128x8xf32> -> vector<8x128xf32>
    %c0_49 = arith.constant 0 : index
    %c0_50 = arith.constant 0 : index
    %c0_51 = arith.constant 0 : index
    %389 = vector.load %arg16[%c0_49, %c0_50, %c0_51] : memref<1x8x128xf32, #tpu.memory_space<vmem>>, vector<1x8x128xf32>
    %390 = vector.shape_cast %389 : vector<1x8x128xf32> to vector<8x128xf32>
    %391 = vector.shape_cast %388 : vector<8x128xf32> to vector<1x8x128xf32>
    tpu.vector_store %arg16[%c0_49, %c0_50, %c0_51], %391 {strides = array<i32>} : memref<1x8x128xf32, #tpu.memory_space<vmem>>, vector<1x8x128xf32>,
    return
  }
  func.func @transform_0(%arg0: i32, %arg1: i32) -> (i32, i32, i32, i32) {
    %c0_i32 = arith.constant 0 : i32
    %c0_i32_0 = arith.constant 0 : i32
    %c0_i32_1 = arith.constant 0 : i32
    %c0_i32_2 = arith.constant 0 : i32
    return %arg0, %c0_i32, %c0_i32_0, %c0_i32_1 : i32, i32, i32, i32
  }
  func.func @transform_1(%arg0: i32, %arg1: i32) -> (i32, i32, i32, i32) {
    %c0_i32 = arith.constant 0 : i32
    %c0_i32_0 = arith.constant 0 : i32
    %c0_i32_1 = arith.constant 0 : i32
    %c0_i32_2 = arith.constant 0 : i32
    return %arg0, %c0_i32, %c0_i32_0, %c0_i32_1 : i32, i32, i32, i32
  }
  func.func @transform_2(%arg0: i32, %arg1: i32) -> (i32, i32) {
    %c0_i32 = arith.constant 0 : i32
    %c0_i32_0 = arith.constant 0 : i32
    %c0_i32_1 = arith.constant 0 : i32
    return %c0_i32, %c0_i32_0 : i32, i32
  }
  func.func @transform_3(%arg0: i32, %arg1: i32) -> (i32, i32) {
    %c0_i32 = arith.constant 0 : i32
    %c0_i32_0 = arith.constant 0 : i32
    %c0_i32_1 = arith.constant 0 : i32
    return %c0_i32, %c0_i32_0 : i32, i32
  }
  func.func @transform_4(%arg0: i32, %arg1: i32) -> (i32, i32) {
    %c0_i32 = arith.constant 0 : i32
    %c0_i32_0 = arith.constant 0 : i32
    %c0_i32_1 = arith.constant 0 : i32
    return %c0_i32, %c0_i32_0 : i32, i32
  }
  func.func @transform_5(%arg0: i32, %arg1: i32) -> (i32, i32) {
    %c0_i32 = arith.constant 0 : i32
    %c0_i32_0 = arith.constant 0 : i32
    %c0_i32_1 = arith.constant 0 : i32
    return %c0_i32, %c0_i32_0 : i32, i32
  }
  func.func @transform_6(%arg0: i32, %arg1: i32) -> (i32, i32) {
    %c0_i32 = arith.constant 0 : i32
    %c0_i32_0 = arith.constant 0 : i32
    %c0_i32_1 = arith.constant 0 : i32
    return %c0_i32, %c0_i32_0 : i32, i32
  }
  func.func @transform_7(%arg0: i32, %arg1: i32) -> (i32, i32) {
    %c0_i32 = arith.constant 0 : i32
    %c0_i32_0 = arith.constant 0 : i32
    %c0_i32_1 = arith.constant 0 : i32
    return %c0_i32, %c0_i32_0 : i32, i32
  }
  func.func @transform_8(%arg0: i32, %arg1: i32) -> (i32, i32) {
    %c0_i32 = arith.constant 0 : i32
    %c0_i32_0 = arith.constant 0 : i32
    %c0_i32_1 = arith.constant 0 : i32
    return %c0_i32, %c0_i32_0 : i32, i32
  }
  func.func @transform_9(%arg0: i32, %arg1: i32) -> (i32, i32) {
    %c0_i32 = arith.constant 0 : i32
    %c0_i32_0 = arith.constant 0 : i32
    %c0_i32_1 = arith.constant 0 : i32
    return %c0_i32, %c0_i32_0 : i32, i32
  }
  func.func @transform_10(%arg0: i32, %arg1: i32) -> (i32, i32) {
    %c0_i32 = arith.constant 0 : i32
    %c0_i32_0 = arith.constant 0 : i32
    %c0_i32_1 = arith.constant 0 : i32
    return %c0_i32, %c0_i32_0 : i32, i32
  }
  func.func @transform_11(%arg0: i32, %arg1: i32) -> (i32, i32) {
    %c0_i32 = arith.constant 0 : i32
    %c0_i32_0 = arith.constant 0 : i32
    %c0_i32_1 = arith.constant 0 : i32
    return %c0_i32, %c0_i32_0 : i32, i32
  }
  func.func @transform_12(%arg0: i32, %arg1: i32) -> (i32, i32, i32) {
    %c0_i32 = arith.constant 0 : i32
    %c0_i32_0 = arith.constant 0 : i32
    %c0_i32_1 = arith.constant 0 : i32
    %c0_i32_2 = arith.constant 0 : i32
    return %c0_i32, %c0_i32_0, %c0_i32_1 : i32, i32, i32
  }
  func.func @transform_13(%arg0: i32, %arg1: i32) -> (i32, i32) {
    %c0_i32 = arith.constant 0 : i32
    %c0_i32_0 = arith.constant 0 : i32
    %c0_i32_1 = arith.constant 0 : i32
    return %c0_i32, %c0_i32_0 : i32, i32
  }
  func.func @transform_14(%arg0: i32, %arg1: i32) -> (i32, i32, i32) {
    %c0_i32 = arith.constant 0 : i32
    %c0_i32_0 = arith.constant 0 : i32
    return %arg0, %c0_i32, %arg1 : i32, i32, i32
  }
}

</mosaic_0001>

<llo_original>
// kernel: tpu_custom_call.1
$region0: #{tpu_custom_call.1}
  #allocation0 [shape = 'u32[]', space=smem, size = 0x4, offset = 0x4, fixed_abs, tag = 'smem constant byte address 0x4 - core index']
  #allocation1 [shape = 'u32[144,128]{1,0:T(1,128)}', space=vmem, size = 0x12000, scoped, tag = 'internal scratch']
  %s0 = inlined_call_operand.vmem [shape: f32[2,22,27,4], index: 0, kind: input, shape index: {}]
  %s1 = inlined_call_operand.vmem [shape: f32[2,22,27,8], index: 1, kind: input, shape index: {}]
  %s2 = inlined_call_operand.vmem [shape: f32[1,4], index: 2, kind: input, shape index: {}]
  %s3 = inlined_call_operand.vmem [shape: f32[1,4], index: 3, kind: input, shape index: {}]
  %s4 = inlined_call_operand.vmem [shape: bf16[36,8], index: 4, kind: input, shape index: {}]
  %s5 = inlined_call_operand.vmem [shape: f32[1,8], index: 5, kind: input, shape index: {}]
  %s6 = inlined_call_operand.vmem [shape: f32[1,8], index: 6, kind: input, shape index: {}]
  %s7 = inlined_call_operand.vmem [shape: f32[1,8], index: 7, kind: input, shape index: {}]
  %s8 = inlined_call_operand.vmem [shape: bf16[72,8], index: 8, kind: input, shape index: {}]
  %s9 = inlined_call_operand.vmem [shape: f32[1,8], index: 9, kind: input, shape index: {}]
  %s10 = inlined_call_operand.vmem [shape: f32[1,8], index: 10, kind: input, shape index: {}]
  %s11 = inlined_call_operand.vmem [shape: f32[1,8], index: 11, kind: input, shape index: {}]
  %s12 = inlined_call_operand.vmem [shape: f32[7,7,8], index: 12, kind: input, shape index: {}]
  %s13 = inlined_call_operand.vmem [shape: f32[1,8], index: 13, kind: input, shape index: {}]
  %s14 = inlined_call_operand.hbm [shape: f32[2,8,256], index: 14, kind: output, shape index: {}]
  %s15 = sld [smem:[#allocation0]]
  $region89: #{tpu_custom_call.1} parent=0
    _
  %s17 = ssub.s32 1, %s15
  %s18 = scalar_select 0, %s17, %s15
  $region1: #{tpu_custom_call.1} parent=0
    #allocation2 [shape = 'u8[8192]{0}', space=vmem, size = 0x2000, scoped, tag = 'output window, operand 0']
    #allocation3 [shape = 's32[2]{0}', space=sflag, size = 0x8, scoped, tag = 'scoped memory for tpu_custom_call.1']
    %19 = vsyncpa [#allocation3], 0
    %s20 = scalar_lea.sflag [#allocation3], 1
    %21 = vsyncpa %s20, 0
    loop: start=0, step=1, limit=6
    $region2: #{tpu_custom_call.1} parent=1 // loop_pre_header
      _
    $region3: #{tpu_custom_call.1} parent=1 // loop_header
      %s23 = sphi 0, %s27
      %p24 = scmp.ge.s32.totalorder %s23, 6
      %s30 = sphi 0, %s42
      %s31 = sphi 0, %s38
      %s32 = sphi 0, %s30
      %s33 = sphi 0, %s31
      %s34 = sphi 0, %s32
      %s35 = sphi 0, %s33
      %s45 = sphi 0, %s47
      %s48 = sphi 0, %s45
      %s49 = sphi 0, %s48
      %s65 = sphi 0, %s49
      %s71 = sphi 0, %s73
      %s74 = sphi 0, %s71
      %s75 = sphi 0, %s74
      %s91 = sphi 0, %s75
      %s95 = sphi 0, %s95
      %s97 = sphi 0, %s95
      %s98 = sphi 0, %s97
      %s112 = sphi 0, %s98
      %s116 = sphi 0, %s116
      %s118 = sphi 0, %s116
      %s119 = sphi 0, %s118
      %s133 = sphi 0, %s119
      %s137 = sphi 0, %s137
      %s139 = sphi 0, %s137
      %s140 = sphi 0, %s139
      %s154 = sphi 0, %s140
      %s158 = sphi 0, %s158
      %s160 = sphi 0, %s158
      %s161 = sphi 0, %s160
      %s175 = sphi 0, %s161
      %s179 = sphi 0, %s179
      %s181 = sphi 0, %s179
      %s182 = sphi 0, %s181
      %s196 = sphi 0, %s182
      %s200 = sphi 0, %s200
      %s202 = sphi 0, %s200
      %s203 = sphi 0, %s202
      %s217 = sphi 0, %s203
      %s221 = sphi 0, %s221
      %s223 = sphi 0, %s221
      %s224 = sphi 0, %s223
      %s238 = sphi 0, %s224
      %s242 = sphi 0, %s242
      %s244 = sphi 0, %s242
      %s245 = sphi 0, %s244
      %s259 = sphi 0, %s245
      %s263 = sphi 0, %s263
      %s265 = sphi 0, %s263
      %s266 = sphi 0, %s265
      %s280 = sphi 0, %s266
      %s284 = sphi 0, %s284
      %s286 = sphi 0, %s284
      %s287 = sphi 0, %s286
      %s301 = sphi 0, %s287
      %s305 = sphi 0, %s305
      %s307 = sphi 0, %s305
      %s308 = sphi 0, %s307
      %s322 = sphi 0, %s308
      %s326 = sphi 0, %s326
      %s328 = sphi 0, %s326
      %s329 = sphi 0, %s328
      %s343 = sphi 0, %s329
      %s351 = sphi 0, %s353
      %s354 = sphi 0, %s351
      %s355 = sphi 0, %s354
      %s371 = sphi 0, %s355
    $region4: #{tpu_custom_call.1} parent=1 // loop_header_branch
      %26 = sbr.rel (%p24) target = $region8
    $region5: #{tpu_custom_call.1} parent=1 // loop_body
      %s28 = ssub.s32 %s23, 1
      %s29 = ssub.s32 %s23, 2
      %s36 = sadd.s32 1, %s31
      %p37 = scmp.ge.s32.totalorder %s36, 2
      %s38 = scalar_select %p37, 0, %s36
      %s39 = sadd.s32 1, %s30
      %s40 = scalar_select %p37, %s39, %s30
      %p41 = scmp.ge.s32.totalorder %s40, 2
      %s42 = scalar_select %p41, 0, %s40
      %s43 = ssub.s32 %s30, %s42
      %p44 = scmp.eq.s32.totalorder %s43, 0
      %s46 = sadd.s32 %s45, 1
      %s47 = scalar_select %p44, %s45, %s46
      %p50 = pneg %p44
      %p51 = scmp.eq.s32.totalorder %s23, 3
      %p52 = por %p50, %p51
      %p53 = scmp.ne.s32.totalorder %s45, %s48
      %p54 = scmp.eq.s32.totalorder %s23, 0
      %p55 = por %p53, %p54
      %p56 = scmp.ne.s32.totalorder %s45, %s48
      %p57 = scmp.eq.s32.totalorder %s28, 3
      %p58 = por %p56, %p57
      %p59 = scmp.ne.s32.totalorder %s48, %s49
      %p60 = scmp.eq.s32.totalorder %s28, 0
      %p61 = por %p59, %p60
      %p62 = scmp.ne.s32.totalorder %s48, %s49
      %p63 = scmp.eq.s32.totalorder %s29, 3
      %p64 = por %p62, %p63
      %p66 = scmp.ne.s32.totalorder %s49, %s65
      %p67 = scmp.eq.s32.totalorder %s29, 0
      %p68 = por %p66, %p67
      %s69 = ssub.s32 %s30, %s42
      %p70 = scmp.eq.s32.totalorder %s69, 0
      %s72 = sadd.s32 %s71, 1
      %s73 = scalar_select %p70, %s71, %s72
      %p76 = pneg %p70
      %p77 = scmp.eq.s32.totalorder %s23, 3
      %p78 = por %p76, %p77
      %p79 = scmp.ne.s32.totalorder %s71, %s74
      %p80 = scmp.eq.s32.totalorder %s23, 0
      %p81 = por %p79, %p80
      %p82 = scmp.ne.s32.totalorder %s71, %s74
      %p83 = scmp.eq.s32.totalorder %s28, 3
      %p84 = por %p82, %p83
      %p85 = scmp.ne.s32.totalorder %s74, %s75
      %p86 = scmp.eq.s32.totalorder %s28, 0
      %p87 = por %p85, %p86
      %p88 = scmp.ne.s32.totalorder %s74, %s75
      %p89 = scmp.eq.s32.totalorder %s29, 3
      %p90 = por %p88, %p89
      %p92 = scmp.ne.s32.totalorder %s75, %s91
      %p93 = scmp.eq.s32.totalorder %s29, 0
      %p94 = por %p92, %p93
      %s96 = sadd.s32 %s95, 1
      %p99 = scmp.eq.s32.totalorder %s23, 3
      %p100 = scmp.ne.s32.totalorder %s95, %s97
      %p101 = scmp.eq.s32.totalorder %s23, 0
      %p102 = por %p100, %p101
      %p103 = scmp.ne.s32.totalorder %s95, %s97
      %p104 = scmp.eq.s32.totalorder %s28, 3
      %p105 = por %p103, %p104
      %p106 = scmp.ne.s32.totalorder %s97, %s98
      %p107 = scmp.eq.s32.totalorder %s28, 0
      %p108 = por %p106, %p107
      %p109 = scmp.ne.s32.totalorder %s97, %s98
      %p110 = scmp.eq.s32.totalorder %s29, 3
      %p111 = por %p109, %p110
      %p113 = scmp.ne.s32.totalorder %s98, %s112
      %p114 = scmp.eq.s32.totalorder %s29, 0
      %p115 = por %p113, %p114
      %s117 = sadd.s32 %s116, 1
      %p120 = scmp.eq.s32.totalorder %s23, 3
      %p121 = scmp.ne.s32.totalorder %s116, %s118
      %p122 = scmp.eq.s32.totalorder %s23, 0
      %p123 = por %p121, %p122
      %p124 = scmp.ne.s32.totalorder %s116, %s118
      %p125 = scmp.eq.s32.totalorder %s28, 3
      %p126 = por %p124, %p125
      %p127 = scmp.ne.s32.totalorder %s118, %s119
      %p128 = scmp.eq.s32.totalorder %s28, 0
      %p129 = por %p127, %p128
      %p130 = scmp.ne.s32.totalorder %s118, %s119
      %p131 = scmp.eq.s32.totalorder %s29, 3
      %p132 = por %p130, %p131
      %p134 = scmp.ne.s32.totalorder %s119, %s133
      %p135 = scmp.eq.s32.totalorder %s29, 0
      %p136 = por %p134, %p135
      %s138 = sadd.s32 %s137, 1
      %p141 = scmp.eq.s32.totalorder %s23, 3
      %p142 = scmp.ne.s32.totalorder %s137, %s139
      %p143 = scmp.eq.s32.totalorder %s23, 0
      %p144 = por %p142, %p143
      %p145 = scmp.ne.s32.totalorder %s137, %s139
      %p146 = scmp.eq.s32.totalorder %s28, 3
      %p147 = por %p145, %p146
      %p148 = scmp.ne.s32.totalorder %s139, %s140
      %p149 = scmp.eq.s32.totalorder %s28, 0
      %p150 = por %p148, %p149
      %p151 = scmp.ne.s32.totalorder %s139, %s140
      %p152 = scmp.eq.s32.totalorder %s29, 3
      %p153 = por %p151, %p152
      %p155 = scmp.ne.s32.totalorder %s140, %s154
      %p156 = scmp.eq.s32.totalorder %s29, 0
      %p157 = por %p155, %p156
      %s159 = sadd.s32 %s158, 1
      %p162 = scmp.eq.s32.totalorder %s23, 3
      %p163 = scmp.ne.s32.totalorder %s158, %s160
      %p164 = scmp.eq.s32.totalorder %s23, 0
      %p165 = por %p163, %p164
      %p166 = scmp.ne.s32.totalorder %s158, %s160
      %p167 = scmp.eq.s32.totalorder %s28, 3
      %p168 = por %p166, %p167
      %p169 = scmp.ne.s32.totalorder %s160, %s161
      %p170 = scmp.eq.s32.totalorder %s28, 0
      %p171 = por %p169, %p170
      %p172 = scmp.ne.s32.totalorder %s160, %s161
      %p173 = scmp.eq.s32.totalorder %s29, 3
      %p174 = por %p172, %p173
      %p176 = scmp.ne.s32.totalorder %s161, %s175
      %p177 = scmp.eq.s32.totalorder %s29, 0
      %p178 = por %p176, %p177
      %s180 = sadd.s32 %s179, 1
      %p183 = scmp.eq.s32.totalorder %s23, 3
      %p184 = scmp.ne.s32.totalorder %s179, %s181
      %p185 = scmp.eq.s32.totalorder %s23, 0
      %p186 = por %p184, %p185
      %p187 = scmp.ne.s32.totalorder %s179, %s181
      %p188 = scmp.eq.s32.totalorder %s28, 3
      %p189 = por %p187, %p188
      %p190 = scmp.ne.s32.totalorder %s181, %s182
      %p191 = scmp.eq.s32.totalorder %s28, 0
      %p192 = por %p190, %p191
      %p193 = scmp.ne.s32.totalorder %s181, %s182
      %p194 = scmp.eq.s32.totalorder %s29, 3
      %p195 = por %p193, %p194
      %p197 = scmp.ne.s32.totalorder %s182, %s196
      %p198 = scmp.eq.s32.totalorder %s29, 0
      %p199 = por %p197, %p198
      %s201 = sadd.s32 %s200, 1
      %p204 = scmp.eq.s32.totalorder %s23, 3
      %p205 = scmp.ne.s32.totalorder %s200, %s202
      %p206 = scmp.eq.s32.totalorder %s23, 0
      %p207 = por %p205, %p206
      %p208 = scmp.ne.s32.totalorder %s200, %s202
      %p209 = scmp.eq.s32.totalorder %s28, 3
      %p210 = por %p208, %p209
      %p211 = scmp.ne.s32.totalorder %s202, %s203
      %p212 = scmp.eq.s32.totalorder %s28, 0
      %p213 = por %p211, %p212
      %p214 = scmp.ne.s32.totalorder %s202, %s203
      %p215 = scmp.eq.s32.totalorder %s29, 3
      %p216 = por %p214, %p215
      %p218 = scmp.ne.s32.totalorder %s203, %s217
      %p219 = scmp.eq.s32.totalorder %s29, 0
      %p220 = por %p218, %p219
      %s222 = sadd.s32 %s221, 1
      %p225 = scmp.eq.s32.totalorder %s23, 3
      %p226 = scmp.ne.s32.totalorder %s221, %s223
      %p227 = scmp.eq.s32.totalorder %s23, 0
      %p228 = por %p226, %p227
      %p229 = scmp.ne.s32.totalorder %s221, %s223
      %p230 = scmp.eq.s32.totalorder %s28, 3
      %p231 = por %p229, %p230
      %p232 = scmp.ne.s32.totalorder %s223, %s224
      %p233 = scmp.eq.s32.totalorder %s28, 0
      %p234 = por %p232, %p233
      %p235 = scmp.ne.s32.totalorder %s223, %s224
      %p236 = scmp.eq.s32.totalorder %s29, 3
      %p237 = por %p235, %p236
      %p239 = scmp.ne.s32.totalorder %s224, %s238
      %p240 = scmp.eq.s32.totalorder %s29, 0
      %p241 = por %p239, %p240
      %s243 = sadd.s32 %s242, 1
      %p246 = scmp.eq.s32.totalorder %s23, 3
      %p247 = scmp.ne.s32.totalorder %s242, %s244
      %p248 = scmp.eq.s32.totalorder %s23, 0
      %p249 = por %p247, %p248
      %p250 = scmp.ne.s32.totalorder %s242, %s244
      %p251 = scmp.eq.s32.totalorder %s28, 3
      %p252 = por %p250, %p251
      %p253 = scmp.ne.s32.totalorder %s244, %s245
      %p254 = scmp.eq.s32.totalorder %s28, 0
      %p255 = por %p253, %p254
      %p256 = scmp.ne.s32.totalorder %s244, %s245
      %p257 = scmp.eq.s32.totalorder %s29, 3
      %p258 = por %p256, %p257
      %p260 = scmp.ne.s32.totalorder %s245, %s259
      %p261 = scmp.eq.s32.totalorder %s29, 0
      %p262 = por %p260, %p261
      %s264 = sadd.s32 %s263, 1
      %p267 = scmp.eq.s32.totalorder %s23, 3
      %p268 = scmp.ne.s32.totalorder %s263, %s265
      %p269 = scmp.eq.s32.totalorder %s23, 0
      %p270 = por %p268, %p269
      %p271 = scmp.ne.s32.totalorder %s263, %s265
      %p272 = scmp.eq.s32.totalorder %s28, 3
      %p273 = por %p271, %p272
      %p274 = scmp.ne.s32.totalorder %s265, %s266
      %p275 = scmp.eq.s32.totalorder %s28, 0
      %p276 = por %p274, %p275
      %p277 = scmp.ne.s32.totalorder %s265, %s266
      %p278 = scmp.eq.s32.totalorder %s29, 3
      %p279 = por %p277, %p278
      %p281 = scmp.ne.s32.totalorder %s266, %s280
      %p282 = scmp.eq.s32.totalorder %s29, 0
      %p283 = por %p281, %p282
      %s285 = sadd.s32 %s284, 1
      %p288 = scmp.eq.s32.totalorder %s23, 3
      %p289 = scmp.ne.s32.totalorder %s284, %s286
      %p290 = scmp.eq.s32.totalorder %s23, 0
      %p291 = por %p289, %p290
      %p292 = scmp.ne.s32.totalorder %s284, %s286
      %p293 = scmp.eq.s32.totalorder %s28, 3
      %p294 = por %p292, %p293
      %p295 = scmp.ne.s32.totalorder %s286, %s287
      %p296 = scmp.eq.s32.totalorder %s28, 0
      %p297 = por %p295, %p296
      %p298 = scmp.ne.s32.totalorder %s286, %s287
      %p299 = scmp.eq.s32.totalorder %s29, 3
      %p300 = por %p298, %p299
      %p302 = scmp.ne.s32.totalorder %s287, %s301
      %p303 = scmp.eq.s32.totalorder %s29, 0
      %p304 = por %p302, %p303
      %s306 = sadd.s32 %s305, 1
      %p309 = scmp.eq.s32.totalorder %s23, 3
      %p310 = scmp.ne.s32.totalorder %s305, %s307
      %p311 = scmp.eq.s32.totalorder %s23, 0
      %p312 = por %p310, %p311
      %p313 = scmp.ne.s32.totalorder %s305, %s307
      %p314 = scmp.eq.s32.totalorder %s28, 3
      %p315 = por %p313, %p314
      %p316 = scmp.ne.s32.totalorder %s307, %s308
      %p317 = scmp.eq.s32.totalorder %s28, 0
      %p318 = por %p316, %p317
      %p319 = scmp.ne.s32.totalorder %s307, %s308
      %p320 = scmp.eq.s32.totalorder %s29, 3
      %p321 = por %p319, %p320
      %p323 = scmp.ne.s32.totalorder %s308, %s322
      %p324 = scmp.eq.s32.totalorder %s29, 0
      %p325 = por %p323, %p324
      %s327 = sadd.s32 %s326, 1
      %p330 = scmp.eq.s32.totalorder %s23, 3
      %p331 = scmp.ne.s32.totalorder %s326, %s328
      %p332 = scmp.eq.s32.totalorder %s23, 0
      %p333 = por %p331, %p332
      %p334 = scmp.ne.s32.totalorder %s326, %s328
      %p335 = scmp.eq.s32.totalorder %s28, 3
      %p336 = por %p334, %p335
      %p337 = scmp.ne.s32.totalorder %s328, %s329
      %p338 = scmp.eq.s32.totalorder %s28, 0
      %p339 = por %p337, %p338
      %p340 = scmp.ne.s32.totalorder %s328, %s329
      %p341 = scmp.eq.s32.totalorder %s29, 3
      %p342 = por %p340, %p341
      %p344 = scmp.ne.s32.totalorder %s329, %s343
      %p345 = scmp.eq.s32.totalorder %s29, 0
      %p346 = por %p344, %p345
      %s347 = ssub.s32 %s30, %s42
      %s348 = ssub.s32 %s31, %s38
      %s349 = sor.u32 %s347, %s348
      %p350 = scmp.eq.s32.totalorder %s349, 0
      %s352 = sadd.s32 %s351, 1
      %s353 = scalar_select %p350, %s351, %s352
      %p356 = pneg %p350
      %p357 = scmp.eq.s32.totalorder %s23, 3
      %p358 = por %p356, %p357
      %p359 = scmp.ne.s32.totalorder %s351, %s354
      %p360 = scmp.eq.s32.totalorder %s23, 0
      %p361 = por %p359, %p360
      %p362 = scmp.ne.s32.totalorder %s351, %s354
      %p363 = scmp.eq.s32.totalorder %s28, 3
      %p364 = por %p362, %p363
      %p365 = scmp.ne.s32.totalorder %s354, %s355
      %p366 = scmp.eq.s32.totalorder %s28, 0
      %p367 = por %p365, %p366
      %p368 = scmp.ne.s32.totalorder %s354, %s355
      %p369 = scmp.eq.s32.totalorder %s29, 3
      %p370 = por %p368, %p369
      %p372 = scmp.ne.s32.totalorder %s355, %s371
      %p373 = scmp.eq.s32.totalorder %s29, 0
      %p374 = por %p372, %p373
      %p375 = scmp.le.s32.totalorder 1, %s23
      %p376 = scmp.lt.s32.totalorder %s23, 5
      %p377 = pnand %p375, %p376
      %p378 = pneg %p377
      // Predicated region
      $region9: #{tpu_custom_call.1} parent=5 // pred_check
        _
      $region10: #{tpu_custom_call.1} parent=5 // pred_check_branch
        %380 = sbr.rel (%p377) target = $region12
      $region11: #{tpu_custom_call.1} parent=5 // pred_region
        %s381 = ssub.s32 %s23, 1
        // Predicated region
        $region13: #{tpu_custom_call.1} parent=11 // pred_check
          %p382 = pneg %p108
        $region14: #{tpu_custom_call.1} parent=11 // pred_check_branch
          %384 = sbr.rel (%p382) target = $region16
        $region15: #{tpu_custom_call.1} parent=11 // pred_region
          _
        $region16: #{tpu_custom_call.1} parent=11 // pred_fallthru
          _
        // Predicated region
        $region17: #{tpu_custom_call.1} parent=11 // pred_check
          %p385 = pneg %p129
        $region18: #{tpu_custom_call.1} parent=11 // pred_check_branch
          %387 = sbr.rel (%p385) target = $region20
        $region19: #{tpu_custom_call.1} parent=11 // pred_region
          _
        $region20: #{tpu_custom_call.1} parent=11 // pred_fallthru
          _
        // Predicated region
        $region21: #{tpu_custom_call.1} parent=11 // pred_check
          %p388 = pneg %p150
        $region22: #{tpu_custom_call.1} parent=11 // pred_check_branch
          %390 = sbr.rel (%p388) target = $region24
        $region23: #{tpu_custom_call.1} parent=11 // pred_region
          _
        $region24: #{tpu_custom_call.1} parent=11 // pred_fallthru
          _
        // Predicated region
        $region25: #{tpu_custom_call.1} parent=11 // pred_check
          %p391 = pneg %p171
        $region26: #{tpu_custom_call.1} parent=11 // pred_check_branch
          %393 = sbr.rel (%p391) target = $region28
        $region27: #{tpu_custom_call.1} parent=11 // pred_region
          _
        $region28: #{tpu_custom_call.1} parent=11 // pred_fallthru
          _
        // Predicated region
        $region29: #{tpu_custom_call.1} parent=11 // pred_check
          %p394 = pneg %p192
        $region30: #{tpu_custom_call.1} parent=11 // pred_check_branch
          %396 = sbr.rel (%p394) target = $region32
        $region31: #{tpu_custom_call.1} parent=11 // pred_region
          _
        $region32: #{tpu_custom_call.1} parent=11 // pred_fallthru
          _
        // Predicated region
        $region33: #{tpu_custom_call.1} parent=11 // pred_check
          %p397 = pneg %p213
        $region34: #{tpu_custom_call.1} parent=11 // pred_check_branch
          %399 = sbr.rel (%p397) target = $region36
        $region35: #{tpu_custom_call.1} parent=11 // pred_region
          _
        $region36: #{tpu_custom_call.1} parent=11 // pred_fallthru
          _
        // Predicated region
        $region37: #{tpu_custom_call.1} parent=11 // pred_check
          %p400 = pneg %p234
        $region38: #{tpu_custom_call.1} parent=11 // pred_check_branch
          %402 = sbr.rel (%p400) target = $region40
        $region39: #{tpu_custom_call.1} parent=11 // pred_region
          _
        $region40: #{tpu_custom_call.1} parent=11 // pred_fallthru
          _
        // Predicated region
        $region41: #{tpu_custom_call.1} parent=11 // pred_check
          %p403 = pneg %p255
        $region42: #{tpu_custom_call.1} parent=11 // pred_check_branch
          %405 = sbr.rel (%p403) target = $region44
        $region43: #{tpu_custom_call.1} parent=11 // pred_region
          _
        $region44: #{tpu_custom_call.1} parent=11 // pred_fallthru
          _
        // Predicated region
        $region45: #{tpu_custom_call.1} parent=11 // pred_check
          %p406 = pneg %p276
        $region46: #{tpu_custom_call.1} parent=11 // pred_check_branch
          %408 = sbr.rel (%p406) target = $region48
        $region47: #{tpu_custom_call.1} parent=11 // pred_region
          _
        $region48: #{tpu_custom_call.1} parent=11 // pred_fallthru
          _
        // Predicated region
        $region49: #{tpu_custom_call.1} parent=11 // pred_check
          %p409 = pneg %p297
        $region50: #{tpu_custom_call.1} parent=11 // pred_check_branch
          %411 = sbr.rel (%p409) target = $region52
        $region51: #{tpu_custom_call.1} parent=11 // pred_region
          _
        $region52: #{tpu_custom_call.1} parent=11 // pred_fallthru
          _
        // Predicated region
        $region53: #{tpu_custom_call.1} parent=11 // pred_check
          %p412 = pneg %p318
        $region54: #{tpu_custom_call.1} parent=11 // pred_check_branch
          %414 = sbr.rel (%p412) target = $region56
        $region55: #{tpu_custom_call.1} parent=11 // pred_region
          _
        $region56: #{tpu_custom_call.1} parent=11 // pred_fallthru
          _
        // Predicated region
        $region57: #{tpu_custom_call.1} parent=11 // pred_check
          %p415 = pneg %p339
        $region58: #{tpu_custom_call.1} parent=11 // pred_check_branch
          %417 = sbr.rel (%p415) target = $region60
        $region59: #{tpu_custom_call.1} parent=11 // pred_region
          _
        $region60: #{tpu_custom_call.1} parent=11 // pred_fallthru
          _
      $region12: #{tpu_custom_call.1} parent=5 // pred_fallthru
        _
      %p418 = scmp.lt.s32.totalorder %s23, 4
      // Predicated region
      $region61: #{tpu_custom_call.1} parent=5 // pred_check
        %p419 = pneg %p418
      $region62: #{tpu_custom_call.1} parent=5 // pred_check_branch
        %421 = sbr.rel (%p419) target = $region64
      $region63: #{tpu_custom_call.1} parent=5 // pred_region
        // Predicated region
        $region65: #{tpu_custom_call.1} parent=63 // pred_check
          %p422 = pneg %p55
        $region66: #{tpu_custom_call.1} parent=63 // pred_check_branch
          %424 = sbr.rel (%p422) target = $region68
        $region67: #{tpu_custom_call.1} parent=63 // pred_region
          %p425 = scmp.lt.s32.totalorder %s30, 1
          %s426 = scalar_select %p425, %s30, 1
          %s427 = smul.addr %s426, 88
          %s428 = smul.addr %s427, 8
          %s429 = scalar_lea.vmem %s0, %s428
        $region68: #{tpu_custom_call.1} parent=63 // pred_fallthru
          _
        // Predicated region
        $region69: #{tpu_custom_call.1} parent=63 // pred_check
          %p430 = pneg %p81
        $region70: #{tpu_custom_call.1} parent=63 // pred_check_branch
          %432 = sbr.rel (%p430) target = $region72
        $region71: #{tpu_custom_call.1} parent=63 // pred_region
          %p433 = scmp.lt.s32.totalorder %s30, 1
          %s434 = scalar_select %p433, %s30, 1
          %s435 = smul.addr %s434, 88
          %s436 = smul.addr %s435, 8
          %s437 = scalar_lea.vmem %s1, %s436
        $region72: #{tpu_custom_call.1} parent=63 // pred_fallthru
          _
      $region64: #{tpu_custom_call.1} parent=5 // pred_fallthru
        _
      %p438 = scmp.le.s32.totalorder 1, %s23
      %p439 = scmp.lt.s32.totalorder %s23, 5
      %p440 = pnand %p438, %p439
      %p441 = pneg %p440
      // Predicated region
      $region73: #{tpu_custom_call.1} parent=5 // pred_check
        _
      $region74: #{tpu_custom_call.1} parent=5 // pred_check_branch
        %443 = sbr.rel (%p440) target = $region76
      $region75: #{tpu_custom_call.1} parent=5 // pred_region
        %s444 = ssub.s32 %s23, 1
        %p445 = scmp.lt.s32.totalorder %s32, 1
        %s446 = scalar_select %p445, %s32, 1
        %s447 = smul.addr %s446, 88
        %s448 = smul.addr %s447, 8
        %s449 = scalar_lea.vmem %s0, %s448
        %p450 = pneg %p61
        %p451 = pneg %p58
        %p452 = scmp.lt.s32.totalorder %s32, 1
        %s453 = scalar_select %p452, %s32, 1
        %s454 = smul.addr %s453, 88
        %s455 = smul.addr %s454, 8
        %s456 = scalar_lea.vmem %s1, %s455
        %p457 = pneg %p87
        %p458 = pneg %p84
        %p459 = pneg %p108
        %p460 = pneg %p105
        %p461 = pneg %p129
        %p462 = pneg %p126
        %p463 = pneg %p150
        %p464 = pneg %p147
        %p465 = pneg %p171
        %p466 = pneg %p168
        %p467 = pneg %p192
        %p468 = pneg %p189
        %p469 = pneg %p213
        %p470 = pneg %p210
        %p471 = pneg %p234
        %p472 = pneg %p231
        %p473 = pneg %p255
        %p474 = pneg %p252
        %p475 = pneg %p276
        %p476 = pneg %p273
        %p477 = pneg %p297
        %p478 = pneg %p294
        %p479 = pneg %p318
        %p480 = pneg %p315
        %p481 = pneg %p339
        %p482 = pneg %p336
        %p483 = pneg %p367
        %p484 = pneg %p364
        %s485 = sand.u32 %s354, 1
        %s486 = scalar_lea.sflag [#allocation3], %s485
        %s487 = sand.u32 %s354, 1
        %s488 = smul.addr %s487, 8
        %s489 = scalar_lea.vmem [#allocation2], %s488
        %p490 = scmp.lt.s32.totalorder %s32, 1
        %s491 = scalar_select %p490, %s32, 1
        %s492 = smul.addr %s491, 88
        %s493 = smul.addr %s492, 8
        %s494 = scalar_lea.vmem %s0, %s493
        %p495 = scmp.lt.s32.totalorder %s32, 1
        %s496 = scalar_select %p495, %s32, 1
        %s497 = smul.addr %s496, 88
        %s498 = smul.addr %s497, 8
        %s499 = scalar_lea.vmem %s1, %s498
        %s501 = smul.u32 %s33, 8
        %s502 = sadd.s32 %s501, 1
        %s503 = smul.u32 %s502, 32
        %s504 = scalar_lea.vmem %s494, %s503
        %v505 = vld [vmem:[%s504] sm:$0xff]
        %v506 = vld [vmem:[%s504 + $0x8] sm:$0xff]
        %v507 = vld [vmem:[%s504 + $0x10] sm:$0xff]
        %v508 = vld [vmem:[%s504 + $0x18] sm:$0x7]
        %v509 = vld [vmem:[%s504 + $0x20] sm:$0xff]
        %v510 = vld [vmem:[%s504 + $0x28] sm:$0xff]
        %v511 = vld [vmem:[%s504 + $0x30] sm:$0xff]
        %v512 = vld [vmem:[%s504 + $0x38] sm:$0x7]
        %v513 = vld [vmem:[%s504 + $0x40] sm:$0xff]
        %v514 = vld [vmem:[%s504 + $0x48] sm:$0xff]
        %v515 = vld [vmem:[%s504 + $0x50] sm:$0xff]
        %v516 = vld [vmem:[%s504 + $0x58] sm:$0x7]
        %v517 = vld [vmem:[%s504 + $0x60] sm:$0xff]
        %v518 = vld [vmem:[%s504 + $0x68] sm:$0xff]
        %v519 = vld [vmem:[%s504 + $0x70] sm:$0xff]
        %v520 = vld [vmem:[%s504 + $0x78] sm:$0x7]
        %v521 = vld [vmem:[%s504 + $0x80] sm:$0xff]
        %v522 = vld [vmem:[%s504 + $0x88] sm:$0xff]
        %v523 = vld [vmem:[%s504 + $0x90] sm:$0xff]
        %v524 = vld [vmem:[%s504 + $0x98] sm:$0x7]
        %v525 = vld [vmem:[%s504 + $0xa0] sm:$0xff]
        %v526 = vld [vmem:[%s504 + $0xa8] sm:$0xff]
        %v527 = vld [vmem:[%s504 + $0xb0] sm:$0xff]
        %v528 = vld [vmem:[%s504 + $0xb8] sm:$0x7]
        %v529 = vld [vmem:[%s504 + $0xc0] sm:$0xff]
        %v530 = vld [vmem:[%s504 + $0xc8] sm:$0xff]
        %v531 = vld [vmem:[%s504 + $0xd0] sm:$0xff]
        %v532 = vld [vmem:[%s504 + $0xd8] sm:$0x7]
        %v533 = vld [vmem:[%s504 + $0xe0] sm:$0xff]
        %v534 = vld [vmem:[%s504 + $0xe8] sm:$0xff]
        %v535 = vld [vmem:[%s504 + $0xf0] sm:$0xff]
        %v536 = vld [vmem:[%s504 + $0xf8] sm:$0x7]
        %v537 = vld [vmem:[%s504 + $0x100] sm:$0xff]
        %v538 = vld [vmem:[%s504 + $0x108] sm:$0xff]
        %v539 = vld [vmem:[%s504 + $0x110] sm:$0xff]
        %v540 = vld [vmem:[%s504 + $0x118] sm:$0x7]
        %v541 = vld [vmem:[%s504 + $0x120] sm:$0xff]
        %v542 = vld [vmem:[%s504 + $0x128] sm:$0xff]
        %v543 = vld [vmem:[%s504 + $0x130] sm:$0xff]
        %v544 = vld [vmem:[%s504 + $0x138] sm:$0x7]
        %v545 = vld [vmem:[%s504 + $0x140] sm:$0xff]
        %v546 = vld [vmem:[%s504 + $0x148] sm:$0xff]
        %v547 = vld [vmem:[%s504 + $0x150] sm:$0xff]
        %v548 = vld [vmem:[%s504 + $0x158] sm:$0x7]
        %v549 = vld [vmem:[%s504 + $0x160] sm:$0xff]
        %v550 = vld [vmem:[%s504 + $0x168] sm:$0xff]
        %v551 = vld [vmem:[%s504 + $0x170] sm:$0xff]
        %v552 = vld [vmem:[%s504 + $0x178] sm:$0x7]
        %s553 = ssub.s32 %s501, 2
        %v554 = vld [vmem:[%s2] sm:$0x1]
        %v556 = vlaneseq
        %v557 = vshrl.u32 %v556, 7
        %v558 = vsub.s32 0, %v557
        %v559 = vrot.slane %v554, %v558
        %v561 = vmul.f32 %v505, %v559
        %v562 = vmul.f32 %v506, %v559
        %v563 = vmul.f32 %v507, %v559
        %v564 = vmul.f32 %v508, %v559
        %v565 = vmul.f32 %v509, %v559
        %v566 = vmul.f32 %v510, %v559
        %v567 = vmul.f32 %v511, %v559
        %v568 = vmul.f32 %v512, %v559
        %v569 = vmul.f32 %v513, %v559
        %v570 = vmul.f32 %v514, %v559
        %v571 = vmul.f32 %v515, %v559
        %v572 = vmul.f32 %v516, %v559
        %v573 = vmul.f32 %v517, %v559
        %v574 = vmul.f32 %v518, %v559
        %v575 = vmul.f32 %v519, %v559
        %v576 = vmul.f32 %v520, %v559
        %v577 = vmul.f32 %v521, %v559
        %v578 = vmul.f32 %v522, %v559
        %v579 = vmul.f32 %v523, %v559
        %v580 = vmul.f32 %v524, %v559
        %v581 = vmul.f32 %v525, %v559
        %v582 = vmul.f32 %v526, %v559
        %v583 = vmul.f32 %v527, %v559
        %v584 = vmul.f32 %v528, %v559
        %v585 = vmul.f32 %v529, %v559
        %v586 = vmul.f32 %v530, %v559
        %v587 = vmul.f32 %v531, %v559
        %v588 = vmul.f32 %v532, %v559
        %v589 = vmul.f32 %v533, %v559
        %v590 = vmul.f32 %v534, %v559
        %v591 = vmul.f32 %v535, %v559
        %v592 = vmul.f32 %v536, %v559
        %v593 = vmul.f32 %v537, %v559
        %v594 = vmul.f32 %v538, %v559
        %v595 = vmul.f32 %v539, %v559
        %v596 = vmul.f32 %v540, %v559
        %v597 = vmul.f32 %v541, %v559
        %v598 = vmul.f32 %v542, %v559
        %v599 = vmul.f32 %v543, %v559
        %v600 = vmul.f32 %v544, %v559
        %v601 = vmul.f32 %v545, %v559
        %v602 = vmul.f32 %v546, %v559
        %v603 = vmul.f32 %v547, %v559
        %v604 = vmul.f32 %v548, %v559
        %v605 = vmul.f32 %v549, %v559
        %v606 = vmul.f32 %v550, %v559
        %v607 = vmul.f32 %v551, %v559
        %v608 = vmul.f32 %v552, %v559
        %v609 = vld [vmem:[%s3] sm:$0x1]
        %v611 = vlaneseq
        %v612 = vshrl.u32 %v611, 7
        %v613 = vsub.s32 0, %v612
        %v614 = vrot.slane %v609, %v613
        %v616 = vadd.f32 %v561, %v614
        %v617 = vadd.f32 %v562, %v614
        %v618 = vadd.f32 %v563, %v614
        %v619 = vadd.f32 %v564, %v614
        %v620 = vadd.f32 %v565, %v614
        %v621 = vadd.f32 %v566, %v614
        %v622 = vadd.f32 %v567, %v614
        %v623 = vadd.f32 %v568, %v614
        %v624 = vadd.f32 %v569, %v614
        %v625 = vadd.f32 %v570, %v614
        %v626 = vadd.f32 %v571, %v614
        %v627 = vadd.f32 %v572, %v614
        %v628 = vadd.f32 %v573, %v614
        %v629 = vadd.f32 %v574, %v614
        %v630 = vadd.f32 %v575, %v614
        %v631 = vadd.f32 %v576, %v614
        %v632 = vadd.f32 %v577, %v614
        %v633 = vadd.f32 %v578, %v614
        %v634 = vadd.f32 %v579, %v614
        %v635 = vadd.f32 %v580, %v614
        %v636 = vadd.f32 %v581, %v614
        %v637 = vadd.f32 %v582, %v614
        %v638 = vadd.f32 %v583, %v614
        %v639 = vadd.f32 %v584, %v614
        %v640 = vadd.f32 %v585, %v614
        %v641 = vadd.f32 %v586, %v614
        %v642 = vadd.f32 %v587, %v614
        %v643 = vadd.f32 %v588, %v614
        %v644 = vadd.f32 %v589, %v614
        %v645 = vadd.f32 %v590, %v614
        %v646 = vadd.f32 %v591, %v614
        %v647 = vadd.f32 %v592, %v614
        %v648 = vadd.f32 %v593, %v614
        %v649 = vadd.f32 %v594, %v614
        %v650 = vadd.f32 %v595, %v614
        %v651 = vadd.f32 %v596, %v614
        %v652 = vadd.f32 %v597, %v614
        %v653 = vadd.f32 %v598, %v614
        %v654 = vadd.f32 %v599, %v614
        %v655 = vadd.f32 %v600, %v614
        %v656 = vadd.f32 %v601, %v614
        %v657 = vadd.f32 %v602, %v614
        %v658 = vadd.f32 %v603, %v614
        %v659 = vadd.f32 %v604, %v614
        %v660 = vadd.f32 %v605, %v614
        %v661 = vadd.f32 %v606, %v614
        %v662 = vadd.f32 %v607, %v614
        %v663 = vadd.f32 %v608, %v614
        %v664 = vmax.f32 %v616, 0.0
        %v665 = vmax.f32 %v617, 0.0
        %v666 = vmax.f32 %v618, 0.0
        %v667 = vmax.f32 %v619, 0.0
        %v668 = vmax.f32 %v620, 0.0
        %v669 = vmax.f32 %v621, 0.0
        %v670 = vmax.f32 %v622, 0.0
        %v671 = vmax.f32 %v623, 0.0
        %v672 = vmax.f32 %v624, 0.0
        %v673 = vmax.f32 %v625, 0.0
        %v674 = vmax.f32 %v626, 0.0
        %v675 = vmax.f32 %v627, 0.0
        %v676 = vmax.f32 %v628, 0.0
        %v677 = vmax.f32 %v629, 0.0
        %v678 = vmax.f32 %v630, 0.0
        %v679 = vmax.f32 %v631, 0.0
        %v680 = vmax.f32 %v632, 0.0
        %v681 = vmax.f32 %v633, 0.0
        %v682 = vmax.f32 %v634, 0.0
        %v683 = vmax.f32 %v635, 0.0
        %v684 = vmax.f32 %v636, 0.0
        %v685 = vmax.f32 %v637, 0.0
        %v686 = vmax.f32 %v638, 0.0
        %v687 = vmax.f32 %v639, 0.0
        %v688 = vmax.f32 %v640, 0.0
        %v689 = vmax.f32 %v641, 0.0
        %v690 = vmax.f32 %v642, 0.0
        %v691 = vmax.f32 %v643, 0.0
        %v692 = vmax.f32 %v644, 0.0
        %v693 = vmax.f32 %v645, 0.0
        %v694 = vmax.f32 %v646, 0.0
        %v695 = vmax.f32 %v647, 0.0
        %v696 = vmax.f32 %v648, 0.0
        %v697 = vmax.f32 %v649, 0.0
        %v698 = vmax.f32 %v650, 0.0
        %v699 = vmax.f32 %v651, 0.0
        %v700 = vmax.f32 %v652, 0.0
        %v701 = vmax.f32 %v653, 0.0
        %v702 = vmax.f32 %v654, 0.0
        %v703 = vmax.f32 %v655, 0.0
        %v704 = vmax.f32 %v656, 0.0
        %v705 = vmax.f32 %v657, 0.0
        %v706 = vmax.f32 %v658, 0.0
        %v707 = vmax.f32 %v659, 0.0
        %v708 = vmax.f32 %v660, 0.0
        %v709 = vmax.f32 %v661, 0.0
        %v710 = vmax.f32 %v662, 0.0
        %v711 = vmax.f32 %v663, 0.0
        %v712 = vstv %s553
        %v713 = vadd.s32 %v712, 1
        %v714 = vadd.s32 %v712, 2
        %v715 = vadd.s32 %v712, 3
        %v716 = vadd.s32 %v712, 4
        %v717 = vadd.s32 %v712, 5
        %v718 = vadd.s32 %v712, 6
        %v719 = vadd.s32 %v712, 7
        %v720 = vadd.s32 %v712, 8
        %v721 = vadd.s32 %v712, 9
        %v722 = vadd.s32 %v712, 10
        %v723 = vadd.s32 %v712, 11
        %v724 = vlaneseq
        %v725 = vshrl.u32 %v724, 7
        %v726 = vadd.s32 %v725, 8
        %v727 = vadd.s32 %v725, 16
        %v728 = vadd.s32 %v725, 24
        %v729 = vadd.s32 %v725, 4294967294
        %v730 = vadd.s32 %v726, 4294967294
        %v731 = vadd.s32 %v727, 4294967294
        %v732 = vadd.s32 %v728, 4294967294
        %vm733 = vcmp.ge.s32.totalorder %v712, 0
        %vm734 = vcmp.ge.s32.totalorder %v713, 0
        %vm735 = vcmp.ge.s32.totalorder %v714, 0
        %vm736 = vcmp.ge.s32.totalorder %v715, 0
        %vm737 = vcmp.ge.s32.totalorder %v716, 0
        %vm738 = vcmp.ge.s32.totalorder %v717, 0
        %vm739 = vcmp.ge.s32.totalorder %v718, 0
        %vm740 = vcmp.ge.s32.totalorder %v719, 0
        %vm741 = vcmp.ge.s32.totalorder %v720, 0
        %vm742 = vcmp.ge.s32.totalorder %v721, 0
        %vm743 = vcmp.ge.s32.totalorder %v722, 0
        %vm744 = vcmp.ge.s32.totalorder %v723, 0
        %vm745 = vcmp.lt.s32.totalorder %v712, 16
        %vm746 = vcmp.lt.s32.totalorder %v713, 16
        %vm747 = vcmp.lt.s32.totalorder %v714, 16
        %vm748 = vcmp.lt.s32.totalorder %v715, 16
        %vm749 = vcmp.lt.s32.totalorder %v716, 16
        %vm750 = vcmp.lt.s32.totalorder %v717, 16
        %vm751 = vcmp.lt.s32.totalorder %v718, 16
        %vm752 = vcmp.lt.s32.totalorder %v719, 16
        %vm753 = vcmp.lt.s32.totalorder %v720, 16
        %vm754 = vcmp.lt.s32.totalorder %v721, 16
        %vm755 = vcmp.lt.s32.totalorder %v722, 16
        %vm756 = vcmp.lt.s32.totalorder %v723, 16
        %vm757 = vmand %vm733, %vm745
        %vm758 = vmand %vm734, %vm746
        %vm759 = vmand %vm735, %vm747
        %vm760 = vmand %vm736, %vm748
        %vm761 = vmand %vm737, %vm749
        %vm762 = vmand %vm738, %vm750
        %vm763 = vmand %vm739, %vm751
        %vm764 = vmand %vm740, %vm752
        %vm765 = vmand %vm741, %vm753
        %vm766 = vmand %vm742, %vm754
        %vm767 = vmand %vm743, %vm755
        %vm768 = vmand %vm744, %vm756
        %vm769 = vcmp.ge.s32.totalorder %v729, 0
        %vm770 = vcmp.ge.s32.totalorder %v730, 0
        %vm771 = vcmp.ge.s32.totalorder %v731, 0
        %vm772 = vcmp.ge.s32.totalorder %v732, 0
        %vm773 = vmand %vm757, %vm769
        %vm774 = vmand %vm757, %vm770
        %vm775 = vmand %vm757, %vm771
        %vm776 = vmand %vm757, %vm772
        %vm777 = vmand %vm758, %vm769
        %vm778 = vmand %vm758, %vm770
        %vm779 = vmand %vm758, %vm771
        %vm780 = vmand %vm758, %vm772
        %vm781 = vmand %vm759, %vm769
        %vm782 = vmand %vm759, %vm770
        %vm783 = vmand %vm759, %vm771
        %vm784 = vmand %vm759, %vm772
        %vm785 = vmand %vm760, %vm769
        %vm786 = vmand %vm760, %vm770
        %vm787 = vmand %vm760, %vm771
        %vm788 = vmand %vm760, %vm772
        %vm789 = vmand %vm761, %vm769
        %vm790 = vmand %vm761, %vm770
        %vm791 = vmand %vm761, %vm771
        %vm792 = vmand %vm761, %vm772
        %vm793 = vmand %vm762, %vm769
        %vm794 = vmand %vm762, %vm770
        %vm795 = vmand %vm762, %vm771
        %vm796 = vmand %vm762, %vm772
        %vm797 = vmand %vm763, %vm769
        %vm798 = vmand %vm763, %vm770
        %vm799 = vmand %vm763, %vm771
        %vm800 = vmand %vm763, %vm772
        %vm801 = vmand %vm764, %vm769
        %vm802 = vmand %vm764, %vm770
        %vm803 = vmand %vm764, %vm771
        %vm804 = vmand %vm764, %vm772
        %vm805 = vmand %vm765, %vm769
        %vm806 = vmand %vm765, %vm770
        %vm807 = vmand %vm765, %vm771
        %vm808 = vmand %vm765, %vm772
        %vm809 = vmand %vm766, %vm769
        %vm810 = vmand %vm766, %vm770
        %vm811 = vmand %vm766, %vm771
        %vm812 = vmand %vm766, %vm772
        %vm813 = vmand %vm767, %vm769
        %vm814 = vmand %vm767, %vm770
        %vm815 = vmand %vm767, %vm771
        %vm816 = vmand %vm767, %vm772
        %vm817 = vmand %vm768, %vm769
        %vm818 = vmand %vm768, %vm770
        %vm819 = vmand %vm768, %vm771
        %vm820 = vmand %vm768, %vm772
        %vm821 = vcmp.lt.s32.totalorder %v729, 16
        %vm822 = vcmp.lt.s32.totalorder %v730, 16
        %vm823 = vcmp.lt.s32.totalorder %v731, 16
        %vm824 = vcmp.lt.s32.totalorder %v732, 16
        %vm825 = vmand %vm773, %vm821
        %vm826 = vmand %vm774, %vm822
        %vm827 = vmand %vm775, %vm823
        %vm828 = vmand %vm776, %vm824
        %vm829 = vmand %vm777, %vm821
        %vm830 = vmand %vm778, %vm822
        %vm831 = vmand %vm779, %vm823
        %vm832 = vmand %vm780, %vm824
        %vm833 = vmand %vm781, %vm821
        %vm834 = vmand %vm782, %vm822
        %vm835 = vmand %vm783, %vm823
        %vm836 = vmand %vm784, %vm824
        %vm837 = vmand %vm785, %vm821
        %vm838 = vmand %vm786, %vm822
        %vm839 = vmand %vm787, %vm823
        %vm840 = vmand %vm788, %vm824
        %vm841 = vmand %vm789, %vm821
        %vm842 = vmand %vm790, %vm822
        %vm843 = vmand %vm791, %vm823
        %vm844 = vmand %vm792, %vm824
        %vm845 = vmand %vm793, %vm821
        %vm846 = vmand %vm794, %vm822
        %vm847 = vmand %vm795, %vm823
        %vm848 = vmand %vm796, %vm824
        %vm849 = vmand %vm797, %vm821
        %vm850 = vmand %vm798, %vm822
        %vm851 = vmand %vm799, %vm823
        %vm852 = vmand %vm800, %vm824
        %vm853 = vmand %vm801, %vm821
        %vm854 = vmand %vm802, %vm822
        %vm855 = vmand %vm803, %vm823
        %vm856 = vmand %vm804, %vm824
        %vm857 = vmand %vm805, %vm821
        %vm858 = vmand %vm806, %vm822
        %vm859 = vmand %vm807, %vm823
        %vm860 = vmand %vm808, %vm824
        %vm861 = vmand %vm809, %vm821
        %vm862 = vmand %vm810, %vm822
        %vm863 = vmand %vm811, %vm823
        %vm864 = vmand %vm812, %vm824
        %vm865 = vmand %vm813, %vm821
        %vm866 = vmand %vm814, %vm822
        %vm867 = vmand %vm815, %vm823
        %vm868 = vmand %vm816, %vm824
        %vm869 = vmand %vm817, %vm821
        %vm870 = vmand %vm818, %vm822
        %vm871 = vmand %vm819, %vm823
        %vm872 = vmand %vm820, %vm824
        %vm921 = vcmask 1046528
        %v922 = vrot.slane %v664, 1
        %v923 = vrot.slane %v665, 1
        %v924 = vsel %vm921, %v922, %v923
        %v925 = vrot.slane %v666, 1
        %v926 = vsel %vm921, %v923, %v925
        %v927 = vrot.slane %v667, 1
        %v928 = vsel %vm921, %v925, %v927
        %v929 = vrot.slane %v668, 1
        %v930 = vrot.slane %v669, 1
        %v931 = vsel %vm921, %v929, %v930
        %v932 = vrot.slane %v670, 1
        %v933 = vsel %vm921, %v930, %v932
        %v934 = vrot.slane %v671, 1
        %v935 = vsel %vm921, %v932, %v934
        %v936 = vrot.slane %v672, 1
        %v937 = vrot.slane %v673, 1
        %v938 = vsel %vm921, %v936, %v937
        %v939 = vrot.slane %v674, 1
        %v940 = vsel %vm921, %v937, %v939
        %v941 = vrot.slane %v675, 1
        %v942 = vsel %vm921, %v939, %v941
        %v943 = vrot.slane %v676, 1
        %v944 = vrot.slane %v677, 1
        %v945 = vsel %vm921, %v943, %v944
        %v946 = vrot.slane %v678, 1
        %v947 = vsel %vm921, %v944, %v946
        %v948 = vrot.slane %v679, 1
        %v949 = vsel %vm921, %v946, %v948
        %v950 = vrot.slane %v680, 1
        %v951 = vrot.slane %v681, 1
        %v952 = vsel %vm921, %v950, %v951
        %v953 = vrot.slane %v682, 1
        %v954 = vsel %vm921, %v951, %v953
        %v955 = vrot.slane %v683, 1
        %v956 = vsel %vm921, %v953, %v955
        %v957 = vrot.slane %v684, 1
        %v958 = vrot.slane %v685, 1
        %v959 = vsel %vm921, %v957, %v958
        %v960 = vrot.slane %v686, 1
        %v961 = vsel %vm921, %v958, %v960
        %v962 = vrot.slane %v687, 1
        %v963 = vsel %vm921, %v960, %v962
        %v964 = vrot.slane %v688, 1
        %v965 = vrot.slane %v689, 1
        %v966 = vsel %vm921, %v964, %v965
        %v967 = vrot.slane %v690, 1
        %v968 = vsel %vm921, %v965, %v967
        %v969 = vrot.slane %v691, 1
        %v970 = vsel %vm921, %v967, %v969
        %v971 = vrot.slane %v692, 1
        %v972 = vrot.slane %v693, 1
        %v973 = vsel %vm921, %v971, %v972
        %v974 = vrot.slane %v694, 1
        %v975 = vsel %vm921, %v972, %v974
        %v976 = vrot.slane %v695, 1
        %v977 = vsel %vm921, %v974, %v976
        %v978 = vrot.slane %v696, 1
        %v979 = vrot.slane %v697, 1
        %v980 = vsel %vm921, %v978, %v979
        %v981 = vrot.slane %v698, 1
        %v982 = vsel %vm921, %v979, %v981
        %v983 = vrot.slane %v699, 1
        %v984 = vsel %vm921, %v981, %v983
        %v985 = vrot.slane %v700, 1
        %v986 = vrot.slane %v701, 1
        %v987 = vsel %vm921, %v985, %v986
        %v988 = vrot.slane %v702, 1
        %v989 = vsel %vm921, %v986, %v988
        %v990 = vrot.slane %v703, 1
        %v991 = vsel %vm921, %v988, %v990
        %v992 = vrot.slane %v704, 1
        %v993 = vrot.slane %v705, 1
        %v994 = vsel %vm921, %v992, %v993
        %v995 = vrot.slane %v706, 1
        %v996 = vsel %vm921, %v993, %v995
        %v997 = vrot.slane %v707, 1
        %v998 = vsel %vm921, %v995, %v997
        %v999 = vrot.slane %v708, 1
        %v1000 = vrot.slane %v709, 1
        %v1001 = vsel %vm921, %v999, %v1000
        %v1002 = vrot.slane %v710, 1
        %v1003 = vsel %vm921, %v1000, %v1002
        %v1004 = vrot.slane %v711, 1
        %v1005 = vsel %vm921, %v1002, %v1004
        %v1054 = vsel %vm825, %v924, 0.0
        %v1055 = vsel %vm826, %v926, 0.0
        %v1056 = vsel %vm827, %v928, 0.0
        %v1057 = vsel %vm828, %v927, 0.0
        %v1058 = vsel %vm829, %v931, 0.0
        %v1059 = vsel %vm830, %v933, 0.0
        %v1060 = vsel %vm831, %v935, 0.0
        %v1061 = vsel %vm832, %v934, 0.0
        %v1062 = vsel %vm833, %v938, 0.0
        %v1063 = vsel %vm834, %v940, 0.0
        %v1064 = vsel %vm835, %v942, 0.0
        %v1065 = vsel %vm836, %v941, 0.0
        %v1066 = vsel %vm837, %v945, 0.0
        %v1067 = vsel %vm838, %v947, 0.0
        %v1068 = vsel %vm839, %v949, 0.0
        %v1069 = vsel %vm840, %v948, 0.0
        %v1070 = vsel %vm841, %v952, 0.0
        %v1071 = vsel %vm842, %v954, 0.0
        %v1072 = vsel %vm843, %v956, 0.0
        %v1073 = vsel %vm844, %v955, 0.0
        %v1074 = vsel %vm845, %v959, 0.0
        %v1075 = vsel %vm846, %v961, 0.0
        %v1076 = vsel %vm847, %v963, 0.0
        %v1077 = vsel %vm848, %v962, 0.0
        %v1078 = vsel %vm849, %v966, 0.0
        %v1079 = vsel %vm850, %v968, 0.0
        %v1080 = vsel %vm851, %v970, 0.0
        %v1081 = vsel %vm852, %v969, 0.0
        %v1082 = vsel %vm853, %v973, 0.0
        %v1083 = vsel %vm854, %v975, 0.0
        %v1084 = vsel %vm855, %v977, 0.0
        %v1085 = vsel %vm856, %v976, 0.0
        %v1086 = vsel %vm857, %v980, 0.0
        %v1087 = vsel %vm858, %v982, 0.0
        %v1088 = vsel %vm859, %v984, 0.0
        %v1089 = vsel %vm860, %v983, 0.0
        %v1090 = vsel %vm861, %v987, 0.0
        %v1091 = vsel %vm862, %v989, 0.0
        %v1092 = vsel %vm863, %v991, 0.0
        %v1093 = vsel %vm864, %v990, 0.0
        %v1094 = vsel %vm865, %v994, 0.0
        %v1095 = vsel %vm866, %v996, 0.0
        %v1096 = vsel %vm867, %v998, 0.0
        %v1097 = vsel %vm868, %v997, 0.0
        %v1098 = vsel %vm869, %v1001, 0.0
        %v1099 = vsel %vm870, %v1003, 0.0
        %v1100 = vsel %vm871, %v1005, 0.0
        %v1101 = vsel %vm872, %v1004, 0.0
        %v1142 = vrot.slane %v1054, 1
        %v1143 = vrot.slane %v1055, 1
        %v1144 = vsel %vm921, %v1142, %v1143
        %v1145 = vrot.slane %v1056, 1
        %v1146 = vsel %vm921, %v1143, %v1145
        %v1147 = vrot.slane %v1057, 1
        %v1148 = vsel %vm921, %v1145, %v1147
        %v1149 = vrot.slane %v1058, 1
        %v1150 = vrot.slane %v1059, 1
        %v1151 = vsel %vm921, %v1149, %v1150
        %v1152 = vrot.slane %v1060, 1
        %v1153 = vsel %vm921, %v1150, %v1152
        %v1154 = vrot.slane %v1061, 1
        %v1155 = vsel %vm921, %v1152, %v1154
        %v1156 = vrot.slane %v1062, 1
        %v1157 = vrot.slane %v1063, 1
        %v1158 = vsel %vm921, %v1156, %v1157
        %v1159 = vrot.slane %v1064, 1
        %v1160 = vsel %vm921, %v1157, %v1159
        %v1161 = vrot.slane %v1065, 1
        %v1162 = vsel %vm921, %v1159, %v1161
        %v1163 = vrot.slane %v1066, 1
        %v1164 = vrot.slane %v1067, 1
        %v1165 = vsel %vm921, %v1163, %v1164
        %v1166 = vrot.slane %v1068, 1
        %v1167 = vsel %vm921, %v1164, %v1166
        %v1168 = vrot.slane %v1069, 1
        %v1169 = vsel %vm921, %v1166, %v1168
        %v1170 = vrot.slane %v1070, 1
        %v1171 = vrot.slane %v1071, 1
        %v1172 = vsel %vm921, %v1170, %v1171
        %v1173 = vrot.slane %v1072, 1
        %v1174 = vsel %vm921, %v1171, %v1173
        %v1175 = vrot.slane %v1073, 1
        %v1176 = vsel %vm921, %v1173, %v1175
        %v1177 = vrot.slane %v1074, 1
        %v1178 = vrot.slane %v1075, 1
        %v1179 = vsel %vm921, %v1177, %v1178
        %v1180 = vrot.slane %v1076, 1
        %v1181 = vsel %vm921, %v1178, %v1180
        %v1182 = vrot.slane %v1077, 1
        %v1183 = vsel %vm921, %v1180, %v1182
        %v1184 = vrot.slane %v1078, 1
        %v1185 = vrot.slane %v1079, 1
        %v1186 = vsel %vm921, %v1184, %v1185
        %v1187 = vrot.slane %v1080, 1
        %v1188 = vsel %vm921, %v1185, %v1187
        %v1189 = vrot.slane %v1081, 1
        %v1190 = vsel %vm921, %v1187, %v1189
        %v1191 = vrot.slane %v1082, 1
        %v1192 = vrot.slane %v1083, 1
        %v1193 = vsel %vm921, %v1191, %v1192
        %v1194 = vrot.slane %v1084, 1
        %v1195 = vsel %vm921, %v1192, %v1194
        %v1196 = vrot.slane %v1085, 1
        %v1197 = vsel %vm921, %v1194, %v1196
        %v1198 = vrot.slane %v1086, 1
        %v1199 = vrot.slane %v1087, 1
        %v1200 = vsel %vm921, %v1198, %v1199
        %v1201 = vrot.slane %v1088, 1
        %v1202 = vsel %vm921, %v1199, %v1201
        %v1203 = vrot.slane %v1089, 1
        %v1204 = vsel %vm921, %v1201, %v1203
        %v1205 = vrot.slane %v1090, 1
        %v1206 = vrot.slane %v1091, 1
        %v1207 = vsel %vm921, %v1205, %v1206
        %v1208 = vrot.slane %v1092, 1
        %v1209 = vsel %vm921, %v1206, %v1208
        %v1210 = vrot.slane %v1093, 1
        %v1211 = vsel %vm921, %v1208, %v1210
        %1212 = vrot.lane.b32.xlu0 %v1144, 4
        %v1213 = vpop.permute.xlu0 %1212
        %1214 = vrot.lane.b32.xlu0 %v1146, 4
        %v1215 = vpop.permute.xlu0 %1214
        %1216 = vrot.lane.b32.xlu0 %v1148, 4
        %v1217 = vpop.permute.xlu0 %1216
        %1218 = vrot.lane.b32.xlu0 %v1151, 4
        %v1219 = vpop.permute.xlu0 %1218
        %1220 = vrot.lane.b32.xlu0 %v1153, 4
        %v1221 = vpop.permute.xlu0 %1220
        %1222 = vrot.lane.b32.xlu0 %v1155, 4
        %v1223 = vpop.permute.xlu0 %1222
        %1224 = vrot.lane.b32.xlu0 %v1158, 4
        %v1225 = vpop.permute.xlu0 %1224
        %1226 = vrot.lane.b32.xlu0 %v1160, 4
        %v1227 = vpop.permute.xlu0 %1226
        %1228 = vrot.lane.b32.xlu0 %v1162, 4
        %v1229 = vpop.permute.xlu0 %1228
        %1230 = vrot.lane.b32.xlu0 %v1165, 4
        %v1231 = vpop.permute.xlu0 %1230
        %1232 = vrot.lane.b32.xlu0 %v1167, 4
        %v1233 = vpop.permute.xlu0 %1232
        %1234 = vrot.lane.b32.xlu0 %v1169, 4
        %v1235 = vpop.permute.xlu0 %1234
        %1236 = vrot.lane.b32.xlu0 %v1172, 4
        %v1237 = vpop.permute.xlu0 %1236
        %1238 = vrot.lane.b32.xlu0 %v1174, 4
        %v1239 = vpop.permute.xlu0 %1238
        %1240 = vrot.lane.b32.xlu0 %v1176, 4
        %v1241 = vpop.permute.xlu0 %1240
        %1242 = vrot.lane.b32.xlu0 %v1179, 4
        %v1243 = vpop.permute.xlu0 %1242
        %1244 = vrot.lane.b32.xlu0 %v1181, 4
        %v1245 = vpop.permute.xlu0 %1244
        %1246 = vrot.lane.b32.xlu0 %v1183, 4
        %v1247 = vpop.permute.xlu0 %1246
        %1248 = vrot.lane.b32.xlu0 %v1186, 4
        %v1249 = vpop.permute.xlu0 %1248
        %1250 = vrot.lane.b32.xlu0 %v1188, 4
        %v1251 = vpop.permute.xlu0 %1250
        %1252 = vrot.lane.b32.xlu0 %v1190, 4
        %v1253 = vpop.permute.xlu0 %1252
        %1254 = vrot.lane.b32.xlu0 %v1193, 4
        %v1255 = vpop.permute.xlu0 %1254
        %1256 = vrot.lane.b32.xlu0 %v1195, 4
        %v1257 = vpop.permute.xlu0 %1256
        %1258 = vrot.lane.b32.xlu0 %v1197, 4
        %v1259 = vpop.permute.xlu0 %1258
        %1260 = vrot.lane.b32.xlu0 %v1200, 4
        %v1261 = vpop.permute.xlu0 %1260
        %1262 = vrot.lane.b32.xlu0 %v1202, 4
        %v1263 = vpop.permute.xlu0 %1262
        %1264 = vrot.lane.b32.xlu0 %v1204, 4
        %v1265 = vpop.permute.xlu0 %1264
        %1266 = vrot.lane.b32.xlu0 %v1207, 4
        %v1267 = vpop.permute.xlu0 %1266
        %1268 = vrot.lane.b32.xlu0 %v1209, 4
        %v1269 = vpop.permute.xlu0 %1268
        %1270 = vrot.lane.b32.xlu0 %v1211, 4
        %v1271 = vpop.permute.xlu0 %1270
        %vm1302 = vcmask 1045504
        %v1303 = vrot.slane %v1054, 2
        %v1304 = vrot.slane %v1055, 2
        %v1305 = vsel %vm1302, %v1303, %v1304
        %v1306 = vrot.slane %v1056, 2
        %v1307 = vsel %vm1302, %v1304, %v1306
        %v1308 = vrot.slane %v1057, 2
        %v1309 = vsel %vm1302, %v1306, %v1308
        %v1310 = vrot.slane %v1058, 2
        %v1311 = vrot.slane %v1059, 2
        %v1312 = vsel %vm1302, %v1310, %v1311
        %v1313 = vrot.slane %v1060, 2
        %v1314 = vsel %vm1302, %v1311, %v1313
        %v1315 = vrot.slane %v1061, 2
        %v1316 = vsel %vm1302, %v1313, %v1315
        %v1317 = vrot.slane %v1062, 2
        %v1318 = vrot.slane %v1063, 2
        %v1319 = vsel %vm1302, %v1317, %v1318
        %v1320 = vrot.slane %v1064, 2
        %v1321 = vsel %vm1302, %v1318, %v1320
        %v1322 = vrot.slane %v1065, 2
        %v1323 = vsel %vm1302, %v1320, %v1322
        %v1324 = vrot.slane %v1066, 2
        %v1325 = vrot.slane %v1067, 2
        %v1326 = vsel %vm1302, %v1324, %v1325
        %v1327 = vrot.slane %v1068, 2
        %v1328 = vsel %vm1302, %v1325, %v1327
        %v1329 = vrot.slane %v1069, 2
        %v1330 = vsel %vm1302, %v1327, %v1329
        %v1331 = vrot.slane %v1070, 2
        %v1332 = vrot.slane %v1071, 2
        %v1333 = vsel %vm1302, %v1331, %v1332
        %v1334 = vrot.slane %v1072, 2
        %v1335 = vsel %vm1302, %v1332, %v1334
        %v1336 = vrot.slane %v1073, 2
        %v1337 = vsel %vm1302, %v1334, %v1336
        %v1338 = vrot.slane %v1074, 2
        %v1339 = vrot.slane %v1075, 2
        %v1340 = vsel %vm1302, %v1338, %v1339
        %v1341 = vrot.slane %v1076, 2
        %v1342 = vsel %vm1302, %v1339, %v1341
        %v1343 = vrot.slane %v1077, 2
        %v1344 = vsel %vm1302, %v1341, %v1343
        %v1345 = vrot.slane %v1078, 2
        %v1346 = vrot.slane %v1079, 2
        %v1347 = vsel %vm1302, %v1345, %v1346
        %v1348 = vrot.slane %v1080, 2
        %v1349 = vsel %vm1302, %v1346, %v1348
        %v1350 = vrot.slane %v1081, 2
        %v1351 = vsel %vm1302, %v1348, %v1350
        %v1352 = vrot.slane %v1082, 2
        %v1353 = vrot.slane %v1083, 2
        %v1354 = vsel %vm1302, %v1352, %v1353
        %v1355 = vrot.slane %v1084, 2
        %v1356 = vsel %vm1302, %v1353, %v1355
        %v1357 = vrot.slane %v1085, 2
        %v1358 = vsel %vm1302, %v1355, %v1357
        %v1359 = vrot.slane %v1086, 2
        %v1360 = vrot.slane %v1087, 2
        %v1361 = vsel %vm1302, %v1359, %v1360
        %v1362 = vrot.slane %v1088, 2
        %v1363 = vsel %vm1302, %v1360, %v1362
        %v1364 = vrot.slane %v1089, 2
        %v1365 = vsel %vm1302, %v1362, %v1364
        %v1366 = vrot.slane %v1090, 2
        %v1367 = vrot.slane %v1091, 2
        %v1368 = vsel %vm1302, %v1366, %v1367
        %v1369 = vrot.slane %v1092, 2
        %v1370 = vsel %vm1302, %v1367, %v1369
        %v1371 = vrot.slane %v1093, 2
        %v1372 = vsel %vm1302, %v1369, %v1371
        %1373 = vrot.lane.b32.xlu0 %v1305, 8
        %v1374 = vpop.permute.xlu0 %1373
        %1375 = vrot.lane.b32.xlu0 %v1307, 8
        %v1376 = vpop.permute.xlu0 %1375
        %1377 = vrot.lane.b32.xlu0 %v1309, 8
        %v1378 = vpop.permute.xlu0 %1377
        %1379 = vrot.lane.b32.xlu0 %v1312, 8
        %v1380 = vpop.permute.xlu0 %1379
        %1381 = vrot.lane.b32.xlu0 %v1314, 8
        %v1382 = vpop.permute.xlu0 %1381
        %1383 = vrot.lane.b32.xlu0 %v1316, 8
        %v1384 = vpop.permute.xlu0 %1383
        %1385 = vrot.lane.b32.xlu0 %v1319, 8
        %v1386 = vpop.permute.xlu0 %1385
        %1387 = vrot.lane.b32.xlu0 %v1321, 8
        %v1388 = vpop.permute.xlu0 %1387
        %1389 = vrot.lane.b32.xlu0 %v1323, 8
        %v1390 = vpop.permute.xlu0 %1389
        %1391 = vrot.lane.b32.xlu0 %v1326, 8
        %v1392 = vpop.permute.xlu0 %1391
        %1393 = vrot.lane.b32.xlu0 %v1328, 8
        %v1394 = vpop.permute.xlu0 %1393
        %1395 = vrot.lane.b32.xlu0 %v1330, 8
        %v1396 = vpop.permute.xlu0 %1395
        %1397 = vrot.lane.b32.xlu0 %v1333, 8
        %v1398 = vpop.permute.xlu0 %1397
        %1399 = vrot.lane.b32.xlu0 %v1335, 8
        %v1400 = vpop.permute.xlu0 %1399
        %1401 = vrot.lane.b32.xlu0 %v1337, 8
        %v1402 = vpop.permute.xlu0 %1401
        %1403 = vrot.lane.b32.xlu0 %v1340, 8
        %v1404 = vpop.permute.xlu0 %1403
        %1405 = vrot.lane.b32.xlu0 %v1342, 8
        %v1406 = vpop.permute.xlu0 %1405
        %1407 = vrot.lane.b32.xlu0 %v1344, 8
        %v1408 = vpop.permute.xlu0 %1407
        %1409 = vrot.lane.b32.xlu0 %v1347, 8
        %v1410 = vpop.permute.xlu0 %1409
        %1411 = vrot.lane.b32.xlu0 %v1349, 8
        %v1412 = vpop.permute.xlu0 %1411
        %1413 = vrot.lane.b32.xlu0 %v1351, 8
        %v1414 = vpop.permute.xlu0 %1413
        %1415 = vrot.lane.b32.xlu0 %v1354, 8
        %v1416 = vpop.permute.xlu0 %1415
        %1417 = vrot.lane.b32.xlu0 %v1356, 8
        %v1418 = vpop.permute.xlu0 %1417
        %1419 = vrot.lane.b32.xlu0 %v1358, 8
        %v1420 = vpop.permute.xlu0 %1419
        %1421 = vrot.lane.b32.xlu0 %v1361, 8
        %v1422 = vpop.permute.xlu0 %1421
        %1423 = vrot.lane.b32.xlu0 %v1363, 8
        %v1424 = vpop.permute.xlu0 %1423
        %1425 = vrot.lane.b32.xlu0 %v1365, 8
        %v1426 = vpop.permute.xlu0 %1425
        %1427 = vrot.lane.b32.xlu0 %v1368, 8
        %v1428 = vpop.permute.xlu0 %1427
        %1429 = vrot.lane.b32.xlu0 %v1370, 8
        %v1430 = vpop.permute.xlu0 %1429
        %1431 = vrot.lane.b32.xlu0 %v1372, 8
        %v1432 = vpop.permute.xlu0 %1431
        %1466 = vrot.lane.b32.xlu0 %v1058, 12
        %v1467 = vpop.permute.xlu0 %1466
        %1468 = vrot.lane.b32.xlu0 %v1059, 12
        %v1469 = vpop.permute.xlu0 %1468
        %1470 = vrot.lane.b32.xlu0 %v1060, 12
        %v1471 = vpop.permute.xlu0 %1470
        %1472 = vrot.lane.b32.xlu0 %v1062, 12
        %v1473 = vpop.permute.xlu0 %1472
        %1474 = vrot.lane.b32.xlu0 %v1063, 12
        %v1475 = vpop.permute.xlu0 %1474
        %1476 = vrot.lane.b32.xlu0 %v1064, 12
        %v1477 = vpop.permute.xlu0 %1476
        %1478 = vrot.lane.b32.xlu0 %v1066, 12
        %v1479 = vpop.permute.xlu0 %1478
        %1480 = vrot.lane.b32.xlu0 %v1067, 12
        %v1481 = vpop.permute.xlu0 %1480
        %1482 = vrot.lane.b32.xlu0 %v1068, 12
        %v1483 = vpop.permute.xlu0 %1482
        %1484 = vrot.lane.b32.xlu0 %v1070, 12
        %v1485 = vpop.permute.xlu0 %1484
        %1486 = vrot.lane.b32.xlu0 %v1071, 12
        %v1487 = vpop.permute.xlu0 %1486
        %1488 = vrot.lane.b32.xlu0 %v1072, 12
        %v1489 = vpop.permute.xlu0 %1488
        %1490 = vrot.lane.b32.xlu0 %v1074, 12
        %v1491 = vpop.permute.xlu0 %1490
        %1492 = vrot.lane.b32.xlu0 %v1075, 12
        %v1493 = vpop.permute.xlu0 %1492
        %1494 = vrot.lane.b32.xlu0 %v1076, 12
        %v1495 = vpop.permute.xlu0 %1494
        %1496 = vrot.lane.b32.xlu0 %v1078, 12
        %v1497 = vpop.permute.xlu0 %1496
        %1498 = vrot.lane.b32.xlu0 %v1079, 12
        %v1499 = vpop.permute.xlu0 %1498
        %1500 = vrot.lane.b32.xlu0 %v1080, 12
        %v1501 = vpop.permute.xlu0 %1500
        %1502 = vrot.lane.b32.xlu0 %v1082, 12
        %v1503 = vpop.permute.xlu0 %1502
        %1504 = vrot.lane.b32.xlu0 %v1083, 12
        %v1505 = vpop.permute.xlu0 %1504
        %1506 = vrot.lane.b32.xlu0 %v1084, 12
        %v1507 = vpop.permute.xlu0 %1506
        %1508 = vrot.lane.b32.xlu0 %v1086, 12
        %v1509 = vpop.permute.xlu0 %1508
        %1510 = vrot.lane.b32.xlu0 %v1087, 12
        %v1511 = vpop.permute.xlu0 %1510
        %1512 = vrot.lane.b32.xlu0 %v1088, 12
        %v1513 = vpop.permute.xlu0 %1512
        %1514 = vrot.lane.b32.xlu0 %v1090, 12
        %v1515 = vpop.permute.xlu0 %1514
        %1516 = vrot.lane.b32.xlu0 %v1091, 12
        %v1517 = vpop.permute.xlu0 %1516
        %1518 = vrot.lane.b32.xlu0 %v1092, 12
        %v1519 = vpop.permute.xlu0 %1518
        %1520 = vrot.lane.b32.xlu0 %v1094, 12
        %v1521 = vpop.permute.xlu0 %1520
        %1522 = vrot.lane.b32.xlu0 %v1095, 12
        %v1523 = vpop.permute.xlu0 %1522
        %1524 = vrot.lane.b32.xlu0 %v1096, 12
        %v1525 = vpop.permute.xlu0 %1524
        %v1557 = vrot.slane %v1094, 1
        %v1558 = vrot.slane %v1095, 1
        %v1559 = vsel %vm921, %v1557, %v1558
        %v1560 = vrot.slane %v1096, 1
        %v1561 = vsel %vm921, %v1558, %v1560
        %v1562 = vrot.slane %v1097, 1
        %v1563 = vsel %vm921, %v1560, %v1562
        %1564 = vrot.lane.b32.xlu0 %v1151, 16
        %v1565 = vpop.permute.xlu0 %1564
        %1566 = vrot.lane.b32.xlu0 %v1153, 16
        %v1567 = vpop.permute.xlu0 %1566
        %1568 = vrot.lane.b32.xlu0 %v1155, 16
        %v1569 = vpop.permute.xlu0 %1568
        %1570 = vrot.lane.b32.xlu0 %v1158, 16
        %v1571 = vpop.permute.xlu0 %1570
        %1572 = vrot.lane.b32.xlu0 %v1160, 16
        %v1573 = vpop.permute.xlu0 %1572
        %1574 = vrot.lane.b32.xlu0 %v1162, 16
        %v1575 = vpop.permute.xlu0 %1574
        %1576 = vrot.lane.b32.xlu0 %v1165, 16
        %v1577 = vpop.permute.xlu0 %1576
        %1578 = vrot.lane.b32.xlu0 %v1167, 16
        %v1579 = vpop.permute.xlu0 %1578
        %1580 = vrot.lane.b32.xlu0 %v1169, 16
        %v1581 = vpop.permute.xlu0 %1580
        %1582 = vrot.lane.b32.xlu0 %v1172, 16
        %v1583 = vpop.permute.xlu0 %1582
        %1584 = vrot.lane.b32.xlu0 %v1174, 16
        %v1585 = vpop.permute.xlu0 %1584
        %1586 = vrot.lane.b32.xlu0 %v1176, 16
        %v1587 = vpop.permute.xlu0 %1586
        %1588 = vrot.lane.b32.xlu0 %v1179, 16
        %v1589 = vpop.permute.xlu0 %1588
        %1590 = vrot.lane.b32.xlu0 %v1181, 16
        %v1591 = vpop.permute.xlu0 %1590
        %1592 = vrot.lane.b32.xlu0 %v1183, 16
        %v1593 = vpop.permute.xlu0 %1592
        %1594 = vrot.lane.b32.xlu0 %v1186, 16
        %v1595 = vpop.permute.xlu0 %1594
        %1596 = vrot.lane.b32.xlu0 %v1188, 16
        %v1597 = vpop.permute.xlu0 %1596
        %1598 = vrot.lane.b32.xlu0 %v1190, 16
        %v1599 = vpop.permute.xlu0 %1598
        %1600 = vrot.lane.b32.xlu0 %v1193, 16
        %v1601 = vpop.permute.xlu0 %1600
        %1602 = vrot.lane.b32.xlu0 %v1195, 16
        %v1603 = vpop.permute.xlu0 %1602
        %1604 = vrot.lane.b32.xlu0 %v1197, 16
        %v1605 = vpop.permute.xlu0 %1604
        %1606 = vrot.lane.b32.xlu0 %v1200, 16
        %v1607 = vpop.permute.xlu0 %1606
        %1608 = vrot.lane.b32.xlu0 %v1202, 16
        %v1609 = vpop.permute.xlu0 %1608
        %1610 = vrot.lane.b32.xlu0 %v1204, 16
        %v1611 = vpop.permute.xlu0 %1610
        %1612 = vrot.lane.b32.xlu0 %v1207, 16
        %v1613 = vpop.permute.xlu0 %1612
        %1614 = vrot.lane.b32.xlu0 %v1209, 16
        %v1615 = vpop.permute.xlu0 %1614
        %1616 = vrot.lane.b32.xlu0 %v1211, 16
        %v1617 = vpop.permute.xlu0 %1616
        %1618 = vrot.lane.b32.xlu0 %v1559, 16
        %v1619 = vpop.permute.xlu0 %1618
        %1620 = vrot.lane.b32.xlu0 %v1561, 16
        %v1621 = vpop.permute.xlu0 %1620
        %1622 = vrot.lane.b32.xlu0 %v1563, 16
        %v1623 = vpop.permute.xlu0 %1622
        %v1654 = vrot.slane %v1094, 2
        %v1655 = vrot.slane %v1095, 2
        %v1656 = vsel %vm1302, %v1654, %v1655
        %v1657 = vrot.slane %v1096, 2
        %v1658 = vsel %vm1302, %v1655, %v1657
        %v1659 = vrot.slane %v1097, 2
        %v1660 = vsel %vm1302, %v1657, %v1659
        %1661 = vrot.lane.b32.xlu0 %v1312, 20
        %v1662 = vpop.permute.xlu0 %1661
        %1663 = vrot.lane.b32.xlu0 %v1314, 20
        %v1664 = vpop.permute.xlu0 %1663
        %1665 = vrot.lane.b32.xlu0 %v1316, 20
        %v1666 = vpop.permute.xlu0 %1665
        %1667 = vrot.lane.b32.xlu0 %v1319, 20
        %v1668 = vpop.permute.xlu0 %1667
        %1669 = vrot.lane.b32.xlu0 %v1321, 20
        %v1670 = vpop.permute.xlu0 %1669
        %1671 = vrot.lane.b32.xlu0 %v1323, 20
        %v1672 = vpop.permute.xlu0 %1671
        %1673 = vrot.lane.b32.xlu0 %v1326, 20
        %v1674 = vpop.permute.xlu0 %1673
        %1675 = vrot.lane.b32.xlu0 %v1328, 20
        %v1676 = vpop.permute.xlu0 %1675
        %1677 = vrot.lane.b32.xlu0 %v1330, 20
        %v1678 = vpop.permute.xlu0 %1677
        %1679 = vrot.lane.b32.xlu0 %v1333, 20
        %v1680 = vpop.permute.xlu0 %1679
        %1681 = vrot.lane.b32.xlu0 %v1335, 20
        %v1682 = vpop.permute.xlu0 %1681
        %1683 = vrot.lane.b32.xlu0 %v1337, 20
        %v1684 = vpop.permute.xlu0 %1683
        %1685 = vrot.lane.b32.xlu0 %v1340, 20
        %v1686 = vpop.permute.xlu0 %1685
        %1687 = vrot.lane.b32.xlu0 %v1342, 20
        %v1688 = vpop.permute.xlu0 %1687
        %1689 = vrot.lane.b32.xlu0 %v1344, 20
        %v1690 = vpop.permute.xlu0 %1689
        %1691 = vrot.lane.b32.xlu0 %v1347, 20
        %v1692 = vpop.permute.xlu0 %1691
        %1693 = vrot.lane.b32.xlu0 %v1349, 20
        %v1694 = vpop.permute.xlu0 %1693
        %1695 = vrot.lane.b32.xlu0 %v1351, 20
        %v1696 = vpop.permute.xlu0 %1695
        %1697 = vrot.lane.b32.xlu0 %v1354, 20
        %v1698 = vpop.permute.xlu0 %1697
        %1699 = vrot.lane.b32.xlu0 %v1356, 20
        %v1700 = vpop.permute.xlu0 %1699
        %1701 = vrot.lane.b32.xlu0 %v1358, 20
        %v1702 = vpop.permute.xlu0 %1701
        %1703 = vrot.lane.b32.xlu0 %v1361, 20
        %v1704 = vpop.permute.xlu0 %1703
        %1705 = vrot.lane.b32.xlu0 %v1363, 20
        %v1706 = vpop.permute.xlu0 %1705
        %1707 = vrot.lane.b32.xlu0 %v1365, 20
        %v1708 = vpop.permute.xlu0 %1707
        %1709 = vrot.lane.b32.xlu0 %v1368, 20
        %v1710 = vpop.permute.xlu0 %1709
        %1711 = vrot.lane.b32.xlu0 %v1370, 20
        %v1712 = vpop.permute.xlu0 %1711
        %1713 = vrot.lane.b32.xlu0 %v1372, 20
        %v1714 = vpop.permute.xlu0 %1713
        %1715 = vrot.lane.b32.xlu0 %v1656, 20
        %v1716 = vpop.permute.xlu0 %1715
        %1717 = vrot.lane.b32.xlu0 %v1658, 20
        %v1718 = vpop.permute.xlu0 %1717
        %1719 = vrot.lane.b32.xlu0 %v1660, 20
        %v1720 = vpop.permute.xlu0 %1719
        %1754 = vrot.lane.b32.xlu0 %v1062, 24
        %v1755 = vpop.permute.xlu0 %1754
        %1756 = vrot.lane.b32.xlu0 %v1063, 24
        %v1757 = vpop.permute.xlu0 %1756
        %1758 = vrot.lane.b32.xlu0 %v1064, 24
        %v1759 = vpop.permute.xlu0 %1758
        %1760 = vrot.lane.b32.xlu0 %v1066, 24
        %v1761 = vpop.permute.xlu0 %1760
        %1762 = vrot.lane.b32.xlu0 %v1067, 24
        %v1763 = vpop.permute.xlu0 %1762
        %1764 = vrot.lane.b32.xlu0 %v1068, 24
        %v1765 = vpop.permute.xlu0 %1764
        %1766 = vrot.lane.b32.xlu0 %v1070, 24
        %v1767 = vpop.permute.xlu0 %1766
        %1768 = vrot.lane.b32.xlu0 %v1071, 24
        %v1769 = vpop.permute.xlu0 %1768
        %1770 = vrot.lane.b32.xlu0 %v1072, 24
        %v1771 = vpop.permute.xlu0 %1770
        %1772 = vrot.lane.b32.xlu0 %v1074, 24
        %v1773 = vpop.permute.xlu0 %1772
        %1774 = vrot.lane.b32.xlu0 %v1075, 24
        %v1775 = vpop.permute.xlu0 %1774
        %1776 = vrot.lane.b32.xlu0 %v1076, 24
        %v1777 = vpop.permute.xlu0 %1776
        %1778 = vrot.lane.b32.xlu0 %v1078, 24
        %v1779 = vpop.permute.xlu0 %1778
        %1780 = vrot.lane.b32.xlu0 %v1079, 24
        %v1781 = vpop.permute.xlu0 %1780
        %1782 = vrot.lane.b32.xlu0 %v1080, 24
        %v1783 = vpop.permute.xlu0 %1782
        %1784 = vrot.lane.b32.xlu0 %v1082, 24
        %v1785 = vpop.permute.xlu0 %1784
        %1786 = vrot.lane.b32.xlu0 %v1083, 24
        %v1787 = vpop.permute.xlu0 %1786
        %1788 = vrot.lane.b32.xlu0 %v1084, 24
        %v1789 = vpop.permute.xlu0 %1788
        %1790 = vrot.lane.b32.xlu0 %v1086, 24
        %v1791 = vpop.permute.xlu0 %1790
        %1792 = vrot.lane.b32.xlu0 %v1087, 24
        %v1793 = vpop.permute.xlu0 %1792
        %1794 = vrot.lane.b32.xlu0 %v1088, 24
        %v1795 = vpop.permute.xlu0 %1794
        %1796 = vrot.lane.b32.xlu0 %v1090, 24
        %v1797 = vpop.permute.xlu0 %1796
        %1798 = vrot.lane.b32.xlu0 %v1091, 24
        %v1799 = vpop.permute.xlu0 %1798
        %1800 = vrot.lane.b32.xlu0 %v1092, 24
        %v1801 = vpop.permute.xlu0 %1800
        %1802 = vrot.lane.b32.xlu0 %v1094, 24
        %v1803 = vpop.permute.xlu0 %1802
        %1804 = vrot.lane.b32.xlu0 %v1095, 24
        %v1805 = vpop.permute.xlu0 %1804
        %1806 = vrot.lane.b32.xlu0 %v1096, 24
        %v1807 = vpop.permute.xlu0 %1806
        %1808 = vrot.lane.b32.xlu0 %v1098, 24
        %v1809 = vpop.permute.xlu0 %1808
        %1810 = vrot.lane.b32.xlu0 %v1099, 24
        %v1811 = vpop.permute.xlu0 %1810
        %1812 = vrot.lane.b32.xlu0 %v1100, 24
        %v1813 = vpop.permute.xlu0 %1812
        %v1845 = vrot.slane %v1098, 1
        %v1846 = vrot.slane %v1099, 1
        %v1847 = vsel %vm921, %v1845, %v1846
        %v1848 = vrot.slane %v1100, 1
        %v1849 = vsel %vm921, %v1846, %v1848
        %v1850 = vrot.slane %v1101, 1
        %v1851 = vsel %vm921, %v1848, %v1850
        %1852 = vrot.lane.b32.xlu0 %v1158, 28
        %v1853 = vpop.permute.xlu0 %1852
        %1854 = vrot.lane.b32.xlu0 %v1160, 28
        %v1855 = vpop.permute.xlu0 %1854
        %1856 = vrot.lane.b32.xlu0 %v1162, 28
        %v1857 = vpop.permute.xlu0 %1856
        %1858 = vrot.lane.b32.xlu0 %v1165, 28
        %v1859 = vpop.permute.xlu0 %1858
        %1860 = vrot.lane.b32.xlu0 %v1167, 28
        %v1861 = vpop.permute.xlu0 %1860
        %1862 = vrot.lane.b32.xlu0 %v1169, 28
        %v1863 = vpop.permute.xlu0 %1862
        %1864 = vrot.lane.b32.xlu0 %v1172, 28
        %v1865 = vpop.permute.xlu0 %1864
        %1866 = vrot.lane.b32.xlu0 %v1174, 28
        %v1867 = vpop.permute.xlu0 %1866
        %1868 = vrot.lane.b32.xlu0 %v1176, 28
        %v1869 = vpop.permute.xlu0 %1868
        %1870 = vrot.lane.b32.xlu0 %v1179, 28
        %v1871 = vpop.permute.xlu0 %1870
        %1872 = vrot.lane.b32.xlu0 %v1181, 28
        %v1873 = vpop.permute.xlu0 %1872
        %1874 = vrot.lane.b32.xlu0 %v1183, 28
        %v1875 = vpop.permute.xlu0 %1874
        %1876 = vrot.lane.b32.xlu0 %v1186, 28
        %v1877 = vpop.permute.xlu0 %1876
        %1878 = vrot.lane.b32.xlu0 %v1188, 28
        %v1879 = vpop.permute.xlu0 %1878
        %1880 = vrot.lane.b32.xlu0 %v1190, 28
        %v1881 = vpop.permute.xlu0 %1880
        %1882 = vrot.lane.b32.xlu0 %v1193, 28
        %v1883 = vpop.permute.xlu0 %1882
        %1884 = vrot.lane.b32.xlu0 %v1195, 28
        %v1885 = vpop.permute.xlu0 %1884
        %1886 = vrot.lane.b32.xlu0 %v1197, 28
        %v1887 = vpop.permute.xlu0 %1886
        %1888 = vrot.lane.b32.xlu0 %v1200, 28
        %v1889 = vpop.permute.xlu0 %1888
        %1890 = vrot.lane.b32.xlu0 %v1202, 28
        %v1891 = vpop.permute.xlu0 %1890
        %1892 = vrot.lane.b32.xlu0 %v1204, 28
        %v1893 = vpop.permute.xlu0 %1892
        %1894 = vrot.lane.b32.xlu0 %v1207, 28
        %v1895 = vpop.permute.xlu0 %1894
        %1896 = vrot.lane.b32.xlu0 %v1209, 28
        %v1897 = vpop.permute.xlu0 %1896
        %1898 = vrot.lane.b32.xlu0 %v1211, 28
        %v1899 = vpop.permute.xlu0 %1898
        %1900 = vrot.lane.b32.xlu0 %v1559, 28
        %v1901 = vpop.permute.xlu0 %1900
        %1902 = vrot.lane.b32.xlu0 %v1561, 28
        %v1903 = vpop.permute.xlu0 %1902
        %1904 = vrot.lane.b32.xlu0 %v1563, 28
        %v1905 = vpop.permute.xlu0 %1904
        %1906 = vrot.lane.b32.xlu0 %v1847, 28
        %v1907 = vpop.permute.xlu0 %1906
        %1908 = vrot.lane.b32.xlu0 %v1849, 28
        %v1909 = vpop.permute.xlu0 %1908
        %1910 = vrot.lane.b32.xlu0 %v1851, 28
        %v1911 = vpop.permute.xlu0 %1910
        %v1942 = vrot.slane %v1098, 2
        %v1943 = vrot.slane %v1099, 2
        %v1944 = vsel %vm1302, %v1942, %v1943
        %v1945 = vrot.slane %v1100, 2
        %v1946 = vsel %vm1302, %v1943, %v1945
        %v1947 = vrot.slane %v1101, 2
        %v1948 = vsel %vm1302, %v1945, %v1947
        %1949 = vrot.lane.b32.xlu0 %v1319, 32
        %v1950 = vpop.permute.xlu0 %1949
        %1951 = vrot.lane.b32.xlu0 %v1321, 32
        %v1952 = vpop.permute.xlu0 %1951
        %1953 = vrot.lane.b32.xlu0 %v1323, 32
        %v1954 = vpop.permute.xlu0 %1953
        %1955 = vrot.lane.b32.xlu0 %v1326, 32
        %v1956 = vpop.permute.xlu0 %1955
        %1957 = vrot.lane.b32.xlu0 %v1328, 32
        %v1958 = vpop.permute.xlu0 %1957
        %1959 = vrot.lane.b32.xlu0 %v1330, 32
        %v1960 = vpop.permute.xlu0 %1959
        %1961 = vrot.lane.b32.xlu0 %v1333, 32
        %v1962 = vpop.permute.xlu0 %1961
        %1963 = vrot.lane.b32.xlu0 %v1335, 32
        %v1964 = vpop.permute.xlu0 %1963
        %1965 = vrot.lane.b32.xlu0 %v1337, 32
        %v1966 = vpop.permute.xlu0 %1965
        %1967 = vrot.lane.b32.xlu0 %v1340, 32
        %v1968 = vpop.permute.xlu0 %1967
        %1969 = vrot.lane.b32.xlu0 %v1342, 32
        %v1970 = vpop.permute.xlu0 %1969
        %1971 = vrot.lane.b32.xlu0 %v1344, 32
        %v1972 = vpop.permute.xlu0 %1971
        %1973 = vrot.lane.b32.xlu0 %v1347, 32
        %v1974 = vpop.permute.xlu0 %1973
        %1975 = vrot.lane.b32.xlu0 %v1349, 32
        %v1976 = vpop.permute.xlu0 %1975
        %1977 = vrot.lane.b32.xlu0 %v1351, 32
        %v1978 = vpop.permute.xlu0 %1977
        %1979 = vrot.lane.b32.xlu0 %v1354, 32
        %v1980 = vpop.permute.xlu0 %1979
        %1981 = vrot.lane.b32.xlu0 %v1356, 32
        %v1982 = vpop.permute.xlu0 %1981
        %1983 = vrot.lane.b32.xlu0 %v1358, 32
        %v1984 = vpop.permute.xlu0 %1983
        %1985 = vrot.lane.b32.xlu0 %v1361, 32
        %v1986 = vpop.permute.xlu0 %1985
        %1987 = vrot.lane.b32.xlu0 %v1363, 32
        %v1988 = vpop.permute.xlu0 %1987
        %1989 = vrot.lane.b32.xlu0 %v1365, 32
        %v1990 = vpop.permute.xlu0 %1989
        %1991 = vrot.lane.b32.xlu0 %v1368, 32
        %v1992 = vpop.permute.xlu0 %1991
        %1993 = vrot.lane.b32.xlu0 %v1370, 32
        %v1994 = vpop.permute.xlu0 %1993
        %1995 = vrot.lane.b32.xlu0 %v1372, 32
        %v1996 = vpop.permute.xlu0 %1995
        %1997 = vrot.lane.b32.xlu0 %v1656, 32
        %v1998 = vpop.permute.xlu0 %1997
        %1999 = vrot.lane.b32.xlu0 %v1658, 32
        %v2000 = vpop.permute.xlu0 %1999
        %2001 = vrot.lane.b32.xlu0 %v1660, 32
        %v2002 = vpop.permute.xlu0 %2001
        %2003 = vrot.lane.b32.xlu0 %v1944, 32
        %v2004 = vpop.permute.xlu0 %2003
        %2005 = vrot.lane.b32.xlu0 %v1946, 32
        %v2006 = vpop.permute.xlu0 %2005
        %2007 = vrot.lane.b32.xlu0 %v1948, 32
        %v2008 = vpop.permute.xlu0 %2007
        %vm2039 = vcmask 31744
        %v2040 = vsel %vm2039, %v1054, %v1213
        %v2041 = vsel %vm2039, %v1055, %v1215
        %v2042 = vsel %vm2039, %v1056, %v1217
        %v2043 = vsel %vm2039, %v1058, %v1219
        %v2044 = vsel %vm2039, %v1059, %v1221
        %v2045 = vsel %vm2039, %v1060, %v1223
        %v2046 = vsel %vm2039, %v1062, %v1225
        %v2047 = vsel %vm2039, %v1063, %v1227
        %v2048 = vsel %vm2039, %v1064, %v1229
        %v2049 = vsel %vm2039, %v1066, %v1231
        %v2050 = vsel %vm2039, %v1067, %v1233
        %v2051 = vsel %vm2039, %v1068, %v1235
        %v2052 = vsel %vm2039, %v1070, %v1237
        %v2053 = vsel %vm2039, %v1071, %v1239
        %v2054 = vsel %vm2039, %v1072, %v1241
        %v2055 = vsel %vm2039, %v1074, %v1243
        %v2056 = vsel %vm2039, %v1075, %v1245
        %v2057 = vsel %vm2039, %v1076, %v1247
        %v2058 = vsel %vm2039, %v1078, %v1249
        %v2059 = vsel %vm2039, %v1079, %v1251
        %v2060 = vsel %vm2039, %v1080, %v1253
        %v2061 = vsel %vm2039, %v1082, %v1255
        %v2062 = vsel %vm2039, %v1083, %v1257
        %v2063 = vsel %vm2039, %v1084, %v1259
        %v2064 = vsel %vm2039, %v1086, %v1261
        %v2065 = vsel %vm2039, %v1087, %v1263
        %v2066 = vsel %vm2039, %v1088, %v1265
        %v2067 = vsel %vm2039, %v1090, %v1267
        %v2068 = vsel %vm2039, %v1091, %v1269
        %v2069 = vsel %vm2039, %v1092, %v1271
        %vm2070 = vcmask 64512
        %v2071 = vsel %vm2070, %v2040, %v1374
        %v2072 = vsel %vm2070, %v2041, %v1376
        %v2073 = vsel %vm2070, %v2042, %v1378
        %v2074 = vsel %vm2070, %v2043, %v1380
        %v2075 = vsel %vm2070, %v2044, %v1382
        %v2076 = vsel %vm2070, %v2045, %v1384
        %v2077 = vsel %vm2070, %v2046, %v1386
        %v2078 = vsel %vm2070, %v2047, %v1388
        %v2079 = vsel %vm2070, %v2048, %v1390
        %v2080 = vsel %vm2070, %v2049, %v1392
        %v2081 = vsel %vm2070, %v2050, %v1394
        %v2082 = vsel %vm2070, %v2051, %v1396
        %v2083 = vsel %vm2070, %v2052, %v1398
        %v2084 = vsel %vm2070, %v2053, %v1400
        %v2085 = vsel %vm2070, %v2054, %v1402
        %v2086 = vsel %vm2070, %v2055, %v1404
        %v2087 = vsel %vm2070, %v2056, %v1406
        %v2088 = vsel %vm2070, %v2057, %v1408
        %v2089 = vsel %vm2070, %v2058, %v1410
        %v2090 = vsel %vm2070, %v2059, %v1412
        %v2091 = vsel %vm2070, %v2060, %v1414
        %v2092 = vsel %vm2070, %v2061, %v1416
        %v2093 = vsel %vm2070, %v2062, %v1418
        %v2094 = vsel %vm2070, %v2063, %v1420
        %v2095 = vsel %vm2070, %v2064, %v1422
        %v2096 = vsel %vm2070, %v2065, %v1424
        %v2097 = vsel %vm2070, %v2066, %v1426
        %v2098 = vsel %vm2070, %v2067, %v1428
        %v2099 = vsel %vm2070, %v2068, %v1430
        %v2100 = vsel %vm2070, %v2069, %v1432
        %vm2101 = vcmask 97280
        %v2102 = vsel %vm2101, %v2071, %v1467
        %v2103 = vsel %vm2101, %v2072, %v1469
        %v2104 = vsel %vm2101, %v2073, %v1471
        %v2105 = vsel %vm2101, %v2074, %v1473
        %v2106 = vsel %vm2101, %v2075, %v1475
        %v2107 = vsel %vm2101, %v2076, %v1477
        %v2108 = vsel %vm2101, %v2077, %v1479
        %v2109 = vsel %vm2101, %v2078, %v1481
        %v2110 = vsel %vm2101, %v2079, %v1483
        %v2111 = vsel %vm2101, %v2080, %v1485
        %v2112 = vsel %vm2101, %v2081, %v1487
        %v2113 = vsel %vm2101, %v2082, %v1489
        %v2114 = vsel %vm2101, %v2083, %v1491
        %v2115 = vsel %vm2101, %v2084, %v1493
        %v2116 = vsel %vm2101, %v2085, %v1495
        %v2117 = vsel %vm2101, %v2086, %v1497
        %v2118 = vsel %vm2101, %v2087, %v1499
        %v2119 = vsel %vm2101, %v2088, %v1501
        %v2120 = vsel %vm2101, %v2089, %v1503
        %v2121 = vsel %vm2101, %v2090, %v1505
        %v2122 = vsel %vm2101, %v2091, %v1507
        %v2123 = vsel %vm2101, %v2092, %v1509
        %v2124 = vsel %vm2101, %v2093, %v1511
        %v2125 = vsel %vm2101, %v2094, %v1513
        %v2126 = vsel %vm2101, %v2095, %v1515
        %v2127 = vsel %vm2101, %v2096, %v1517
        %v2128 = vsel %vm2101, %v2097, %v1519
        %v2129 = vsel %vm2101, %v2098, %v1521
        %v2130 = vsel %vm2101, %v2099, %v1523
        %v2131 = vsel %vm2101, %v2100, %v1525
        %vm2132 = vcmask 130048
        %v2133 = vsel %vm2132, %v2102, %v1565
        %v2134 = vsel %vm2132, %v2103, %v1567
        %v2135 = vsel %vm2132, %v2104, %v1569
        %v2136 = vsel %vm2132, %v2105, %v1571
        %v2137 = vsel %vm2132, %v2106, %v1573
        %v2138 = vsel %vm2132, %v2107, %v1575
        %v2139 = vsel %vm2132, %v2108, %v1577
        %v2140 = vsel %vm2132, %v2109, %v1579
        %v2141 = vsel %vm2132, %v2110, %v1581
        %v2142 = vsel %vm2132, %v2111, %v1583
        %v2143 = vsel %vm2132, %v2112, %v1585
        %v2144 = vsel %vm2132, %v2113, %v1587
        %v2145 = vsel %vm2132, %v2114, %v1589
        %v2146 = vsel %vm2132, %v2115, %v1591
        %v2147 = vsel %vm2132, %v2116, %v1593
        %v2148 = vsel %vm2132, %v2117, %v1595
        %v2149 = vsel %vm2132, %v2118, %v1597
        %v2150 = vsel %vm2132, %v2119, %v1599
        %v2151 = vsel %vm2132, %v2120, %v1601
        %v2152 = vsel %vm2132, %v2121, %v1603
        %v2153 = vsel %vm2132, %v2122, %v1605
        %v2154 = vsel %vm2132, %v2123, %v1607
        %v2155 = vsel %vm2132, %v2124, %v1609
        %v2156 = vsel %vm2132, %v2125, %v1611
        %v2157 = vsel %vm2132, %v2126, %v1613
        %v2158 = vsel %vm2132, %v2127, %v1615
        %v2159 = vsel %vm2132, %v2128, %v1617
        %v2160 = vsel %vm2132, %v2129, %v1619
        %v2161 = vsel %vm2132, %v2130, %v1621
        %v2162 = vsel %vm2132, %v2131, %v1623
        %vm2163 = vcmask 162816
        %v2164 = vsel %vm2163, %v2133, %v1662
        %v2165 = vsel %vm2163, %v2134, %v1664
        %v2166 = vsel %vm2163, %v2135, %v1666
        %v2167 = vsel %vm2163, %v2136, %v1668
        %v2168 = vsel %vm2163, %v2137, %v1670
        %v2169 = vsel %vm2163, %v2138, %v1672
        %v2170 = vsel %vm2163, %v2139, %v1674
        %v2171 = vsel %vm2163, %v2140, %v1676
        %v2172 = vsel %vm2163, %v2141, %v1678
        %v2173 = vsel %vm2163, %v2142, %v1680
        %v2174 = vsel %vm2163, %v2143, %v1682
        %v2175 = vsel %vm2163, %v2144, %v1684
        %v2176 = vsel %vm2163, %v2145, %v1686
        %v2177 = vsel %vm2163, %v2146, %v1688
        %v2178 = vsel %vm2163, %v2147, %v1690
        %v2179 = vsel %vm2163, %v2148, %v1692
        %v2180 = vsel %vm2163, %v2149, %v1694
        %v2181 = vsel %vm2163, %v2150, %v1696
        %v2182 = vsel %vm2163, %v2151, %v1698
        %v2183 = vsel %vm2163, %v2152, %v1700
        %v2184 = vsel %vm2163, %v2153, %v1702
        %v2185 = vsel %vm2163, %v2154, %v1704
        %v2186 = vsel %vm2163, %v2155, %v1706
        %v2187 = vsel %vm2163, %v2156, %v1708
        %v2188 = vsel %vm2163, %v2157, %v1710
        %v2189 = vsel %vm2163, %v2158, %v1712
        %v2190 = vsel %vm2163, %v2159, %v1714
        %v2191 = vsel %vm2163, %v2160, %v1716
        %v2192 = vsel %vm2163, %v2161, %v1718
        %v2193 = vsel %vm2163, %v2162, %v1720
        %vm2194 = vcmask 195584
        %v2195 = vsel %vm2194, %v2164, %v1755
        %v2196 = vsel %vm2194, %v2165, %v1757
        %v2197 = vsel %vm2194, %v2166, %v1759
        %v2198 = vsel %vm2194, %v2167, %v1761
        %v2199 = vsel %vm2194, %v2168, %v1763
        %v2200 = vsel %vm2194, %v2169, %v1765
        %v2201 = vsel %vm2194, %v2170, %v1767
        %v2202 = vsel %vm2194, %v2171, %v1769
        %v2203 = vsel %vm2194, %v2172, %v1771
        %v2204 = vsel %vm2194, %v2173, %v1773
        %v2205 = vsel %vm2194, %v2174, %v1775
        %v2206 = vsel %vm2194, %v2175, %v1777
        %v2207 = vsel %vm2194, %v2176, %v1779
        %v2208 = vsel %vm2194, %v2177, %v1781
        %v2209 = vsel %vm2194, %v2178, %v1783
        %v2210 = vsel %vm2194, %v2179, %v1785
        %v2211 = vsel %vm2194, %v2180, %v1787
        %v2212 = vsel %vm2194, %v2181, %v1789
        %v2213 = vsel %vm2194, %v2182, %v1791
        %v2214 = vsel %vm2194, %v2183, %v1793
        %v2215 = vsel %vm2194, %v2184, %v1795
        %v2216 = vsel %vm2194, %v2185, %v1797
        %v2217 = vsel %vm2194, %v2186, %v1799
        %v2218 = vsel %vm2194, %v2187, %v1801
        %v2219 = vsel %vm2194, %v2188, %v1803
        %v2220 = vsel %vm2194, %v2189, %v1805
        %v2221 = vsel %vm2194, %v2190, %v1807
        %v2222 = vsel %vm2194, %v2191, %v1809
        %v2223 = vsel %vm2194, %v2192, %v1811
        %v2224 = vsel %vm2194, %v2193, %v1813
        %vm2225 = vcmask 228352
        %v2226 = vsel %vm2225, %v2195, %v1853
        %v2227 = vsel %vm2225, %v2196, %v1855
        %v2228 = vsel %vm2225, %v2197, %v1857
        %v2229 = vsel %vm2225, %v2198, %v1859
        %v2230 = vsel %vm2225, %v2199, %v1861
        %v2231 = vsel %vm2225, %v2200, %v1863
        %v2232 = vsel %vm2225, %v2201, %v1865
        %v2233 = vsel %vm2225, %v2202, %v1867
        %v2234 = vsel %vm2225, %v2203, %v1869
        %v2235 = vsel %vm2225, %v2204, %v1871
        %v2236 = vsel %vm2225, %v2205, %v1873
        %v2237 = vsel %vm2225, %v2206, %v1875
        %v2238 = vsel %vm2225, %v2207, %v1877
        %v2239 = vsel %vm2225, %v2208, %v1879
        %v2240 = vsel %vm2225, %v2209, %v1881
        %v2241 = vsel %vm2225, %v2210, %v1883
        %v2242 = vsel %vm2225, %v2211, %v1885
        %v2243 = vsel %vm2225, %v2212, %v1887
        %v2244 = vsel %vm2225, %v2213, %v1889
        %v2245 = vsel %vm2225, %v2214, %v1891
        %v2246 = vsel %vm2225, %v2215, %v1893
        %v2247 = vsel %vm2225, %v2216, %v1895
        %v2248 = vsel %vm2225, %v2217, %v1897
        %v2249 = vsel %vm2225, %v2218, %v1899
        %v2250 = vsel %vm2225, %v2219, %v1901
        %v2251 = vsel %vm2225, %v2220, %v1903
        %v2252 = vsel %vm2225, %v2221, %v1905
        %v2253 = vsel %vm2225, %v2222, %v1907
        %v2254 = vsel %vm2225, %v2223, %v1909
        %v2255 = vsel %vm2225, %v2224, %v1911
        %vm2256 = vcmask 261120
        %v2257 = vsel %vm2256, %v2226, %v1950
        %v2258 = vsel %vm2256, %v2227, %v1952
        %v2259 = vsel %vm2256, %v2228, %v1954
        %v2260 = vsel %vm2256, %v2229, %v1956
        %v2261 = vsel %vm2256, %v2230, %v1958
        %v2262 = vsel %vm2256, %v2231, %v1960
        %v2263 = vsel %vm2256, %v2232, %v1962
        %v2264 = vsel %vm2256, %v2233, %v1964
        %v2265 = vsel %vm2256, %v2234, %v1966
        %v2266 = vsel %vm2256, %v2235, %v1968
        %v2267 = vsel %vm2256, %v2236, %v1970
        %v2268 = vsel %vm2256, %v2237, %v1972
        %v2269 = vsel %vm2256, %v2238, %v1974
        %v2270 = vsel %vm2256, %v2239, %v1976
        %v2271 = vsel %vm2256, %v2240, %v1978
        %v2272 = vsel %vm2256, %v2241, %v1980
        %v2273 = vsel %vm2256, %v2242, %v1982
        %v2274 = vsel %vm2256, %v2243, %v1984
        %v2275 = vsel %vm2256, %v2244, %v1986
        %v2276 = vsel %vm2256, %v2245, %v1988
        %v2277 = vsel %vm2256, %v2246, %v1990
        %v2278 = vsel %vm2256, %v2247, %v1992
        %v2279 = vsel %vm2256, %v2248, %v1994
        %v2280 = vsel %vm2256, %v2249, %v1996
        %v2281 = vsel %vm2256, %v2250, %v1998
        %v2282 = vsel %vm2256, %v2251, %v2000
        %v2283 = vsel %vm2256, %v2252, %v2002
        %v2284 = vsel %vm2256, %v2253, %v2004
        %v2285 = vsel %vm2256, %v2254, %v2006
        %v2286 = vsel %vm2256, %v2255, %v2008
        %v2287 = vpack.c.bf16 %v2258, %v2257
        %v2288 = vpack.c.bf16 %v2260, %v2259
        %v2289 = vpack.c.bf16 %v2262, %v2261
        %v2290 = vpack.c.bf16 %v2264, %v2263
        %v2291 = vpack.c.bf16 %v2266, %v2265
        %v2292 = vpack.c.bf16 %v2268, %v2267
        %v2293 = vpack.c.bf16 %v2270, %v2269
        %v2294 = vpack.c.bf16 %v2272, %v2271
        %v2295 = vpack.c.bf16 %v2274, %v2273
        %v2296 = vpack.c.bf16 %v2276, %v2275
        %v2297 = vpack.c.bf16 %v2278, %v2277
        %v2298 = vpack.c.bf16 %v2280, %v2279
        %v2299 = vpack.c.bf16 %v2282, %v2281
        %v2300 = vpack.c.bf16 %v2284, %v2283
        %v2301 = vpack.c.bf16 %v2286, %v2285
        %v2302 = vld [vmem:[%s4] sm:$0xf]
        %v2303 = vld [vmem:[%s4 + $0x4] sm:$0xf]
        %v2304 = vld [vmem:[%s4 + $0x8] sm:$0xf]
        %v2305 = vld [vmem:[%s4 + $0xc] sm:$0xf]
        %v2306 = vld [vmem:[%s4 + $0x10] sm:$0x3]
        %v2307 = vld [vmem:[%s5] sm:$0x1]
        %v2309 = vlaneseq
        %v2310 = vshrl.u32 %v2309, 7
        %v2311 = vsub.s32 0, %v2310
        %v2312 = vrot.slane %v2307, %v2311
        %v2319 = vunpack.c.l.b16 %v2302
        %v2320 = vunpack.c.l.b16 %v2303
        %v2321 = vunpack.c.l.b16 %v2304
        %v2322 = vunpack.c.l.b16 %v2305
        %v2323 = vunpack.c.l.b16 %v2306
        %v2324 = vpack.c.b16 %v2320, %v2319
        %v2325 = vpack.c.b16 %v2322, %v2321
        %v2326 = vpack.c.b16 %v2323, %v2323
        %vm2329 = vcmask 293888
        %v2331 = vsel %vm2329, %v2287, 0
        %v2334 = vsel %vm2329, %v2288, 0
        %v2337 = vsel %vm2329, %v2289, 0
        %v2340 = vsel %vm2329, %v2290, 0
        %v2343 = vsel %vm2329, %v2291, 0
        %v2346 = vsel %vm2329, %v2292, 0
        %v2349 = vsel %vm2329, %v2293, 0
        %v2352 = vsel %vm2329, %v2294, 0
        %v2355 = vsel %vm2329, %v2295, 0
        %v2358 = vsel %vm2329, %v2296, 0
        %v2361 = vsel %vm2329, %v2297, 0
        %v2364 = vsel %vm2329, %v2298, 0
        %v2367 = vsel %vm2329, %v2299, 0
        %v2370 = vsel %vm2329, %v2300, 0
        %v2373 = vsel %vm2329, %v2301, 0
        %vm2375 = vcmask 1041408
        %v2377 = vsel %vm2375, %v2326, 0
        %2379 = vmatprep.subr.bf16.mxu0 0
        %2380 = vmatpush1.bf16.msra.mxu0 0
        %2381 = vmatprep.subr.bf16.mxu0 0
        %2382 = vmatpush1.bf16.msra.mxu0 0
        %2383 = vmatprep.subr.bf16.mxu0 0
        %2384 = vmatpush1.bf16.msra.mxu0 0
        %2385 = vmatprep.subr.bf16.mxu0 0
        %2386 = vmatpush1.bf16.msra.mxu0 0
        %2387 = vmatprep.subr.bf16.mxu0 0
        %2388 = vmatpush1.bf16.msra.mxu0 0
        %2389 = vmatprep.subr.bf16.mxu0 0
        %2390 = vmatpush1.bf16.msra.mxu0 %v2377
        %2391 = vmatprep.subr.bf16.mxu0 0
        %2392 = vmatpush1.bf16.msra.mxu0 %v2325
        %2393 = vmatprep.subr.bf16.mxu0 0
        %2394 = vmatpush1.bf16.msra.mxu0 %v2324
        %2395 = vmatprep.subr.bf16.mxu0 0
        %2396 = vmatpush2.bf16.msra.mxu0 0
        %2397 = vmatprep.subr.bf16.mxu0 0
        %2398 = vmatpush2.bf16.msra.mxu0 0
        %2399 = vmatprep.subr.bf16.mxu0 0
        %2400 = vmatpush2.bf16.msra.mxu0 0
        %2401 = vmatprep.subr.bf16.mxu0 0
        %2402 = vmatpush2.bf16.msra.mxu0 0
        %2403 = vmatprep.subr.bf16.mxu0 0
        %2404 = vmatpush2.bf16.msra.mxu0 0
        %2405 = vmatprep.subr.bf16.mxu0 0
        %2406 = vmatpush2.bf16.msra.mxu0 0
        %2407 = vmatprep.subr.bf16.mxu0 0
        %2408 = vmatpush2.bf16.msra.mxu0 0
        %2409 = vmatprep.subr.bf16.mxu0 0
        %2410 = vmatpush2.bf16.msra.mxu0 0
        %2411 = vmatprep.mubr.bf16.mxu0 0
        %2412 = vmatmul.mubr.bf16.gmra.mxu0 %v2331
        %v2413 = vpop.f32.mrf.mxu0
        %v2414 = vadd.f32 %v2312, %v2413
        %v2415 = vpop.f32.mrf.mxu0
        %v2416 = vpop.f32.mrf.mxu0
        %v2417 = vadd.f32 %v2312, %v2416
        %v2418 = vpop.f32.mrf.mxu0
        %2419 = vmatprep.mubr.bf16.mxu0 0
        %2420 = vmatmul.mubr.bf16.gmra.mxu0 %v2334
        %v2421 = vpop.f32.mrf.mxu0
        %v2422 = vadd.f32 %v2312, %v2421
        %v2423 = vpop.f32.mrf.mxu0
        %v2424 = vpop.f32.mrf.mxu0
        %v2425 = vadd.f32 %v2312, %v2424
        %v2426 = vpop.f32.mrf.mxu0
        %2427 = vmatprep.mubr.bf16.mxu0 0
        %2428 = vmatmul.mubr.bf16.gmra.mxu0 %v2337
        %v2429 = vpop.f32.mrf.mxu0
        %v2430 = vadd.f32 %v2312, %v2429
        %v2431 = vpop.f32.mrf.mxu0
        %v2432 = vpop.f32.mrf.mxu0
        %v2433 = vadd.f32 %v2312, %v2432
        %v2434 = vpop.f32.mrf.mxu0
        %2435 = vmatprep.mubr.bf16.mxu0 0
        %2436 = vmatmul.mubr.bf16.gmra.mxu0 %v2340
        %v2437 = vpop.f32.mrf.mxu0
        %v2438 = vadd.f32 %v2312, %v2437
        %v2439 = vpop.f32.mrf.mxu0
        %v2440 = vpop.f32.mrf.mxu0
        %v2441 = vadd.f32 %v2312, %v2440
        %v2442 = vpop.f32.mrf.mxu0
        %2443 = vmatprep.mubr.bf16.mxu0 0
        %2444 = vmatmul.mubr.bf16.gmra.mxu0 %v2343
        %v2445 = vpop.f32.mrf.mxu0
        %v2446 = vadd.f32 %v2312, %v2445
        %v2447 = vpop.f32.mrf.mxu0
        %v2448 = vpop.f32.mrf.mxu0
        %v2449 = vadd.f32 %v2312, %v2448
        %v2450 = vpop.f32.mrf.mxu0
        %2451 = vmatprep.mubr.bf16.mxu0 0
        %2452 = vmatmul.mubr.bf16.gmra.mxu0 %v2346
        %v2453 = vpop.f32.mrf.mxu0
        %v2454 = vadd.f32 %v2312, %v2453
        %v2455 = vpop.f32.mrf.mxu0
        %v2456 = vpop.f32.mrf.mxu0
        %v2457 = vadd.f32 %v2312, %v2456
        %v2458 = vpop.f32.mrf.mxu0
        %2459 = vmatprep.mubr.bf16.mxu0 0
        %2460 = vmatmul.mubr.bf16.gmra.mxu0 %v2349
        %v2461 = vpop.f32.mrf.mxu0
        %v2462 = vadd.f32 %v2312, %v2461
        %v2463 = vpop.f32.mrf.mxu0
        %v2464 = vpop.f32.mrf.mxu0
        %v2465 = vadd.f32 %v2312, %v2464
        %v2466 = vpop.f32.mrf.mxu0
        %2467 = vmatprep.mubr.bf16.mxu0 0
        %2468 = vmatmul.mubr.bf16.gmra.mxu0 %v2352
        %v2469 = vpop.f32.mrf.mxu0
        %v2470 = vadd.f32 %v2312, %v2469
        %v2471 = vpop.f32.mrf.mxu0
        %v2472 = vpop.f32.mrf.mxu0
        %v2473 = vadd.f32 %v2312, %v2472
        %v2474 = vpop.f32.mrf.mxu0
        %2475 = vmatprep.mubr.bf16.mxu0 0
        %2476 = vmatmul.mubr.bf16.gmra.mxu0 %v2355
        %v2477 = vpop.f32.mrf.mxu0
        %v2478 = vadd.f32 %v2312, %v2477
        %v2479 = vpop.f32.mrf.mxu0
        %v2480 = vpop.f32.mrf.mxu0
        %v2481 = vadd.f32 %v2312, %v2480
        %v2482 = vpop.f32.mrf.mxu0
        %2483 = vmatprep.mubr.bf16.mxu0 0
        %2484 = vmatmul.mubr.bf16.gmra.mxu0 %v2358
        %v2485 = vpop.f32.mrf.mxu0
        %v2486 = vadd.f32 %v2312, %v2485
        %v2487 = vpop.f32.mrf.mxu0
        %v2488 = vpop.f32.mrf.mxu0
        %v2489 = vadd.f32 %v2312, %v2488
        %v2490 = vpop.f32.mrf.mxu0
        %2491 = vmatprep.mubr.bf16.mxu0 0
        %2492 = vmatmul.mubr.bf16.gmra.mxu0 %v2361
        %v2493 = vpop.f32.mrf.mxu0
        %v2494 = vadd.f32 %v2312, %v2493
        %v2495 = vpop.f32.mrf.mxu0
        %v2496 = vpop.f32.mrf.mxu0
        %v2497 = vadd.f32 %v2312, %v2496
        %v2498 = vpop.f32.mrf.mxu0
        %2499 = vmatprep.mubr.bf16.mxu0 0
        %2500 = vmatmul.mubr.bf16.gmra.mxu0 %v2364
        %v2501 = vpop.f32.mrf.mxu0
        %v2502 = vadd.f32 %v2312, %v2501
        %v2503 = vpop.f32.mrf.mxu0
        %v2504 = vpop.f32.mrf.mxu0
        %v2505 = vadd.f32 %v2312, %v2504
        %v2506 = vpop.f32.mrf.mxu0
        %2507 = vmatprep.mubr.bf16.mxu0 0
        %2508 = vmatmul.mubr.bf16.gmra.mxu0 %v2367
        %v2509 = vpop.f32.mrf.mxu0
        %v2510 = vadd.f32 %v2312, %v2509
        %v2511 = vpop.f32.mrf.mxu0
        %v2512 = vpop.f32.mrf.mxu0
        %v2513 = vadd.f32 %v2312, %v2512
        %v2514 = vpop.f32.mrf.mxu0
        %2515 = vmatprep.mubr.bf16.mxu0 0
        %2516 = vmatmul.mubr.bf16.gmra.mxu0 %v2370
        %v2517 = vpop.f32.mrf.mxu0
        %v2518 = vadd.f32 %v2312, %v2517
        %v2519 = vpop.f32.mrf.mxu0
        %v2520 = vpop.f32.mrf.mxu0
        %v2521 = vadd.f32 %v2312, %v2520
        %v2522 = vpop.f32.mrf.mxu0
        %2523 = vmatprep.mubr.bf16.mxu0 0
        %2524 = vmatmul.mubr.bf16.gmra.mxu0 %v2373
        %v2525 = vpop.f32.mrf.mxu0
        %v2526 = vadd.f32 %v2312, %v2525
        %v2527 = vpop.f32.mrf.mxu0
        %v2528 = vpop.f32.mrf.mxu0
        %v2529 = vadd.f32 %v2312, %v2528
        %v2530 = vpop.f32.mrf.mxu0
        %2531 = vdwg.mxu0
        %s2532 = ssub.s32 %s501, 1
        %v2533 = vld [vmem:[%s6] sm:$0x1]
        %v2535 = vlaneseq
        %v2536 = vshrl.u32 %v2535, 7
        %v2537 = vsub.s32 0, %v2536
        %v2538 = vrot.slane %v2533, %v2537
        %v2540 = vmul.f32 %v2414, %v2538
        %v2541 = vmul.f32 %v2417, %v2538
        %v2542 = vmul.f32 %v2422, %v2538
        %v2543 = vmul.f32 %v2425, %v2538
        %v2544 = vmul.f32 %v2430, %v2538
        %v2545 = vmul.f32 %v2433, %v2538
        %v2546 = vmul.f32 %v2438, %v2538
        %v2547 = vmul.f32 %v2441, %v2538
        %v2548 = vmul.f32 %v2446, %v2538
        %v2549 = vmul.f32 %v2449, %v2538
        %v2550 = vmul.f32 %v2454, %v2538
        %v2551 = vmul.f32 %v2457, %v2538
        %v2552 = vmul.f32 %v2462, %v2538
        %v2553 = vmul.f32 %v2465, %v2538
        %v2554 = vmul.f32 %v2470, %v2538
        %v2555 = vmul.f32 %v2473, %v2538
        %v2556 = vmul.f32 %v2478, %v2538
        %v2557 = vmul.f32 %v2481, %v2538
        %v2558 = vmul.f32 %v2486, %v2538
        %v2559 = vmul.f32 %v2489, %v2538
        %v2560 = vmul.f32 %v2494, %v2538
        %v2561 = vmul.f32 %v2497, %v2538
        %v2562 = vmul.f32 %v2502, %v2538
        %v2563 = vmul.f32 %v2505, %v2538
        %v2564 = vmul.f32 %v2510, %v2538
        %v2565 = vmul.f32 %v2513, %v2538
        %v2566 = vmul.f32 %v2518, %v2538
        %v2567 = vmul.f32 %v2521, %v2538
        %v2568 = vmul.f32 %v2526, %v2538
        %v2569 = vmul.f32 %v2529, %v2538
        %v2570 = vld [vmem:[%s7] sm:$0x1]
        %v2572 = vlaneseq
        %v2573 = vshrl.u32 %v2572, 7
        %v2574 = vsub.s32 0, %v2573
        %v2575 = vrot.slane %v2570, %v2574
        %v2577 = vadd.f32 %v2540, %v2575
        %v2578 = vadd.f32 %v2541, %v2575
        %v2579 = vadd.f32 %v2542, %v2575
        %v2580 = vadd.f32 %v2543, %v2575
        %v2581 = vadd.f32 %v2544, %v2575
        %v2582 = vadd.f32 %v2545, %v2575
        %v2583 = vadd.f32 %v2546, %v2575
        %v2584 = vadd.f32 %v2547, %v2575
        %v2585 = vadd.f32 %v2548, %v2575
        %v2586 = vadd.f32 %v2549, %v2575
        %v2587 = vadd.f32 %v2550, %v2575
        %v2588 = vadd.f32 %v2551, %v2575
        %v2589 = vadd.f32 %v2552, %v2575
        %v2590 = vadd.f32 %v2553, %v2575
        %v2591 = vadd.f32 %v2554, %v2575
        %v2592 = vadd.f32 %v2555, %v2575
        %v2593 = vadd.f32 %v2556, %v2575
        %v2594 = vadd.f32 %v2557, %v2575
        %v2595 = vadd.f32 %v2558, %v2575
        %v2596 = vadd.f32 %v2559, %v2575
        %v2597 = vadd.f32 %v2560, %v2575
        %v2598 = vadd.f32 %v2561, %v2575
        %v2599 = vadd.f32 %v2562, %v2575
        %v2600 = vadd.f32 %v2563, %v2575
        %v2601 = vadd.f32 %v2564, %v2575
        %v2602 = vadd.f32 %v2565, %v2575
        %v2603 = vadd.f32 %v2566, %v2575
        %v2604 = vadd.f32 %v2567, %v2575
        %v2605 = vadd.f32 %v2568, %v2575
        %v2606 = vadd.f32 %v2569, %v2575
        %v2607 = vmax.f32 %v2577, 0.0
        %v2608 = vmax.f32 %v2578, 0.0
        %v2609 = vmax.f32 %v2579, 0.0
        %v2610 = vmax.f32 %v2580, 0.0
        %v2611 = vmax.f32 %v2581, 0.0
        %v2612 = vmax.f32 %v2582, 0.0
        %v2613 = vmax.f32 %v2583, 0.0
        %v2614 = vmax.f32 %v2584, 0.0
        %v2615 = vmax.f32 %v2585, 0.0
        %v2616 = vmax.f32 %v2586, 0.0
        %v2617 = vmax.f32 %v2587, 0.0
        %v2618 = vmax.f32 %v2588, 0.0
        %v2619 = vmax.f32 %v2589, 0.0
        %v2620 = vmax.f32 %v2590, 0.0
        %v2621 = vmax.f32 %v2591, 0.0
        %v2622 = vmax.f32 %v2592, 0.0
        %v2623 = vmax.f32 %v2593, 0.0
        %v2624 = vmax.f32 %v2594, 0.0
        %v2625 = vmax.f32 %v2595, 0.0
        %v2626 = vmax.f32 %v2596, 0.0
        %v2627 = vmax.f32 %v2597, 0.0
        %v2628 = vmax.f32 %v2598, 0.0
        %v2629 = vmax.f32 %v2599, 0.0
        %v2630 = vmax.f32 %v2600, 0.0
        %v2631 = vmax.f32 %v2601, 0.0
        %v2632 = vmax.f32 %v2602, 0.0
        %v2633 = vmax.f32 %v2603, 0.0
        %v2634 = vmax.f32 %v2604, 0.0
        %v2635 = vmax.f32 %v2605, 0.0
        %v2636 = vmax.f32 %v2606, 0.0
        %v2637 = vstv %s2532
        %v2638 = vadd.s32 %v2637, 1
        %v2639 = vadd.s32 %v2637, 2
        %v2640 = vadd.s32 %v2637, 3
        %v2641 = vadd.s32 %v2637, 4
        %v2642 = vadd.s32 %v2637, 5
        %v2643 = vadd.s32 %v2637, 6
        %v2644 = vadd.s32 %v2637, 7
        %v2645 = vadd.s32 %v2637, 8
        %v2646 = vadd.s32 %v2637, 9
        %v2647 = vadd.s32 %v725, 4294967295
        %v2648 = vadd.s32 %v726, 4294967295
        %v2649 = vadd.s32 %v727, 4294967295
        %vm2650 = vcmp.ge.s32.totalorder %v2637, 0
        %vm2651 = vcmp.ge.s32.totalorder %v2638, 0
        %vm2652 = vcmp.ge.s32.totalorder %v2639, 0
        %vm2653 = vcmp.ge.s32.totalorder %v2640, 0
        %vm2654 = vcmp.ge.s32.totalorder %v2641, 0
        %vm2655 = vcmp.ge.s32.totalorder %v2642, 0
        %vm2656 = vcmp.ge.s32.totalorder %v2643, 0
        %vm2657 = vcmp.ge.s32.totalorder %v2644, 0
        %vm2658 = vcmp.ge.s32.totalorder %v2645, 0
        %vm2659 = vcmp.ge.s32.totalorder %v2646, 0
        %vm2660 = vcmp.lt.s32.totalorder %v2637, 16
        %vm2661 = vcmp.lt.s32.totalorder %v2638, 16
        %vm2662 = vcmp.lt.s32.totalorder %v2639, 16
        %vm2663 = vcmp.lt.s32.totalorder %v2640, 16
        %vm2664 = vcmp.lt.s32.totalorder %v2641, 16
        %vm2665 = vcmp.lt.s32.totalorder %v2642, 16
        %vm2666 = vcmp.lt.s32.totalorder %v2643, 16
        %vm2667 = vcmp.lt.s32.totalorder %v2644, 16
        %vm2668 = vcmp.lt.s32.totalorder %v2645, 16
        %vm2669 = vcmp.lt.s32.totalorder %v2646, 16
        %vm2670 = vmand %vm2650, %vm2660
        %vm2671 = vmand %vm2651, %vm2661
        %vm2672 = vmand %vm2652, %vm2662
        %vm2673 = vmand %vm2653, %vm2663
        %vm2674 = vmand %vm2654, %vm2664
        %vm2675 = vmand %vm2655, %vm2665
        %vm2676 = vmand %vm2656, %vm2666
        %vm2677 = vmand %vm2657, %vm2667
        %vm2678 = vmand %vm2658, %vm2668
        %vm2679 = vmand %vm2659, %vm2669
        %vm2680 = vcmp.ge.s32.totalorder %v2647, 0
        %vm2681 = vcmp.ge.s32.totalorder %v2648, 0
        %vm2682 = vcmp.ge.s32.totalorder %v2649, 0
        %vm2683 = vmand %vm2670, %vm2680
        %vm2684 = vmand %vm2670, %vm2681
        %vm2685 = vmand %vm2670, %vm2682
        %vm2686 = vmand %vm2671, %vm2680
        %vm2687 = vmand %vm2671, %vm2681
        %vm2688 = vmand %vm2671, %vm2682
        %vm2689 = vmand %vm2672, %vm2680
        %vm2690 = vmand %vm2672, %vm2681
        %vm2691 = vmand %vm2672, %vm2682
        %vm2692 = vmand %vm2673, %vm2680
        %vm2693 = vmand %vm2673, %vm2681
        %vm2694 = vmand %vm2673, %vm2682
        %vm2695 = vmand %vm2674, %vm2680
        %vm2696 = vmand %vm2674, %vm2681
        %vm2697 = vmand %vm2674, %vm2682
        %vm2698 = vmand %vm2675, %vm2680
        %vm2699 = vmand %vm2675, %vm2681
        %vm2700 = vmand %vm2675, %vm2682
        %vm2701 = vmand %vm2676, %vm2680
        %vm2702 = vmand %vm2676, %vm2681
        %vm2703 = vmand %vm2676, %vm2682
        %vm2704 = vmand %vm2677, %vm2680
        %vm2705 = vmand %vm2677, %vm2681
        %vm2706 = vmand %vm2677, %vm2682
        %vm2707 = vmand %vm2678, %vm2680
        %vm2708 = vmand %vm2678, %vm2681
        %vm2709 = vmand %vm2678, %vm2682
        %vm2710 = vmand %vm2679, %vm2680
        %vm2711 = vmand %vm2679, %vm2681
        %vm2712 = vmand %vm2679, %vm2682
        %vm2713 = vcmp.lt.s32.totalorder %v2647, 16
        %vm2714 = vcmp.lt.s32.totalorder %v2648, 16
        %vm2715 = vcmp.lt.s32.totalorder %v2649, 16
        %vm2716 = vmand %vm2683, %vm2713
        %vm2717 = vmand %vm2684, %vm2714
        %vm2718 = vmand %vm2685, %vm2715
        %vm2719 = vmand %vm2686, %vm2713
        %vm2720 = vmand %vm2687, %vm2714
        %vm2721 = vmand %vm2688, %vm2715
        %vm2722 = vmand %vm2689, %vm2713
        %vm2723 = vmand %vm2690, %vm2714
        %vm2724 = vmand %vm2691, %vm2715
        %vm2725 = vmand %vm2692, %vm2713
        %vm2726 = vmand %vm2693, %vm2714
        %vm2727 = vmand %vm2694, %vm2715
        %vm2728 = vmand %vm2695, %vm2713
        %vm2729 = vmand %vm2696, %vm2714
        %vm2730 = vmand %vm2697, %vm2715
        %vm2731 = vmand %vm2698, %vm2713
        %vm2732 = vmand %vm2699, %vm2714
        %vm2733 = vmand %vm2700, %vm2715
        %vm2734 = vmand %vm2701, %vm2713
        %vm2735 = vmand %vm2702, %vm2714
        %vm2736 = vmand %vm2703, %vm2715
        %vm2737 = vmand %vm2704, %vm2713
        %vm2738 = vmand %vm2705, %vm2714
        %vm2739 = vmand %vm2706, %vm2715
        %vm2740 = vmand %vm2707, %vm2713
        %vm2741 = vmand %vm2708, %vm2714
        %vm2742 = vmand %vm2709, %vm2715
        %vm2743 = vmand %vm2710, %vm2713
        %vm2744 = vmand %vm2711, %vm2714
        %vm2745 = vmand %vm2712, %vm2715
        %v2746 = vsel %vm2716, %v2607, 0.0
        %v2747 = vsel %vm2717, %v2608, 0.0
        %v2748 = vsel %vm2718, %v2609, 0.0
        %v2749 = vsel %vm2719, %v2610, 0.0
        %v2750 = vsel %vm2720, %v2611, 0.0
        %v2751 = vsel %vm2721, %v2612, 0.0
        %v2752 = vsel %vm2722, %v2613, 0.0
        %v2753 = vsel %vm2723, %v2614, 0.0
        %v2754 = vsel %vm2724, %v2615, 0.0
        %v2755 = vsel %vm2725, %v2616, 0.0
        %v2756 = vsel %vm2726, %v2617, 0.0
        %v2757 = vsel %vm2727, %v2618, 0.0
        %v2758 = vsel %vm2728, %v2619, 0.0
        %v2759 = vsel %vm2729, %v2620, 0.0
        %v2760 = vsel %vm2730, %v2621, 0.0
        %v2761 = vsel %vm2731, %v2622, 0.0
        %v2762 = vsel %vm2732, %v2623, 0.0
        %v2763 = vsel %vm2733, %v2624, 0.0
        %v2764 = vsel %vm2734, %v2625, 0.0
        %v2765 = vsel %vm2735, %v2626, 0.0
        %v2766 = vsel %vm2736, %v2627, 0.0
        %v2767 = vsel %vm2737, %v2628, 0.0
        %v2768 = vsel %vm2738, %v2629, 0.0
        %v2769 = vsel %vm2739, %v2630, 0.0
        %v2770 = vsel %vm2740, %v2631, 0.0
        %v2771 = vsel %vm2741, %v2632, 0.0
        %v2772 = vsel %vm2742, %v2633, 0.0
        %v2773 = vsel %vm2743, %v2634, 0.0
        %v2774 = vsel %vm2744, %v2635, 0.0
        %v2775 = vsel %vm2745, %v2636, 0.0
        %v2800 = vrot.slane %v2746, 1
        %v2801 = vrot.slane %v2747, 1
        %v2802 = vsel %vm921, %v2800, %v2801
        %v2803 = vrot.slane %v2748, 1
        %v2804 = vsel %vm921, %v2801, %v2803
        %v2805 = vrot.slane %v2749, 1
        %v2806 = vrot.slane %v2750, 1
        %v2807 = vsel %vm921, %v2805, %v2806
        %v2808 = vrot.slane %v2751, 1
        %v2809 = vsel %vm921, %v2806, %v2808
        %v2810 = vrot.slane %v2752, 1
        %v2811 = vrot.slane %v2753, 1
        %v2812 = vsel %vm921, %v2810, %v2811
        %v2813 = vrot.slane %v2754, 1
        %v2814 = vsel %vm921, %v2811, %v2813
        %v2815 = vrot.slane %v2755, 1
        %v2816 = vrot.slane %v2756, 1
        %v2817 = vsel %vm921, %v2815, %v2816
        %v2818 = vrot.slane %v2757, 1
        %v2819 = vsel %vm921, %v2816, %v2818
        %v2820 = vrot.slane %v2758, 1
        %v2821 = vrot.slane %v2759, 1
        %v2822 = vsel %vm921, %v2820, %v2821
        %v2823 = vrot.slane %v2760, 1
        %v2824 = vsel %vm921, %v2821, %v2823
        %v2825 = vrot.slane %v2761, 1
        %v2826 = vrot.slane %v2762, 1
        %v2827 = vsel %vm921, %v2825, %v2826
        %v2828 = vrot.slane %v2763, 1
        %v2829 = vsel %vm921, %v2826, %v2828
        %v2830 = vrot.slane %v2764, 1
        %v2831 = vrot.slane %v2765, 1
        %v2832 = vsel %vm921, %v2830, %v2831
        %v2833 = vrot.slane %v2766, 1
        %v2834 = vsel %vm921, %v2831, %v2833
        %v2835 = vrot.slane %v2767, 1
        %v2836 = vrot.slane %v2768, 1
        %v2837 = vsel %vm921, %v2835, %v2836
        %v2838 = vrot.slane %v2769, 1
        %v2839 = vsel %vm921, %v2836, %v2838
        %2840 = vrot.lane.b32.xlu0 %v2802, 8
        %v2841 = vpop.permute.xlu0 %2840
        %2842 = vrot.lane.b32.xlu0 %v2804, 8
        %v2843 = vpop.permute.xlu0 %2842
        %2844 = vrot.lane.b32.xlu0 %v2807, 8
        %v2845 = vpop.permute.xlu0 %2844
        %2846 = vrot.lane.b32.xlu0 %v2809, 8
        %v2847 = vpop.permute.xlu0 %2846
        %2848 = vrot.lane.b32.xlu0 %v2812, 8
        %v2849 = vpop.permute.xlu0 %2848
        %2850 = vrot.lane.b32.xlu0 %v2814, 8
        %v2851 = vpop.permute.xlu0 %2850
        %2852 = vrot.lane.b32.xlu0 %v2817, 8
        %v2853 = vpop.permute.xlu0 %2852
        %2854 = vrot.lane.b32.xlu0 %v2819, 8
        %v2855 = vpop.permute.xlu0 %2854
        %2856 = vrot.lane.b32.xlu0 %v2822, 8
        %v2857 = vpop.permute.xlu0 %2856
        %2858 = vrot.lane.b32.xlu0 %v2824, 8
        %v2859 = vpop.permute.xlu0 %2858
        %2860 = vrot.lane.b32.xlu0 %v2827, 8
        %v2861 = vpop.permute.xlu0 %2860
        %2862 = vrot.lane.b32.xlu0 %v2829, 8
        %v2863 = vpop.permute.xlu0 %2862
        %2864 = vrot.lane.b32.xlu0 %v2832, 8
        %v2865 = vpop.permute.xlu0 %2864
        %2866 = vrot.lane.b32.xlu0 %v2834, 8
        %v2867 = vpop.permute.xlu0 %2866
        %2868 = vrot.lane.b32.xlu0 %v2837, 8
        %v2869 = vpop.permute.xlu0 %2868
        %2870 = vrot.lane.b32.xlu0 %v2839, 8
        %v2871 = vpop.permute.xlu0 %2870
        %v2888 = vrot.slane %v2746, 2
        %v2889 = vrot.slane %v2747, 2
        %v2890 = vsel %vm1302, %v2888, %v2889
        %v2891 = vrot.slane %v2748, 2
        %v2892 = vsel %vm1302, %v2889, %v2891
        %v2893 = vrot.slane %v2749, 2
        %v2894 = vrot.slane %v2750, 2
        %v2895 = vsel %vm1302, %v2893, %v2894
        %v2896 = vrot.slane %v2751, 2
        %v2897 = vsel %vm1302, %v2894, %v2896
        %v2898 = vrot.slane %v2752, 2
        %v2899 = vrot.slane %v2753, 2
        %v2900 = vsel %vm1302, %v2898, %v2899
        %v2901 = vrot.slane %v2754, 2
        %v2902 = vsel %vm1302, %v2899, %v2901
        %v2903 = vrot.slane %v2755, 2
        %v2904 = vrot.slane %v2756, 2
        %v2905 = vsel %vm1302, %v2903, %v2904
        %v2906 = vrot.slane %v2757, 2
        %v2907 = vsel %vm1302, %v2904, %v2906
        %v2908 = vrot.slane %v2758, 2
        %v2909 = vrot.slane %v2759, 2
        %v2910 = vsel %vm1302, %v2908, %v2909
        %v2911 = vrot.slane %v2760, 2
        %v2912 = vsel %vm1302, %v2909, %v2911
        %v2913 = vrot.slane %v2761, 2
        %v2914 = vrot.slane %v2762, 2
        %v2915 = vsel %vm1302, %v2913, %v2914
        %v2916 = vrot.slane %v2763, 2
        %v2917 = vsel %vm1302, %v2914, %v2916
        %v2918 = vrot.slane %v2764, 2
        %v2919 = vrot.slane %v2765, 2
        %v2920 = vsel %vm1302, %v2918, %v2919
        %v2921 = vrot.slane %v2766, 2
        %v2922 = vsel %vm1302, %v2919, %v2921
        %v2923 = vrot.slane %v2767, 2
        %v2924 = vrot.slane %v2768, 2
        %v2925 = vsel %vm1302, %v2923, %v2924
        %v2926 = vrot.slane %v2769, 2
        %v2927 = vsel %vm1302, %v2924, %v2926
        %2928 = vrot.lane.b32.xlu0 %v2890, 16
        %v2929 = vpop.permute.xlu0 %2928
        %2930 = vrot.lane.b32.xlu0 %v2892, 16
        %v2931 = vpop.permute.xlu0 %2930
        %2932 = vrot.lane.b32.xlu0 %v2895, 16
        %v2933 = vpop.permute.xlu0 %2932
        %2934 = vrot.lane.b32.xlu0 %v2897, 16
        %v2935 = vpop.permute.xlu0 %2934
        %2936 = vrot.lane.b32.xlu0 %v2900, 16
        %v2937 = vpop.permute.xlu0 %2936
        %2938 = vrot.lane.b32.xlu0 %v2902, 16
        %v2939 = vpop.permute.xlu0 %2938
        %2940 = vrot.lane.b32.xlu0 %v2905, 16
        %v2941 = vpop.permute.xlu0 %2940
        %2942 = vrot.lane.b32.xlu0 %v2907, 16
        %v2943 = vpop.permute.xlu0 %2942
        %2944 = vrot.lane.b32.xlu0 %v2910, 16
        %v2945 = vpop.permute.xlu0 %2944
        %2946 = vrot.lane.b32.xlu0 %v2912, 16
        %v2947 = vpop.permute.xlu0 %2946
        %2948 = vrot.lane.b32.xlu0 %v2915, 16
        %v2949 = vpop.permute.xlu0 %2948
        %2950 = vrot.lane.b32.xlu0 %v2917, 16
        %v2951 = vpop.permute.xlu0 %2950
        %2952 = vrot.lane.b32.xlu0 %v2920, 16
        %v2953 = vpop.permute.xlu0 %2952
        %2954 = vrot.lane.b32.xlu0 %v2922, 16
        %v2955 = vpop.permute.xlu0 %2954
        %2956 = vrot.lane.b32.xlu0 %v2925, 16
        %v2957 = vpop.permute.xlu0 %2956
        %2958 = vrot.lane.b32.xlu0 %v2927, 16
        %v2959 = vpop.permute.xlu0 %2958
        %2978 = vrot.lane.b32.xlu0 %v2749, 24
        %v2979 = vpop.permute.xlu0 %2978
        %2980 = vrot.lane.b32.xlu0 %v2750, 24
        %v2981 = vpop.permute.xlu0 %2980
        %2982 = vrot.lane.b32.xlu0 %v2752, 24
        %v2983 = vpop.permute.xlu0 %2982
        %2984 = vrot.lane.b32.xlu0 %v2753, 24
        %v2985 = vpop.permute.xlu0 %2984
        %2986 = vrot.lane.b32.xlu0 %v2755, 24
        %v2987 = vpop.permute.xlu0 %2986
        %2988 = vrot.lane.b32.xlu0 %v2756, 24
        %v2989 = vpop.permute.xlu0 %2988
        %2990 = vrot.lane.b32.xlu0 %v2758, 24
        %v2991 = vpop.permute.xlu0 %2990
        %2992 = vrot.lane.b32.xlu0 %v2759, 24
        %v2993 = vpop.permute.xlu0 %2992
        %2994 = vrot.lane.b32.xlu0 %v2761, 24
        %v2995 = vpop.permute.xlu0 %2994
        %2996 = vrot.lane.b32.xlu0 %v2762, 24
        %v2997 = vpop.permute.xlu0 %2996
        %2998 = vrot.lane.b32.xlu0 %v2764, 24
        %v2999 = vpop.permute.xlu0 %2998
        %3000 = vrot.lane.b32.xlu0 %v2765, 24
        %v3001 = vpop.permute.xlu0 %3000
        %3002 = vrot.lane.b32.xlu0 %v2767, 24
        %v3003 = vpop.permute.xlu0 %3002
        %3004 = vrot.lane.b32.xlu0 %v2768, 24
        %v3005 = vpop.permute.xlu0 %3004
        %3006 = vrot.lane.b32.xlu0 %v2770, 24
        %v3007 = vpop.permute.xlu0 %3006
        %3008 = vrot.lane.b32.xlu0 %v2771, 24
        %v3009 = vpop.permute.xlu0 %3008
        %v3027 = vrot.slane %v2770, 1
        %v3028 = vrot.slane %v2771, 1
        %v3029 = vsel %vm921, %v3027, %v3028
        %v3030 = vrot.slane %v2772, 1
        %v3031 = vsel %vm921, %v3028, %v3030
        %3032 = vrot.lane.b32.xlu0 %v2807, 32
        %v3033 = vpop.permute.xlu0 %3032
        %3034 = vrot.lane.b32.xlu0 %v2809, 32
        %v3035 = vpop.permute.xlu0 %3034
        %3036 = vrot.lane.b32.xlu0 %v2812, 32
        %v3037 = vpop.permute.xlu0 %3036
        %3038 = vrot.lane.b32.xlu0 %v2814, 32
        %v3039 = vpop.permute.xlu0 %3038
        %3040 = vrot.lane.b32.xlu0 %v2817, 32
        %v3041 = vpop.permute.xlu0 %3040
        %3042 = vrot.lane.b32.xlu0 %v2819, 32
        %v3043 = vpop.permute.xlu0 %3042
        %3044 = vrot.lane.b32.xlu0 %v2822, 32
        %v3045 = vpop.permute.xlu0 %3044
        %3046 = vrot.lane.b32.xlu0 %v2824, 32
        %v3047 = vpop.permute.xlu0 %3046
        %3048 = vrot.lane.b32.xlu0 %v2827, 32
        %v3049 = vpop.permute.xlu0 %3048
        %3050 = vrot.lane.b32.xlu0 %v2829, 32
        %v3051 = vpop.permute.xlu0 %3050
        %3052 = vrot.lane.b32.xlu0 %v2832, 32
        %v3053 = vpop.permute.xlu0 %3052
        %3054 = vrot.lane.b32.xlu0 %v2834, 32
        %v3055 = vpop.permute.xlu0 %3054
        %3056 = vrot.lane.b32.xlu0 %v2837, 32
        %v3057 = vpop.permute.xlu0 %3056
        %3058 = vrot.lane.b32.xlu0 %v2839, 32
        %v3059 = vpop.permute.xlu0 %3058
        %3060 = vrot.lane.b32.xlu0 %v3029, 32
        %v3061 = vpop.permute.xlu0 %3060
        %3062 = vrot.lane.b32.xlu0 %v3031, 32
        %v3063 = vpop.permute.xlu0 %3062
        %v3080 = vrot.slane %v2770, 2
        %v3081 = vrot.slane %v2771, 2
        %v3082 = vsel %vm1302, %v3080, %v3081
        %v3083 = vrot.slane %v2772, 2
        %v3084 = vsel %vm1302, %v3081, %v3083
        %3085 = vrot.lane.b32.xlu0 %v2895, 40
        %v3086 = vpop.permute.xlu0 %3085
        %3087 = vrot.lane.b32.xlu0 %v2897, 40
        %v3088 = vpop.permute.xlu0 %3087
        %3089 = vrot.lane.b32.xlu0 %v2900, 40
        %v3090 = vpop.permute.xlu0 %3089
        %3091 = vrot.lane.b32.xlu0 %v2902, 40
        %v3092 = vpop.permute.xlu0 %3091
        %3093 = vrot.lane.b32.xlu0 %v2905, 40
        %v3094 = vpop.permute.xlu0 %3093
        %3095 = vrot.lane.b32.xlu0 %v2907, 40
        %v3096 = vpop.permute.xlu0 %3095
        %3097 = vrot.lane.b32.xlu0 %v2910, 40
        %v3098 = vpop.permute.xlu0 %3097
        %3099 = vrot.lane.b32.xlu0 %v2912, 40
        %v3100 = vpop.permute.xlu0 %3099
        %3101 = vrot.lane.b32.xlu0 %v2915, 40
        %v3102 = vpop.permute.xlu0 %3101
        %3103 = vrot.lane.b32.xlu0 %v2917, 40
        %v3104 = vpop.permute.xlu0 %3103
        %3105 = vrot.lane.b32.xlu0 %v2920, 40
        %v3106 = vpop.permute.xlu0 %3105
        %3107 = vrot.lane.b32.xlu0 %v2922, 40
        %v3108 = vpop.permute.xlu0 %3107
        %3109 = vrot.lane.b32.xlu0 %v2925, 40
        %v3110 = vpop.permute.xlu0 %3109
        %3111 = vrot.lane.b32.xlu0 %v2927, 40
        %v3112 = vpop.permute.xlu0 %3111
        %3113 = vrot.lane.b32.xlu0 %v3082, 40
        %v3114 = vpop.permute.xlu0 %3113
        %3115 = vrot.lane.b32.xlu0 %v3084, 40
        %v3116 = vpop.permute.xlu0 %3115
        %3135 = vrot.lane.b32.xlu0 %v2752, 48
        %v3136 = vpop.permute.xlu0 %3135
        %3137 = vrot.lane.b32.xlu0 %v2753, 48
        %v3138 = vpop.permute.xlu0 %3137
        %3139 = vrot.lane.b32.xlu0 %v2755, 48
        %v3140 = vpop.permute.xlu0 %3139
        %3141 = vrot.lane.b32.xlu0 %v2756, 48
        %v3142 = vpop.permute.xlu0 %3141
        %3143 = vrot.lane.b32.xlu0 %v2758, 48
        %v3144 = vpop.permute.xlu0 %3143
        %3145 = vrot.lane.b32.xlu0 %v2759, 48
        %v3146 = vpop.permute.xlu0 %3145
        %3147 = vrot.lane.b32.xlu0 %v2761, 48
        %v3148 = vpop.permute.xlu0 %3147
        %3149 = vrot.lane.b32.xlu0 %v2762, 48
        %v3150 = vpop.permute.xlu0 %3149
        %3151 = vrot.lane.b32.xlu0 %v2764, 48
        %v3152 = vpop.permute.xlu0 %3151
        %3153 = vrot.lane.b32.xlu0 %v2765, 48
        %v3154 = vpop.permute.xlu0 %3153
        %3155 = vrot.lane.b32.xlu0 %v2767, 48
        %v3156 = vpop.permute.xlu0 %3155
        %3157 = vrot.lane.b32.xlu0 %v2768, 48
        %v3158 = vpop.permute.xlu0 %3157
        %3159 = vrot.lane.b32.xlu0 %v2770, 48
        %v3160 = vpop.permute.xlu0 %3159
        %3161 = vrot.lane.b32.xlu0 %v2771, 48
        %v3162 = vpop.permute.xlu0 %3161
        %3163 = vrot.lane.b32.xlu0 %v2773, 48
        %v3164 = vpop.permute.xlu0 %3163
        %3165 = vrot.lane.b32.xlu0 %v2774, 48
        %v3166 = vpop.permute.xlu0 %3165
        %v3184 = vrot.slane %v2773, 1
        %v3185 = vrot.slane %v2774, 1
        %v3186 = vsel %vm921, %v3184, %v3185
        %v3187 = vrot.slane %v2775, 1
        %v3188 = vsel %vm921, %v3185, %v3187
        %3189 = vrot.lane.b32.xlu0 %v2812, 56
        %v3190 = vpop.permute.xlu0 %3189
        %3191 = vrot.lane.b32.xlu0 %v2814, 56
        %v3192 = vpop.permute.xlu0 %3191
        %3193 = vrot.lane.b32.xlu0 %v2817, 56
        %v3194 = vpop.permute.xlu0 %3193
        %3195 = vrot.lane.b32.xlu0 %v2819, 56
        %v3196 = vpop.permute.xlu0 %3195
        %3197 = vrot.lane.b32.xlu0 %v2822, 56
        %v3198 = vpop.permute.xlu0 %3197
        %3199 = vrot.lane.b32.xlu0 %v2824, 56
        %v3200 = vpop.permute.xlu0 %3199
        %3201 = vrot.lane.b32.xlu0 %v2827, 56
        %v3202 = vpop.permute.xlu0 %3201
        %3203 = vrot.lane.b32.xlu0 %v2829, 56
        %v3204 = vpop.permute.xlu0 %3203
        %3205 = vrot.lane.b32.xlu0 %v2832, 56
        %v3206 = vpop.permute.xlu0 %3205
        %3207 = vrot.lane.b32.xlu0 %v2834, 56
        %v3208 = vpop.permute.xlu0 %3207
        %3209 = vrot.lane.b32.xlu0 %v2837, 56
        %v3210 = vpop.permute.xlu0 %3209
        %3211 = vrot.lane.b32.xlu0 %v2839, 56
        %v3212 = vpop.permute.xlu0 %3211
        %3213 = vrot.lane.b32.xlu0 %v3029, 56
        %v3214 = vpop.permute.xlu0 %3213
        %3215 = vrot.lane.b32.xlu0 %v3031, 56
        %v3216 = vpop.permute.xlu0 %3215
        %3217 = vrot.lane.b32.xlu0 %v3186, 56
        %v3218 = vpop.permute.xlu0 %3217
        %3219 = vrot.lane.b32.xlu0 %v3188, 56
        %v3220 = vpop.permute.xlu0 %3219
        %v3237 = vrot.slane %v2773, 2
        %v3238 = vrot.slane %v2774, 2
        %v3239 = vsel %vm1302, %v3237, %v3238
        %v3240 = vrot.slane %v2775, 2
        %v3241 = vsel %vm1302, %v3238, %v3240
        %3242 = vrot.lane.b32.xlu0 %v2900, 64
        %v3243 = vpop.permute.xlu0 %3242
        %3244 = vrot.lane.b32.xlu0 %v2902, 64
        %v3245 = vpop.permute.xlu0 %3244
        %3246 = vrot.lane.b32.xlu0 %v2905, 64
        %v3247 = vpop.permute.xlu0 %3246
        %3248 = vrot.lane.b32.xlu0 %v2907, 64
        %v3249 = vpop.permute.xlu0 %3248
        %3250 = vrot.lane.b32.xlu0 %v2910, 64
        %v3251 = vpop.permute.xlu0 %3250
        %3252 = vrot.lane.b32.xlu0 %v2912, 64
        %v3253 = vpop.permute.xlu0 %3252
        %3254 = vrot.lane.b32.xlu0 %v2915, 64
        %v3255 = vpop.permute.xlu0 %3254
        %3256 = vrot.lane.b32.xlu0 %v2917, 64
        %v3257 = vpop.permute.xlu0 %3256
        %3258 = vrot.lane.b32.xlu0 %v2920, 64
        %v3259 = vpop.permute.xlu0 %3258
        %3260 = vrot.lane.b32.xlu0 %v2922, 64
        %v3261 = vpop.permute.xlu0 %3260
        %3262 = vrot.lane.b32.xlu0 %v2925, 64
        %v3263 = vpop.permute.xlu0 %3262
        %3264 = vrot.lane.b32.xlu0 %v2927, 64
        %v3265 = vpop.permute.xlu0 %3264
        %3266 = vrot.lane.b32.xlu0 %v3082, 64
        %v3267 = vpop.permute.xlu0 %3266
        %3268 = vrot.lane.b32.xlu0 %v3084, 64
        %v3269 = vpop.permute.xlu0 %3268
        %3270 = vrot.lane.b32.xlu0 %v3239, 64
        %v3271 = vpop.permute.xlu0 %3270
        %3272 = vrot.lane.b32.xlu0 %v3241, 64
        %v3273 = vpop.permute.xlu0 %3272
        %v3290 = vsel %vm2070, %v2746, %v2841
        %v3291 = vsel %vm2070, %v2747, %v2843
        %v3292 = vsel %vm2070, %v2749, %v2845
        %v3293 = vsel %vm2070, %v2750, %v2847
        %v3294 = vsel %vm2070, %v2752, %v2849
        %v3295 = vsel %vm2070, %v2753, %v2851
        %v3296 = vsel %vm2070, %v2755, %v2853
        %v3297 = vsel %vm2070, %v2756, %v2855
        %v3298 = vsel %vm2070, %v2758, %v2857
        %v3299 = vsel %vm2070, %v2759, %v2859
        %v3300 = vsel %vm2070, %v2761, %v2861
        %v3301 = vsel %vm2070, %v2762, %v2863
        %v3302 = vsel %vm2070, %v2764, %v2865
        %v3303 = vsel %vm2070, %v2765, %v2867
        %v3304 = vsel %vm2070, %v2767, %v2869
        %v3305 = vsel %vm2070, %v2768, %v2871
        %v3306 = vsel %vm2132, %v3290, %v2929
        %v3307 = vsel %vm2132, %v3291, %v2931
        %v3308 = vsel %vm2132, %v3292, %v2933
        %v3309 = vsel %vm2132, %v3293, %v2935
        %v3310 = vsel %vm2132, %v3294, %v2937
        %v3311 = vsel %vm2132, %v3295, %v2939
        %v3312 = vsel %vm2132, %v3296, %v2941
        %v3313 = vsel %vm2132, %v3297, %v2943
        %v3314 = vsel %vm2132, %v3298, %v2945
        %v3315 = vsel %vm2132, %v3299, %v2947
        %v3316 = vsel %vm2132, %v3300, %v2949
        %v3317 = vsel %vm2132, %v3301, %v2951
        %v3318 = vsel %vm2132, %v3302, %v2953
        %v3319 = vsel %vm2132, %v3303, %v2955
        %v3320 = vsel %vm2132, %v3304, %v2957
        %v3321 = vsel %vm2132, %v3305, %v2959
        %v3322 = vsel %vm2194, %v3306, %v2979
        %v3323 = vsel %vm2194, %v3307, %v2981
        %v3324 = vsel %vm2194, %v3308, %v2983
        %v3325 = vsel %vm2194, %v3309, %v2985
        %v3326 = vsel %vm2194, %v3310, %v2987
        %v3327 = vsel %vm2194, %v3311, %v2989
        %v3328 = vsel %vm2194, %v3312, %v2991
        %v3329 = vsel %vm2194, %v3313, %v2993
        %v3330 = vsel %vm2194, %v3314, %v2995
        %v3331 = vsel %vm2194, %v3315, %v2997
        %v3332 = vsel %vm2194, %v3316, %v2999
        %v3333 = vsel %vm2194, %v3317, %v3001
        %v3334 = vsel %vm2194, %v3318, %v3003
        %v3335 = vsel %vm2194, %v3319, %v3005
        %v3336 = vsel %vm2194, %v3320, %v3007
        %v3337 = vsel %vm2194, %v3321, %v3009
        %v3338 = vsel %vm2256, %v3322, %v3033
        %v3339 = vsel %vm2256, %v3323, %v3035
        %v3340 = vsel %vm2256, %v3324, %v3037
        %v3341 = vsel %vm2256, %v3325, %v3039
        %v3342 = vsel %vm2256, %v3326, %v3041
        %v3343 = vsel %vm2256, %v3327, %v3043
        %v3344 = vsel %vm2256, %v3328, %v3045
        %v3345 = vsel %vm2256, %v3329, %v3047
        %v3346 = vsel %vm2256, %v3330, %v3049
        %v3347 = vsel %vm2256, %v3331, %v3051
        %v3348 = vsel %vm2256, %v3332, %v3053
        %v3349 = vsel %vm2256, %v3333, %v3055
        %v3350 = vsel %vm2256, %v3334, %v3057
        %v3351 = vsel %vm2256, %v3335, %v3059
        %v3352 = vsel %vm2256, %v3336, %v3061
        %v3353 = vsel %vm2256, %v3337, %v3063
        %vm3354 = vcmask 326656
        %v3355 = vsel %vm3354, %v3338, %v3086
        %v3356 = vsel %vm3354, %v3339, %v3088
        %v3357 = vsel %vm3354, %v3340, %v3090
        %v3358 = vsel %vm3354, %v3341, %v3092
        %v3359 = vsel %vm3354, %v3342, %v3094
        %v3360 = vsel %vm3354, %v3343, %v3096
        %v3361 = vsel %vm3354, %v3344, %v3098
        %v3362 = vsel %vm3354, %v3345, %v3100
        %v3363 = vsel %vm3354, %v3346, %v3102
        %v3364 = vsel %vm3354, %v3347, %v3104
        %v3365 = vsel %vm3354, %v3348, %v3106
        %v3366 = vsel %vm3354, %v3349, %v3108
        %v3367 = vsel %vm3354, %v3350, %v3110
        %v3368 = vsel %vm3354, %v3351, %v3112
        %v3369 = vsel %vm3354, %v3352, %v3114
        %v3370 = vsel %vm3354, %v3353, %v3116
        %vm3371 = vcmask 392192
        %v3372 = vsel %vm3371, %v3355, %v3136
        %v3373 = vsel %vm3371, %v3356, %v3138
        %v3374 = vsel %vm3371, %v3357, %v3140
        %v3375 = vsel %vm3371, %v3358, %v3142
        %v3376 = vsel %vm3371, %v3359, %v3144
        %v3377 = vsel %vm3371, %v3360, %v3146
        %v3378 = vsel %vm3371, %v3361, %v3148
        %v3379 = vsel %vm3371, %v3362, %v3150
        %v3380 = vsel %vm3371, %v3363, %v3152
        %v3381 = vsel %vm3371, %v3364, %v3154
        %v3382 = vsel %vm3371, %v3365, %v3156
        %v3383 = vsel %vm3371, %v3366, %v3158
        %v3384 = vsel %vm3371, %v3367, %v3160
        %v3385 = vsel %vm3371, %v3368, %v3162
        %v3386 = vsel %vm3371, %v3369, %v3164
        %v3387 = vsel %vm3371, %v3370, %v3166
        %vm3388 = vcmask 457728
        %v3389 = vsel %vm3388, %v3372, %v3190
        %v3390 = vsel %vm3388, %v3373, %v3192
        %v3391 = vsel %vm3388, %v3374, %v3194
        %v3392 = vsel %vm3388, %v3375, %v3196
        %v3393 = vsel %vm3388, %v3376, %v3198
        %v3394 = vsel %vm3388, %v3377, %v3200
        %v3395 = vsel %vm3388, %v3378, %v3202
        %v3396 = vsel %vm3388, %v3379, %v3204
        %v3397 = vsel %vm3388, %v3380, %v3206
        %v3398 = vsel %vm3388, %v3381, %v3208
        %v3399 = vsel %vm3388, %v3382, %v3210
        %v3400 = vsel %vm3388, %v3383, %v3212
        %v3401 = vsel %vm3388, %v3384, %v3214
        %v3402 = vsel %vm3388, %v3385, %v3216
        %v3403 = vsel %vm3388, %v3386, %v3218
        %v3404 = vsel %vm3388, %v3387, %v3220
        %vm3405 = vcmask 523264
        %v3406 = vsel %vm3405, %v3389, %v3243
        %v3407 = vsel %vm3405, %v3390, %v3245
        %v3408 = vsel %vm3405, %v3391, %v3247
        %v3409 = vsel %vm3405, %v3392, %v3249
        %v3410 = vsel %vm3405, %v3393, %v3251
        %v3411 = vsel %vm3405, %v3394, %v3253
        %v3412 = vsel %vm3405, %v3395, %v3255
        %v3413 = vsel %vm3405, %v3396, %v3257
        %v3414 = vsel %vm3405, %v3397, %v3259
        %v3415 = vsel %vm3405, %v3398, %v3261
        %v3416 = vsel %vm3405, %v3399, %v3263
        %v3417 = vsel %vm3405, %v3400, %v3265
        %v3418 = vsel %vm3405, %v3401, %v3267
        %v3419 = vsel %vm3405, %v3402, %v3269
        %v3420 = vsel %vm3405, %v3403, %v3271
        %v3421 = vsel %vm3405, %v3404, %v3273
        %v3422 = vpack.c.bf16 %v3407, %v3406
        %v3423 = vpack.c.bf16 %v3409, %v3408
        %v3424 = vpack.c.bf16 %v3411, %v3410
        %v3425 = vpack.c.bf16 %v3413, %v3412
        %v3426 = vpack.c.bf16 %v3415, %v3414
        %v3427 = vpack.c.bf16 %v3417, %v3416
        %v3428 = vpack.c.bf16 %v3419, %v3418
        %v3429 = vpack.c.bf16 %v3421, %v3420
        %v3430 = vld [vmem:[%s8] sm:$0xf]
        %v3431 = vld [vmem:[%s8 + $0x4] sm:$0xf]
        %v3432 = vld [vmem:[%s8 + $0x8] sm:$0xf]
        %v3433 = vld [vmem:[%s8 + $0xc] sm:$0xf]
        %v3434 = vld [vmem:[%s8 + $0x10] sm:$0xf]
        %v3435 = vld [vmem:[%s8 + $0x14] sm:$0xf]
        %v3436 = vld [vmem:[%s8 + $0x18] sm:$0xf]
        %v3437 = vld [vmem:[%s8 + $0x1c] sm:$0xf]
        %v3438 = vld [vmem:[%s8 + $0x20] sm:$0xf]
        %v3439 = vld [vmem:[%s9] sm:$0x1]
        %v3441 = vlaneseq
        %v3442 = vshrl.u32 %v3441, 7
        %v3443 = vsub.s32 0, %v3442
        %v3444 = vrot.slane %v3439, %v3443
        %v3455 = vunpack.c.l.b16 %v3430
        %v3456 = vunpack.c.l.b16 %v3431
        %v3457 = vunpack.c.l.b16 %v3432
        %v3458 = vunpack.c.l.b16 %v3433
        %v3459 = vunpack.c.l.b16 %v3434
        %v3460 = vunpack.c.l.b16 %v3435
        %v3461 = vunpack.c.l.b16 %v3436
        %v3462 = vunpack.c.l.b16 %v3437
        %v3463 = vunpack.c.l.b16 %v3438
        %v3464 = vpack.c.b16 %v3456, %v3455
        %v3465 = vpack.c.b16 %v3458, %v3457
        %v3466 = vpack.c.b16 %v3460, %v3459
        %v3467 = vpack.c.b16 %v3462, %v3461
        %v3468 = vpack.c.b16 %v3463, %v3463
        %vm3473 = vcmask 588800
        %v3475 = vsel %vm3473, %v3422, 0
        %v3478 = vsel %vm3473, %v3423, 0
        %v3481 = vsel %vm3473, %v3424, 0
        %v3484 = vsel %vm3473, %v3425, 0
        %v3487 = vsel %vm3473, %v3426, 0
        %v3490 = vsel %vm3473, %v3427, 0
        %v3493 = vsel %vm3473, %v3428, 0
        %v3496 = vsel %vm3473, %v3429, 0
        %vm3498 = vcmask 1043456
        %v3500 = vsel %vm3498, %v3468, 0
        %3502 = vmatprep.subr.bf16.mxu0 0
        %3503 = vmatpush1.bf16.msra.mxu0 0
        %3504 = vmatprep.subr.bf16.mxu0 0
        %3505 = vmatpush1.bf16.msra.mxu0 0
        %3506 = vmatprep.subr.bf16.mxu0 0
        %3507 = vmatpush1.bf16.msra.mxu0 0
        %3508 = vmatprep.subr.bf16.mxu0 0
        %3509 = vmatpush1.bf16.msra.mxu0 %v3500
        %3510 = vmatprep.subr.bf16.mxu0 0
        %3511 = vmatpush1.bf16.msra.mxu0 %v3467
        %3512 = vmatprep.subr.bf16.mxu0 0
        %3513 = vmatpush1.bf16.msra.mxu0 %v3466
        %3514 = vmatprep.subr.bf16.mxu0 0
        %3515 = vmatpush1.bf16.msra.mxu0 %v3465
        %3516 = vmatprep.subr.bf16.mxu0 0
        %3517 = vmatpush1.bf16.msra.mxu0 %v3464
        %3518 = vmatprep.subr.bf16.mxu0 0
        %3519 = vmatpush2.bf16.msra.mxu0 0
        %3520 = vmatprep.subr.bf16.mxu0 0
        %3521 = vmatpush2.bf16.msra.mxu0 0
        %3522 = vmatprep.subr.bf16.mxu0 0
        %3523 = vmatpush2.bf16.msra.mxu0 0
        %3524 = vmatprep.subr.bf16.mxu0 0
        %3525 = vmatpush2.bf16.msra.mxu0 0
        %3526 = vmatprep.subr.bf16.mxu0 0
        %3527 = vmatpush2.bf16.msra.mxu0 0
        %3528 = vmatprep.subr.bf16.mxu0 0
        %3529 = vmatpush2.bf16.msra.mxu0 0
        %3530 = vmatprep.subr.bf16.mxu0 0
        %3531 = vmatpush2.bf16.msra.mxu0 0
        %3532 = vmatprep.subr.bf16.mxu0 0
        %3533 = vmatpush2.bf16.msra.mxu0 0
        %3534 = vmatprep.mubr.bf16.mxu0 0
        %3535 = vmatmul.mubr.bf16.gmra.mxu0 %v3475
        %v3536 = vpop.f32.mrf.mxu0
        %v3537 = vadd.f32 %v3444, %v3536
        %v3538 = vpop.f32.mrf.mxu0
        %v3539 = vpop.f32.mrf.mxu0
        %v3540 = vadd.f32 %v3444, %v3539
        %v3541 = vpop.f32.mrf.mxu0
        %3542 = vmatprep.mubr.bf16.mxu0 0
        %3543 = vmatmul.mubr.bf16.gmra.mxu0 %v3478
        %v3544 = vpop.f32.mrf.mxu0
        %v3545 = vadd.f32 %v3444, %v3544
        %v3546 = vpop.f32.mrf.mxu0
        %v3547 = vpop.f32.mrf.mxu0
        %v3548 = vadd.f32 %v3444, %v3547
        %v3549 = vpop.f32.mrf.mxu0
        %3550 = vmatprep.mubr.bf16.mxu0 0
        %3551 = vmatmul.mubr.bf16.gmra.mxu0 %v3481
        %v3552 = vpop.f32.mrf.mxu0
        %v3553 = vadd.f32 %v3444, %v3552
        %v3554 = vpop.f32.mrf.mxu0
        %v3555 = vpop.f32.mrf.mxu0
        %v3556 = vadd.f32 %v3444, %v3555
        %v3557 = vpop.f32.mrf.mxu0
        %3558 = vmatprep.mubr.bf16.mxu0 0
        %3559 = vmatmul.mubr.bf16.gmra.mxu0 %v3484
        %v3560 = vpop.f32.mrf.mxu0
        %v3561 = vadd.f32 %v3444, %v3560
        %v3562 = vpop.f32.mrf.mxu0
        %v3563 = vpop.f32.mrf.mxu0
        %v3564 = vadd.f32 %v3444, %v3563
        %v3565 = vpop.f32.mrf.mxu0
        %3566 = vmatprep.mubr.bf16.mxu0 0
        %3567 = vmatmul.mubr.bf16.gmra.mxu0 %v3487
        %v3568 = vpop.f32.mrf.mxu0
        %v3569 = vadd.f32 %v3444, %v3568
        %v3570 = vpop.f32.mrf.mxu0
        %v3571 = vpop.f32.mrf.mxu0
        %v3572 = vadd.f32 %v3444, %v3571
        %v3573 = vpop.f32.mrf.mxu0
        %3574 = vmatprep.mubr.bf16.mxu0 0
        %3575 = vmatmul.mubr.bf16.gmra.mxu0 %v3490
        %v3576 = vpop.f32.mrf.mxu0
        %v3577 = vadd.f32 %v3444, %v3576
        %v3578 = vpop.f32.mrf.mxu0
        %v3579 = vpop.f32.mrf.mxu0
        %v3580 = vadd.f32 %v3444, %v3579
        %v3581 = vpop.f32.mrf.mxu0
        %3582 = vmatprep.mubr.bf16.mxu0 0
        %3583 = vmatmul.mubr.bf16.gmra.mxu0 %v3493
        %v3584 = vpop.f32.mrf.mxu0
        %v3585 = vadd.f32 %v3444, %v3584
        %v3586 = vpop.f32.mrf.mxu0
        %v3587 = vpop.f32.mrf.mxu0
        %v3588 = vadd.f32 %v3444, %v3587
        %v3589 = vpop.f32.mrf.mxu0
        %3590 = vmatprep.mubr.bf16.mxu0 0
        %3591 = vmatmul.mubr.bf16.gmra.mxu0 %v3496
        %v3592 = vpop.f32.mrf.mxu0
        %v3593 = vadd.f32 %v3444, %v3592
        %v3594 = vpop.f32.mrf.mxu0
        %v3595 = vpop.f32.mrf.mxu0
        %v3596 = vadd.f32 %v3444, %v3595
        %v3597 = vpop.f32.mrf.mxu0
        %3598 = vdwg.mxu0
        %s3599 = smul.u32 %s501, 32
        %s3600 = scalar_lea.vmem %s499, %s3599
        %v3601 = vld [vmem:[%s3600] sm:$0xff]
        %v3602 = vld [vmem:[%s3600 + $0x8] sm:$0xff]
        %v3603 = vld [vmem:[%s3600 + $0x10] sm:$0xff]
        %v3604 = vld [vmem:[%s3600 + $0x20] sm:$0xff]
        %v3605 = vld [vmem:[%s3600 + $0x28] sm:$0xff]
        %v3606 = vld [vmem:[%s3600 + $0x30] sm:$0xff]
        %v3607 = vld [vmem:[%s3600 + $0x40] sm:$0xff]
        %v3608 = vld [vmem:[%s3600 + $0x48] sm:$0xff]
        %v3609 = vld [vmem:[%s3600 + $0x50] sm:$0xff]
        %v3610 = vld [vmem:[%s3600 + $0x60] sm:$0xff]
        %v3611 = vld [vmem:[%s3600 + $0x68] sm:$0xff]
        %v3612 = vld [vmem:[%s3600 + $0x70] sm:$0xff]
        %v3613 = vld [vmem:[%s3600 + $0x80] sm:$0xff]
        %v3614 = vld [vmem:[%s3600 + $0x88] sm:$0xff]
        %v3615 = vld [vmem:[%s3600 + $0x90] sm:$0xff]
        %v3616 = vld [vmem:[%s3600 + $0xa0] sm:$0xff]
        %v3617 = vld [vmem:[%s3600 + $0xa8] sm:$0xff]
        %v3618 = vld [vmem:[%s3600 + $0xb0] sm:$0xff]
        %v3619 = vld [vmem:[%s3600 + $0xc0] sm:$0xff]
        %v3620 = vld [vmem:[%s3600 + $0xc8] sm:$0xff]
        %v3621 = vld [vmem:[%s3600 + $0xd0] sm:$0xff]
        %v3622 = vld [vmem:[%s3600 + $0xe0] sm:$0xff]
        %v3623 = vld [vmem:[%s3600 + $0xe8] sm:$0xff]
        %v3624 = vld [vmem:[%s3600 + $0xf0] sm:$0xff]
        %v3625 = vld [vmem:[%s3600 + $0x100] sm:$0xff]
        %v3626 = vld [vmem:[%s3600 + $0x108] sm:$0xff]
        %v3627 = vld [vmem:[%s3600 + $0x110] sm:$0xff]
        %v3628 = vld [vmem:[%s3600 + $0x120] sm:$0xff]
        %v3629 = vld [vmem:[%s3600 + $0x128] sm:$0xff]
        %v3630 = vld [vmem:[%s3600 + $0x130] sm:$0xff]
        %v3631 = vld [vmem:[%s3600 + $0x140] sm:$0xff]
        %v3632 = vld [vmem:[%s3600 + $0x148] sm:$0xff]
        %v3633 = vld [vmem:[%s3600 + $0x150] sm:$0xff]
        %v3634 = vld [vmem:[%s3600 + $0x160] sm:$0xff]
        %v3635 = vld [vmem:[%s3600 + $0x168] sm:$0xff]
        %v3636 = vld [vmem:[%s3600 + $0x170] sm:$0xff]
        %v3637 = vld [vmem:[%s3600 + $0x180] sm:$0xff]
        %v3638 = vld [vmem:[%s3600 + $0x188] sm:$0xff]
        %v3639 = vld [vmem:[%s3600 + $0x190] sm:$0xff]
        %v3640 = vld [vmem:[%s3600 + $0x1a0] sm:$0xff]
        %v3641 = vld [vmem:[%s3600 + $0x1a8] sm:$0xff]
        %v3642 = vld [vmem:[%s3600 + $0x1b0] sm:$0xff]
        %s3643 = ssub.s32 %s501, 3
        %v3644 = vld [vmem:[%s10] sm:$0x1]
        %v3646 = vlaneseq
        %v3647 = vshrl.u32 %v3646, 7
        %v3648 = vsub.s32 0, %v3647
        %v3649 = vrot.slane %v3644, %v3648
        %v3651 = vmul.f32 %v3601, %v3649
        %v3652 = vmul.f32 %v3602, %v3649
        %v3653 = vmul.f32 %v3603, %v3649
        %v3654 = vmul.f32 %v3604, %v3649
        %v3655 = vmul.f32 %v3605, %v3649
        %v3656 = vmul.f32 %v3606, %v3649
        %v3657 = vmul.f32 %v3607, %v3649
        %v3658 = vmul.f32 %v3608, %v3649
        %v3659 = vmul.f32 %v3609, %v3649
        %v3660 = vmul.f32 %v3610, %v3649
        %v3661 = vmul.f32 %v3611, %v3649
        %v3662 = vmul.f32 %v3612, %v3649
        %v3663 = vmul.f32 %v3613, %v3649
        %v3664 = vmul.f32 %v3614, %v3649
        %v3665 = vmul.f32 %v3615, %v3649
        %v3666 = vmul.f32 %v3616, %v3649
        %v3667 = vmul.f32 %v3617, %v3649
        %v3668 = vmul.f32 %v3618, %v3649
        %v3669 = vmul.f32 %v3619, %v3649
        %v3670 = vmul.f32 %v3620, %v3649
        %v3671 = vmul.f32 %v3621, %v3649
        %v3672 = vmul.f32 %v3622, %v3649
        %v3673 = vmul.f32 %v3623, %v3649
        %v3674 = vmul.f32 %v3624, %v3649
        %v3675 = vmul.f32 %v3625, %v3649
        %v3676 = vmul.f32 %v3626, %v3649
        %v3677 = vmul.f32 %v3627, %v3649
        %v3678 = vmul.f32 %v3628, %v3649
        %v3679 = vmul.f32 %v3629, %v3649
        %v3680 = vmul.f32 %v3630, %v3649
        %v3681 = vmul.f32 %v3631, %v3649
        %v3682 = vmul.f32 %v3632, %v3649
        %v3683 = vmul.f32 %v3633, %v3649
        %v3684 = vmul.f32 %v3634, %v3649
        %v3685 = vmul.f32 %v3635, %v3649
        %v3686 = vmul.f32 %v3636, %v3649
        %v3687 = vmul.f32 %v3637, %v3649
        %v3688 = vmul.f32 %v3638, %v3649
        %v3689 = vmul.f32 %v3639, %v3649
        %v3690 = vmul.f32 %v3640, %v3649
        %v3691 = vmul.f32 %v3641, %v3649
        %v3692 = vmul.f32 %v3642, %v3649
        %v3693 = vld [vmem:[%s11] sm:$0x1]
        %v3695 = vlaneseq
        %v3696 = vshrl.u32 %v3695, 7
        %v3697 = vsub.s32 0, %v3696
        %v3698 = vrot.slane %v3693, %v3697
        %v3700 = vadd.f32 %v3651, %v3698
        %v3701 = vadd.f32 %v3652, %v3698
        %v3702 = vadd.f32 %v3653, %v3698
        %v3703 = vadd.f32 %v3654, %v3698
        %v3704 = vadd.f32 %v3655, %v3698
        %v3705 = vadd.f32 %v3656, %v3698
        %v3706 = vadd.f32 %v3657, %v3698
        %v3707 = vadd.f32 %v3658, %v3698
        %v3708 = vadd.f32 %v3659, %v3698
        %v3709 = vadd.f32 %v3660, %v3698
        %v3710 = vadd.f32 %v3661, %v3698
        %v3711 = vadd.f32 %v3662, %v3698
        %v3712 = vadd.f32 %v3663, %v3698
        %v3713 = vadd.f32 %v3664, %v3698
        %v3714 = vadd.f32 %v3665, %v3698
        %v3715 = vadd.f32 %v3666, %v3698
        %v3716 = vadd.f32 %v3667, %v3698
        %v3717 = vadd.f32 %v3668, %v3698
        %v3718 = vadd.f32 %v3669, %v3698
        %v3719 = vadd.f32 %v3670, %v3698
        %v3720 = vadd.f32 %v3671, %v3698
        %v3721 = vadd.f32 %v3672, %v3698
        %v3722 = vadd.f32 %v3673, %v3698
        %v3723 = vadd.f32 %v3674, %v3698
        %v3724 = vadd.f32 %v3675, %v3698
        %v3725 = vadd.f32 %v3676, %v3698
        %v3726 = vadd.f32 %v3677, %v3698
        %v3727 = vadd.f32 %v3678, %v3698
        %v3728 = vadd.f32 %v3679, %v3698
        %v3729 = vadd.f32 %v3680, %v3698
        %v3730 = vadd.f32 %v3681, %v3698
        %v3731 = vadd.f32 %v3682, %v3698
        %v3732 = vadd.f32 %v3683, %v3698
        %v3733 = vadd.f32 %v3684, %v3698
        %v3734 = vadd.f32 %v3685, %v3698
        %v3735 = vadd.f32 %v3686, %v3698
        %v3736 = vadd.f32 %v3687, %v3698
        %v3737 = vadd.f32 %v3688, %v3698
        %v3738 = vadd.f32 %v3689, %v3698
        %v3739 = vadd.f32 %v3690, %v3698
        %v3740 = vadd.f32 %v3691, %v3698
        %v3741 = vadd.f32 %v3692, %v3698
        %v3742 = vmax.f32 %v3700, 0.0
        %v3743 = vmax.f32 %v3701, 0.0
        %v3744 = vmax.f32 %v3702, 0.0
        %v3745 = vmax.f32 %v3703, 0.0
        %v3746 = vmax.f32 %v3704, 0.0
        %v3747 = vmax.f32 %v3705, 0.0
        %v3748 = vmax.f32 %v3706, 0.0
        %v3749 = vmax.f32 %v3707, 0.0
        %v3750 = vmax.f32 %v3708, 0.0
        %v3751 = vmax.f32 %v3709, 0.0
        %v3752 = vmax.f32 %v3710, 0.0
        %v3753 = vmax.f32 %v3711, 0.0
        %v3754 = vmax.f32 %v3712, 0.0
        %v3755 = vmax.f32 %v3713, 0.0
        %v3756 = vmax.f32 %v3714, 0.0
        %v3757 = vmax.f32 %v3715, 0.0
        %v3758 = vmax.f32 %v3716, 0.0
        %v3759 = vmax.f32 %v3717, 0.0
        %v3760 = vmax.f32 %v3718, 0.0
        %v3761 = vmax.f32 %v3719, 0.0
        %v3762 = vmax.f32 %v3720, 0.0
        %v3763 = vmax.f32 %v3721, 0.0
        %v3764 = vmax.f32 %v3722, 0.0
        %v3765 = vmax.f32 %v3723, 0.0
        %v3766 = vmax.f32 %v3724, 0.0
        %v3767 = vmax.f32 %v3725, 0.0
        %v3768 = vmax.f32 %v3726, 0.0
        %v3769 = vmax.f32 %v3727, 0.0
        %v3770 = vmax.f32 %v3728, 0.0
        %v3771 = vmax.f32 %v3729, 0.0
        %v3772 = vmax.f32 %v3730, 0.0
        %v3773 = vmax.f32 %v3731, 0.0
        %v3774 = vmax.f32 %v3732, 0.0
        %v3775 = vmax.f32 %v3733, 0.0
        %v3776 = vmax.f32 %v3734, 0.0
        %v3777 = vmax.f32 %v3735, 0.0
        %v3778 = vmax.f32 %v3736, 0.0
        %v3779 = vmax.f32 %v3737, 0.0
        %v3780 = vmax.f32 %v3738, 0.0
        %v3781 = vmax.f32 %v3739, 0.0
        %v3782 = vmax.f32 %v3740, 0.0
        %v3783 = vmax.f32 %v3741, 0.0
        %v3784 = vstv %s3643
        %v3785 = vadd.s32 %v3784, 1
        %v3786 = vadd.s32 %v3784, 2
        %v3787 = vadd.s32 %v3784, 3
        %v3788 = vadd.s32 %v3784, 4
        %v3789 = vadd.s32 %v3784, 5
        %v3790 = vadd.s32 %v3784, 6
        %v3791 = vadd.s32 %v3784, 7
        %v3792 = vadd.s32 %v3784, 8
        %v3793 = vadd.s32 %v3784, 9
        %v3794 = vadd.s32 %v3784, 10
        %v3795 = vadd.s32 %v3784, 11
        %v3796 = vadd.s32 %v3784, 12
        %v3797 = vadd.s32 %v3784, 13
        %v3798 = vadd.s32 %v725, 4294967293
        %v3799 = vadd.s32 %v726, 4294967293
        %v3800 = vadd.s32 %v727, 4294967293
        %vm3801 = vcmp.ge.s32.totalorder %v3784, 0
        %vm3802 = vcmp.ge.s32.totalorder %v3785, 0
        %vm3803 = vcmp.ge.s32.totalorder %v3786, 0
        %vm3804 = vcmp.ge.s32.totalorder %v3787, 0
        %vm3805 = vcmp.ge.s32.totalorder %v3788, 0
        %vm3806 = vcmp.ge.s32.totalorder %v3789, 0
        %vm3807 = vcmp.ge.s32.totalorder %v3790, 0
        %vm3808 = vcmp.ge.s32.totalorder %v3791, 0
        %vm3809 = vcmp.ge.s32.totalorder %v3792, 0
        %vm3810 = vcmp.ge.s32.totalorder %v3793, 0
        %vm3811 = vcmp.ge.s32.totalorder %v3794, 0
        %vm3812 = vcmp.ge.s32.totalorder %v3795, 0
        %vm3813 = vcmp.ge.s32.totalorder %v3796, 0
        %vm3814 = vcmp.ge.s32.totalorder %v3797, 0
        %vm3815 = vcmp.lt.s32.totalorder %v3784, 16
        %vm3816 = vcmp.lt.s32.totalorder %v3785, 16
        %vm3817 = vcmp.lt.s32.totalorder %v3786, 16
        %vm3818 = vcmp.lt.s32.totalorder %v3787, 16
        %vm3819 = vcmp.lt.s32.totalorder %v3788, 16
        %vm3820 = vcmp.lt.s32.totalorder %v3789, 16
        %vm3821 = vcmp.lt.s32.totalorder %v3790, 16
        %vm3822 = vcmp.lt.s32.totalorder %v3791, 16
        %vm3823 = vcmp.lt.s32.totalorder %v3792, 16
        %vm3824 = vcmp.lt.s32.totalorder %v3793, 16
        %vm3825 = vcmp.lt.s32.totalorder %v3794, 16
        %vm3826 = vcmp.lt.s32.totalorder %v3795, 16
        %vm3827 = vcmp.lt.s32.totalorder %v3796, 16
        %vm3828 = vcmp.lt.s32.totalorder %v3797, 16
        %vm3829 = vmand %vm3801, %vm3815
        %vm3830 = vmand %vm3802, %vm3816
        %vm3831 = vmand %vm3803, %vm3817
        %vm3832 = vmand %vm3804, %vm3818
        %vm3833 = vmand %vm3805, %vm3819
        %vm3834 = vmand %vm3806, %vm3820
        %vm3835 = vmand %vm3807, %vm3821
        %vm3836 = vmand %vm3808, %vm3822
        %vm3837 = vmand %vm3809, %vm3823
        %vm3838 = vmand %vm3810, %vm3824
        %vm3839 = vmand %vm3811, %vm3825
        %vm3840 = vmand %vm3812, %vm3826
        %vm3841 = vmand %vm3813, %vm3827
        %vm3842 = vmand %vm3814, %vm3828
        %vm3843 = vcmp.ge.s32.totalorder %v3798, 0
        %vm3844 = vcmp.ge.s32.totalorder %v3799, 0
        %vm3845 = vcmp.ge.s32.totalorder %v3800, 0
        %vm3846 = vmand %vm3829, %vm3843
        %vm3847 = vmand %vm3829, %vm3844
        %vm3848 = vmand %vm3829, %vm3845
        %vm3849 = vmand %vm3830, %vm3843
        %vm3850 = vmand %vm3830, %vm3844
        %vm3851 = vmand %vm3830, %vm3845
        %vm3852 = vmand %vm3831, %vm3843
        %vm3853 = vmand %vm3831, %vm3844
        %vm3854 = vmand %vm3831, %vm3845
        %vm3855 = vmand %vm3832, %vm3843
        %vm3856 = vmand %vm3832, %vm3844
        %vm3857 = vmand %vm3832, %vm3845
        %vm3858 = vmand %vm3833, %vm3843
        %vm3859 = vmand %vm3833, %vm3844
        %vm3860 = vmand %vm3833, %vm3845
        %vm3861 = vmand %vm3834, %vm3843
        %vm3862 = vmand %vm3834, %vm3844
        %vm3863 = vmand %vm3834, %vm3845
        %vm3864 = vmand %vm3835, %vm3843
        %vm3865 = vmand %vm3835, %vm3844
        %vm3866 = vmand %vm3835, %vm3845
        %vm3867 = vmand %vm3836, %vm3843
        %vm3868 = vmand %vm3836, %vm3844
        %vm3869 = vmand %vm3836, %vm3845
        %vm3870 = vmand %vm3837, %vm3843
        %vm3871 = vmand %vm3837, %vm3844
        %vm3872 = vmand %vm3837, %vm3845
        %vm3873 = vmand %vm3838, %vm3843
        %vm3874 = vmand %vm3838, %vm3844
        %vm3875 = vmand %vm3838, %vm3845
        %vm3876 = vmand %vm3839, %vm3843
        %vm3877 = vmand %vm3839, %vm3844
        %vm3878 = vmand %vm3839, %vm3845
        %vm3879 = vmand %vm3840, %vm3843
        %vm3880 = vmand %vm3840, %vm3844
        %vm3881 = vmand %vm3840, %vm3845
        %vm3882 = vmand %vm3841, %vm3843
        %vm3883 = vmand %vm3841, %vm3844
        %vm3884 = vmand %vm3841, %vm3845
        %vm3885 = vmand %vm3842, %vm3843
        %vm3886 = vmand %vm3842, %vm3844
        %vm3887 = vmand %vm3842, %vm3845
        %vm3888 = vcmp.lt.s32.totalorder %v3798, 16
        %vm3889 = vcmp.lt.s32.totalorder %v3799, 16
        %vm3890 = vcmp.lt.s32.totalorder %v3800, 16
        %vm3891 = vmand %vm3846, %vm3888
        %vm3892 = vmand %vm3847, %vm3889
        %vm3893 = vmand %vm3848, %vm3890
        %vm3894 = vmand %vm3849, %vm3888
        %vm3895 = vmand %vm3850, %vm3889
        %vm3896 = vmand %vm3851, %vm3890
        %vm3897 = vmand %vm3852, %vm3888
        %vm3898 = vmand %vm3853, %vm3889
        %vm3899 = vmand %vm3854, %vm3890
        %vm3900 = vmand %vm3855, %vm3888
        %vm3901 = vmand %vm3856, %vm3889
        %vm3902 = vmand %vm3857, %vm3890
        %vm3903 = vmand %vm3858, %vm3888
        %vm3904 = vmand %vm3859, %vm3889
        %vm3905 = vmand %vm3860, %vm3890
        %vm3906 = vmand %vm3861, %vm3888
        %vm3907 = vmand %vm3862, %vm3889
        %vm3908 = vmand %vm3863, %vm3890
        %vm3909 = vmand %vm3864, %vm3888
        %vm3910 = vmand %vm3865, %vm3889
        %vm3911 = vmand %vm3866, %vm3890
        %vm3912 = vmand %vm3867, %vm3888
        %vm3913 = vmand %vm3868, %vm3889
        %vm3914 = vmand %vm3869, %vm3890
        %vm3915 = vmand %vm3870, %vm3888
        %vm3916 = vmand %vm3871, %vm3889
        %vm3917 = vmand %vm3872, %vm3890
        %vm3918 = vmand %vm3873, %vm3888
        %vm3919 = vmand %vm3874, %vm3889
        %vm3920 = vmand %vm3875, %vm3890
        %vm3921 = vmand %vm3876, %vm3888
        %vm3922 = vmand %vm3877, %vm3889
        %vm3923 = vmand %vm3878, %vm3890
        %vm3924 = vmand %vm3879, %vm3888
        %vm3925 = vmand %vm3880, %vm3889
        %vm3926 = vmand %vm3881, %vm3890
        %vm3927 = vmand %vm3882, %vm3888
        %vm3928 = vmand %vm3883, %vm3889
        %vm3929 = vmand %vm3884, %vm3890
        %vm3930 = vmand %vm3885, %vm3888
        %vm3931 = vmand %vm3886, %vm3889
        %vm3932 = vmand %vm3887, %vm3890
        %v3933 = vsel %vm3891, %v3742, 0.0
        %v3934 = vsel %vm3892, %v3743, 0.0
        %v3935 = vsel %vm3893, %v3744, 0.0
        %v3936 = vsel %vm3894, %v3745, 0.0
        %v3937 = vsel %vm3895, %v3746, 0.0
        %v3938 = vsel %vm3896, %v3747, 0.0
        %v3939 = vsel %vm3897, %v3748, 0.0
        %v3940 = vsel %vm3898, %v3749, 0.0
        %v3941 = vsel %vm3899, %v3750, 0.0
        %v3942 = vsel %vm3900, %v3751, 0.0
        %v3943 = vsel %vm3901, %v3752, 0.0
        %v3944 = vsel %vm3902, %v3753, 0.0
        %v3945 = vsel %vm3903, %v3754, 0.0
        %v3946 = vsel %vm3904, %v3755, 0.0
        %v3947 = vsel %vm3905, %v3756, 0.0
        %v3948 = vsel %vm3906, %v3757, 0.0
        %v3949 = vsel %vm3907, %v3758, 0.0
        %v3950 = vsel %vm3908, %v3759, 0.0
        %v3951 = vsel %vm3909, %v3760, 0.0
        %v3952 = vsel %vm3910, %v3761, 0.0
        %v3953 = vsel %vm3911, %v3762, 0.0
        %v3954 = vsel %vm3912, %v3763, 0.0
        %v3955 = vsel %vm3913, %v3764, 0.0
        %v3956 = vsel %vm3914, %v3765, 0.0
        %v3957 = vsel %vm3915, %v3766, 0.0
        %v3958 = vsel %vm3916, %v3767, 0.0
        %v3959 = vsel %vm3917, %v3768, 0.0
        %v3960 = vsel %vm3918, %v3769, 0.0
        %v3961 = vsel %vm3919, %v3770, 0.0
        %v3962 = vsel %vm3920, %v3771, 0.0
        %v3963 = vsel %vm3921, %v3772, 0.0
        %v3964 = vsel %vm3922, %v3773, 0.0
        %v3965 = vsel %vm3923, %v3774, 0.0
        %v3966 = vsel %vm3924, %v3775, 0.0
        %v3967 = vsel %vm3925, %v3776, 0.0
        %v3968 = vsel %vm3926, %v3777, 0.0
        %v3969 = vsel %vm3927, %v3778, 0.0
        %v3970 = vsel %vm3928, %v3779, 0.0
        %v3971 = vsel %vm3929, %v3780, 0.0
        %v3972 = vsel %vm3930, %v3781, 0.0
        %v3973 = vsel %vm3931, %v3782, 0.0
        %v3974 = vsel %vm3932, %v3783, 0.0
        %v3975 = vld [vmem:[%s12] sm:$0x7f]
        %v3976 = vld [vmem:[%s12 + $0x8] sm:$0x7f]
        %v3977 = vld [vmem:[%s12 + $0x10] sm:$0x7f]
        %v3978 = vld [vmem:[%s12 + $0x18] sm:$0x7f]
        %v3979 = vld [vmem:[%s12 + $0x20] sm:$0x7f]
        %v3980 = vld [vmem:[%s12 + $0x28] sm:$0x7f]
        %v3981 = vld [vmem:[%s12 + $0x30] sm:$0x7f]
        %v3982 = vlaneseq
        %v3983 = vshrl.u32 %v3982, 7
        %v3984 = vsub.s32 0, %v3983
        %v3985 = vrot.slane %v3975, %v3984
        %v3986 = vmul.f32 %v3933, %v3985
        %v3987 = vmul.f32 %v3934, %v3985
        %v3988 = vmul.f32 %v3936, %v3985
        %v3989 = vmul.f32 %v3937, %v3985
        %v3990 = vmul.f32 %v3939, %v3985
        %v3991 = vmul.f32 %v3940, %v3985
        %v3992 = vmul.f32 %v3942, %v3985
        %v3993 = vmul.f32 %v3943, %v3985
        %v3994 = vmul.f32 %v3945, %v3985
        %v3995 = vmul.f32 %v3946, %v3985
        %v3996 = vmul.f32 %v3948, %v3985
        %v3997 = vmul.f32 %v3949, %v3985
        %v3998 = vmul.f32 %v3951, %v3985
        %v3999 = vmul.f32 %v3952, %v3985
        %v4000 = vmul.f32 %v3954, %v3985
        %v4001 = vmul.f32 %v3955, %v3985
        %v4002 = vadd.f32 %v3986, 0.0
        %v4003 = vadd.f32 %v3987, 0.0
        %v4004 = vadd.f32 %v3988, 0.0
        %v4005 = vadd.f32 %v3989, 0.0
        %v4006 = vadd.f32 %v3990, 0.0
        %v4007 = vadd.f32 %v3991, 0.0
        %v4008 = vadd.f32 %v3992, 0.0
        %v4009 = vadd.f32 %v3993, 0.0
        %v4010 = vadd.f32 %v3994, 0.0
        %v4011 = vadd.f32 %v3995, 0.0
        %v4012 = vadd.f32 %v3996, 0.0
        %v4013 = vadd.f32 %v3997, 0.0
        %v4014 = vadd.f32 %v3998, 0.0
        %v4015 = vadd.f32 %v3999, 0.0
        %v4016 = vadd.f32 %v4000, 0.0
        %v4017 = vadd.f32 %v4001, 0.0
        %v4018 = vlaneseq
        %v4019 = vshrl.u32 %v4018, 7
        %v4020 = vsub.s32 1, %v4019
        %v4021 = vrot.slane %v3975, %v4020
        %v4022 = vmul.f32 %v3933, %v4021
        %v4023 = vmul.f32 %v3934, %v4021
        %v4024 = vmul.f32 %v3935, %v4021
        %v4025 = vmul.f32 %v3936, %v4021
        %v4026 = vmul.f32 %v3937, %v4021
        %v4027 = vmul.f32 %v3938, %v4021
        %v4028 = vmul.f32 %v3939, %v4021
        %v4029 = vmul.f32 %v3940, %v4021
        %v4030 = vmul.f32 %v3941, %v4021
        %v4031 = vmul.f32 %v3942, %v4021
        %v4032 = vmul.f32 %v3943, %v4021
        %v4033 = vmul.f32 %v3944, %v4021
        %v4034 = vmul.f32 %v3945, %v4021
        %v4035 = vmul.f32 %v3946, %v4021
        %v4036 = vmul.f32 %v3947, %v4021
        %v4037 = vmul.f32 %v3948, %v4021
        %v4038 = vmul.f32 %v3949, %v4021
        %v4039 = vmul.f32 %v3950, %v4021
        %v4040 = vmul.f32 %v3951, %v4021
        %v4041 = vmul.f32 %v3952, %v4021
        %v4042 = vmul.f32 %v3953, %v4021
        %v4043 = vmul.f32 %v3954, %v4021
        %v4044 = vmul.f32 %v3955, %v4021
        %v4045 = vmul.f32 %v3956, %v4021
        %v4070 = vrot.slane %v4022, 1
        %v4071 = vrot.slane %v4023, 1
        %v4072 = vsel %vm921, %v4070, %v4071
        %v4073 = vrot.slane %v4024, 1
        %v4074 = vsel %vm921, %v4071, %v4073
        %v4075 = vrot.slane %v4025, 1
        %v4076 = vrot.slane %v4026, 1
        %v4077 = vsel %vm921, %v4075, %v4076
        %v4078 = vrot.slane %v4027, 1
        %v4079 = vsel %vm921, %v4076, %v4078
        %v4080 = vrot.slane %v4028, 1
        %v4081 = vrot.slane %v4029, 1
        %v4082 = vsel %vm921, %v4080, %v4081
        %v4083 = vrot.slane %v4030, 1
        %v4084 = vsel %vm921, %v4081, %v4083
        %v4085 = vrot.slane %v4031, 1
        %v4086 = vrot.slane %v4032, 1
        %v4087 = vsel %vm921, %v4085, %v4086
        %v4088 = vrot.slane %v4033, 1
        %v4089 = vsel %vm921, %v4086, %v4088
        %v4090 = vrot.slane %v4034, 1
        %v4091 = vrot.slane %v4035, 1
        %v4092 = vsel %vm921, %v4090, %v4091
        %v4093 = vrot.slane %v4036, 1
        %v4094 = vsel %vm921, %v4091, %v4093
        %v4095 = vrot.slane %v4037, 1
        %v4096 = vrot.slane %v4038, 1
        %v4097 = vsel %vm921, %v4095, %v4096
        %v4098 = vrot.slane %v4039, 1
        %v4099 = vsel %vm921, %v4096, %v4098
        %v4100 = vrot.slane %v4040, 1
        %v4101 = vrot.slane %v4041, 1
        %v4102 = vsel %vm921, %v4100, %v4101
        %v4103 = vrot.slane %v4042, 1
        %v4104 = vsel %vm921, %v4101, %v4103
        %v4105 = vrot.slane %v4043, 1
        %v4106 = vrot.slane %v4044, 1
        %v4107 = vsel %vm921, %v4105, %v4106
        %v4108 = vrot.slane %v4045, 1
        %v4109 = vsel %vm921, %v4106, %v4108
        %v4126 = vadd.f32 %v4002, %v4072
        %v4127 = vadd.f32 %v4003, %v4074
        %v4128 = vadd.f32 %v4004, %v4077
        %v4129 = vadd.f32 %v4005, %v4079
        %v4130 = vadd.f32 %v4006, %v4082
        %v4131 = vadd.f32 %v4007, %v4084
        %v4132 = vadd.f32 %v4008, %v4087
        %v4133 = vadd.f32 %v4009, %v4089
        %v4134 = vadd.f32 %v4010, %v4092
        %v4135 = vadd.f32 %v4011, %v4094
        %v4136 = vadd.f32 %v4012, %v4097
        %v4137 = vadd.f32 %v4013, %v4099
        %v4138 = vadd.f32 %v4014, %v4102
        %v4139 = vadd.f32 %v4015, %v4104
        %v4140 = vadd.f32 %v4016, %v4107
        %v4141 = vadd.f32 %v4017, %v4109
        %v4142 = vlaneseq
        %v4143 = vshrl.u32 %v4142, 7
        %v4144 = vsub.s32 2, %v4143
        %v4145 = vrot.slane %v3975, %v4144
        %v4146 = vmul.f32 %v3933, %v4145
        %v4147 = vmul.f32 %v3934, %v4145
        %v4148 = vmul.f32 %v3935, %v4145
        %v4149 = vmul.f32 %v3936, %v4145
        %v4150 = vmul.f32 %v3937, %v4145
        %v4151 = vmul.f32 %v3938, %v4145
        %v4152 = vmul.f32 %v3939, %v4145
        %v4153 = vmul.f32 %v3940, %v4145
        %v4154 = vmul.f32 %v3941, %v4145
        %v4155 = vmul.f32 %v3942, %v4145
        %v4156 = vmul.f32 %v3943, %v4145
        %v4157 = vmul.f32 %v3944, %v4145
        %v4158 = vmul.f32 %v3945, %v4145
        %v4159 = vmul.f32 %v3946, %v4145
        %v4160 = vmul.f32 %v3947, %v4145
        %v4161 = vmul.f32 %v3948, %v4145
        %v4162 = vmul.f32 %v3949, %v4145
        %v4163 = vmul.f32 %v3950, %v4145
        %v4164 = vmul.f32 %v3951, %v4145
        %v4165 = vmul.f32 %v3952, %v4145
        %v4166 = vmul.f32 %v3953, %v4145
        %v4167 = vmul.f32 %v3954, %v4145
        %v4168 = vmul.f32 %v3955, %v4145
        %v4169 = vmul.f32 %v3956, %v4145
        %v4194 = vrot.slane %v4146, 2
        %v4195 = vrot.slane %v4147, 2
        %v4196 = vsel %vm1302, %v4194, %v4195
        %v4197 = vrot.slane %v4148, 2
        %v4198 = vsel %vm1302, %v4195, %v4197
        %v4199 = vrot.slane %v4149, 2
        %v4200 = vrot.slane %v4150, 2
        %v4201 = vsel %vm1302, %v4199, %v4200
        %v4202 = vrot.slane %v4151, 2
        %v4203 = vsel %vm1302, %v4200, %v4202
        %v4204 = vrot.slane %v4152, 2
        %v4205 = vrot.slane %v4153, 2
        %v4206 = vsel %vm1302, %v4204, %v4205
        %v4207 = vrot.slane %v4154, 2
        %v4208 = vsel %vm1302, %v4205, %v4207
        %v4209 = vrot.slane %v4155, 2
        %v4210 = vrot.slane %v4156, 2
        %v4211 = vsel %vm1302, %v4209, %v4210
        %v4212 = vrot.slane %v4157, 2
        %v4213 = vsel %vm1302, %v4210, %v4212
        %v4214 = vrot.slane %v4158, 2
        %v4215 = vrot.slane %v4159, 2
        %v4216 = vsel %vm1302, %v4214, %v4215
        %v4217 = vrot.slane %v4160, 2
        %v4218 = vsel %vm1302, %v4215, %v4217
        %v4219 = vrot.slane %v4161, 2
        %v4220 = vrot.slane %v4162, 2
        %v4221 = vsel %vm1302, %v4219, %v4220
        %v4222 = vrot.slane %v4163, 2
        %v4223 = vsel %vm1302, %v4220, %v4222
        %v4224 = vrot.slane %v4164, 2
        %v4225 = vrot.slane %v4165, 2
        %v4226 = vsel %vm1302, %v4224, %v4225
        %v4227 = vrot.slane %v4166, 2
        %v4228 = vsel %vm1302, %v4225, %v4227
        %v4229 = vrot.slane %v4167, 2
        %v4230 = vrot.slane %v4168, 2
        %v4231 = vsel %vm1302, %v4229, %v4230
        %v4232 = vrot.slane %v4169, 2
        %v4233 = vsel %vm1302, %v4230, %v4232
        %v4250 = vadd.f32 %v4126, %v4196
        %v4251 = vadd.f32 %v4127, %v4198
        %v4252 = vadd.f32 %v4128, %v4201
        %v4253 = vadd.f32 %v4129, %v4203
        %v4254 = vadd.f32 %v4130, %v4206
        %v4255 = vadd.f32 %v4131, %v4208
        %v4256 = vadd.f32 %v4132, %v4211
        %v4257 = vadd.f32 %v4133, %v4213
        %v4258 = vadd.f32 %v4134, %v4216
        %v4259 = vadd.f32 %v4135, %v4218
        %v4260 = vadd.f32 %v4136, %v4221
        %v4261 = vadd.f32 %v4137, %v4223
        %v4262 = vadd.f32 %v4138, %v4226
        %v4263 = vadd.f32 %v4139, %v4228
        %v4264 = vadd.f32 %v4140, %v4231
        %v4265 = vadd.f32 %v4141, %v4233
        %v4266 = vlaneseq
        %v4267 = vshrl.u32 %v4266, 7
        %v4268 = vsub.s32 3, %v4267
        %v4269 = vrot.slane %v3975, %v4268
        %v4270 = vmul.f32 %v3933, %v4269
        %v4271 = vmul.f32 %v3934, %v4269
        %v4272 = vmul.f32 %v3935, %v4269
        %v4273 = vmul.f32 %v3936, %v4269
        %v4274 = vmul.f32 %v3937, %v4269
        %v4275 = vmul.f32 %v3938, %v4269
        %v4276 = vmul.f32 %v3939, %v4269
        %v4277 = vmul.f32 %v3940, %v4269
        %v4278 = vmul.f32 %v3941, %v4269
        %v4279 = vmul.f32 %v3942, %v4269
        %v4280 = vmul.f32 %v3943, %v4269
        %v4281 = vmul.f32 %v3944, %v4269
        %v4282 = vmul.f32 %v3945, %v4269
        %v4283 = vmul.f32 %v3946, %v4269
        %v4284 = vmul.f32 %v3947, %v4269
        %v4285 = vmul.f32 %v3948, %v4269
        %v4286 = vmul.f32 %v3949, %v4269
        %v4287 = vmul.f32 %v3950, %v4269
        %v4288 = vmul.f32 %v3951, %v4269
        %v4289 = vmul.f32 %v3952, %v4269
        %v4290 = vmul.f32 %v3953, %v4269
        %v4291 = vmul.f32 %v3954, %v4269
        %v4292 = vmul.f32 %v3955, %v4269
        %v4293 = vmul.f32 %v3956, %v4269
        %vm4318 = vcmask 1044480
        %v4319 = vrot.slane %v4270, 3
        %v4320 = vrot.slane %v4271, 3
        %v4321 = vsel %vm4318, %v4319, %v4320
        %v4322 = vrot.slane %v4272, 3
        %v4323 = vsel %vm4318, %v4320, %v4322
        %v4324 = vrot.slane %v4273, 3
        %v4325 = vrot.slane %v4274, 3
        %v4326 = vsel %vm4318, %v4324, %v4325
        %v4327 = vrot.slane %v4275, 3
        %v4328 = vsel %vm4318, %v4325, %v4327
        %v4329 = vrot.slane %v4276, 3
        %v4330 = vrot.slane %v4277, 3
        %v4331 = vsel %vm4318, %v4329, %v4330
        %v4332 = vrot.slane %v4278, 3
        %v4333 = vsel %vm4318, %v4330, %v4332
        %v4334 = vrot.slane %v4279, 3
        %v4335 = vrot.slane %v4280, 3
        %v4336 = vsel %vm4318, %v4334, %v4335
        %v4337 = vrot.slane %v4281, 3
        %v4338 = vsel %vm4318, %v4335, %v4337
        %v4339 = vrot.slane %v4282, 3
        %v4340 = vrot.slane %v4283, 3
        %v4341 = vsel %vm4318, %v4339, %v4340
        %v4342 = vrot.slane %v4284, 3
        %v4343 = vsel %vm4318, %v4340, %v4342
        %v4344 = vrot.slane %v4285, 3
        %v4345 = vrot.slane %v4286, 3
        %v4346 = vsel %vm4318, %v4344, %v4345
        %v4347 = vrot.slane %v4287, 3
        %v4348 = vsel %vm4318, %v4345, %v4347
        %v4349 = vrot.slane %v4288, 3
        %v4350 = vrot.slane %v4289, 3
        %v4351 = vsel %vm4318, %v4349, %v4350
        %v4352 = vrot.slane %v4290, 3
        %v4353 = vsel %vm4318, %v4350, %v4352
        %v4354 = vrot.slane %v4291, 3
        %v4355 = vrot.slane %v4292, 3
        %v4356 = vsel %vm4318, %v4354, %v4355
        %v4357 = vrot.slane %v4293, 3
        %v4358 = vsel %vm4318, %v4355, %v4357
        %v4375 = vadd.f32 %v4250, %v4321
        %v4376 = vadd.f32 %v4251, %v4323
        %v4377 = vadd.f32 %v4252, %v4326
        %v4378 = vadd.f32 %v4253, %v4328
        %v4379 = vadd.f32 %v4254, %v4331
        %v4380 = vadd.f32 %v4255, %v4333
        %v4381 = vadd.f32 %v4256, %v4336
        %v4382 = vadd.f32 %v4257, %v4338
        %v4383 = vadd.f32 %v4258, %v4341
        %v4384 = vadd.f32 %v4259, %v4343
        %v4385 = vadd.f32 %v4260, %v4346
        %v4386 = vadd.f32 %v4261, %v4348
        %v4387 = vadd.f32 %v4262, %v4351
        %v4388 = vadd.f32 %v4263, %v4353
        %v4389 = vadd.f32 %v4264, %v4356
        %v4390 = vadd.f32 %v4265, %v4358
        %v4391 = vlaneseq
        %v4392 = vshrl.u32 %v4391, 7
        %v4393 = vsub.s32 4, %v4392
        %v4394 = vrot.slane %v3975, %v4393
        %v4395 = vmul.f32 %v3933, %v4394
        %v4396 = vmul.f32 %v3934, %v4394
        %v4397 = vmul.f32 %v3935, %v4394
        %v4398 = vmul.f32 %v3936, %v4394
        %v4399 = vmul.f32 %v3937, %v4394
        %v4400 = vmul.f32 %v3938, %v4394
        %v4401 = vmul.f32 %v3939, %v4394
        %v4402 = vmul.f32 %v3940, %v4394
        %v4403 = vmul.f32 %v3941, %v4394
        %v4404 = vmul.f32 %v3942, %v4394
        %v4405 = vmul.f32 %v3943, %v4394
        %v4406 = vmul.f32 %v3944, %v4394
        %v4407 = vmul.f32 %v3945, %v4394
        %v4408 = vmul.f32 %v3946, %v4394
        %v4409 = vmul.f32 %v3947, %v4394
        %v4410 = vmul.f32 %v3948, %v4394
        %v4411 = vmul.f32 %v3949, %v4394
        %v4412 = vmul.f32 %v3950, %v4394
        %v4413 = vmul.f32 %v3951, %v4394
        %v4414 = vmul.f32 %v3952, %v4394
        %v4415 = vmul.f32 %v3953, %v4394
        %v4416 = vmul.f32 %v3954, %v4394
        %v4417 = vmul.f32 %v3955, %v4394
        %v4418 = vmul.f32 %v3956, %v4394
        %v4443 = vrot.slane %v4395, 4
        %v4444 = vrot.slane %v4396, 4
        %v4445 = vsel %vm3498, %v4443, %v4444
        %v4446 = vrot.slane %v4397, 4
        %v4447 = vsel %vm3498, %v4444, %v4446
        %v4448 = vrot.slane %v4398, 4
        %v4449 = vrot.slane %v4399, 4
        %v4450 = vsel %vm3498, %v4448, %v4449
        %v4451 = vrot.slane %v4400, 4
        %v4452 = vsel %vm3498, %v4449, %v4451
        %v4453 = vrot.slane %v4401, 4
        %v4454 = vrot.slane %v4402, 4
        %v4455 = vsel %vm3498, %v4453, %v4454
        %v4456 = vrot.slane %v4403, 4
        %v4457 = vsel %vm3498, %v4454, %v4456
        %v4458 = vrot.slane %v4404, 4
        %v4459 = vrot.slane %v4405, 4
        %v4460 = vsel %vm3498, %v4458, %v4459
        %v4461 = vrot.slane %v4406, 4
        %v4462 = vsel %vm3498, %v4459, %v4461
        %v4463 = vrot.slane %v4407, 4
        %v4464 = vrot.slane %v4408, 4
        %v4465 = vsel %vm3498, %v4463, %v4464
        %v4466 = vrot.slane %v4409, 4
        %v4467 = vsel %vm3498, %v4464, %v4466
        %v4468 = vrot.slane %v4410, 4
        %v4469 = vrot.slane %v4411, 4
        %v4470 = vsel %vm3498, %v4468, %v4469
        %v4471 = vrot.slane %v4412, 4
        %v4472 = vsel %vm3498, %v4469, %v4471
        %v4473 = vrot.slane %v4413, 4
        %v4474 = vrot.slane %v4414, 4
        %v4475 = vsel %vm3498, %v4473, %v4474
        %v4476 = vrot.slane %v4415, 4
        %v4477 = vsel %vm3498, %v4474, %v4476
        %v4478 = vrot.slane %v4416, 4
        %v4479 = vrot.slane %v4417, 4
        %v4480 = vsel %vm3498, %v4478, %v4479
        %v4481 = vrot.slane %v4418, 4
        %v4482 = vsel %vm3498, %v4479, %v4481
        %v4499 = vadd.f32 %v4375, %v4445
        %v4500 = vadd.f32 %v4376, %v4447
        %v4501 = vadd.f32 %v4377, %v4450
        %v4502 = vadd.f32 %v4378, %v4452
        %v4503 = vadd.f32 %v4379, %v4455
        %v4504 = vadd.f32 %v4380, %v4457
        %v4505 = vadd.f32 %v4381, %v4460
        %v4506 = vadd.f32 %v4382, %v4462
        %v4507 = vadd.f32 %v4383, %v4465
        %v4508 = vadd.f32 %v4384, %v4467
        %v4509 = vadd.f32 %v4385, %v4470
        %v4510 = vadd.f32 %v4386, %v4472
        %v4511 = vadd.f32 %v4387, %v4475
        %v4512 = vadd.f32 %v4388, %v4477
        %v4513 = vadd.f32 %v4389, %v4480
        %v4514 = vadd.f32 %v4390, %v4482
        %v4515 = vlaneseq
        %v4516 = vshrl.u32 %v4515, 7
        %v4517 = vsub.s32 5, %v4516
        %v4518 = vrot.slane %v3975, %v4517
        %v4519 = vmul.f32 %v3933, %v4518
        %v4520 = vmul.f32 %v3934, %v4518
        %v4521 = vmul.f32 %v3935, %v4518
        %v4522 = vmul.f32 %v3936, %v4518
        %v4523 = vmul.f32 %v3937, %v4518
        %v4524 = vmul.f32 %v3938, %v4518
        %v4525 = vmul.f32 %v3939, %v4518
        %v4526 = vmul.f32 %v3940, %v4518
        %v4527 = vmul.f32 %v3941, %v4518
        %v4528 = vmul.f32 %v3942, %v4518
        %v4529 = vmul.f32 %v3943, %v4518
        %v4530 = vmul.f32 %v3944, %v4518
        %v4531 = vmul.f32 %v3945, %v4518
        %v4532 = vmul.f32 %v3946, %v4518
        %v4533 = vmul.f32 %v3947, %v4518
        %v4534 = vmul.f32 %v3948, %v4518
        %v4535 = vmul.f32 %v3949, %v4518
        %v4536 = vmul.f32 %v3950, %v4518
        %v4537 = vmul.f32 %v3951, %v4518
        %v4538 = vmul.f32 %v3952, %v4518
        %v4539 = vmul.f32 %v3953, %v4518
        %v4540 = vmul.f32 %v3954, %v4518
        %v4541 = vmul.f32 %v3955, %v4518
        %v4542 = vmul.f32 %v3956, %v4518
        %vm4567 = vcmask 1042432
        %v4568 = vrot.slane %v4519, 5
        %v4569 = vrot.slane %v4520, 5
        %v4570 = vsel %vm4567, %v4568, %v4569
        %v4571 = vrot.slane %v4521, 5
        %v4572 = vsel %vm4567, %v4569, %v4571
        %v4573 = vrot.slane %v4522, 5
        %v4574 = vrot.slane %v4523, 5
        %v4575 = vsel %vm4567, %v4573, %v4574
        %v4576 = vrot.slane %v4524, 5
        %v4577 = vsel %vm4567, %v4574, %v4576
        %v4578 = vrot.slane %v4525, 5
        %v4579 = vrot.slane %v4526, 5
        %v4580 = vsel %vm4567, %v4578, %v4579
        %v4581 = vrot.slane %v4527, 5
        %v4582 = vsel %vm4567, %v4579, %v4581
        %v4583 = vrot.slane %v4528, 5
        %v4584 = vrot.slane %v4529, 5
        %v4585 = vsel %vm4567, %v4583, %v4584
        %v4586 = vrot.slane %v4530, 5
        %v4587 = vsel %vm4567, %v4584, %v4586
        %v4588 = vrot.slane %v4531, 5
        %v4589 = vrot.slane %v4532, 5
        %v4590 = vsel %vm4567, %v4588, %v4589
        %v4591 = vrot.slane %v4533, 5
        %v4592 = vsel %vm4567, %v4589, %v4591
        %v4593 = vrot.slane %v4534, 5
        %v4594 = vrot.slane %v4535, 5
        %v4595 = vsel %vm4567, %v4593, %v4594
        %v4596 = vrot.slane %v4536, 5
        %v4597 = vsel %vm4567, %v4594, %v4596
        %v4598 = vrot.slane %v4537, 5
        %v4599 = vrot.slane %v4538, 5
        %v4600 = vsel %vm4567, %v4598, %v4599
        %v4601 = vrot.slane %v4539, 5
        %v4602 = vsel %vm4567, %v4599, %v4601
        %v4603 = vrot.slane %v4540, 5
        %v4604 = vrot.slane %v4541, 5
        %v4605 = vsel %vm4567, %v4603, %v4604
        %v4606 = vrot.slane %v4542, 5
        %v4607 = vsel %vm4567, %v4604, %v4606
        %v4624 = vadd.f32 %v4499, %v4570
        %v4625 = vadd.f32 %v4500, %v4572
        %v4626 = vadd.f32 %v4501, %v4575
        %v4627 = vadd.f32 %v4502, %v4577
        %v4628 = vadd.f32 %v4503, %v4580
        %v4629 = vadd.f32 %v4504, %v4582
        %v4630 = vadd.f32 %v4505, %v4585
        %v4631 = vadd.f32 %v4506, %v4587
        %v4632 = vadd.f32 %v4507, %v4590
        %v4633 = vadd.f32 %v4508, %v4592
        %v4634 = vadd.f32 %v4509, %v4595
        %v4635 = vadd.f32 %v4510, %v4597
        %v4636 = vadd.f32 %v4511, %v4600
        %v4637 = vadd.f32 %v4512, %v4602
        %v4638 = vadd.f32 %v4513, %v4605
        %v4639 = vadd.f32 %v4514, %v4607
        %v4640 = vlaneseq
        %v4641 = vshrl.u32 %v4640, 7
        %v4642 = vsub.s32 6, %v4641
        %v4643 = vrot.slane %v3975, %v4642
        %v4644 = vmul.f32 %v3933, %v4643
        %v4645 = vmul.f32 %v3934, %v4643
        %v4646 = vmul.f32 %v3935, %v4643
        %v4647 = vmul.f32 %v3936, %v4643
        %v4648 = vmul.f32 %v3937, %v4643
        %v4649 = vmul.f32 %v3938, %v4643
        %v4650 = vmul.f32 %v3939, %v4643
        %v4651 = vmul.f32 %v3940, %v4643
        %v4652 = vmul.f32 %v3941, %v4643
        %v4653 = vmul.f32 %v3942, %v4643
        %v4654 = vmul.f32 %v3943, %v4643
        %v4655 = vmul.f32 %v3944, %v4643
        %v4656 = vmul.f32 %v3945, %v4643
        %v4657 = vmul.f32 %v3946, %v4643
        %v4658 = vmul.f32 %v3947, %v4643
        %v4659 = vmul.f32 %v3948, %v4643
        %v4660 = vmul.f32 %v3949, %v4643
        %v4661 = vmul.f32 %v3950, %v4643
        %v4662 = vmul.f32 %v3951, %v4643
        %v4663 = vmul.f32 %v3952, %v4643
        %v4664 = vmul.f32 %v3953, %v4643
        %v4665 = vmul.f32 %v3954, %v4643
        %v4666 = vmul.f32 %v3955, %v4643
        %v4667 = vmul.f32 %v3956, %v4643
        %v4692 = vrot.slane %v4644, 6
        %v4693 = vrot.slane %v4645, 6
        %v4694 = vsel %vm2375, %v4692, %v4693
        %v4695 = vrot.slane %v4646, 6
        %v4696 = vsel %vm2375, %v4693, %v4695
        %v4697 = vrot.slane %v4647, 6
        %v4698 = vrot.slane %v4648, 6
        %v4699 = vsel %vm2375, %v4697, %v4698
        %v4700 = vrot.slane %v4649, 6
        %v4701 = vsel %vm2375, %v4698, %v4700
        %v4702 = vrot.slane %v4650, 6
        %v4703 = vrot.slane %v4651, 6
        %v4704 = vsel %vm2375, %v4702, %v4703
        %v4705 = vrot.slane %v4652, 6
        %v4706 = vsel %vm2375, %v4703, %v4705
        %v4707 = vrot.slane %v4653, 6
        %v4708 = vrot.slane %v4654, 6
        %v4709 = vsel %vm2375, %v4707, %v4708
        %v4710 = vrot.slane %v4655, 6
        %v4711 = vsel %vm2375, %v4708, %v4710
        %v4712 = vrot.slane %v4656, 6
        %v4713 = vrot.slane %v4657, 6
        %v4714 = vsel %vm2375, %v4712, %v4713
        %v4715 = vrot.slane %v4658, 6
        %v4716 = vsel %vm2375, %v4713, %v4715
        %v4717 = vrot.slane %v4659, 6
        %v4718 = vrot.slane %v4660, 6
        %v4719 = vsel %vm2375, %v4717, %v4718
        %v4720 = vrot.slane %v4661, 6
        %v4721 = vsel %vm2375, %v4718, %v4720
        %v4722 = vrot.slane %v4662, 6
        %v4723 = vrot.slane %v4663, 6
        %v4724 = vsel %vm2375, %v4722, %v4723
        %v4725 = vrot.slane %v4664, 6
        %v4726 = vsel %vm2375, %v4723, %v4725
        %v4727 = vrot.slane %v4665, 6
        %v4728 = vrot.slane %v4666, 6
        %v4729 = vsel %vm2375, %v4727, %v4728
        %v4730 = vrot.slane %v4667, 6
        %v4731 = vsel %vm2375, %v4728, %v4730
        %v4748 = vadd.f32 %v4624, %v4694
        %v4749 = vadd.f32 %v4625, %v4696
        %v4750 = vadd.f32 %v4626, %v4699
        %v4751 = vadd.f32 %v4627, %v4701
        %v4752 = vadd.f32 %v4628, %v4704
        %v4753 = vadd.f32 %v4629, %v4706
        %v4754 = vadd.f32 %v4630, %v4709
        %v4755 = vadd.f32 %v4631, %v4711
        %v4756 = vadd.f32 %v4632, %v4714
        %v4757 = vadd.f32 %v4633, %v4716
        %v4758 = vadd.f32 %v4634, %v4719
        %v4759 = vadd.f32 %v4635, %v4721
        %v4760 = vadd.f32 %v4636, %v4724
        %v4761 = vadd.f32 %v4637, %v4726
        %v4762 = vadd.f32 %v4638, %v4729
        %v4763 = vadd.f32 %v4639, %v4731
        %v4764 = vlaneseq
        %v4765 = vshrl.u32 %v4764, 7
        %v4766 = vsub.s32 0, %v4765
        %v4767 = vrot.slane %v3976, %v4766
        %v4768 = vmul.f32 %v3936, %v4767
        %v4769 = vmul.f32 %v3937, %v4767
        %v4770 = vmul.f32 %v3939, %v4767
        %v4771 = vmul.f32 %v3940, %v4767
        %v4772 = vmul.f32 %v3942, %v4767
        %v4773 = vmul.f32 %v3943, %v4767
        %v4774 = vmul.f32 %v3945, %v4767
        %v4775 = vmul.f32 %v3946, %v4767
        %v4776 = vmul.f32 %v3948, %v4767
        %v4777 = vmul.f32 %v3949, %v4767
        %v4778 = vmul.f32 %v3951, %v4767
        %v4779 = vmul.f32 %v3952, %v4767
        %v4780 = vmul.f32 %v3954, %v4767
        %v4781 = vmul.f32 %v3955, %v4767
        %v4782 = vmul.f32 %v3957, %v4767
        %v4783 = vmul.f32 %v3958, %v4767
        %v4784 = vadd.f32 %v4748, %v4768
        %v4785 = vadd.f32 %v4749, %v4769
        %v4786 = vadd.f32 %v4750, %v4770
        %v4787 = vadd.f32 %v4751, %v4771
        %v4788 = vadd.f32 %v4752, %v4772
        %v4789 = vadd.f32 %v4753, %v4773
        %v4790 = vadd.f32 %v4754, %v4774
        %v4791 = vadd.f32 %v4755, %v4775
        %v4792 = vadd.f32 %v4756, %v4776
        %v4793 = vadd.f32 %v4757, %v4777
        %v4794 = vadd.f32 %v4758, %v4778
        %v4795 = vadd.f32 %v4759, %v4779
        %v4796 = vadd.f32 %v4760, %v4780
        %v4797 = vadd.f32 %v4761, %v4781
        %v4798 = vadd.f32 %v4762, %v4782
        %v4799 = vadd.f32 %v4763, %v4783
        %v4800 = vlaneseq
        %v4801 = vshrl.u32 %v4800, 7
        %v4802 = vsub.s32 1, %v4801
        %v4803 = vrot.slane %v3976, %v4802
        %v4804 = vmul.f32 %v3936, %v4803
        %v4805 = vmul.f32 %v3937, %v4803
        %v4806 = vmul.f32 %v3938, %v4803
        %v4807 = vmul.f32 %v3939, %v4803
        %v4808 = vmul.f32 %v3940, %v4803
        %v4809 = vmul.f32 %v3941, %v4803
        %v4810 = vmul.f32 %v3942, %v4803
        %v4811 = vmul.f32 %v3943, %v4803
        %v4812 = vmul.f32 %v3944, %v4803
        %v4813 = vmul.f32 %v3945, %v4803
        %v4814 = vmul.f32 %v3946, %v4803
        %v4815 = vmul.f32 %v3947, %v4803
        %v4816 = vmul.f32 %v3948, %v4803
        %v4817 = vmul.f32 %v3949, %v4803
        %v4818 = vmul.f32 %v3950, %v4803
        %v4819 = vmul.f32 %v3951, %v4803
        %v4820 = vmul.f32 %v3952, %v4803
        %v4821 = vmul.f32 %v3953, %v4803
        %v4822 = vmul.f32 %v3954, %v4803
        %v4823 = vmul.f32 %v3955, %v4803
        %v4824 = vmul.f32 %v3956, %v4803
        %v4825 = vmul.f32 %v3957, %v4803
        %v4826 = vmul.f32 %v3958, %v4803
        %v4827 = vmul.f32 %v3959, %v4803
        %v4852 = vrot.slane %v4804, 1
        %v4853 = vrot.slane %v4805, 1
        %v4854 = vsel %vm921, %v4852, %v4853
        %v4855 = vrot.slane %v4806, 1
        %v4856 = vsel %vm921, %v4853, %v4855
        %v4857 = vrot.slane %v4807, 1
        %v4858 = vrot.slane %v4808, 1
        %v4859 = vsel %vm921, %v4857, %v4858
        %v4860 = vrot.slane %v4809, 1
        %v4861 = vsel %vm921, %v4858, %v4860
        %v4862 = vrot.slane %v4810, 1
        %v4863 = vrot.slane %v4811, 1
        %v4864 = vsel %vm921, %v4862, %v4863
        %v4865 = vrot.slane %v4812, 1
        %v4866 = vsel %vm921, %v4863, %v4865
        %v4867 = vrot.slane %v4813, 1
        %v4868 = vrot.slane %v4814, 1
        %v4869 = vsel %vm921, %v4867, %v4868
        %v4870 = vrot.slane %v4815, 1
        %v4871 = vsel %vm921, %v4868, %v4870
        %v4872 = vrot.slane %v4816, 1
        %v4873 = vrot.slane %v4817, 1
        %v4874 = vsel %vm921, %v4872, %v4873
        %v4875 = vrot.slane %v4818, 1
        %v4876 = vsel %vm921, %v4873, %v4875
        %v4877 = vrot.slane %v4819, 1
        %v4878 = vrot.slane %v4820, 1
        %v4879 = vsel %vm921, %v4877, %v4878
        %v4880 = vrot.slane %v4821, 1
        %v4881 = vsel %vm921, %v4878, %v4880
        %v4882 = vrot.slane %v4822, 1
        %v4883 = vrot.slane %v4823, 1
        %v4884 = vsel %vm921, %v4882, %v4883
        %v4885 = vrot.slane %v4824, 1
        %v4886 = vsel %vm921, %v4883, %v4885
        %v4887 = vrot.slane %v4825, 1
        %v4888 = vrot.slane %v4826, 1
        %v4889 = vsel %vm921, %v4887, %v4888
        %v4890 = vrot.slane %v4827, 1
        %v4891 = vsel %vm921, %v4888, %v4890
        %v4908 = vadd.f32 %v4784, %v4854
        %v4909 = vadd.f32 %v4785, %v4856
        %v4910 = vadd.f32 %v4786, %v4859
        %v4911 = vadd.f32 %v4787, %v4861
        %v4912 = vadd.f32 %v4788, %v4864
        %v4913 = vadd.f32 %v4789, %v4866
        %v4914 = vadd.f32 %v4790, %v4869
        %v4915 = vadd.f32 %v4791, %v4871
        %v4916 = vadd.f32 %v4792, %v4874
        %v4917 = vadd.f32 %v4793, %v4876
        %v4918 = vadd.f32 %v4794, %v4879
        %v4919 = vadd.f32 %v4795, %v4881
        %v4920 = vadd.f32 %v4796, %v4884
        %v4921 = vadd.f32 %v4797, %v4886
        %v4922 = vadd.f32 %v4798, %v4889
        %v4923 = vadd.f32 %v4799, %v4891
        %v4924 = vlaneseq
        %v4925 = vshrl.u32 %v4924, 7
        %v4926 = vsub.s32 2, %v4925
        %v4927 = vrot.slane %v3976, %v4926
        %v4928 = vmul.f32 %v3936, %v4927
        %v4929 = vmul.f32 %v3937, %v4927
        %v4930 = vmul.f32 %v3938, %v4927
        %v4931 = vmul.f32 %v3939, %v4927
        %v4932 = vmul.f32 %v3940, %v4927
        %v4933 = vmul.f32 %v3941, %v4927
        %v4934 = vmul.f32 %v3942, %v4927
        %v4935 = vmul.f32 %v3943, %v4927
        %v4936 = vmul.f32 %v3944, %v4927
        %v4937 = vmul.f32 %v3945, %v4927
        %v4938 = vmul.f32 %v3946, %v4927
        %v4939 = vmul.f32 %v3947, %v4927
        %v4940 = vmul.f32 %v3948, %v4927
        %v4941 = vmul.f32 %v3949, %v4927
        %v4942 = vmul.f32 %v3950, %v4927
        %v4943 = vmul.f32 %v3951, %v4927
        %v4944 = vmul.f32 %v3952, %v4927
        %v4945 = vmul.f32 %v3953, %v4927
        %v4946 = vmul.f32 %v3954, %v4927
        %v4947 = vmul.f32 %v3955, %v4927
        %v4948 = vmul.f32 %v3956, %v4927
        %v4949 = vmul.f32 %v3957, %v4927
        %v4950 = vmul.f32 %v3958, %v4927
        %v4951 = vmul.f32 %v3959, %v4927
        %v4976 = vrot.slane %v4928, 2
        %v4977 = vrot.slane %v4929, 2
        %v4978 = vsel %vm1302, %v4976, %v4977
        %v4979 = vrot.slane %v4930, 2
        %v4980 = vsel %vm1302, %v4977, %v4979
        %v4981 = vrot.slane %v4931, 2
        %v4982 = vrot.slane %v4932, 2
        %v4983 = vsel %vm1302, %v4981, %v4982
        %v4984 = vrot.slane %v4933, 2
        %v4985 = vsel %vm1302, %v4982, %v4984
        %v4986 = vrot.slane %v4934, 2
        %v4987 = vrot.slane %v4935, 2
        %v4988 = vsel %vm1302, %v4986, %v4987
        %v4989 = vrot.slane %v4936, 2
        %v4990 = vsel %vm1302, %v4987, %v4989
        %v4991 = vrot.slane %v4937, 2
        %v4992 = vrot.slane %v4938, 2
        %v4993 = vsel %vm1302, %v4991, %v4992
        %v4994 = vrot.slane %v4939, 2
        %v4995 = vsel %vm1302, %v4992, %v4994
        %v4996 = vrot.slane %v4940, 2
        %v4997 = vrot.slane %v4941, 2
        %v4998 = vsel %vm1302, %v4996, %v4997
        %v4999 = vrot.slane %v4942, 2
        %v5000 = vsel %vm1302, %v4997, %v4999
        %v5001 = vrot.slane %v4943, 2
        %v5002 = vrot.slane %v4944, 2
        %v5003 = vsel %vm1302, %v5001, %v5002
        %v5004 = vrot.slane %v4945, 2
        %v5005 = vsel %vm1302, %v5002, %v5004
        %v5006 = vrot.slane %v4946, 2
        %v5007 = vrot.slane %v4947, 2
        %v5008 = vsel %vm1302, %v5006, %v5007
        %v5009 = vrot.slane %v4948, 2
        %v5010 = vsel %vm1302, %v5007, %v5009
        %v5011 = vrot.slane %v4949, 2
        %v5012 = vrot.slane %v4950, 2
        %v5013 = vsel %vm1302, %v5011, %v5012
        %v5014 = vrot.slane %v4951, 2
        %v5015 = vsel %vm1302, %v5012, %v5014
        %v5032 = vadd.f32 %v4908, %v4978
        %v5033 = vadd.f32 %v4909, %v4980
        %v5034 = vadd.f32 %v4910, %v4983
        %v5035 = vadd.f32 %v4911, %v4985
        %v5036 = vadd.f32 %v4912, %v4988
        %v5037 = vadd.f32 %v4913, %v4990
        %v5038 = vadd.f32 %v4914, %v4993
        %v5039 = vadd.f32 %v4915, %v4995
        %v5040 = vadd.f32 %v4916, %v4998
        %v5041 = vadd.f32 %v4917, %v5000
        %v5042 = vadd.f32 %v4918, %v5003
        %v5043 = vadd.f32 %v4919, %v5005
        %v5044 = vadd.f32 %v4920, %v5008
        %v5045 = vadd.f32 %v4921, %v5010
        %v5046 = vadd.f32 %v4922, %v5013
        %v5047 = vadd.f32 %v4923, %v5015
        %v5048 = vlaneseq
        %v5049 = vshrl.u32 %v5048, 7
        %v5050 = vsub.s32 3, %v5049
        %v5051 = vrot.slane %v3976, %v5050
        %v5052 = vmul.f32 %v3936, %v5051
        %v5053 = vmul.f32 %v3937, %v5051
        %v5054 = vmul.f32 %v3938, %v5051
        %v5055 = vmul.f32 %v3939, %v5051
        %v5056 = vmul.f32 %v3940, %v5051
        %v5057 = vmul.f32 %v3941, %v5051
        %v5058 = vmul.f32 %v3942, %v5051
        %v5059 = vmul.f32 %v3943, %v5051
        %v5060 = vmul.f32 %v3944, %v5051
        %v5061 = vmul.f32 %v3945, %v5051
        %v5062 = vmul.f32 %v3946, %v5051
        %v5063 = vmul.f32 %v3947, %v5051
        %v5064 = vmul.f32 %v3948, %v5051
        %v5065 = vmul.f32 %v3949, %v5051
        %v5066 = vmul.f32 %v3950, %v5051
        %v5067 = vmul.f32 %v3951, %v5051
        %v5068 = vmul.f32 %v3952, %v5051
        %v5069 = vmul.f32 %v3953, %v5051
        %v5070 = vmul.f32 %v3954, %v5051
        %v5071 = vmul.f32 %v3955, %v5051
        %v5072 = vmul.f32 %v3956, %v5051
        %v5073 = vmul.f32 %v3957, %v5051
        %v5074 = vmul.f32 %v3958, %v5051
        %v5075 = vmul.f32 %v3959, %v5051
        %v5100 = vrot.slane %v5052, 3
        %v5101 = vrot.slane %v5053, 3
        %v5102 = vsel %vm4318, %v5100, %v5101
        %v5103 = vrot.slane %v5054, 3
        %v5104 = vsel %vm4318, %v5101, %v5103
        %v5105 = vrot.slane %v5055, 3
        %v5106 = vrot.slane %v5056, 3
        %v5107 = vsel %vm4318, %v5105, %v5106
        %v5108 = vrot.slane %v5057, 3
        %v5109 = vsel %vm4318, %v5106, %v5108
        %v5110 = vrot.slane %v5058, 3
        %v5111 = vrot.slane %v5059, 3
        %v5112 = vsel %vm4318, %v5110, %v5111
        %v5113 = vrot.slane %v5060, 3
        %v5114 = vsel %vm4318, %v5111, %v5113
        %v5115 = vrot.slane %v5061, 3
        %v5116 = vrot.slane %v5062, 3
        %v5117 = vsel %vm4318, %v5115, %v5116
        %v5118 = vrot.slane %v5063, 3
        %v5119 = vsel %vm4318, %v5116, %v5118
        %v5120 = vrot.slane %v5064, 3
        %v5121 = vrot.slane %v5065, 3
        %v5122 = vsel %vm4318, %v5120, %v5121
        %v5123 = vrot.slane %v5066, 3
        %v5124 = vsel %vm4318, %v5121, %v5123
        %v5125 = vrot.slane %v5067, 3
        %v5126 = vrot.slane %v5068, 3
        %v5127 = vsel %vm4318, %v5125, %v5126
        %v5128 = vrot.slane %v5069, 3
        %v5129 = vsel %vm4318, %v5126, %v5128
        %v5130 = vrot.slane %v5070, 3
        %v5131 = vrot.slane %v5071, 3
        %v5132 = vsel %vm4318, %v5130, %v5131
        %v5133 = vrot.slane %v5072, 3
        %v5134 = vsel %vm4318, %v5131, %v5133
        %v5135 = vrot.slane %v5073, 3
        %v5136 = vrot.slane %v5074, 3
        %v5137 = vsel %vm4318, %v5135, %v5136
        %v5138 = vrot.slane %v5075, 3
        %v5139 = vsel %vm4318, %v5136, %v5138
        %v5156 = vadd.f32 %v5032, %v5102
        %v5157 = vadd.f32 %v5033, %v5104
        %v5158 = vadd.f32 %v5034, %v5107
        %v5159 = vadd.f32 %v5035, %v5109
        %v5160 = vadd.f32 %v5036, %v5112
        %v5161 = vadd.f32 %v5037, %v5114
        %v5162 = vadd.f32 %v5038, %v5117
        %v5163 = vadd.f32 %v5039, %v5119
        %v5164 = vadd.f32 %v5040, %v5122
        %v5165 = vadd.f32 %v5041, %v5124
        %v5166 = vadd.f32 %v5042, %v5127
        %v5167 = vadd.f32 %v5043, %v5129
        %v5168 = vadd.f32 %v5044, %v5132
        %v5169 = vadd.f32 %v5045, %v5134
        %v5170 = vadd.f32 %v5046, %v5137
        %v5171 = vadd.f32 %v5047, %v5139
        %v5172 = vlaneseq
        %v5173 = vshrl.u32 %v5172, 7
        %v5174 = vsub.s32 4, %v5173
        %v5175 = vrot.slane %v3976, %v5174
        %v5176 = vmul.f32 %v3936, %v5175
        %v5177 = vmul.f32 %v3937, %v5175
        %v5178 = vmul.f32 %v3938, %v5175
        %v5179 = vmul.f32 %v3939, %v5175
        %v5180 = vmul.f32 %v3940, %v5175
        %v5181 = vmul.f32 %v3941, %v5175
        %v5182 = vmul.f32 %v3942, %v5175
        %v5183 = vmul.f32 %v3943, %v5175
        %v5184 = vmul.f32 %v3944, %v5175
        %v5185 = vmul.f32 %v3945, %v5175
        %v5186 = vmul.f32 %v3946, %v5175
        %v5187 = vmul.f32 %v3947, %v5175
        %v5188 = vmul.f32 %v3948, %v5175
        %v5189 = vmul.f32 %v3949, %v5175
        %v5190 = vmul.f32 %v3950, %v5175
        %v5191 = vmul.f32 %v3951, %v5175
        %v5192 = vmul.f32 %v3952, %v5175
        %v5193 = vmul.f32 %v3953, %v5175
        %v5194 = vmul.f32 %v3954, %v5175
        %v5195 = vmul.f32 %v3955, %v5175
        %v5196 = vmul.f32 %v3956, %v5175
        %v5197 = vmul.f32 %v3957, %v5175
        %v5198 = vmul.f32 %v3958, %v5175
        %v5199 = vmul.f32 %v3959, %v5175
        %v5224 = vrot.slane %v5176, 4
        %v5225 = vrot.slane %v5177, 4
        %v5226 = vsel %vm3498, %v5224, %v5225
        %v5227 = vrot.slane %v5178, 4
        %v5228 = vsel %vm3498, %v5225, %v5227
        %v5229 = vrot.slane %v5179, 4
        %v5230 = vrot.slane %v5180, 4
        %v5231 = vsel %vm3498, %v5229, %v5230
        %v5232 = vrot.slane %v5181, 4
        %v5233 = vsel %vm3498, %v5230, %v5232
        %v5234 = vrot.slane %v5182, 4
        %v5235 = vrot.slane %v5183, 4
        %v5236 = vsel %vm3498, %v5234, %v5235
        %v5237 = vrot.slane %v5184, 4
        %v5238 = vsel %vm3498, %v5235, %v5237
        %v5239 = vrot.slane %v5185, 4
        %v5240 = vrot.slane %v5186, 4
        %v5241 = vsel %vm3498, %v5239, %v5240
        %v5242 = vrot.slane %v5187, 4
        %v5243 = vsel %vm3498, %v5240, %v5242
        %v5244 = vrot.slane %v5188, 4
        %v5245 = vrot.slane %v5189, 4
        %v5246 = vsel %vm3498, %v5244, %v5245
        %v5247 = vrot.slane %v5190, 4
        %v5248 = vsel %vm3498, %v5245, %v5247
        %v5249 = vrot.slane %v5191, 4
        %v5250 = vrot.slane %v5192, 4
        %v5251 = vsel %vm3498, %v5249, %v5250
        %v5252 = vrot.slane %v5193, 4
        %v5253 = vsel %vm3498, %v5250, %v5252
        %v5254 = vrot.slane %v5194, 4
        %v5255 = vrot.slane %v5195, 4
        %v5256 = vsel %vm3498, %v5254, %v5255
        %v5257 = vrot.slane %v5196, 4
        %v5258 = vsel %vm3498, %v5255, %v5257
        %v5259 = vrot.slane %v5197, 4
        %v5260 = vrot.slane %v5198, 4
        %v5261 = vsel %vm3498, %v5259, %v5260
        %v5262 = vrot.slane %v5199, 4
        %v5263 = vsel %vm3498, %v5260, %v5262
        %v5280 = vadd.f32 %v5156, %v5226
        %v5281 = vadd.f32 %v5157, %v5228
        %v5282 = vadd.f32 %v5158, %v5231
        %v5283 = vadd.f32 %v5159, %v5233
        %v5284 = vadd.f32 %v5160, %v5236
        %v5285 = vadd.f32 %v5161, %v5238
        %v5286 = vadd.f32 %v5162, %v5241
        %v5287 = vadd.f32 %v5163, %v5243
        %v5288 = vadd.f32 %v5164, %v5246
        %v5289 = vadd.f32 %v5165, %v5248
        %v5290 = vadd.f32 %v5166, %v5251
        %v5291 = vadd.f32 %v5167, %v5253
        %v5292 = vadd.f32 %v5168, %v5256
        %v5293 = vadd.f32 %v5169, %v5258
        %v5294 = vadd.f32 %v5170, %v5261
        %v5295 = vadd.f32 %v5171, %v5263
        %v5296 = vlaneseq
        %v5297 = vshrl.u32 %v5296, 7
        %v5298 = vsub.s32 5, %v5297
        %v5299 = vrot.slane %v3976, %v5298
        %v5300 = vmul.f32 %v3936, %v5299
        %v5301 = vmul.f32 %v3937, %v5299
        %v5302 = vmul.f32 %v3938, %v5299
        %v5303 = vmul.f32 %v3939, %v5299
        %v5304 = vmul.f32 %v3940, %v5299
        %v5305 = vmul.f32 %v3941, %v5299
        %v5306 = vmul.f32 %v3942, %v5299
        %v5307 = vmul.f32 %v3943, %v5299
        %v5308 = vmul.f32 %v3944, %v5299
        %v5309 = vmul.f32 %v3945, %v5299
        %v5310 = vmul.f32 %v3946, %v5299
        %v5311 = vmul.f32 %v3947, %v5299
        %v5312 = vmul.f32 %v3948, %v5299
        %v5313 = vmul.f32 %v3949, %v5299
        %v5314 = vmul.f32 %v3950, %v5299
        %v5315 = vmul.f32 %v3951, %v5299
        %v5316 = vmul.f32 %v3952, %v5299
        %v5317 = vmul.f32 %v3953, %v5299
        %v5318 = vmul.f32 %v3954, %v5299
        %v5319 = vmul.f32 %v3955, %v5299
        %v5320 = vmul.f32 %v3956, %v5299
        %v5321 = vmul.f32 %v3957, %v5299
        %v5322 = vmul.f32 %v3958, %v5299
        %v5323 = vmul.f32 %v3959, %v5299
        %v5348 = vrot.slane %v5300, 5
        %v5349 = vrot.slane %v5301, 5
        %v5350 = vsel %vm4567, %v5348, %v5349
        %v5351 = vrot.slane %v5302, 5
        %v5352 = vsel %vm4567, %v5349, %v5351
        %v5353 = vrot.slane %v5303, 5
        %v5354 = vrot.slane %v5304, 5
        %v5355 = vsel %vm4567, %v5353, %v5354
        %v5356 = vrot.slane %v5305, 5
        %v5357 = vsel %vm4567, %v5354, %v5356
        %v5358 = vrot.slane %v5306, 5
        %v5359 = vrot.slane %v5307, 5
        %v5360 = vsel %vm4567, %v5358, %v5359
        %v5361 = vrot.slane %v5308, 5
        %v5362 = vsel %vm4567, %v5359, %v5361
        %v5363 = vrot.slane %v5309, 5
        %v5364 = vrot.slane %v5310, 5
        %v5365 = vsel %vm4567, %v5363, %v5364
        %v5366 = vrot.slane %v5311, 5
        %v5367 = vsel %vm4567, %v5364, %v5366
        %v5368 = vrot.slane %v5312, 5
        %v5369 = vrot.slane %v5313, 5
        %v5370 = vsel %vm4567, %v5368, %v5369
        %v5371 = vrot.slane %v5314, 5
        %v5372 = vsel %vm4567, %v5369, %v5371
        %v5373 = vrot.slane %v5315, 5
        %v5374 = vrot.slane %v5316, 5
        %v5375 = vsel %vm4567, %v5373, %v5374
        %v5376 = vrot.slane %v5317, 5
        %v5377 = vsel %vm4567, %v5374, %v5376
        %v5378 = vrot.slane %v5318, 5
        %v5379 = vrot.slane %v5319, 5
        %v5380 = vsel %vm4567, %v5378, %v5379
        %v5381 = vrot.slane %v5320, 5
        %v5382 = vsel %vm4567, %v5379, %v5381
        %v5383 = vrot.slane %v5321, 5
        %v5384 = vrot.slane %v5322, 5
        %v5385 = vsel %vm4567, %v5383, %v5384
        %v5386 = vrot.slane %v5323, 5
        %v5387 = vsel %vm4567, %v5384, %v5386
        %v5404 = vadd.f32 %v5280, %v5350
        %v5405 = vadd.f32 %v5281, %v5352
        %v5406 = vadd.f32 %v5282, %v5355
        %v5407 = vadd.f32 %v5283, %v5357
        %v5408 = vadd.f32 %v5284, %v5360
        %v5409 = vadd.f32 %v5285, %v5362
        %v5410 = vadd.f32 %v5286, %v5365
        %v5411 = vadd.f32 %v5287, %v5367
        %v5412 = vadd.f32 %v5288, %v5370
        %v5413 = vadd.f32 %v5289, %v5372
        %v5414 = vadd.f32 %v5290, %v5375
        %v5415 = vadd.f32 %v5291, %v5377
        %v5416 = vadd.f32 %v5292, %v5380
        %v5417 = vadd.f32 %v5293, %v5382
        %v5418 = vadd.f32 %v5294, %v5385
        %v5419 = vadd.f32 %v5295, %v5387
        %v5420 = vlaneseq
        %v5421 = vshrl.u32 %v5420, 7
        %v5422 = vsub.s32 6, %v5421
        %v5423 = vrot.slane %v3976, %v5422
        %v5424 = vmul.f32 %v3936, %v5423
        %v5425 = vmul.f32 %v3937, %v5423
        %v5426 = vmul.f32 %v3938, %v5423
        %v5427 = vmul.f32 %v3939, %v5423
        %v5428 = vmul.f32 %v3940, %v5423
        %v5429 = vmul.f32 %v3941, %v5423
        %v5430 = vmul.f32 %v3942, %v5423
        %v5431 = vmul.f32 %v3943, %v5423
        %v5432 = vmul.f32 %v3944, %v5423
        %v5433 = vmul.f32 %v3945, %v5423
        %v5434 = vmul.f32 %v3946, %v5423
        %v5435 = vmul.f32 %v3947, %v5423
        %v5436 = vmul.f32 %v3948, %v5423
        %v5437 = vmul.f32 %v3949, %v5423
        %v5438 = vmul.f32 %v3950, %v5423
        %v5439 = vmul.f32 %v3951, %v5423
        %v5440 = vmul.f32 %v3952, %v5423
        %v5441 = vmul.f32 %v3953, %v5423
        %v5442 = vmul.f32 %v3954, %v5423
        %v5443 = vmul.f32 %v3955, %v5423
        %v5444 = vmul.f32 %v3956, %v5423
        %v5445 = vmul.f32 %v3957, %v5423
        %v5446 = vmul.f32 %v3958, %v5423
        %v5447 = vmul.f32 %v3959, %v5423
        %v5472 = vrot.slane %v5424, 6
        %v5473 = vrot.slane %v5425, 6
        %v5474 = vsel %vm2375, %v5472, %v5473
        %v5475 = vrot.slane %v5426, 6
        %v5476 = vsel %vm2375, %v5473, %v5475
        %v5477 = vrot.slane %v5427, 6
        %v5478 = vrot.slane %v5428, 6
        %v5479 = vsel %vm2375, %v5477, %v5478
        %v5480 = vrot.slane %v5429, 6
        %v5481 = vsel %vm2375, %v5478, %v5480
        %v5482 = vrot.slane %v5430, 6
        %v5483 = vrot.slane %v5431, 6
        %v5484 = vsel %vm2375, %v5482, %v5483
        %v5485 = vrot.slane %v5432, 6
        %v5486 = vsel %vm2375, %v5483, %v5485
        %v5487 = vrot.slane %v5433, 6
        %v5488 = vrot.slane %v5434, 6
        %v5489 = vsel %vm2375, %v5487, %v5488
        %v5490 = vrot.slane %v5435, 6
        %v5491 = vsel %vm2375, %v5488, %v5490
        %v5492 = vrot.slane %v5436, 6
        %v5493 = vrot.slane %v5437, 6
        %v5494 = vsel %vm2375, %v5492, %v5493
        %v5495 = vrot.slane %v5438, 6
        %v5496 = vsel %vm2375, %v5493, %v5495
        %v5497 = vrot.slane %v5439, 6
        %v5498 = vrot.slane %v5440, 6
        %v5499 = vsel %vm2375, %v5497, %v5498
        %v5500 = vrot.slane %v5441, 6
        %v5501 = vsel %vm2375, %v5498, %v5500
        %v5502 = vrot.slane %v5442, 6
        %v5503 = vrot.slane %v5443, 6
        %v5504 = vsel %vm2375, %v5502, %v5503
        %v5505 = vrot.slane %v5444, 6
        %v5506 = vsel %vm2375, %v5503, %v5505
        %v5507 = vrot.slane %v5445, 6
        %v5508 = vrot.slane %v5446, 6
        %v5509 = vsel %vm2375, %v5507, %v5508
        %v5510 = vrot.slane %v5447, 6
        %v5511 = vsel %vm2375, %v5508, %v5510
        %v5528 = vadd.f32 %v5404, %v5474
        %v5529 = vadd.f32 %v5405, %v5476
        %v5530 = vadd.f32 %v5406, %v5479
        %v5531 = vadd.f32 %v5407, %v5481
        %v5532 = vadd.f32 %v5408, %v5484
        %v5533 = vadd.f32 %v5409, %v5486
        %v5534 = vadd.f32 %v5410, %v5489
        %v5535 = vadd.f32 %v5411, %v5491
        %v5536 = vadd.f32 %v5412, %v5494
        %v5537 = vadd.f32 %v5413, %v5496
        %v5538 = vadd.f32 %v5414, %v5499
        %v5539 = vadd.f32 %v5415, %v5501
        %v5540 = vadd.f32 %v5416, %v5504
        %v5541 = vadd.f32 %v5417, %v5506
        %v5542 = vadd.f32 %v5418, %v5509
        %v5543 = vadd.f32 %v5419, %v5511
        %v5544 = vlaneseq
        %v5545 = vshrl.u32 %v5544, 7
        %v5546 = vsub.s32 0, %v5545
        %v5547 = vrot.slane %v3977, %v5546
        %v5548 = vmul.f32 %v3939, %v5547
        %v5549 = vmul.f32 %v3940, %v5547
        %v5550 = vmul.f32 %v3942, %v5547
        %v5551 = vmul.f32 %v3943, %v5547
        %v5552 = vmul.f32 %v3945, %v5547
        %v5553 = vmul.f32 %v3946, %v5547
        %v5554 = vmul.f32 %v3948, %v5547
        %v5555 = vmul.f32 %v3949, %v5547
        %v5556 = vmul.f32 %v3951, %v5547
        %v5557 = vmul.f32 %v3952, %v5547
        %v5558 = vmul.f32 %v3954, %v5547
        %v5559 = vmul.f32 %v3955, %v5547
        %v5560 = vmul.f32 %v3957, %v5547
        %v5561 = vmul.f32 %v3958, %v5547
        %v5562 = vmul.f32 %v3960, %v5547
        %v5563 = vmul.f32 %v3961, %v5547
        %v5564 = vadd.f32 %v5528, %v5548
        %v5565 = vadd.f32 %v5529, %v5549
        %v5566 = vadd.f32 %v5530, %v5550
        %v5567 = vadd.f32 %v5531, %v5551
        %v5568 = vadd.f32 %v5532, %v5552
        %v5569 = vadd.f32 %v5533, %v5553
        %v5570 = vadd.f32 %v5534, %v5554
        %v5571 = vadd.f32 %v5535, %v5555
        %v5572 = vadd.f32 %v5536, %v5556
        %v5573 = vadd.f32 %v5537, %v5557
        %v5574 = vadd.f32 %v5538, %v5558
        %v5575 = vadd.f32 %v5539, %v5559
        %v5576 = vadd.f32 %v5540, %v5560
        %v5577 = vadd.f32 %v5541, %v5561
        %v5578 = vadd.f32 %v5542, %v5562
        %v5579 = vadd.f32 %v5543, %v5563
        %v5580 = vlaneseq
        %v5581 = vshrl.u32 %v5580, 7
        %v5582 = vsub.s32 1, %v5581
        %v5583 = vrot.slane %v3977, %v5582
        %v5584 = vmul.f32 %v3939, %v5583
        %v5585 = vmul.f32 %v3940, %v5583
        %v5586 = vmul.f32 %v3941, %v5583
        %v5587 = vmul.f32 %v3942, %v5583
        %v5588 = vmul.f32 %v3943, %v5583
        %v5589 = vmul.f32 %v3944, %v5583
        %v5590 = vmul.f32 %v3945, %v5583
        %v5591 = vmul.f32 %v3946, %v5583
        %v5592 = vmul.f32 %v3947, %v5583
        %v5593 = vmul.f32 %v3948, %v5583
        %v5594 = vmul.f32 %v3949, %v5583
        %v5595 = vmul.f32 %v3950, %v5583
        %v5596 = vmul.f32 %v3951, %v5583
        %v5597 = vmul.f32 %v3952, %v5583
        %v5598 = vmul.f32 %v3953, %v5583
        %v5599 = vmul.f32 %v3954, %v5583
        %v5600 = vmul.f32 %v3955, %v5583
        %v5601 = vmul.f32 %v3956, %v5583
        %v5602 = vmul.f32 %v3957, %v5583
        %v5603 = vmul.f32 %v3958, %v5583
        %v5604 = vmul.f32 %v3959, %v5583
        %v5605 = vmul.f32 %v3960, %v5583
        %v5606 = vmul.f32 %v3961, %v5583
        %v5607 = vmul.f32 %v3962, %v5583
        %v5632 = vrot.slane %v5584, 1
        %v5633 = vrot.slane %v5585, 1
        %v5634 = vsel %vm921, %v5632, %v5633
        %v5635 = vrot.slane %v5586, 1
        %v5636 = vsel %vm921, %v5633, %v5635
        %v5637 = vrot.slane %v5587, 1
        %v5638 = vrot.slane %v5588, 1
        %v5639 = vsel %vm921, %v5637, %v5638
        %v5640 = vrot.slane %v5589, 1
        %v5641 = vsel %vm921, %v5638, %v5640
        %v5642 = vrot.slane %v5590, 1
        %v5643 = vrot.slane %v5591, 1
        %v5644 = vsel %vm921, %v5642, %v5643
        %v5645 = vrot.slane %v5592, 1
        %v5646 = vsel %vm921, %v5643, %v5645
        %v5647 = vrot.slane %v5593, 1
        %v5648 = vrot.slane %v5594, 1
        %v5649 = vsel %vm921, %v5647, %v5648
        %v5650 = vrot.slane %v5595, 1
        %v5651 = vsel %vm921, %v5648, %v5650
        %v5652 = vrot.slane %v5596, 1
        %v5653 = vrot.slane %v5597, 1
        %v5654 = vsel %vm921, %v5652, %v5653
        %v5655 = vrot.slane %v5598, 1
        %v5656 = vsel %vm921, %v5653, %v5655
        %v5657 = vrot.slane %v5599, 1
        %v5658 = vrot.slane %v5600, 1
        %v5659 = vsel %vm921, %v5657, %v5658
        %v5660 = vrot.slane %v5601, 1
        %v5661 = vsel %vm921, %v5658, %v5660
        %v5662 = vrot.slane %v5602, 1
        %v5663 = vrot.slane %v5603, 1
        %v5664 = vsel %vm921, %v5662, %v5663
        %v5665 = vrot.slane %v5604, 1
        %v5666 = vsel %vm921, %v5663, %v5665
        %v5667 = vrot.slane %v5605, 1
        %v5668 = vrot.slane %v5606, 1
        %v5669 = vsel %vm921, %v5667, %v5668
        %v5670 = vrot.slane %v5607, 1
        %v5671 = vsel %vm921, %v5668, %v5670
        %v5688 = vadd.f32 %v5564, %v5634
        %v5689 = vadd.f32 %v5565, %v5636
        %v5690 = vadd.f32 %v5566, %v5639
        %v5691 = vadd.f32 %v5567, %v5641
        %v5692 = vadd.f32 %v5568, %v5644
        %v5693 = vadd.f32 %v5569, %v5646
        %v5694 = vadd.f32 %v5570, %v5649
        %v5695 = vadd.f32 %v5571, %v5651
        %v5696 = vadd.f32 %v5572, %v5654
        %v5697 = vadd.f32 %v5573, %v5656
        %v5698 = vadd.f32 %v5574, %v5659
        %v5699 = vadd.f32 %v5575, %v5661
        %v5700 = vadd.f32 %v5576, %v5664
        %v5701 = vadd.f32 %v5577, %v5666
        %v5702 = vadd.f32 %v5578, %v5669
        %v5703 = vadd.f32 %v5579, %v5671
        %v5704 = vlaneseq
        %v5705 = vshrl.u32 %v5704, 7
        %v5706 = vsub.s32 2, %v5705
        %v5707 = vrot.slane %v3977, %v5706
        %v5708 = vmul.f32 %v3939, %v5707
        %v5709 = vmul.f32 %v3940, %v5707
        %v5710 = vmul.f32 %v3941, %v5707
        %v5711 = vmul.f32 %v3942, %v5707
        %v5712 = vmul.f32 %v3943, %v5707
        %v5713 = vmul.f32 %v3944, %v5707
        %v5714 = vmul.f32 %v3945, %v5707
        %v5715 = vmul.f32 %v3946, %v5707
        %v5716 = vmul.f32 %v3947, %v5707
        %v5717 = vmul.f32 %v3948, %v5707
        %v5718 = vmul.f32 %v3949, %v5707
        %v5719 = vmul.f32 %v3950, %v5707
        %v5720 = vmul.f32 %v3951, %v5707
        %v5721 = vmul.f32 %v3952, %v5707
        %v5722 = vmul.f32 %v3953, %v5707
        %v5723 = vmul.f32 %v3954, %v5707
        %v5724 = vmul.f32 %v3955, %v5707
        %v5725 = vmul.f32 %v3956, %v5707
        %v5726 = vmul.f32 %v3957, %v5707
        %v5727 = vmul.f32 %v3958, %v5707
        %v5728 = vmul.f32 %v3959, %v5707
        %v5729 = vmul.f32 %v3960, %v5707
        %v5730 = vmul.f32 %v3961, %v5707
        %v5731 = vmul.f32 %v3962, %v5707
        %v5756 = vrot.slane %v5708, 2
        %v5757 = vrot.slane %v5709, 2
        %v5758 = vsel %vm1302, %v5756, %v5757
        %v5759 = vrot.slane %v5710, 2
        %v5760 = vsel %vm1302, %v5757, %v5759
        %v5761 = vrot.slane %v5711, 2
        %v5762 = vrot.slane %v5712, 2
        %v5763 = vsel %vm1302, %v5761, %v5762
        %v5764 = vrot.slane %v5713, 2
        %v5765 = vsel %vm1302, %v5762, %v5764
        %v5766 = vrot.slane %v5714, 2
        %v5767 = vrot.slane %v5715, 2
        %v5768 = vsel %vm1302, %v5766, %v5767
        %v5769 = vrot.slane %v5716, 2
        %v5770 = vsel %vm1302, %v5767, %v5769
        %v5771 = vrot.slane %v5717, 2
        %v5772 = vrot.slane %v5718, 2
        %v5773 = vsel %vm1302, %v5771, %v5772
        %v5774 = vrot.slane %v5719, 2
        %v5775 = vsel %vm1302, %v5772, %v5774
        %v5776 = vrot.slane %v5720, 2
        %v5777 = vrot.slane %v5721, 2
        %v5778 = vsel %vm1302, %v5776, %v5777
        %v5779 = vrot.slane %v5722, 2
        %v5780 = vsel %vm1302, %v5777, %v5779
        %v5781 = vrot.slane %v5723, 2
        %v5782 = vrot.slane %v5724, 2
        %v5783 = vsel %vm1302, %v5781, %v5782
        %v5784 = vrot.slane %v5725, 2
        %v5785 = vsel %vm1302, %v5782, %v5784
        %v5786 = vrot.slane %v5726, 2
        %v5787 = vrot.slane %v5727, 2
        %v5788 = vsel %vm1302, %v5786, %v5787
        %v5789 = vrot.slane %v5728, 2
        %v5790 = vsel %vm1302, %v5787, %v5789
        %v5791 = vrot.slane %v5729, 2
        %v5792 = vrot.slane %v5730, 2
        %v5793 = vsel %vm1302, %v5791, %v5792
        %v5794 = vrot.slane %v5731, 2
        %v5795 = vsel %vm1302, %v5792, %v5794
        %v5812 = vadd.f32 %v5688, %v5758
        %v5813 = vadd.f32 %v5689, %v5760
        %v5814 = vadd.f32 %v5690, %v5763
        %v5815 = vadd.f32 %v5691, %v5765
        %v5816 = vadd.f32 %v5692, %v5768
        %v5817 = vadd.f32 %v5693, %v5770
        %v5818 = vadd.f32 %v5694, %v5773
        %v5819 = vadd.f32 %v5695, %v5775
        %v5820 = vadd.f32 %v5696, %v5778
        %v5821 = vadd.f32 %v5697, %v5780
        %v5822 = vadd.f32 %v5698, %v5783
        %v5823 = vadd.f32 %v5699, %v5785
        %v5824 = vadd.f32 %v5700, %v5788
        %v5825 = vadd.f32 %v5701, %v5790
        %v5826 = vadd.f32 %v5702, %v5793
        %v5827 = vadd.f32 %v5703, %v5795
        %v5828 = vlaneseq
        %v5829 = vshrl.u32 %v5828, 7
        %v5830 = vsub.s32 3, %v5829
        %v5831 = vrot.slane %v3977, %v5830
        %v5832 = vmul.f32 %v3939, %v5831
        %v5833 = vmul.f32 %v3940, %v5831
        %v5834 = vmul.f32 %v3941, %v5831
        %v5835 = vmul.f32 %v3942, %v5831
        %v5836 = vmul.f32 %v3943, %v5831
        %v5837 = vmul.f32 %v3944, %v5831
        %v5838 = vmul.f32 %v3945, %v5831
        %v5839 = vmul.f32 %v3946, %v5831
        %v5840 = vmul.f32 %v3947, %v5831
        %v5841 = vmul.f32 %v3948, %v5831
        %v5842 = vmul.f32 %v3949, %v5831
        %v5843 = vmul.f32 %v3950, %v5831
        %v5844 = vmul.f32 %v3951, %v5831
        %v5845 = vmul.f32 %v3952, %v5831
        %v5846 = vmul.f32 %v3953, %v5831
        %v5847 = vmul.f32 %v3954, %v5831
        %v5848 = vmul.f32 %v3955, %v5831
        %v5849 = vmul.f32 %v3956, %v5831
        %v5850 = vmul.f32 %v3957, %v5831
        %v5851 = vmul.f32 %v3958, %v5831
        %v5852 = vmul.f32 %v3959, %v5831
        %v5853 = vmul.f32 %v3960, %v5831
        %v5854 = vmul.f32 %v3961, %v5831
        %v5855 = vmul.f32 %v3962, %v5831
        %v5880 = vrot.slane %v5832, 3
        %v5881 = vrot.slane %v5833, 3
        %v5882 = vsel %vm4318, %v5880, %v5881
        %v5883 = vrot.slane %v5834, 3
        %v5884 = vsel %vm4318, %v5881, %v5883
        %v5885 = vrot.slane %v5835, 3
        %v5886 = vrot.slane %v5836, 3
        %v5887 = vsel %vm4318, %v5885, %v5886
        %v5888 = vrot.slane %v5837, 3
        %v5889 = vsel %vm4318, %v5886, %v5888
        %v5890 = vrot.slane %v5838, 3
        %v5891 = vrot.slane %v5839, 3
        %v5892 = vsel %vm4318, %v5890, %v5891
        %v5893 = vrot.slane %v5840, 3
        %v5894 = vsel %vm4318, %v5891, %v5893
        %v5895 = vrot.slane %v5841, 3
        %v5896 = vrot.slane %v5842, 3
        %v5897 = vsel %vm4318, %v5895, %v5896
        %v5898 = vrot.slane %v5843, 3
        %v5899 = vsel %vm4318, %v5896, %v5898
        %v5900 = vrot.slane %v5844, 3
        %v5901 = vrot.slane %v5845, 3
        %v5902 = vsel %vm4318, %v5900, %v5901
        %v5903 = vrot.slane %v5846, 3
        %v5904 = vsel %vm4318, %v5901, %v5903
        %v5905 = vrot.slane %v5847, 3
        %v5906 = vrot.slane %v5848, 3
        %v5907 = vsel %vm4318, %v5905, %v5906
        %v5908 = vrot.slane %v5849, 3
        %v5909 = vsel %vm4318, %v5906, %v5908
        %v5910 = vrot.slane %v5850, 3
        %v5911 = vrot.slane %v5851, 3
        %v5912 = vsel %vm4318, %v5910, %v5911
        %v5913 = vrot.slane %v5852, 3
        %v5914 = vsel %vm4318, %v5911, %v5913
        %v5915 = vrot.slane %v5853, 3
        %v5916 = vrot.slane %v5854, 3
        %v5917 = vsel %vm4318, %v5915, %v5916
        %v5918 = vrot.slane %v5855, 3
        %v5919 = vsel %vm4318, %v5916, %v5918
        %v5936 = vadd.f32 %v5812, %v5882
        %v5937 = vadd.f32 %v5813, %v5884
        %v5938 = vadd.f32 %v5814, %v5887
        %v5939 = vadd.f32 %v5815, %v5889
        %v5940 = vadd.f32 %v5816, %v5892
        %v5941 = vadd.f32 %v5817, %v5894
        %v5942 = vadd.f32 %v5818, %v5897
        %v5943 = vadd.f32 %v5819, %v5899
        %v5944 = vadd.f32 %v5820, %v5902
        %v5945 = vadd.f32 %v5821, %v5904
        %v5946 = vadd.f32 %v5822, %v5907
        %v5947 = vadd.f32 %v5823, %v5909
        %v5948 = vadd.f32 %v5824, %v5912
        %v5949 = vadd.f32 %v5825, %v5914
        %v5950 = vadd.f32 %v5826, %v5917
        %v5951 = vadd.f32 %v5827, %v5919
        %v5952 = vlaneseq
        %v5953 = vshrl.u32 %v5952, 7
        %v5954 = vsub.s32 4, %v5953
        %v5955 = vrot.slane %v3977, %v5954
        %v5956 = vmul.f32 %v3939, %v5955
        %v5957 = vmul.f32 %v3940, %v5955
        %v5958 = vmul.f32 %v3941, %v5955
        %v5959 = vmul.f32 %v3942, %v5955
        %v5960 = vmul.f32 %v3943, %v5955
        %v5961 = vmul.f32 %v3944, %v5955
        %v5962 = vmul.f32 %v3945, %v5955
        %v5963 = vmul.f32 %v3946, %v5955
        %v5964 = vmul.f32 %v3947, %v5955
        %v5965 = vmul.f32 %v3948, %v5955
        %v5966 = vmul.f32 %v3949, %v5955
        %v5967 = vmul.f32 %v3950, %v5955
        %v5968 = vmul.f32 %v3951, %v5955
        %v5969 = vmul.f32 %v3952, %v5955
        %v5970 = vmul.f32 %v3953, %v5955
        %v5971 = vmul.f32 %v3954, %v5955
        %v5972 = vmul.f32 %v3955, %v5955
        %v5973 = vmul.f32 %v3956, %v5955
        %v5974 = vmul.f32 %v3957, %v5955
        %v5975 = vmul.f32 %v3958, %v5955
        %v5976 = vmul.f32 %v3959, %v5955
        %v5977 = vmul.f32 %v3960, %v5955
        %v5978 = vmul.f32 %v3961, %v5955
        %v5979 = vmul.f32 %v3962, %v5955
        %v6004 = vrot.slane %v5956, 4
        %v6005 = vrot.slane %v5957, 4
        %v6006 = vsel %vm3498, %v6004, %v6005
        %v6007 = vrot.slane %v5958, 4
        %v6008 = vsel %vm3498, %v6005, %v6007
        %v6009 = vrot.slane %v5959, 4
        %v6010 = vrot.slane %v5960, 4
        %v6011 = vsel %vm3498, %v6009, %v6010
        %v6012 = vrot.slane %v5961, 4
        %v6013 = vsel %vm3498, %v6010, %v6012
        %v6014 = vrot.slane %v5962, 4
        %v6015 = vrot.slane %v5963, 4
        %v6016 = vsel %vm3498, %v6014, %v6015
        %v6017 = vrot.slane %v5964, 4
        %v6018 = vsel %vm3498, %v6015, %v6017
        %v6019 = vrot.slane %v5965, 4
        %v6020 = vrot.slane %v5966, 4
        %v6021 = vsel %vm3498, %v6019, %v6020
        %v6022 = vrot.slane %v5967, 4
        %v6023 = vsel %vm3498, %v6020, %v6022
        %v6024 = vrot.slane %v5968, 4
        %v6025 = vrot.slane %v5969, 4
        %v6026 = vsel %vm3498, %v6024, %v6025
        %v6027 = vrot.slane %v5970, 4
        %v6028 = vsel %vm3498, %v6025, %v6027
        %v6029 = vrot.slane %v5971, 4
        %v6030 = vrot.slane %v5972, 4
        %v6031 = vsel %vm3498, %v6029, %v6030
        %v6032 = vrot.slane %v5973, 4
        %v6033 = vsel %vm3498, %v6030, %v6032
        %v6034 = vrot.slane %v5974, 4
        %v6035 = vrot.slane %v5975, 4
        %v6036 = vsel %vm3498, %v6034, %v6035
        %v6037 = vrot.slane %v5976, 4
        %v6038 = vsel %vm3498, %v6035, %v6037
        %v6039 = vrot.slane %v5977, 4
        %v6040 = vrot.slane %v5978, 4
        %v6041 = vsel %vm3498, %v6039, %v6040
        %v6042 = vrot.slane %v5979, 4
        %v6043 = vsel %vm3498, %v6040, %v6042
        %v6060 = vadd.f32 %v5936, %v6006
        %v6061 = vadd.f32 %v5937, %v6008
        %v6062 = vadd.f32 %v5938, %v6011
        %v6063 = vadd.f32 %v5939, %v6013
        %v6064 = vadd.f32 %v5940, %v6016
        %v6065 = vadd.f32 %v5941, %v6018
        %v6066 = vadd.f32 %v5942, %v6021
        %v6067 = vadd.f32 %v5943, %v6023
        %v6068 = vadd.f32 %v5944, %v6026
        %v6069 = vadd.f32 %v5945, %v6028
        %v6070 = vadd.f32 %v5946, %v6031
        %v6071 = vadd.f32 %v5947, %v6033
        %v6072 = vadd.f32 %v5948, %v6036
        %v6073 = vadd.f32 %v5949, %v6038
        %v6074 = vadd.f32 %v5950, %v6041
        %v6075 = vadd.f32 %v5951, %v6043
        %v6076 = vlaneseq
        %v6077 = vshrl.u32 %v6076, 7
        %v6078 = vsub.s32 5, %v6077
        %v6079 = vrot.slane %v3977, %v6078
        %v6080 = vmul.f32 %v3939, %v6079
        %v6081 = vmul.f32 %v3940, %v6079
        %v6082 = vmul.f32 %v3941, %v6079
        %v6083 = vmul.f32 %v3942, %v6079
        %v6084 = vmul.f32 %v3943, %v6079
        %v6085 = vmul.f32 %v3944, %v6079
        %v6086 = vmul.f32 %v3945, %v6079
        %v6087 = vmul.f32 %v3946, %v6079
        %v6088 = vmul.f32 %v3947, %v6079
        %v6089 = vmul.f32 %v3948, %v6079
        %v6090 = vmul.f32 %v3949, %v6079
        %v6091 = vmul.f32 %v3950, %v6079
        %v6092 = vmul.f32 %v3951, %v6079
        %v6093 = vmul.f32 %v3952, %v6079
        %v6094 = vmul.f32 %v3953, %v6079
        %v6095 = vmul.f32 %v3954, %v6079
        %v6096 = vmul.f32 %v3955, %v6079
        %v6097 = vmul.f32 %v3956, %v6079
        %v6098 = vmul.f32 %v3957, %v6079
        %v6099 = vmul.f32 %v3958, %v6079
        %v6100 = vmul.f32 %v3959, %v6079
        %v6101 = vmul.f32 %v3960, %v6079
        %v6102 = vmul.f32 %v3961, %v6079
        %v6103 = vmul.f32 %v3962, %v6079
        %v6128 = vrot.slane %v6080, 5
        %v6129 = vrot.slane %v6081, 5
        %v6130 = vsel %vm4567, %v6128, %v6129
        %v6131 = vrot.slane %v6082, 5
        %v6132 = vsel %vm4567, %v6129, %v6131
        %v6133 = vrot.slane %v6083, 5
        %v6134 = vrot.slane %v6084, 5
        %v6135 = vsel %vm4567, %v6133, %v6134
        %v6136 = vrot.slane %v6085, 5
        %v6137 = vsel %vm4567, %v6134, %v6136
        %v6138 = vrot.slane %v6086, 5
        %v6139 = vrot.slane %v6087, 5
        %v6140 = vsel %vm4567, %v6138, %v6139
        %v6141 = vrot.slane %v6088, 5
        %v6142 = vsel %vm4567, %v6139, %v6141
        %v6143 = vrot.slane %v6089, 5
        %v6144 = vrot.slane %v6090, 5
        %v6145 = vsel %vm4567, %v6143, %v6144
        %v6146 = vrot.slane %v6091, 5
        %v6147 = vsel %vm4567, %v6144, %v6146
        %v6148 = vrot.slane %v6092, 5
        %v6149 = vrot.slane %v6093, 5
        %v6150 = vsel %vm4567, %v6148, %v6149
        %v6151 = vrot.slane %v6094, 5
        %v6152 = vsel %vm4567, %v6149, %v6151
        %v6153 = vrot.slane %v6095, 5
        %v6154 = vrot.slane %v6096, 5
        %v6155 = vsel %vm4567, %v6153, %v6154
        %v6156 = vrot.slane %v6097, 5
        %v6157 = vsel %vm4567, %v6154, %v6156
        %v6158 = vrot.slane %v6098, 5
        %v6159 = vrot.slane %v6099, 5
        %v6160 = vsel %vm4567, %v6158, %v6159
        %v6161 = vrot.slane %v6100, 5
        %v6162 = vsel %vm4567, %v6159, %v6161
        %v6163 = vrot.slane %v6101, 5
        %v6164 = vrot.slane %v6102, 5
        %v6165 = vsel %vm4567, %v6163, %v6164
        %v6166 = vrot.slane %v6103, 5
        %v6167 = vsel %vm4567, %v6164, %v6166
        %v6184 = vadd.f32 %v6060, %v6130
        %v6185 = vadd.f32 %v6061, %v6132
        %v6186 = vadd.f32 %v6062, %v6135
        %v6187 = vadd.f32 %v6063, %v6137
        %v6188 = vadd.f32 %v6064, %v6140
        %v6189 = vadd.f32 %v6065, %v6142
        %v6190 = vadd.f32 %v6066, %v6145
        %v6191 = vadd.f32 %v6067, %v6147
        %v6192 = vadd.f32 %v6068, %v6150
        %v6193 = vadd.f32 %v6069, %v6152
        %v6194 = vadd.f32 %v6070, %v6155
        %v6195 = vadd.f32 %v6071, %v6157
        %v6196 = vadd.f32 %v6072, %v6160
        %v6197 = vadd.f32 %v6073, %v6162
        %v6198 = vadd.f32 %v6074, %v6165
        %v6199 = vadd.f32 %v6075, %v6167
        %v6200 = vlaneseq
        %v6201 = vshrl.u32 %v6200, 7
        %v6202 = vsub.s32 6, %v6201
        %v6203 = vrot.slane %v3977, %v6202
        %v6204 = vmul.f32 %v3939, %v6203
        %v6205 = vmul.f32 %v3940, %v6203
        %v6206 = vmul.f32 %v3941, %v6203
        %v6207 = vmul.f32 %v3942, %v6203
        %v6208 = vmul.f32 %v3943, %v6203
        %v6209 = vmul.f32 %v3944, %v6203
        %v6210 = vmul.f32 %v3945, %v6203
        %v6211 = vmul.f32 %v3946, %v6203
        %v6212 = vmul.f32 %v3947, %v6203
        %v6213 = vmul.f32 %v3948, %v6203
        %v6214 = vmul.f32 %v3949, %v6203
        %v6215 = vmul.f32 %v3950, %v6203
        %v6216 = vmul.f32 %v3951, %v6203
        %v6217 = vmul.f32 %v3952, %v6203
        %v6218 = vmul.f32 %v3953, %v6203
        %v6219 = vmul.f32 %v3954, %v6203
        %v6220 = vmul.f32 %v3955, %v6203
        %v6221 = vmul.f32 %v3956, %v6203
        %v6222 = vmul.f32 %v3957, %v6203
        %v6223 = vmul.f32 %v3958, %v6203
        %v6224 = vmul.f32 %v3959, %v6203
        %v6225 = vmul.f32 %v3960, %v6203
        %v6226 = vmul.f32 %v3961, %v6203
        %v6227 = vmul.f32 %v3962, %v6203
        %v6252 = vrot.slane %v6204, 6
        %v6253 = vrot.slane %v6205, 6
        %v6254 = vsel %vm2375, %v6252, %v6253
        %v6255 = vrot.slane %v6206, 6
        %v6256 = vsel %vm2375, %v6253, %v6255
        %v6257 = vrot.slane %v6207, 6
        %v6258 = vrot.slane %v6208, 6
        %v6259 = vsel %vm2375, %v6257, %v6258
        %v6260 = vrot.slane %v6209, 6
        %v6261 = vsel %vm2375, %v6258, %v6260
        %v6262 = vrot.slane %v6210, 6
        %v6263 = vrot.slane %v6211, 6
        %v6264 = vsel %vm2375, %v6262, %v6263
        %v6265 = vrot.slane %v6212, 6
        %v6266 = vsel %vm2375, %v6263, %v6265
        %v6267 = vrot.slane %v6213, 6
        %v6268 = vrot.slane %v6214, 6
        %v6269 = vsel %vm2375, %v6267, %v6268
        %v6270 = vrot.slane %v6215, 6
        %v6271 = vsel %vm2375, %v6268, %v6270
        %v6272 = vrot.slane %v6216, 6
        %v6273 = vrot.slane %v6217, 6
        %v6274 = vsel %vm2375, %v6272, %v6273
        %v6275 = vrot.slane %v6218, 6
        %v6276 = vsel %vm2375, %v6273, %v6275
        %v6277 = vrot.slane %v6219, 6
        %v6278 = vrot.slane %v6220, 6
        %v6279 = vsel %vm2375, %v6277, %v6278
        %v6280 = vrot.slane %v6221, 6
        %v6281 = vsel %vm2375, %v6278, %v6280
        %v6282 = vrot.slane %v6222, 6
        %v6283 = vrot.slane %v6223, 6
        %v6284 = vsel %vm2375, %v6282, %v6283
        %v6285 = vrot.slane %v6224, 6
        %v6286 = vsel %vm2375, %v6283, %v6285
        %v6287 = vrot.slane %v6225, 6
        %v6288 = vrot.slane %v6226, 6
        %v6289 = vsel %vm2375, %v6287, %v6288
        %v6290 = vrot.slane %v6227, 6
        %v6291 = vsel %vm2375, %v6288, %v6290
        %v6308 = vadd.f32 %v6184, %v6254
        %v6309 = vadd.f32 %v6185, %v6256
        %v6310 = vadd.f32 %v6186, %v6259
        %v6311 = vadd.f32 %v6187, %v6261
        %v6312 = vadd.f32 %v6188, %v6264
        %v6313 = vadd.f32 %v6189, %v6266
        %v6314 = vadd.f32 %v6190, %v6269
        %v6315 = vadd.f32 %v6191, %v6271
        %v6316 = vadd.f32 %v6192, %v6274
        %v6317 = vadd.f32 %v6193, %v6276
        %v6318 = vadd.f32 %v6194, %v6279
        %v6319 = vadd.f32 %v6195, %v6281
        %v6320 = vadd.f32 %v6196, %v6284
        %v6321 = vadd.f32 %v6197, %v6286
        %v6322 = vadd.f32 %v6198, %v6289
        %v6323 = vadd.f32 %v6199, %v6291
        %v6324 = vlaneseq
        %v6325 = vshrl.u32 %v6324, 7
        %v6326 = vsub.s32 0, %v6325
        %v6327 = vrot.slane %v3978, %v6326
        %v6328 = vmul.f32 %v3942, %v6327
        %v6329 = vmul.f32 %v3943, %v6327
        %v6330 = vmul.f32 %v3945, %v6327
        %v6331 = vmul.f32 %v3946, %v6327
        %v6332 = vmul.f32 %v3948, %v6327
        %v6333 = vmul.f32 %v3949, %v6327
        %v6334 = vmul.f32 %v3951, %v6327
        %v6335 = vmul.f32 %v3952, %v6327
        %v6336 = vmul.f32 %v3954, %v6327
        %v6337 = vmul.f32 %v3955, %v6327
        %v6338 = vmul.f32 %v3957, %v6327
        %v6339 = vmul.f32 %v3958, %v6327
        %v6340 = vmul.f32 %v3960, %v6327
        %v6341 = vmul.f32 %v3961, %v6327
        %v6342 = vmul.f32 %v3963, %v6327
        %v6343 = vmul.f32 %v3964, %v6327
        %v6344 = vadd.f32 %v6308, %v6328
        %v6345 = vadd.f32 %v6309, %v6329
        %v6346 = vadd.f32 %v6310, %v6330
        %v6347 = vadd.f32 %v6311, %v6331
        %v6348 = vadd.f32 %v6312, %v6332
        %v6349 = vadd.f32 %v6313, %v6333
        %v6350 = vadd.f32 %v6314, %v6334
        %v6351 = vadd.f32 %v6315, %v6335
        %v6352 = vadd.f32 %v6316, %v6336
        %v6353 = vadd.f32 %v6317, %v6337
        %v6354 = vadd.f32 %v6318, %v6338
        %v6355 = vadd.f32 %v6319, %v6339
        %v6356 = vadd.f32 %v6320, %v6340
        %v6357 = vadd.f32 %v6321, %v6341
        %v6358 = vadd.f32 %v6322, %v6342
        %v6359 = vadd.f32 %v6323, %v6343
        %v6360 = vlaneseq
        %v6361 = vshrl.u32 %v6360, 7
        %v6362 = vsub.s32 1, %v6361
        %v6363 = vrot.slane %v3978, %v6362
        %v6364 = vmul.f32 %v3942, %v6363
        %v6365 = vmul.f32 %v3943, %v6363
        %v6366 = vmul.f32 %v3944, %v6363
        %v6367 = vmul.f32 %v3945, %v6363
        %v6368 = vmul.f32 %v3946, %v6363
        %v6369 = vmul.f32 %v3947, %v6363
        %v6370 = vmul.f32 %v3948, %v6363
        %v6371 = vmul.f32 %v3949, %v6363
        %v6372 = vmul.f32 %v3950, %v6363
        %v6373 = vmul.f32 %v3951, %v6363
        %v6374 = vmul.f32 %v3952, %v6363
        %v6375 = vmul.f32 %v3953, %v6363
        %v6376 = vmul.f32 %v3954, %v6363
        %v6377 = vmul.f32 %v3955, %v6363
        %v6378 = vmul.f32 %v3956, %v6363
        %v6379 = vmul.f32 %v3957, %v6363
        %v6380 = vmul.f32 %v3958, %v6363
        %v6381 = vmul.f32 %v3959, %v6363
        %v6382 = vmul.f32 %v3960, %v6363
        %v6383 = vmul.f32 %v3961, %v6363
        %v6384 = vmul.f32 %v3962, %v6363
        %v6385 = vmul.f32 %v3963, %v6363
        %v6386 = vmul.f32 %v3964, %v6363
        %v6387 = vmul.f32 %v3965, %v6363
        %v6412 = vrot.slane %v6364, 1
        %v6413 = vrot.slane %v6365, 1
        %v6414 = vsel %vm921, %v6412, %v6413
        %v6415 = vrot.slane %v6366, 1
        %v6416 = vsel %vm921, %v6413, %v6415
        %v6417 = vrot.slane %v6367, 1
        %v6418 = vrot.slane %v6368, 1
        %v6419 = vsel %vm921, %v6417, %v6418
        %v6420 = vrot.slane %v6369, 1
        %v6421 = vsel %vm921, %v6418, %v6420
        %v6422 = vrot.slane %v6370, 1
        %v6423 = vrot.slane %v6371, 1
        %v6424 = vsel %vm921, %v6422, %v6423
        %v6425 = vrot.slane %v6372, 1
        %v6426 = vsel %vm921, %v6423, %v6425
        %v6427 = vrot.slane %v6373, 1
        %v6428 = vrot.slane %v6374, 1
        %v6429 = vsel %vm921, %v6427, %v6428
        %v6430 = vrot.slane %v6375, 1
        %v6431 = vsel %vm921, %v6428, %v6430
        %v6432 = vrot.slane %v6376, 1
        %v6433 = vrot.slane %v6377, 1
        %v6434 = vsel %vm921, %v6432, %v6433
        %v6435 = vrot.slane %v6378, 1
        %v6436 = vsel %vm921, %v6433, %v6435
        %v6437 = vrot.slane %v6379, 1
        %v6438 = vrot.slane %v6380, 1
        %v6439 = vsel %vm921, %v6437, %v6438
        %v6440 = vrot.slane %v6381, 1
        %v6441 = vsel %vm921, %v6438, %v6440
        %v6442 = vrot.slane %v6382, 1
        %v6443 = vrot.slane %v6383, 1
        %v6444 = vsel %vm921, %v6442, %v6443
        %v6445 = vrot.slane %v6384, 1
        %v6446 = vsel %vm921, %v6443, %v6445
        %v6447 = vrot.slane %v6385, 1
        %v6448 = vrot.slane %v6386, 1
        %v6449 = vsel %vm921, %v6447, %v6448
        %v6450 = vrot.slane %v6387, 1
        %v6451 = vsel %vm921, %v6448, %v6450
        %v6468 = vadd.f32 %v6344, %v6414
        %v6469 = vadd.f32 %v6345, %v6416
        %v6470 = vadd.f32 %v6346, %v6419
        %v6471 = vadd.f32 %v6347, %v6421
        %v6472 = vadd.f32 %v6348, %v6424
        %v6473 = vadd.f32 %v6349, %v6426
        %v6474 = vadd.f32 %v6350, %v6429
        %v6475 = vadd.f32 %v6351, %v6431
        %v6476 = vadd.f32 %v6352, %v6434
        %v6477 = vadd.f32 %v6353, %v6436
        %v6478 = vadd.f32 %v6354, %v6439
        %v6479 = vadd.f32 %v6355, %v6441
        %v6480 = vadd.f32 %v6356, %v6444
        %v6481 = vadd.f32 %v6357, %v6446
        %v6482 = vadd.f32 %v6358, %v6449
        %v6483 = vadd.f32 %v6359, %v6451
        %v6484 = vlaneseq
        %v6485 = vshrl.u32 %v6484, 7
        %v6486 = vsub.s32 2, %v6485
        %v6487 = vrot.slane %v3978, %v6486
        %v6488 = vmul.f32 %v3942, %v6487
        %v6489 = vmul.f32 %v3943, %v6487
        %v6490 = vmul.f32 %v3944, %v6487
        %v6491 = vmul.f32 %v3945, %v6487
        %v6492 = vmul.f32 %v3946, %v6487
        %v6493 = vmul.f32 %v3947, %v6487
        %v6494 = vmul.f32 %v3948, %v6487
        %v6495 = vmul.f32 %v3949, %v6487
        %v6496 = vmul.f32 %v3950, %v6487
        %v6497 = vmul.f32 %v3951, %v6487
        %v6498 = vmul.f32 %v3952, %v6487
        %v6499 = vmul.f32 %v3953, %v6487
        %v6500 = vmul.f32 %v3954, %v6487
        %v6501 = vmul.f32 %v3955, %v6487
        %v6502 = vmul.f32 %v3956, %v6487
        %v6503 = vmul.f32 %v3957, %v6487
        %v6504 = vmul.f32 %v3958, %v6487
        %v6505 = vmul.f32 %v3959, %v6487
        %v6506 = vmul.f32 %v3960, %v6487
        %v6507 = vmul.f32 %v3961, %v6487
        %v6508 = vmul.f32 %v3962, %v6487
        %v6509 = vmul.f32 %v3963, %v6487
        %v6510 = vmul.f32 %v3964, %v6487
        %v6511 = vmul.f32 %v3965, %v6487
        %v6536 = vrot.slane %v6488, 2
        %v6537 = vrot.slane %v6489, 2
        %v6538 = vsel %vm1302, %v6536, %v6537
        %v6539 = vrot.slane %v6490, 2
        %v6540 = vsel %vm1302, %v6537, %v6539
        %v6541 = vrot.slane %v6491, 2
        %v6542 = vrot.slane %v6492, 2
        %v6543 = vsel %vm1302, %v6541, %v6542
        %v6544 = vrot.slane %v6493, 2
        %v6545 = vsel %vm1302, %v6542, %v6544
        %v6546 = vrot.slane %v6494, 2
        %v6547 = vrot.slane %v6495, 2
        %v6548 = vsel %vm1302, %v6546, %v6547
        %v6549 = vrot.slane %v6496, 2
        %v6550 = vsel %vm1302, %v6547, %v6549
        %v6551 = vrot.slane %v6497, 2
        %v6552 = vrot.slane %v6498, 2
        %v6553 = vsel %vm1302, %v6551, %v6552
        %v6554 = vrot.slane %v6499, 2
        %v6555 = vsel %vm1302, %v6552, %v6554
        %v6556 = vrot.slane %v6500, 2
        %v6557 = vrot.slane %v6501, 2
        %v6558 = vsel %vm1302, %v6556, %v6557
        %v6559 = vrot.slane %v6502, 2
        %v6560 = vsel %vm1302, %v6557, %v6559
        %v6561 = vrot.slane %v6503, 2
        %v6562 = vrot.slane %v6504, 2
        %v6563 = vsel %vm1302, %v6561, %v6562
        %v6564 = vrot.slane %v6505, 2
        %v6565 = vsel %vm1302, %v6562, %v6564
        %v6566 = vrot.slane %v6506, 2
        %v6567 = vrot.slane %v6507, 2
        %v6568 = vsel %vm1302, %v6566, %v6567
        %v6569 = vrot.slane %v6508, 2
        %v6570 = vsel %vm1302, %v6567, %v6569
        %v6571 = vrot.slane %v6509, 2
        %v6572 = vrot.slane %v6510, 2
        %v6573 = vsel %vm1302, %v6571, %v6572
        %v6574 = vrot.slane %v6511, 2
        %v6575 = vsel %vm1302, %v6572, %v6574
        %v6592 = vadd.f32 %v6468, %v6538
        %v6593 = vadd.f32 %v6469, %v6540
        %v6594 = vadd.f32 %v6470, %v6543
        %v6595 = vadd.f32 %v6471, %v6545
        %v6596 = vadd.f32 %v6472, %v6548
        %v6597 = vadd.f32 %v6473, %v6550
        %v6598 = vadd.f32 %v6474, %v6553
        %v6599 = vadd.f32 %v6475, %v6555
        %v6600 = vadd.f32 %v6476, %v6558
        %v6601 = vadd.f32 %v6477, %v6560
        %v6602 = vadd.f32 %v6478, %v6563
        %v6603 = vadd.f32 %v6479, %v6565
        %v6604 = vadd.f32 %v6480, %v6568
        %v6605 = vadd.f32 %v6481, %v6570
        %v6606 = vadd.f32 %v6482, %v6573
        %v6607 = vadd.f32 %v6483, %v6575
        %v6608 = vlaneseq
        %v6609 = vshrl.u32 %v6608, 7
        %v6610 = vsub.s32 3, %v6609
        %v6611 = vrot.slane %v3978, %v6610
        %v6612 = vmul.f32 %v3942, %v6611
        %v6613 = vmul.f32 %v3943, %v6611
        %v6614 = vmul.f32 %v3944, %v6611
        %v6615 = vmul.f32 %v3945, %v6611
        %v6616 = vmul.f32 %v3946, %v6611
        %v6617 = vmul.f32 %v3947, %v6611
        %v6618 = vmul.f32 %v3948, %v6611
        %v6619 = vmul.f32 %v3949, %v6611
        %v6620 = vmul.f32 %v3950, %v6611
        %v6621 = vmul.f32 %v3951, %v6611
        %v6622 = vmul.f32 %v3952, %v6611
        %v6623 = vmul.f32 %v3953, %v6611
        %v6624 = vmul.f32 %v3954, %v6611
        %v6625 = vmul.f32 %v3955, %v6611
        %v6626 = vmul.f32 %v3956, %v6611
        %v6627 = vmul.f32 %v3957, %v6611
        %v6628 = vmul.f32 %v3958, %v6611
        %v6629 = vmul.f32 %v3959, %v6611
        %v6630 = vmul.f32 %v3960, %v6611
        %v6631 = vmul.f32 %v3961, %v6611
        %v6632 = vmul.f32 %v3962, %v6611
        %v6633 = vmul.f32 %v3963, %v6611
        %v6634 = vmul.f32 %v3964, %v6611
        %v6635 = vmul.f32 %v3965, %v6611
        %v6660 = vrot.slane %v6612, 3
        %v6661 = vrot.slane %v6613, 3
        %v6662 = vsel %vm4318, %v6660, %v6661
        %v6663 = vrot.slane %v6614, 3
        %v6664 = vsel %vm4318, %v6661, %v6663
        %v6665 = vrot.slane %v6615, 3
        %v6666 = vrot.slane %v6616, 3
        %v6667 = vsel %vm4318, %v6665, %v6666
        %v6668 = vrot.slane %v6617, 3
        %v6669 = vsel %vm4318, %v6666, %v6668
        %v6670 = vrot.slane %v6618, 3
        %v6671 = vrot.slane %v6619, 3
        %v6672 = vsel %vm4318, %v6670, %v6671
        %v6673 = vrot.slane %v6620, 3
        %v6674 = vsel %vm4318, %v6671, %v6673
        %v6675 = vrot.slane %v6621, 3
        %v6676 = vrot.slane %v6622, 3
        %v6677 = vsel %vm4318, %v6675, %v6676
        %v6678 = vrot.slane %v6623, 3
        %v6679 = vsel %vm4318, %v6676, %v6678
        %v6680 = vrot.slane %v6624, 3
        %v6681 = vrot.slane %v6625, 3
        %v6682 = vsel %vm4318, %v6680, %v6681
        %v6683 = vrot.slane %v6626, 3
        %v6684 = vsel %vm4318, %v6681, %v6683
        %v6685 = vrot.slane %v6627, 3
        %v6686 = vrot.slane %v6628, 3
        %v6687 = vsel %vm4318, %v6685, %v6686
        %v6688 = vrot.slane %v6629, 3
        %v6689 = vsel %vm4318, %v6686, %v6688
        %v6690 = vrot.slane %v6630, 3
        %v6691 = vrot.slane %v6631, 3
        %v6692 = vsel %vm4318, %v6690, %v6691
        %v6693 = vrot.slane %v6632, 3
        %v6694 = vsel %vm4318, %v6691, %v6693
        %v6695 = vrot.slane %v6633, 3
        %v6696 = vrot.slane %v6634, 3
        %v6697 = vsel %vm4318, %v6695, %v6696
        %v6698 = vrot.slane %v6635, 3
        %v6699 = vsel %vm4318, %v6696, %v6698
        %v6716 = vadd.f32 %v6592, %v6662
        %v6717 = vadd.f32 %v6593, %v6664
        %v6718 = vadd.f32 %v6594, %v6667
        %v6719 = vadd.f32 %v6595, %v6669
        %v6720 = vadd.f32 %v6596, %v6672
        %v6721 = vadd.f32 %v6597, %v6674
        %v6722 = vadd.f32 %v6598, %v6677
        %v6723 = vadd.f32 %v6599, %v6679
        %v6724 = vadd.f32 %v6600, %v6682
        %v6725 = vadd.f32 %v6601, %v6684
        %v6726 = vadd.f32 %v6602, %v6687
        %v6727 = vadd.f32 %v6603, %v6689
        %v6728 = vadd.f32 %v6604, %v6692
        %v6729 = vadd.f32 %v6605, %v6694
        %v6730 = vadd.f32 %v6606, %v6697
        %v6731 = vadd.f32 %v6607, %v6699
        %v6732 = vlaneseq
        %v6733 = vshrl.u32 %v6732, 7
        %v6734 = vsub.s32 4, %v6733
        %v6735 = vrot.slane %v3978, %v6734
        %v6736 = vmul.f32 %v3942, %v6735
        %v6737 = vmul.f32 %v3943, %v6735
        %v6738 = vmul.f32 %v3944, %v6735
        %v6739 = vmul.f32 %v3945, %v6735
        %v6740 = vmul.f32 %v3946, %v6735
        %v6741 = vmul.f32 %v3947, %v6735
        %v6742 = vmul.f32 %v3948, %v6735
        %v6743 = vmul.f32 %v3949, %v6735
        %v6744 = vmul.f32 %v3950, %v6735
        %v6745 = vmul.f32 %v3951, %v6735
        %v6746 = vmul.f32 %v3952, %v6735
        %v6747 = vmul.f32 %v3953, %v6735
        %v6748 = vmul.f32 %v3954, %v6735
        %v6749 = vmul.f32 %v3955, %v6735
        %v6750 = vmul.f32 %v3956, %v6735
        %v6751 = vmul.f32 %v3957, %v6735
        %v6752 = vmul.f32 %v3958, %v6735
        %v6753 = vmul.f32 %v3959, %v6735
        %v6754 = vmul.f32 %v3960, %v6735
        %v6755 = vmul.f32 %v3961, %v6735
        %v6756 = vmul.f32 %v3962, %v6735
        %v6757 = vmul.f32 %v3963, %v6735
        %v6758 = vmul.f32 %v3964, %v6735
        %v6759 = vmul.f32 %v3965, %v6735
        %v6784 = vrot.slane %v6736, 4
        %v6785 = vrot.slane %v6737, 4
        %v6786 = vsel %vm3498, %v6784, %v6785
        %v6787 = vrot.slane %v6738, 4
        %v6788 = vsel %vm3498, %v6785, %v6787
        %v6789 = vrot.slane %v6739, 4
        %v6790 = vrot.slane %v6740, 4
        %v6791 = vsel %vm3498, %v6789, %v6790
        %v6792 = vrot.slane %v6741, 4
        %v6793 = vsel %vm3498, %v6790, %v6792
        %v6794 = vrot.slane %v6742, 4
        %v6795 = vrot.slane %v6743, 4
        %v6796 = vsel %vm3498, %v6794, %v6795
        %v6797 = vrot.slane %v6744, 4
        %v6798 = vsel %vm3498, %v6795, %v6797
        %v6799 = vrot.slane %v6745, 4
        %v6800 = vrot.slane %v6746, 4
        %v6801 = vsel %vm3498, %v6799, %v6800
        %v6802 = vrot.slane %v6747, 4
        %v6803 = vsel %vm3498, %v6800, %v6802
        %v6804 = vrot.slane %v6748, 4
        %v6805 = vrot.slane %v6749, 4
        %v6806 = vsel %vm3498, %v6804, %v6805
        %v6807 = vrot.slane %v6750, 4
        %v6808 = vsel %vm3498, %v6805, %v6807
        %v6809 = vrot.slane %v6751, 4
        %v6810 = vrot.slane %v6752, 4
        %v6811 = vsel %vm3498, %v6809, %v6810
        %v6812 = vrot.slane %v6753, 4
        %v6813 = vsel %vm3498, %v6810, %v6812
        %v6814 = vrot.slane %v6754, 4
        %v6815 = vrot.slane %v6755, 4
        %v6816 = vsel %vm3498, %v6814, %v6815
        %v6817 = vrot.slane %v6756, 4
        %v6818 = vsel %vm3498, %v6815, %v6817
        %v6819 = vrot.slane %v6757, 4
        %v6820 = vrot.slane %v6758, 4
        %v6821 = vsel %vm3498, %v6819, %v6820
        %v6822 = vrot.slane %v6759, 4
        %v6823 = vsel %vm3498, %v6820, %v6822
        %v6840 = vadd.f32 %v6716, %v6786
        %v6841 = vadd.f32 %v6717, %v6788
        %v6842 = vadd.f32 %v6718, %v6791
        %v6843 = vadd.f32 %v6719, %v6793
        %v6844 = vadd.f32 %v6720, %v6796
        %v6845 = vadd.f32 %v6721, %v6798
        %v6846 = vadd.f32 %v6722, %v6801
        %v6847 = vadd.f32 %v6723, %v6803
        %v6848 = vadd.f32 %v6724, %v6806
        %v6849 = vadd.f32 %v6725, %v6808
        %v6850 = vadd.f32 %v6726, %v6811
        %v6851 = vadd.f32 %v6727, %v6813
        %v6852 = vadd.f32 %v6728, %v6816
        %v6853 = vadd.f32 %v6729, %v6818
        %v6854 = vadd.f32 %v6730, %v6821
        %v6855 = vadd.f32 %v6731, %v6823
        %v6856 = vlaneseq
        %v6857 = vshrl.u32 %v6856, 7
        %v6858 = vsub.s32 5, %v6857
        %v6859 = vrot.slane %v3978, %v6858
        %v6860 = vmul.f32 %v3942, %v6859
        %v6861 = vmul.f32 %v3943, %v6859
        %v6862 = vmul.f32 %v3944, %v6859
        %v6863 = vmul.f32 %v3945, %v6859
        %v6864 = vmul.f32 %v3946, %v6859
        %v6865 = vmul.f32 %v3947, %v6859
        %v6866 = vmul.f32 %v3948, %v6859
        %v6867 = vmul.f32 %v3949, %v6859
        %v6868 = vmul.f32 %v3950, %v6859
        %v6869 = vmul.f32 %v3951, %v6859
        %v6870 = vmul.f32 %v3952, %v6859
        %v6871 = vmul.f32 %v3953, %v6859
        %v6872 = vmul.f32 %v3954, %v6859
        %v6873 = vmul.f32 %v3955, %v6859
        %v6874 = vmul.f32 %v3956, %v6859
        %v6875 = vmul.f32 %v3957, %v6859
        %v6876 = vmul.f32 %v3958, %v6859
        %v6877 = vmul.f32 %v3959, %v6859
        %v6878 = vmul.f32 %v3960, %v6859
        %v6879 = vmul.f32 %v3961, %v6859
        %v6880 = vmul.f32 %v3962, %v6859
        %v6881 = vmul.f32 %v3963, %v6859
        %v6882 = vmul.f32 %v3964, %v6859
        %v6883 = vmul.f32 %v3965, %v6859
        %v6908 = vrot.slane %v6860, 5
        %v6909 = vrot.slane %v6861, 5
        %v6910 = vsel %vm4567, %v6908, %v6909
        %v6911 = vrot.slane %v6862, 5
        %v6912 = vsel %vm4567, %v6909, %v6911
        %v6913 = vrot.slane %v6863, 5
        %v6914 = vrot.slane %v6864, 5
        %v6915 = vsel %vm4567, %v6913, %v6914
        %v6916 = vrot.slane %v6865, 5
        %v6917 = vsel %vm4567, %v6914, %v6916
        %v6918 = vrot.slane %v6866, 5
        %v6919 = vrot.slane %v6867, 5
        %v6920 = vsel %vm4567, %v6918, %v6919
        %v6921 = vrot.slane %v6868, 5
        %v6922 = vsel %vm4567, %v6919, %v6921
        %v6923 = vrot.slane %v6869, 5
        %v6924 = vrot.slane %v6870, 5
        %v6925 = vsel %vm4567, %v6923, %v6924
        %v6926 = vrot.slane %v6871, 5
        %v6927 = vsel %vm4567, %v6924, %v6926
        %v6928 = vrot.slane %v6872, 5
        %v6929 = vrot.slane %v6873, 5
        %v6930 = vsel %vm4567, %v6928, %v6929
        %v6931 = vrot.slane %v6874, 5
        %v6932 = vsel %vm4567, %v6929, %v6931
        %v6933 = vrot.slane %v6875, 5
        %v6934 = vrot.slane %v6876, 5
        %v6935 = vsel %vm4567, %v6933, %v6934
        %v6936 = vrot.slane %v6877, 5
        %v6937 = vsel %vm4567, %v6934, %v6936
        %v6938 = vrot.slane %v6878, 5
        %v6939 = vrot.slane %v6879, 5
        %v6940 = vsel %vm4567, %v6938, %v6939
        %v6941 = vrot.slane %v6880, 5
        %v6942 = vsel %vm4567, %v6939, %v6941
        %v6943 = vrot.slane %v6881, 5
        %v6944 = vrot.slane %v6882, 5
        %v6945 = vsel %vm4567, %v6943, %v6944
        %v6946 = vrot.slane %v6883, 5
        %v6947 = vsel %vm4567, %v6944, %v6946
        %v6964 = vadd.f32 %v6840, %v6910
        %v6965 = vadd.f32 %v6841, %v6912
        %v6966 = vadd.f32 %v6842, %v6915
        %v6967 = vadd.f32 %v6843, %v6917
        %v6968 = vadd.f32 %v6844, %v6920
        %v6969 = vadd.f32 %v6845, %v6922
        %v6970 = vadd.f32 %v6846, %v6925
        %v6971 = vadd.f32 %v6847, %v6927
        %v6972 = vadd.f32 %v6848, %v6930
        %v6973 = vadd.f32 %v6849, %v6932
        %v6974 = vadd.f32 %v6850, %v6935
        %v6975 = vadd.f32 %v6851, %v6937
        %v6976 = vadd.f32 %v6852, %v6940
        %v6977 = vadd.f32 %v6853, %v6942
        %v6978 = vadd.f32 %v6854, %v6945
        %v6979 = vadd.f32 %v6855, %v6947
        %v6980 = vlaneseq
        %v6981 = vshrl.u32 %v6980, 7
        %v6982 = vsub.s32 6, %v6981
        %v6983 = vrot.slane %v3978, %v6982
        %v6984 = vmul.f32 %v3942, %v6983
        %v6985 = vmul.f32 %v3943, %v6983
        %v6986 = vmul.f32 %v3944, %v6983
        %v6987 = vmul.f32 %v3945, %v6983
        %v6988 = vmul.f32 %v3946, %v6983
        %v6989 = vmul.f32 %v3947, %v6983
        %v6990 = vmul.f32 %v3948, %v6983
        %v6991 = vmul.f32 %v3949, %v6983
        %v6992 = vmul.f32 %v3950, %v6983
        %v6993 = vmul.f32 %v3951, %v6983
        %v6994 = vmul.f32 %v3952, %v6983
        %v6995 = vmul.f32 %v3953, %v6983
        %v6996 = vmul.f32 %v3954, %v6983
        %v6997 = vmul.f32 %v3955, %v6983
        %v6998 = vmul.f32 %v3956, %v6983
        %v6999 = vmul.f32 %v3957, %v6983
        %v7000 = vmul.f32 %v3958, %v6983
        %v7001 = vmul.f32 %v3959, %v6983
        %v7002 = vmul.f32 %v3960, %v6983
        %v7003 = vmul.f32 %v3961, %v6983
        %v7004 = vmul.f32 %v3962, %v6983
        %v7005 = vmul.f32 %v3963, %v6983
        %v7006 = vmul.f32 %v3964, %v6983
        %v7007 = vmul.f32 %v3965, %v6983
        %v7032 = vrot.slane %v6984, 6
        %v7033 = vrot.slane %v6985, 6
        %v7034 = vsel %vm2375, %v7032, %v7033
        %v7035 = vrot.slane %v6986, 6
        %v7036 = vsel %vm2375, %v7033, %v7035
        %v7037 = vrot.slane %v6987, 6
        %v7038 = vrot.slane %v6988, 6
        %v7039 = vsel %vm2375, %v7037, %v7038
        %v7040 = vrot.slane %v6989, 6
        %v7041 = vsel %vm2375, %v7038, %v7040
        %v7042 = vrot.slane %v6990, 6
        %v7043 = vrot.slane %v6991, 6
        %v7044 = vsel %vm2375, %v7042, %v7043
        %v7045 = vrot.slane %v6992, 6
        %v7046 = vsel %vm2375, %v7043, %v7045
        %v7047 = vrot.slane %v6993, 6
        %v7048 = vrot.slane %v6994, 6
        %v7049 = vsel %vm2375, %v7047, %v7048
        %v7050 = vrot.slane %v6995, 6
        %v7051 = vsel %vm2375, %v7048, %v7050
        %v7052 = vrot.slane %v6996, 6
        %v7053 = vrot.slane %v6997, 6
        %v7054 = vsel %vm2375, %v7052, %v7053
        %v7055 = vrot.slane %v6998, 6
        %v7056 = vsel %vm2375, %v7053, %v7055
        %v7057 = vrot.slane %v6999, 6
        %v7058 = vrot.slane %v7000, 6
        %v7059 = vsel %vm2375, %v7057, %v7058
        %v7060 = vrot.slane %v7001, 6
        %v7061 = vsel %vm2375, %v7058, %v7060
        %v7062 = vrot.slane %v7002, 6
        %v7063 = vrot.slane %v7003, 6
        %v7064 = vsel %vm2375, %v7062, %v7063
        %v7065 = vrot.slane %v7004, 6
        %v7066 = vsel %vm2375, %v7063, %v7065
        %v7067 = vrot.slane %v7005, 6
        %v7068 = vrot.slane %v7006, 6
        %v7069 = vsel %vm2375, %v7067, %v7068
        %v7070 = vrot.slane %v7007, 6
        %v7071 = vsel %vm2375, %v7068, %v7070
        %v7088 = vadd.f32 %v6964, %v7034
        %v7089 = vadd.f32 %v6965, %v7036
        %v7090 = vadd.f32 %v6966, %v7039
        %v7091 = vadd.f32 %v6967, %v7041
        %v7092 = vadd.f32 %v6968, %v7044
        %v7093 = vadd.f32 %v6969, %v7046
        %v7094 = vadd.f32 %v6970, %v7049
        %v7095 = vadd.f32 %v6971, %v7051
        %v7096 = vadd.f32 %v6972, %v7054
        %v7097 = vadd.f32 %v6973, %v7056
        %v7098 = vadd.f32 %v6974, %v7059
        %v7099 = vadd.f32 %v6975, %v7061
        %v7100 = vadd.f32 %v6976, %v7064
        %v7101 = vadd.f32 %v6977, %v7066
        %v7102 = vadd.f32 %v6978, %v7069
        %v7103 = vadd.f32 %v6979, %v7071
        %v7104 = vlaneseq
        %v7105 = vshrl.u32 %v7104, 7
        %v7106 = vsub.s32 0, %v7105
        %v7107 = vrot.slane %v3979, %v7106
        %v7108 = vmul.f32 %v3945, %v7107
        %v7109 = vmul.f32 %v3946, %v7107
        %v7110 = vmul.f32 %v3948, %v7107
        %v7111 = vmul.f32 %v3949, %v7107
        %v7112 = vmul.f32 %v3951, %v7107
        %v7113 = vmul.f32 %v3952, %v7107
        %v7114 = vmul.f32 %v3954, %v7107
        %v7115 = vmul.f32 %v3955, %v7107
        %v7116 = vmul.f32 %v3957, %v7107
        %v7117 = vmul.f32 %v3958, %v7107
        %v7118 = vmul.f32 %v3960, %v7107
        %v7119 = vmul.f32 %v3961, %v7107
        %v7120 = vmul.f32 %v3963, %v7107
        %v7121 = vmul.f32 %v3964, %v7107
        %v7122 = vmul.f32 %v3966, %v7107
        %v7123 = vmul.f32 %v3967, %v7107
        %v7124 = vadd.f32 %v7088, %v7108
        %v7125 = vadd.f32 %v7089, %v7109
        %v7126 = vadd.f32 %v7090, %v7110
        %v7127 = vadd.f32 %v7091, %v7111
        %v7128 = vadd.f32 %v7092, %v7112
        %v7129 = vadd.f32 %v7093, %v7113
        %v7130 = vadd.f32 %v7094, %v7114
        %v7131 = vadd.f32 %v7095, %v7115
        %v7132 = vadd.f32 %v7096, %v7116
        %v7133 = vadd.f32 %v7097, %v7117
        %v7134 = vadd.f32 %v7098, %v7118
        %v7135 = vadd.f32 %v7099, %v7119
        %v7136 = vadd.f32 %v7100, %v7120
        %v7137 = vadd.f32 %v7101, %v7121
        %v7138 = vadd.f32 %v7102, %v7122
        %v7139 = vadd.f32 %v7103, %v7123
        %v7140 = vlaneseq
        %v7141 = vshrl.u32 %v7140, 7
        %v7142 = vsub.s32 1, %v7141
        %v7143 = vrot.slane %v3979, %v7142
        %v7144 = vmul.f32 %v3945, %v7143
        %v7145 = vmul.f32 %v3946, %v7143
        %v7146 = vmul.f32 %v3947, %v7143
        %v7147 = vmul.f32 %v3948, %v7143
        %v7148 = vmul.f32 %v3949, %v7143
        %v7149 = vmul.f32 %v3950, %v7143
        %v7150 = vmul.f32 %v3951, %v7143
        %v7151 = vmul.f32 %v3952, %v7143
        %v7152 = vmul.f32 %v3953, %v7143
        %v7153 = vmul.f32 %v3954, %v7143
        %v7154 = vmul.f32 %v3955, %v7143
        %v7155 = vmul.f32 %v3956, %v7143
        %v7156 = vmul.f32 %v3957, %v7143
        %v7157 = vmul.f32 %v3958, %v7143
        %v7158 = vmul.f32 %v3959, %v7143
        %v7159 = vmul.f32 %v3960, %v7143
        %v7160 = vmul.f32 %v3961, %v7143
        %v7161 = vmul.f32 %v3962, %v7143
        %v7162 = vmul.f32 %v3963, %v7143
        %v7163 = vmul.f32 %v3964, %v7143
        %v7164 = vmul.f32 %v3965, %v7143
        %v7165 = vmul.f32 %v3966, %v7143
        %v7166 = vmul.f32 %v3967, %v7143
        %v7167 = vmul.f32 %v3968, %v7143
        %v7192 = vrot.slane %v7144, 1
        %v7193 = vrot.slane %v7145, 1
        %v7194 = vsel %vm921, %v7192, %v7193
        %v7195 = vrot.slane %v7146, 1
        %v7196 = vsel %vm921, %v7193, %v7195
        %v7197 = vrot.slane %v7147, 1
        %v7198 = vrot.slane %v7148, 1
        %v7199 = vsel %vm921, %v7197, %v7198
        %v7200 = vrot.slane %v7149, 1
        %v7201 = vsel %vm921, %v7198, %v7200
        %v7202 = vrot.slane %v7150, 1
        %v7203 = vrot.slane %v7151, 1
        %v7204 = vsel %vm921, %v7202, %v7203
        %v7205 = vrot.slane %v7152, 1
        %v7206 = vsel %vm921, %v7203, %v7205
        %v7207 = vrot.slane %v7153, 1
        %v7208 = vrot.slane %v7154, 1
        %v7209 = vsel %vm921, %v7207, %v7208
        %v7210 = vrot.slane %v7155, 1
        %v7211 = vsel %vm921, %v7208, %v7210
        %v7212 = vrot.slane %v7156, 1
        %v7213 = vrot.slane %v7157, 1
        %v7214 = vsel %vm921, %v7212, %v7213
        %v7215 = vrot.slane %v7158, 1
        %v7216 = vsel %vm921, %v7213, %v7215
        %v7217 = vrot.slane %v7159, 1
        %v7218 = vrot.slane %v7160, 1
        %v7219 = vsel %vm921, %v7217, %v7218
        %v7220 = vrot.slane %v7161, 1
        %v7221 = vsel %vm921, %v7218, %v7220
        %v7222 = vrot.slane %v7162, 1
        %v7223 = vrot.slane %v7163, 1
        %v7224 = vsel %vm921, %v7222, %v7223
        %v7225 = vrot.slane %v7164, 1
        %v7226 = vsel %vm921, %v7223, %v7225
        %v7227 = vrot.slane %v7165, 1
        %v7228 = vrot.slane %v7166, 1
        %v7229 = vsel %vm921, %v7227, %v7228
        %v7230 = vrot.slane %v7167, 1
        %v7231 = vsel %vm921, %v7228, %v7230
        %v7248 = vadd.f32 %v7124, %v7194
        %v7249 = vadd.f32 %v7125, %v7196
        %v7250 = vadd.f32 %v7126, %v7199
        %v7251 = vadd.f32 %v7127, %v7201
        %v7252 = vadd.f32 %v7128, %v7204
        %v7253 = vadd.f32 %v7129, %v7206
        %v7254 = vadd.f32 %v7130, %v7209
        %v7255 = vadd.f32 %v7131, %v7211
        %v7256 = vadd.f32 %v7132, %v7214
        %v7257 = vadd.f32 %v7133, %v7216
        %v7258 = vadd.f32 %v7134, %v7219
        %v7259 = vadd.f32 %v7135, %v7221
        %v7260 = vadd.f32 %v7136, %v7224
        %v7261 = vadd.f32 %v7137, %v7226
        %v7262 = vadd.f32 %v7138, %v7229
        %v7263 = vadd.f32 %v7139, %v7231
        %v7264 = vlaneseq
        %v7265 = vshrl.u32 %v7264, 7
        %v7266 = vsub.s32 2, %v7265
        %v7267 = vrot.slane %v3979, %v7266
        %v7268 = vmul.f32 %v3945, %v7267
        %v7269 = vmul.f32 %v3946, %v7267
        %v7270 = vmul.f32 %v3947, %v7267
        %v7271 = vmul.f32 %v3948, %v7267
        %v7272 = vmul.f32 %v3949, %v7267
        %v7273 = vmul.f32 %v3950, %v7267
        %v7274 = vmul.f32 %v3951, %v7267
        %v7275 = vmul.f32 %v3952, %v7267
        %v7276 = vmul.f32 %v3953, %v7267
        %v7277 = vmul.f32 %v3954, %v7267
        %v7278 = vmul.f32 %v3955, %v7267
        %v7279 = vmul.f32 %v3956, %v7267
        %v7280 = vmul.f32 %v3957, %v7267
        %v7281 = vmul.f32 %v3958, %v7267
        %v7282 = vmul.f32 %v3959, %v7267
        %v7283 = vmul.f32 %v3960, %v7267
        %v7284 = vmul.f32 %v3961, %v7267
        %v7285 = vmul.f32 %v3962, %v7267
        %v7286 = vmul.f32 %v3963, %v7267
        %v7287 = vmul.f32 %v3964, %v7267
        %v7288 = vmul.f32 %v3965, %v7267
        %v7289 = vmul.f32 %v3966, %v7267
        %v7290 = vmul.f32 %v3967, %v7267
        %v7291 = vmul.f32 %v3968, %v7267
        %v7316 = vrot.slane %v7268, 2
        %v7317 = vrot.slane %v7269, 2
        %v7318 = vsel %vm1302, %v7316, %v7317
        %v7319 = vrot.slane %v7270, 2
        %v7320 = vsel %vm1302, %v7317, %v7319
        %v7321 = vrot.slane %v7271, 2
        %v7322 = vrot.slane %v7272, 2
        %v7323 = vsel %vm1302, %v7321, %v7322
        %v7324 = vrot.slane %v7273, 2
        %v7325 = vsel %vm1302, %v7322, %v7324
        %v7326 = vrot.slane %v7274, 2
        %v7327 = vrot.slane %v7275, 2
        %v7328 = vsel %vm1302, %v7326, %v7327
        %v7329 = vrot.slane %v7276, 2
        %v7330 = vsel %vm1302, %v7327, %v7329
        %v7331 = vrot.slane %v7277, 2
        %v7332 = vrot.slane %v7278, 2
        %v7333 = vsel %vm1302, %v7331, %v7332
        %v7334 = vrot.slane %v7279, 2
        %v7335 = vsel %vm1302, %v7332, %v7334
        %v7336 = vrot.slane %v7280, 2
        %v7337 = vrot.slane %v7281, 2
        %v7338 = vsel %vm1302, %v7336, %v7337
        %v7339 = vrot.slane %v7282, 2
        %v7340 = vsel %vm1302, %v7337, %v7339
        %v7341 = vrot.slane %v7283, 2
        %v7342 = vrot.slane %v7284, 2
        %v7343 = vsel %vm1302, %v7341, %v7342
        %v7344 = vrot.slane %v7285, 2
        %v7345 = vsel %vm1302, %v7342, %v7344
        %v7346 = vrot.slane %v7286, 2
        %v7347 = vrot.slane %v7287, 2
        %v7348 = vsel %vm1302, %v7346, %v7347
        %v7349 = vrot.slane %v7288, 2
        %v7350 = vsel %vm1302, %v7347, %v7349
        %v7351 = vrot.slane %v7289, 2
        %v7352 = vrot.slane %v7290, 2
        %v7353 = vsel %vm1302, %v7351, %v7352
        %v7354 = vrot.slane %v7291, 2
        %v7355 = vsel %vm1302, %v7352, %v7354
        %v7372 = vadd.f32 %v7248, %v7318
        %v7373 = vadd.f32 %v7249, %v7320
        %v7374 = vadd.f32 %v7250, %v7323
        %v7375 = vadd.f32 %v7251, %v7325
        %v7376 = vadd.f32 %v7252, %v7328
        %v7377 = vadd.f32 %v7253, %v7330
        %v7378 = vadd.f32 %v7254, %v7333
        %v7379 = vadd.f32 %v7255, %v7335
        %v7380 = vadd.f32 %v7256, %v7338
        %v7381 = vadd.f32 %v7257, %v7340
        %v7382 = vadd.f32 %v7258, %v7343
        %v7383 = vadd.f32 %v7259, %v7345
        %v7384 = vadd.f32 %v7260, %v7348
        %v7385 = vadd.f32 %v7261, %v7350
        %v7386 = vadd.f32 %v7262, %v7353
        %v7387 = vadd.f32 %v7263, %v7355
        %v7388 = vlaneseq
        %v7389 = vshrl.u32 %v7388, 7
        %v7390 = vsub.s32 3, %v7389
        %v7391 = vrot.slane %v3979, %v7390
        %v7392 = vmul.f32 %v3945, %v7391
        %v7393 = vmul.f32 %v3946, %v7391
        %v7394 = vmul.f32 %v3947, %v7391
        %v7395 = vmul.f32 %v3948, %v7391
        %v7396 = vmul.f32 %v3949, %v7391
        %v7397 = vmul.f32 %v3950, %v7391
        %v7398 = vmul.f32 %v3951, %v7391
        %v7399 = vmul.f32 %v3952, %v7391
        %v7400 = vmul.f32 %v3953, %v7391
        %v7401 = vmul.f32 %v3954, %v7391
        %v7402 = vmul.f32 %v3955, %v7391
        %v7403 = vmul.f32 %v3956, %v7391
        %v7404 = vmul.f32 %v3957, %v7391
        %v7405 = vmul.f32 %v3958, %v7391
        %v7406 = vmul.f32 %v3959, %v7391
        %v7407 = vmul.f32 %v3960, %v7391
        %v7408 = vmul.f32 %v3961, %v7391
        %v7409 = vmul.f32 %v3962, %v7391
        %v7410 = vmul.f32 %v3963, %v7391
        %v7411 = vmul.f32 %v3964, %v7391
        %v7412 = vmul.f32 %v3965, %v7391
        %v7413 = vmul.f32 %v3966, %v7391
        %v7414 = vmul.f32 %v3967, %v7391
        %v7415 = vmul.f32 %v3968, %v7391
        %v7440 = vrot.slane %v7392, 3
        %v7441 = vrot.slane %v7393, 3
        %v7442 = vsel %vm4318, %v7440, %v7441
        %v7443 = vrot.slane %v7394, 3
        %v7444 = vsel %vm4318, %v7441, %v7443
        %v7445 = vrot.slane %v7395, 3
        %v7446 = vrot.slane %v7396, 3
        %v7447 = vsel %vm4318, %v7445, %v7446
        %v7448 = vrot.slane %v7397, 3
        %v7449 = vsel %vm4318, %v7446, %v7448
        %v7450 = vrot.slane %v7398, 3
        %v7451 = vrot.slane %v7399, 3
        %v7452 = vsel %vm4318, %v7450, %v7451
        %v7453 = vrot.slane %v7400, 3
        %v7454 = vsel %vm4318, %v7451, %v7453
        %v7455 = vrot.slane %v7401, 3
        %v7456 = vrot.slane %v7402, 3
        %v7457 = vsel %vm4318, %v7455, %v7456
        %v7458 = vrot.slane %v7403, 3
        %v7459 = vsel %vm4318, %v7456, %v7458
        %v7460 = vrot.slane %v7404, 3
        %v7461 = vrot.slane %v7405, 3
        %v7462 = vsel %vm4318, %v7460, %v7461
        %v7463 = vrot.slane %v7406, 3
        %v7464 = vsel %vm4318, %v7461, %v7463
        %v7465 = vrot.slane %v7407, 3
        %v7466 = vrot.slane %v7408, 3
        %v7467 = vsel %vm4318, %v7465, %v7466
        %v7468 = vrot.slane %v7409, 3
        %v7469 = vsel %vm4318, %v7466, %v7468
        %v7470 = vrot.slane %v7410, 3
        %v7471 = vrot.slane %v7411, 3
        %v7472 = vsel %vm4318, %v7470, %v7471
        %v7473 = vrot.slane %v7412, 3
        %v7474 = vsel %vm4318, %v7471, %v7473
        %v7475 = vrot.slane %v7413, 3
        %v7476 = vrot.slane %v7414, 3
        %v7477 = vsel %vm4318, %v7475, %v7476
        %v7478 = vrot.slane %v7415, 3
        %v7479 = vsel %vm4318, %v7476, %v7478
        %v7496 = vadd.f32 %v7372, %v7442
        %v7497 = vadd.f32 %v7373, %v7444
        %v7498 = vadd.f32 %v7374, %v7447
        %v7499 = vadd.f32 %v7375, %v7449
        %v7500 = vadd.f32 %v7376, %v7452
        %v7501 = vadd.f32 %v7377, %v7454
        %v7502 = vadd.f32 %v7378, %v7457
        %v7503 = vadd.f32 %v7379, %v7459
        %v7504 = vadd.f32 %v7380, %v7462
        %v7505 = vadd.f32 %v7381, %v7464
        %v7506 = vadd.f32 %v7382, %v7467
        %v7507 = vadd.f32 %v7383, %v7469
        %v7508 = vadd.f32 %v7384, %v7472
        %v7509 = vadd.f32 %v7385, %v7474
        %v7510 = vadd.f32 %v7386, %v7477
        %v7511 = vadd.f32 %v7387, %v7479
        %v7512 = vlaneseq
        %v7513 = vshrl.u32 %v7512, 7
        %v7514 = vsub.s32 4, %v7513
        %v7515 = vrot.slane %v3979, %v7514
        %v7516 = vmul.f32 %v3945, %v7515
        %v7517 = vmul.f32 %v3946, %v7515
        %v7518 = vmul.f32 %v3947, %v7515
        %v7519 = vmul.f32 %v3948, %v7515
        %v7520 = vmul.f32 %v3949, %v7515
        %v7521 = vmul.f32 %v3950, %v7515
        %v7522 = vmul.f32 %v3951, %v7515
        %v7523 = vmul.f32 %v3952, %v7515
        %v7524 = vmul.f32 %v3953, %v7515
        %v7525 = vmul.f32 %v3954, %v7515
        %v7526 = vmul.f32 %v3955, %v7515
        %v7527 = vmul.f32 %v3956, %v7515
        %v7528 = vmul.f32 %v3957, %v7515
        %v7529 = vmul.f32 %v3958, %v7515
        %v7530 = vmul.f32 %v3959, %v7515
        %v7531 = vmul.f32 %v3960, %v7515
        %v7532 = vmul.f32 %v3961, %v7515
        %v7533 = vmul.f32 %v3962, %v7515
        %v7534 = vmul.f32 %v3963, %v7515
        %v7535 = vmul.f32 %v3964, %v7515
        %v7536 = vmul.f32 %v3965, %v7515
        %v7537 = vmul.f32 %v3966, %v7515
        %v7538 = vmul.f32 %v3967, %v7515
        %v7539 = vmul.f32 %v3968, %v7515
        %v7564 = vrot.slane %v7516, 4
        %v7565 = vrot.slane %v7517, 4
        %v7566 = vsel %vm3498, %v7564, %v7565
        %v7567 = vrot.slane %v7518, 4
        %v7568 = vsel %vm3498, %v7565, %v7567
        %v7569 = vrot.slane %v7519, 4
        %v7570 = vrot.slane %v7520, 4
        %v7571 = vsel %vm3498, %v7569, %v7570
        %v7572 = vrot.slane %v7521, 4
        %v7573 = vsel %vm3498, %v7570, %v7572
        %v7574 = vrot.slane %v7522, 4
        %v7575 = vrot.slane %v7523, 4
        %v7576 = vsel %vm3498, %v7574, %v7575
        %v7577 = vrot.slane %v7524, 4
        %v7578 = vsel %vm3498, %v7575, %v7577
        %v7579 = vrot.slane %v7525, 4
        %v7580 = vrot.slane %v7526, 4
        %v7581 = vsel %vm3498, %v7579, %v7580
        %v7582 = vrot.slane %v7527, 4
        %v7583 = vsel %vm3498, %v7580, %v7582
        %v7584 = vrot.slane %v7528, 4
        %v7585 = vrot.slane %v7529, 4
        %v7586 = vsel %vm3498, %v7584, %v7585
        %v7587 = vrot.slane %v7530, 4
        %v7588 = vsel %vm3498, %v7585, %v7587
        %v7589 = vrot.slane %v7531, 4
        %v7590 = vrot.slane %v7532, 4
        %v7591 = vsel %vm3498, %v7589, %v7590
        %v7592 = vrot.slane %v7533, 4
        %v7593 = vsel %vm3498, %v7590, %v7592
        %v7594 = vrot.slane %v7534, 4
        %v7595 = vrot.slane %v7535, 4
        %v7596 = vsel %vm3498, %v7594, %v7595
        %v7597 = vrot.slane %v7536, 4
        %v7598 = vsel %vm3498, %v7595, %v7597
        %v7599 = vrot.slane %v7537, 4
        %v7600 = vrot.slane %v7538, 4
        %v7601 = vsel %vm3498, %v7599, %v7600
        %v7602 = vrot.slane %v7539, 4
        %v7603 = vsel %vm3498, %v7600, %v7602
        %v7620 = vadd.f32 %v7496, %v7566
        %v7621 = vadd.f32 %v7497, %v7568
        %v7622 = vadd.f32 %v7498, %v7571
        %v7623 = vadd.f32 %v7499, %v7573
        %v7624 = vadd.f32 %v7500, %v7576
        %v7625 = vadd.f32 %v7501, %v7578
        %v7626 = vadd.f32 %v7502, %v7581
        %v7627 = vadd.f32 %v7503, %v7583
        %v7628 = vadd.f32 %v7504, %v7586
        %v7629 = vadd.f32 %v7505, %v7588
        %v7630 = vadd.f32 %v7506, %v7591
        %v7631 = vadd.f32 %v7507, %v7593
        %v7632 = vadd.f32 %v7508, %v7596
        %v7633 = vadd.f32 %v7509, %v7598
        %v7634 = vadd.f32 %v7510, %v7601
        %v7635 = vadd.f32 %v7511, %v7603
        %v7636 = vlaneseq
        %v7637 = vshrl.u32 %v7636, 7
        %v7638 = vsub.s32 5, %v7637
        %v7639 = vrot.slane %v3979, %v7638
        %v7640 = vmul.f32 %v3945, %v7639
        %v7641 = vmul.f32 %v3946, %v7639
        %v7642 = vmul.f32 %v3947, %v7639
        %v7643 = vmul.f32 %v3948, %v7639
        %v7644 = vmul.f32 %v3949, %v7639
        %v7645 = vmul.f32 %v3950, %v7639
        %v7646 = vmul.f32 %v3951, %v7639
        %v7647 = vmul.f32 %v3952, %v7639
        %v7648 = vmul.f32 %v3953, %v7639
        %v7649 = vmul.f32 %v3954, %v7639
        %v7650 = vmul.f32 %v3955, %v7639
        %v7651 = vmul.f32 %v3956, %v7639
        %v7652 = vmul.f32 %v3957, %v7639
        %v7653 = vmul.f32 %v3958, %v7639
        %v7654 = vmul.f32 %v3959, %v7639
        %v7655 = vmul.f32 %v3960, %v7639
        %v7656 = vmul.f32 %v3961, %v7639
        %v7657 = vmul.f32 %v3962, %v7639
        %v7658 = vmul.f32 %v3963, %v7639
        %v7659 = vmul.f32 %v3964, %v7639
        %v7660 = vmul.f32 %v3965, %v7639
        %v7661 = vmul.f32 %v3966, %v7639
        %v7662 = vmul.f32 %v3967, %v7639
        %v7663 = vmul.f32 %v3968, %v7639
        %v7688 = vrot.slane %v7640, 5
        %v7689 = vrot.slane %v7641, 5
        %v7690 = vsel %vm4567, %v7688, %v7689
        %v7691 = vrot.slane %v7642, 5
        %v7692 = vsel %vm4567, %v7689, %v7691
        %v7693 = vrot.slane %v7643, 5
        %v7694 = vrot.slane %v7644, 5
        %v7695 = vsel %vm4567, %v7693, %v7694
        %v7696 = vrot.slane %v7645, 5
        %v7697 = vsel %vm4567, %v7694, %v7696
        %v7698 = vrot.slane %v7646, 5
        %v7699 = vrot.slane %v7647, 5
        %v7700 = vsel %vm4567, %v7698, %v7699
        %v7701 = vrot.slane %v7648, 5
        %v7702 = vsel %vm4567, %v7699, %v7701
        %v7703 = vrot.slane %v7649, 5
        %v7704 = vrot.slane %v7650, 5
        %v7705 = vsel %vm4567, %v7703, %v7704
        %v7706 = vrot.slane %v7651, 5
        %v7707 = vsel %vm4567, %v7704, %v7706
        %v7708 = vrot.slane %v7652, 5
        %v7709 = vrot.slane %v7653, 5
        %v7710 = vsel %vm4567, %v7708, %v7709
        %v7711 = vrot.slane %v7654, 5
        %v7712 = vsel %vm4567, %v7709, %v7711
        %v7713 = vrot.slane %v7655, 5
        %v7714 = vrot.slane %v7656, 5
        %v7715 = vsel %vm4567, %v7713, %v7714
        %v7716 = vrot.slane %v7657, 5
        %v7717 = vsel %vm4567, %v7714, %v7716
        %v7718 = vrot.slane %v7658, 5
        %v7719 = vrot.slane %v7659, 5
        %v7720 = vsel %vm4567, %v7718, %v7719
        %v7721 = vrot.slane %v7660, 5
        %v7722 = vsel %vm4567, %v7719, %v7721
        %v7723 = vrot.slane %v7661, 5
        %v7724 = vrot.slane %v7662, 5
        %v7725 = vsel %vm4567, %v7723, %v7724
        %v7726 = vrot.slane %v7663, 5
        %v7727 = vsel %vm4567, %v7724, %v7726
        %v7744 = vadd.f32 %v7620, %v7690
        %v7745 = vadd.f32 %v7621, %v7692
        %v7746 = vadd.f32 %v7622, %v7695
        %v7747 = vadd.f32 %v7623, %v7697
        %v7748 = vadd.f32 %v7624, %v7700
        %v7749 = vadd.f32 %v7625, %v7702
        %v7750 = vadd.f32 %v7626, %v7705
        %v7751 = vadd.f32 %v7627, %v7707
        %v7752 = vadd.f32 %v7628, %v7710
        %v7753 = vadd.f32 %v7629, %v7712
        %v7754 = vadd.f32 %v7630, %v7715
        %v7755 = vadd.f32 %v7631, %v7717
        %v7756 = vadd.f32 %v7632, %v7720
        %v7757 = vadd.f32 %v7633, %v7722
        %v7758 = vadd.f32 %v7634, %v7725
        %v7759 = vadd.f32 %v7635, %v7727
        %v7760 = vlaneseq
        %v7761 = vshrl.u32 %v7760, 7
        %v7762 = vsub.s32 6, %v7761
        %v7763 = vrot.slane %v3979, %v7762
        %v7764 = vmul.f32 %v3945, %v7763
        %v7765 = vmul.f32 %v3946, %v7763
        %v7766 = vmul.f32 %v3947, %v7763
        %v7767 = vmul.f32 %v3948, %v7763
        %v7768 = vmul.f32 %v3949, %v7763
        %v7769 = vmul.f32 %v3950, %v7763
        %v7770 = vmul.f32 %v3951, %v7763
        %v7771 = vmul.f32 %v3952, %v7763
        %v7772 = vmul.f32 %v3953, %v7763
        %v7773 = vmul.f32 %v3954, %v7763
        %v7774 = vmul.f32 %v3955, %v7763
        %v7775 = vmul.f32 %v3956, %v7763
        %v7776 = vmul.f32 %v3957, %v7763
        %v7777 = vmul.f32 %v3958, %v7763
        %v7778 = vmul.f32 %v3959, %v7763
        %v7779 = vmul.f32 %v3960, %v7763
        %v7780 = vmul.f32 %v3961, %v7763
        %v7781 = vmul.f32 %v3962, %v7763
        %v7782 = vmul.f32 %v3963, %v7763
        %v7783 = vmul.f32 %v3964, %v7763
        %v7784 = vmul.f32 %v3965, %v7763
        %v7785 = vmul.f32 %v3966, %v7763
        %v7786 = vmul.f32 %v3967, %v7763
        %v7787 = vmul.f32 %v3968, %v7763
        %v7812 = vrot.slane %v7764, 6
        %v7813 = vrot.slane %v7765, 6
        %v7814 = vsel %vm2375, %v7812, %v7813
        %v7815 = vrot.slane %v7766, 6
        %v7816 = vsel %vm2375, %v7813, %v7815
        %v7817 = vrot.slane %v7767, 6
        %v7818 = vrot.slane %v7768, 6
        %v7819 = vsel %vm2375, %v7817, %v7818
        %v7820 = vrot.slane %v7769, 6
        %v7821 = vsel %vm2375, %v7818, %v7820
        %v7822 = vrot.slane %v7770, 6
        %v7823 = vrot.slane %v7771, 6
        %v7824 = vsel %vm2375, %v7822, %v7823
        %v7825 = vrot.slane %v7772, 6
        %v7826 = vsel %vm2375, %v7823, %v7825
        %v7827 = vrot.slane %v7773, 6
        %v7828 = vrot.slane %v7774, 6
        %v7829 = vsel %vm2375, %v7827, %v7828
        %v7830 = vrot.slane %v7775, 6
        %v7831 = vsel %vm2375, %v7828, %v7830
        %v7832 = vrot.slane %v7776, 6
        %v7833 = vrot.slane %v7777, 6
        %v7834 = vsel %vm2375, %v7832, %v7833
        %v7835 = vrot.slane %v7778, 6
        %v7836 = vsel %vm2375, %v7833, %v7835
        %v7837 = vrot.slane %v7779, 6
        %v7838 = vrot.slane %v7780, 6
        %v7839 = vsel %vm2375, %v7837, %v7838
        %v7840 = vrot.slane %v7781, 6
        %v7841 = vsel %vm2375, %v7838, %v7840
        %v7842 = vrot.slane %v7782, 6
        %v7843 = vrot.slane %v7783, 6
        %v7844 = vsel %vm2375, %v7842, %v7843
        %v7845 = vrot.slane %v7784, 6
        %v7846 = vsel %vm2375, %v7843, %v7845
        %v7847 = vrot.slane %v7785, 6
        %v7848 = vrot.slane %v7786, 6
        %v7849 = vsel %vm2375, %v7847, %v7848
        %v7850 = vrot.slane %v7787, 6
        %v7851 = vsel %vm2375, %v7848, %v7850
        %v7868 = vadd.f32 %v7744, %v7814
        %v7869 = vadd.f32 %v7745, %v7816
        %v7870 = vadd.f32 %v7746, %v7819
        %v7871 = vadd.f32 %v7747, %v7821
        %v7872 = vadd.f32 %v7748, %v7824
        %v7873 = vadd.f32 %v7749, %v7826
        %v7874 = vadd.f32 %v7750, %v7829
        %v7875 = vadd.f32 %v7751, %v7831
        %v7876 = vadd.f32 %v7752, %v7834
        %v7877 = vadd.f32 %v7753, %v7836
        %v7878 = vadd.f32 %v7754, %v7839
        %v7879 = vadd.f32 %v7755, %v7841
        %v7880 = vadd.f32 %v7756, %v7844
        %v7881 = vadd.f32 %v7757, %v7846
        %v7882 = vadd.f32 %v7758, %v7849
        %v7883 = vadd.f32 %v7759, %v7851
        %v7884 = vlaneseq
        %v7885 = vshrl.u32 %v7884, 7
        %v7886 = vsub.s32 0, %v7885
        %v7887 = vrot.slane %v3980, %v7886
        %v7888 = vmul.f32 %v3948, %v7887
        %v7889 = vmul.f32 %v3949, %v7887
        %v7890 = vmul.f32 %v3951, %v7887
        %v7891 = vmul.f32 %v3952, %v7887
        %v7892 = vmul.f32 %v3954, %v7887
        %v7893 = vmul.f32 %v3955, %v7887
        %v7894 = vmul.f32 %v3957, %v7887
        %v7895 = vmul.f32 %v3958, %v7887
        %v7896 = vmul.f32 %v3960, %v7887
        %v7897 = vmul.f32 %v3961, %v7887
        %v7898 = vmul.f32 %v3963, %v7887
        %v7899 = vmul.f32 %v3964, %v7887
        %v7900 = vmul.f32 %v3966, %v7887
        %v7901 = vmul.f32 %v3967, %v7887
        %v7902 = vmul.f32 %v3969, %v7887
        %v7903 = vmul.f32 %v3970, %v7887
        %v7904 = vadd.f32 %v7868, %v7888
        %v7905 = vadd.f32 %v7869, %v7889
        %v7906 = vadd.f32 %v7870, %v7890
        %v7907 = vadd.f32 %v7871, %v7891
        %v7908 = vadd.f32 %v7872, %v7892
        %v7909 = vadd.f32 %v7873, %v7893
        %v7910 = vadd.f32 %v7874, %v7894
        %v7911 = vadd.f32 %v7875, %v7895
        %v7912 = vadd.f32 %v7876, %v7896
        %v7913 = vadd.f32 %v7877, %v7897
        %v7914 = vadd.f32 %v7878, %v7898
        %v7915 = vadd.f32 %v7879, %v7899
        %v7916 = vadd.f32 %v7880, %v7900
        %v7917 = vadd.f32 %v7881, %v7901
        %v7918 = vadd.f32 %v7882, %v7902
        %v7919 = vadd.f32 %v7883, %v7903
        %v7920 = vlaneseq
        %v7921 = vshrl.u32 %v7920, 7
        %v7922 = vsub.s32 1, %v7921
        %v7923 = vrot.slane %v3980, %v7922
        %v7924 = vmul.f32 %v3948, %v7923
        %v7925 = vmul.f32 %v3949, %v7923
        %v7926 = vmul.f32 %v3950, %v7923
        %v7927 = vmul.f32 %v3951, %v7923
        %v7928 = vmul.f32 %v3952, %v7923
        %v7929 = vmul.f32 %v3953, %v7923
        %v7930 = vmul.f32 %v3954, %v7923
        %v7931 = vmul.f32 %v3955, %v7923
        %v7932 = vmul.f32 %v3956, %v7923
        %v7933 = vmul.f32 %v3957, %v7923
        %v7934 = vmul.f32 %v3958, %v7923
        %v7935 = vmul.f32 %v3959, %v7923
        %v7936 = vmul.f32 %v3960, %v7923
        %v7937 = vmul.f32 %v3961, %v7923
        %v7938 = vmul.f32 %v3962, %v7923
        %v7939 = vmul.f32 %v3963, %v7923
        %v7940 = vmul.f32 %v3964, %v7923
        %v7941 = vmul.f32 %v3965, %v7923
        %v7942 = vmul.f32 %v3966, %v7923
        %v7943 = vmul.f32 %v3967, %v7923
        %v7944 = vmul.f32 %v3968, %v7923
        %v7945 = vmul.f32 %v3969, %v7923
        %v7946 = vmul.f32 %v3970, %v7923
        %v7947 = vmul.f32 %v3971, %v7923
        %v7972 = vrot.slane %v7924, 1
        %v7973 = vrot.slane %v7925, 1
        %v7974 = vsel %vm921, %v7972, %v7973
        %v7975 = vrot.slane %v7926, 1
        %v7976 = vsel %vm921, %v7973, %v7975
        %v7977 = vrot.slane %v7927, 1
        %v7978 = vrot.slane %v7928, 1
        %v7979 = vsel %vm921, %v7977, %v7978
        %v7980 = vrot.slane %v7929, 1
        %v7981 = vsel %vm921, %v7978, %v7980
        %v7982 = vrot.slane %v7930, 1
        %v7983 = vrot.slane %v7931, 1
        %v7984 = vsel %vm921, %v7982, %v7983
        %v7985 = vrot.slane %v7932, 1
        %v7986 = vsel %vm921, %v7983, %v7985
        %v7987 = vrot.slane %v7933, 1
        %v7988 = vrot.slane %v7934, 1
        %v7989 = vsel %vm921, %v7987, %v7988
        %v7990 = vrot.slane %v7935, 1
        %v7991 = vsel %vm921, %v7988, %v7990
        %v7992 = vrot.slane %v7936, 1
        %v7993 = vrot.slane %v7937, 1
        %v7994 = vsel %vm921, %v7992, %v7993
        %v7995 = vrot.slane %v7938, 1
        %v7996 = vsel %vm921, %v7993, %v7995
        %v7997 = vrot.slane %v7939, 1
        %v7998 = vrot.slane %v7940, 1
        %v7999 = vsel %vm921, %v7997, %v7998
        %v8000 = vrot.slane %v7941, 1
        %v8001 = vsel %vm921, %v7998, %v8000
        %v8002 = vrot.slane %v7942, 1
        %v8003 = vrot.slane %v7943, 1
        %v8004 = vsel %vm921, %v8002, %v8003
        %v8005 = vrot.slane %v7944, 1
        %v8006 = vsel %vm921, %v8003, %v8005
        %v8007 = vrot.slane %v7945, 1
        %v8008 = vrot.slane %v7946, 1
        %v8009 = vsel %vm921, %v8007, %v8008
        %v8010 = vrot.slane %v7947, 1
        %v8011 = vsel %vm921, %v8008, %v8010
        %v8028 = vadd.f32 %v7904, %v7974
        %v8029 = vadd.f32 %v7905, %v7976
        %v8030 = vadd.f32 %v7906, %v7979
        %v8031 = vadd.f32 %v7907, %v7981
        %v8032 = vadd.f32 %v7908, %v7984
        %v8033 = vadd.f32 %v7909, %v7986
        %v8034 = vadd.f32 %v7910, %v7989
        %v8035 = vadd.f32 %v7911, %v7991
        %v8036 = vadd.f32 %v7912, %v7994
        %v8037 = vadd.f32 %v7913, %v7996
        %v8038 = vadd.f32 %v7914, %v7999
        %v8039 = vadd.f32 %v7915, %v8001
        %v8040 = vadd.f32 %v7916, %v8004
        %v8041 = vadd.f32 %v7917, %v8006
        %v8042 = vadd.f32 %v7918, %v8009
        %v8043 = vadd.f32 %v7919, %v8011
        %v8044 = vlaneseq
        %v8045 = vshrl.u32 %v8044, 7
        %v8046 = vsub.s32 2, %v8045
        %v8047 = vrot.slane %v3980, %v8046
        %v8048 = vmul.f32 %v3948, %v8047
        %v8049 = vmul.f32 %v3949, %v8047
        %v8050 = vmul.f32 %v3950, %v8047
        %v8051 = vmul.f32 %v3951, %v8047
        %v8052 = vmul.f32 %v3952, %v8047
        %v8053 = vmul.f32 %v3953, %v8047
        %v8054 = vmul.f32 %v3954, %v8047
        %v8055 = vmul.f32 %v3955, %v8047
        %v8056 = vmul.f32 %v3956, %v8047
        %v8057 = vmul.f32 %v3957, %v8047
        %v8058 = vmul.f32 %v3958, %v8047
        %v8059 = vmul.f32 %v3959, %v8047
        %v8060 = vmul.f32 %v3960, %v8047
        %v8061 = vmul.f32 %v3961, %v8047
        %v8062 = vmul.f32 %v3962, %v8047
        %v8063 = vmul.f32 %v3963, %v8047
        %v8064 = vmul.f32 %v3964, %v8047
        %v8065 = vmul.f32 %v3965, %v8047
        %v8066 = vmul.f32 %v3966, %v8047
        %v8067 = vmul.f32 %v3967, %v8047
        %v8068 = vmul.f32 %v3968, %v8047
        %v8069 = vmul.f32 %v3969, %v8047
        %v8070 = vmul.f32 %v3970, %v8047
        %v8071 = vmul.f32 %v3971, %v8047
        %v8096 = vrot.slane %v8048, 2
        %v8097 = vrot.slane %v8049, 2
        %v8098 = vsel %vm1302, %v8096, %v8097
        %v8099 = vrot.slane %v8050, 2
        %v8100 = vsel %vm1302, %v8097, %v8099
        %v8101 = vrot.slane %v8051, 2
        %v8102 = vrot.slane %v8052, 2
        %v8103 = vsel %vm1302, %v8101, %v8102
        %v8104 = vrot.slane %v8053, 2
        %v8105 = vsel %vm1302, %v8102, %v8104
        %v8106 = vrot.slane %v8054, 2
        %v8107 = vrot.slane %v8055, 2
        %v8108 = vsel %vm1302, %v8106, %v8107
        %v8109 = vrot.slane %v8056, 2
        %v8110 = vsel %vm1302, %v8107, %v8109
        %v8111 = vrot.slane %v8057, 2
        %v8112 = vrot.slane %v8058, 2
        %v8113 = vsel %vm1302, %v8111, %v8112
        %v8114 = vrot.slane %v8059, 2
        %v8115 = vsel %vm1302, %v8112, %v8114
        %v8116 = vrot.slane %v8060, 2
        %v8117 = vrot.slane %v8061, 2
        %v8118 = vsel %vm1302, %v8116, %v8117
        %v8119 = vrot.slane %v8062, 2
        %v8120 = vsel %vm1302, %v8117, %v8119
        %v8121 = vrot.slane %v8063, 2
        %v8122 = vrot.slane %v8064, 2
        %v8123 = vsel %vm1302, %v8121, %v8122
        %v8124 = vrot.slane %v8065, 2
        %v8125 = vsel %vm1302, %v8122, %v8124
        %v8126 = vrot.slane %v8066, 2
        %v8127 = vrot.slane %v8067, 2
        %v8128 = vsel %vm1302, %v8126, %v8127
        %v8129 = vrot.slane %v8068, 2
        %v8130 = vsel %vm1302, %v8127, %v8129
        %v8131 = vrot.slane %v8069, 2
        %v8132 = vrot.slane %v8070, 2
        %v8133 = vsel %vm1302, %v8131, %v8132
        %v8134 = vrot.slane %v8071, 2
        %v8135 = vsel %vm1302, %v8132, %v8134
        %v8152 = vadd.f32 %v8028, %v8098
        %v8153 = vadd.f32 %v8029, %v8100
        %v8154 = vadd.f32 %v8030, %v8103
        %v8155 = vadd.f32 %v8031, %v8105
        %v8156 = vadd.f32 %v8032, %v8108
        %v8157 = vadd.f32 %v8033, %v8110
        %v8158 = vadd.f32 %v8034, %v8113
        %v8159 = vadd.f32 %v8035, %v8115
        %v8160 = vadd.f32 %v8036, %v8118
        %v8161 = vadd.f32 %v8037, %v8120
        %v8162 = vadd.f32 %v8038, %v8123
        %v8163 = vadd.f32 %v8039, %v8125
        %v8164 = vadd.f32 %v8040, %v8128
        %v8165 = vadd.f32 %v8041, %v8130
        %v8166 = vadd.f32 %v8042, %v8133
        %v8167 = vadd.f32 %v8043, %v8135
        %v8168 = vlaneseq
        %v8169 = vshrl.u32 %v8168, 7
        %v8170 = vsub.s32 3, %v8169
        %v8171 = vrot.slane %v3980, %v8170
        %v8172 = vmul.f32 %v3948, %v8171
        %v8173 = vmul.f32 %v3949, %v8171
        %v8174 = vmul.f32 %v3950, %v8171
        %v8175 = vmul.f32 %v3951, %v8171
        %v8176 = vmul.f32 %v3952, %v8171
        %v8177 = vmul.f32 %v3953, %v8171
        %v8178 = vmul.f32 %v3954, %v8171
        %v8179 = vmul.f32 %v3955, %v8171
        %v8180 = vmul.f32 %v3956, %v8171
        %v8181 = vmul.f32 %v3957, %v8171
        %v8182 = vmul.f32 %v3958, %v8171
        %v8183 = vmul.f32 %v3959, %v8171
        %v8184 = vmul.f32 %v3960, %v8171
        %v8185 = vmul.f32 %v3961, %v8171
        %v8186 = vmul.f32 %v3962, %v8171
        %v8187 = vmul.f32 %v3963, %v8171
        %v8188 = vmul.f32 %v3964, %v8171
        %v8189 = vmul.f32 %v3965, %v8171
        %v8190 = vmul.f32 %v3966, %v8171
        %v8191 = vmul.f32 %v3967, %v8171
        %v8192 = vmul.f32 %v3968, %v8171
        %v8193 = vmul.f32 %v3969, %v8171
        %v8194 = vmul.f32 %v3970, %v8171
        %v8195 = vmul.f32 %v3971, %v8171
        %v8220 = vrot.slane %v8172, 3
        %v8221 = vrot.slane %v8173, 3
        %v8222 = vsel %vm4318, %v8220, %v8221
        %v8223 = vrot.slane %v8174, 3
        %v8224 = vsel %vm4318, %v8221, %v8223
        %v8225 = vrot.slane %v8175, 3
        %v8226 = vrot.slane %v8176, 3
        %v8227 = vsel %vm4318, %v8225, %v8226
        %v8228 = vrot.slane %v8177, 3
        %v8229 = vsel %vm4318, %v8226, %v8228
        %v8230 = vrot.slane %v8178, 3
        %v8231 = vrot.slane %v8179, 3
        %v8232 = vsel %vm4318, %v8230, %v8231
        %v8233 = vrot.slane %v8180, 3
        %v8234 = vsel %vm4318, %v8231, %v8233
        %v8235 = vrot.slane %v8181, 3
        %v8236 = vrot.slane %v8182, 3
        %v8237 = vsel %vm4318, %v8235, %v8236
        %v8238 = vrot.slane %v8183, 3
        %v8239 = vsel %vm4318, %v8236, %v8238
        %v8240 = vrot.slane %v8184, 3
        %v8241 = vrot.slane %v8185, 3
        %v8242 = vsel %vm4318, %v8240, %v8241
        %v8243 = vrot.slane %v8186, 3
        %v8244 = vsel %vm4318, %v8241, %v8243
        %v8245 = vrot.slane %v8187, 3
        %v8246 = vrot.slane %v8188, 3
        %v8247 = vsel %vm4318, %v8245, %v8246
        %v8248 = vrot.slane %v8189, 3
        %v8249 = vsel %vm4318, %v8246, %v8248
        %v8250 = vrot.slane %v8190, 3
        %v8251 = vrot.slane %v8191, 3
        %v8252 = vsel %vm4318, %v8250, %v8251
        %v8253 = vrot.slane %v8192, 3
        %v8254 = vsel %vm4318, %v8251, %v8253
        %v8255 = vrot.slane %v8193, 3
        %v8256 = vrot.slane %v8194, 3
        %v8257 = vsel %vm4318, %v8255, %v8256
        %v8258 = vrot.slane %v8195, 3
        %v8259 = vsel %vm4318, %v8256, %v8258
        %v8276 = vadd.f32 %v8152, %v8222
        %v8277 = vadd.f32 %v8153, %v8224
        %v8278 = vadd.f32 %v8154, %v8227
        %v8279 = vadd.f32 %v8155, %v8229
        %v8280 = vadd.f32 %v8156, %v8232
        %v8281 = vadd.f32 %v8157, %v8234
        %v8282 = vadd.f32 %v8158, %v8237
        %v8283 = vadd.f32 %v8159, %v8239
        %v8284 = vadd.f32 %v8160, %v8242
        %v8285 = vadd.f32 %v8161, %v8244
        %v8286 = vadd.f32 %v8162, %v8247
        %v8287 = vadd.f32 %v8163, %v8249
        %v8288 = vadd.f32 %v8164, %v8252
        %v8289 = vadd.f32 %v8165, %v8254
        %v8290 = vadd.f32 %v8166, %v8257
        %v8291 = vadd.f32 %v8167, %v8259
        %v8292 = vlaneseq
        %v8293 = vshrl.u32 %v8292, 7
        %v8294 = vsub.s32 4, %v8293
        %v8295 = vrot.slane %v3980, %v8294
        %v8296 = vmul.f32 %v3948, %v8295
        %v8297 = vmul.f32 %v3949, %v8295
        %v8298 = vmul.f32 %v3950, %v8295
        %v8299 = vmul.f32 %v3951, %v8295
        %v8300 = vmul.f32 %v3952, %v8295
        %v8301 = vmul.f32 %v3953, %v8295
        %v8302 = vmul.f32 %v3954, %v8295
        %v8303 = vmul.f32 %v3955, %v8295
        %v8304 = vmul.f32 %v3956, %v8295
        %v8305 = vmul.f32 %v3957, %v8295
        %v8306 = vmul.f32 %v3958, %v8295
        %v8307 = vmul.f32 %v3959, %v8295
        %v8308 = vmul.f32 %v3960, %v8295
        %v8309 = vmul.f32 %v3961, %v8295
        %v8310 = vmul.f32 %v3962, %v8295
        %v8311 = vmul.f32 %v3963, %v8295
        %v8312 = vmul.f32 %v3964, %v8295
        %v8313 = vmul.f32 %v3965, %v8295
        %v8314 = vmul.f32 %v3966, %v8295
        %v8315 = vmul.f32 %v3967, %v8295
        %v8316 = vmul.f32 %v3968, %v8295
        %v8317 = vmul.f32 %v3969, %v8295
        %v8318 = vmul.f32 %v3970, %v8295
        %v8319 = vmul.f32 %v3971, %v8295
        %v8344 = vrot.slane %v8296, 4
        %v8345 = vrot.slane %v8297, 4
        %v8346 = vsel %vm3498, %v8344, %v8345
        %v8347 = vrot.slane %v8298, 4
        %v8348 = vsel %vm3498, %v8345, %v8347
        %v8349 = vrot.slane %v8299, 4
        %v8350 = vrot.slane %v8300, 4
        %v8351 = vsel %vm3498, %v8349, %v8350
        %v8352 = vrot.slane %v8301, 4
        %v8353 = vsel %vm3498, %v8350, %v8352
        %v8354 = vrot.slane %v8302, 4
        %v8355 = vrot.slane %v8303, 4
        %v8356 = vsel %vm3498, %v8354, %v8355
        %v8357 = vrot.slane %v8304, 4
        %v8358 = vsel %vm3498, %v8355, %v8357
        %v8359 = vrot.slane %v8305, 4
        %v8360 = vrot.slane %v8306, 4
        %v8361 = vsel %vm3498, %v8359, %v8360
        %v8362 = vrot.slane %v8307, 4
        %v8363 = vsel %vm3498, %v8360, %v8362
        %v8364 = vrot.slane %v8308, 4
        %v8365 = vrot.slane %v8309, 4
        %v8366 = vsel %vm3498, %v8364, %v8365
        %v8367 = vrot.slane %v8310, 4
        %v8368 = vsel %vm3498, %v8365, %v8367
        %v8369 = vrot.slane %v8311, 4
        %v8370 = vrot.slane %v8312, 4
        %v8371 = vsel %vm3498, %v8369, %v8370
        %v8372 = vrot.slane %v8313, 4
        %v8373 = vsel %vm3498, %v8370, %v8372
        %v8374 = vrot.slane %v8314, 4
        %v8375 = vrot.slane %v8315, 4
        %v8376 = vsel %vm3498, %v8374, %v8375
        %v8377 = vrot.slane %v8316, 4
        %v8378 = vsel %vm3498, %v8375, %v8377
        %v8379 = vrot.slane %v8317, 4
        %v8380 = vrot.slane %v8318, 4
        %v8381 = vsel %vm3498, %v8379, %v8380
        %v8382 = vrot.slane %v8319, 4
        %v8383 = vsel %vm3498, %v8380, %v8382
        %v8400 = vadd.f32 %v8276, %v8346
        %v8401 = vadd.f32 %v8277, %v8348
        %v8402 = vadd.f32 %v8278, %v8351
        %v8403 = vadd.f32 %v8279, %v8353
        %v8404 = vadd.f32 %v8280, %v8356
        %v8405 = vadd.f32 %v8281, %v8358
        %v8406 = vadd.f32 %v8282, %v8361
        %v8407 = vadd.f32 %v8283, %v8363
        %v8408 = vadd.f32 %v8284, %v8366
        %v8409 = vadd.f32 %v8285, %v8368
        %v8410 = vadd.f32 %v8286, %v8371
        %v8411 = vadd.f32 %v8287, %v8373
        %v8412 = vadd.f32 %v8288, %v8376
        %v8413 = vadd.f32 %v8289, %v8378
        %v8414 = vadd.f32 %v8290, %v8381
        %v8415 = vadd.f32 %v8291, %v8383
        %v8416 = vlaneseq
        %v8417 = vshrl.u32 %v8416, 7
        %v8418 = vsub.s32 5, %v8417
        %v8419 = vrot.slane %v3980, %v8418
        %v8420 = vmul.f32 %v3948, %v8419
        %v8421 = vmul.f32 %v3949, %v8419
        %v8422 = vmul.f32 %v3950, %v8419
        %v8423 = vmul.f32 %v3951, %v8419
        %v8424 = vmul.f32 %v3952, %v8419
        %v8425 = vmul.f32 %v3953, %v8419
        %v8426 = vmul.f32 %v3954, %v8419
        %v8427 = vmul.f32 %v3955, %v8419
        %v8428 = vmul.f32 %v3956, %v8419
        %v8429 = vmul.f32 %v3957, %v8419
        %v8430 = vmul.f32 %v3958, %v8419
        %v8431 = vmul.f32 %v3959, %v8419
        %v8432 = vmul.f32 %v3960, %v8419
        %v8433 = vmul.f32 %v3961, %v8419
        %v8434 = vmul.f32 %v3962, %v8419
        %v8435 = vmul.f32 %v3963, %v8419
        %v8436 = vmul.f32 %v3964, %v8419
        %v8437 = vmul.f32 %v3965, %v8419
        %v8438 = vmul.f32 %v3966, %v8419
        %v8439 = vmul.f32 %v3967, %v8419
        %v8440 = vmul.f32 %v3968, %v8419
        %v8441 = vmul.f32 %v3969, %v8419
        %v8442 = vmul.f32 %v3970, %v8419
        %v8443 = vmul.f32 %v3971, %v8419
        %v8468 = vrot.slane %v8420, 5
        %v8469 = vrot.slane %v8421, 5
        %v8470 = vsel %vm4567, %v8468, %v8469
        %v8471 = vrot.slane %v8422, 5
        %v8472 = vsel %vm4567, %v8469, %v8471
        %v8473 = vrot.slane %v8423, 5
        %v8474 = vrot.slane %v8424, 5
        %v8475 = vsel %vm4567, %v8473, %v8474
        %v8476 = vrot.slane %v8425, 5
        %v8477 = vsel %vm4567, %v8474, %v8476
        %v8478 = vrot.slane %v8426, 5
        %v8479 = vrot.slane %v8427, 5
        %v8480 = vsel %vm4567, %v8478, %v8479
        %v8481 = vrot.slane %v8428, 5
        %v8482 = vsel %vm4567, %v8479, %v8481
        %v8483 = vrot.slane %v8429, 5
        %v8484 = vrot.slane %v8430, 5
        %v8485 = vsel %vm4567, %v8483, %v8484
        %v8486 = vrot.slane %v8431, 5
        %v8487 = vsel %vm4567, %v8484, %v8486
        %v8488 = vrot.slane %v8432, 5
        %v8489 = vrot.slane %v8433, 5
        %v8490 = vsel %vm4567, %v8488, %v8489
        %v8491 = vrot.slane %v8434, 5
        %v8492 = vsel %vm4567, %v8489, %v8491
        %v8493 = vrot.slane %v8435, 5
        %v8494 = vrot.slane %v8436, 5
        %v8495 = vsel %vm4567, %v8493, %v8494
        %v8496 = vrot.slane %v8437, 5
        %v8497 = vsel %vm4567, %v8494, %v8496
        %v8498 = vrot.slane %v8438, 5
        %v8499 = vrot.slane %v8439, 5
        %v8500 = vsel %vm4567, %v8498, %v8499
        %v8501 = vrot.slane %v8440, 5
        %v8502 = vsel %vm4567, %v8499, %v8501
        %v8503 = vrot.slane %v8441, 5
        %v8504 = vrot.slane %v8442, 5
        %v8505 = vsel %vm4567, %v8503, %v8504
        %v8506 = vrot.slane %v8443, 5
        %v8507 = vsel %vm4567, %v8504, %v8506
        %v8524 = vadd.f32 %v8400, %v8470
        %v8525 = vadd.f32 %v8401, %v8472
        %v8526 = vadd.f32 %v8402, %v8475
        %v8527 = vadd.f32 %v8403, %v8477
        %v8528 = vadd.f32 %v8404, %v8480
        %v8529 = vadd.f32 %v8405, %v8482
        %v8530 = vadd.f32 %v8406, %v8485
        %v8531 = vadd.f32 %v8407, %v8487
        %v8532 = vadd.f32 %v8408, %v8490
        %v8533 = vadd.f32 %v8409, %v8492
        %v8534 = vadd.f32 %v8410, %v8495
        %v8535 = vadd.f32 %v8411, %v8497
        %v8536 = vadd.f32 %v8412, %v8500
        %v8537 = vadd.f32 %v8413, %v8502
        %v8538 = vadd.f32 %v8414, %v8505
        %v8539 = vadd.f32 %v8415, %v8507
        %v8540 = vlaneseq
        %v8541 = vshrl.u32 %v8540, 7
        %v8542 = vsub.s32 6, %v8541
        %v8543 = vrot.slane %v3980, %v8542
        %v8544 = vmul.f32 %v3948, %v8543
        %v8545 = vmul.f32 %v3949, %v8543
        %v8546 = vmul.f32 %v3950, %v8543
        %v8547 = vmul.f32 %v3951, %v8543
        %v8548 = vmul.f32 %v3952, %v8543
        %v8549 = vmul.f32 %v3953, %v8543
        %v8550 = vmul.f32 %v3954, %v8543
        %v8551 = vmul.f32 %v3955, %v8543
        %v8552 = vmul.f32 %v3956, %v8543
        %v8553 = vmul.f32 %v3957, %v8543
        %v8554 = vmul.f32 %v3958, %v8543
        %v8555 = vmul.f32 %v3959, %v8543
        %v8556 = vmul.f32 %v3960, %v8543
        %v8557 = vmul.f32 %v3961, %v8543
        %v8558 = vmul.f32 %v3962, %v8543
        %v8559 = vmul.f32 %v3963, %v8543
        %v8560 = vmul.f32 %v3964, %v8543
        %v8561 = vmul.f32 %v3965, %v8543
        %v8562 = vmul.f32 %v3966, %v8543
        %v8563 = vmul.f32 %v3967, %v8543
        %v8564 = vmul.f32 %v3968, %v8543
        %v8565 = vmul.f32 %v3969, %v8543
        %v8566 = vmul.f32 %v3970, %v8543
        %v8567 = vmul.f32 %v3971, %v8543
        %v8592 = vrot.slane %v8544, 6
        %v8593 = vrot.slane %v8545, 6
        %v8594 = vsel %vm2375, %v8592, %v8593
        %v8595 = vrot.slane %v8546, 6
        %v8596 = vsel %vm2375, %v8593, %v8595
        %v8597 = vrot.slane %v8547, 6
        %v8598 = vrot.slane %v8548, 6
        %v8599 = vsel %vm2375, %v8597, %v8598
        %v8600 = vrot.slane %v8549, 6
        %v8601 = vsel %vm2375, %v8598, %v8600
        %v8602 = vrot.slane %v8550, 6
        %v8603 = vrot.slane %v8551, 6
        %v8604 = vsel %vm2375, %v8602, %v8603
        %v8605 = vrot.slane %v8552, 6
        %v8606 = vsel %vm2375, %v8603, %v8605
        %v8607 = vrot.slane %v8553, 6
        %v8608 = vrot.slane %v8554, 6
        %v8609 = vsel %vm2375, %v8607, %v8608
        %v8610 = vrot.slane %v8555, 6
        %v8611 = vsel %vm2375, %v8608, %v8610
        %v8612 = vrot.slane %v8556, 6
        %v8613 = vrot.slane %v8557, 6
        %v8614 = vsel %vm2375, %v8612, %v8613
        %v8615 = vrot.slane %v8558, 6
        %v8616 = vsel %vm2375, %v8613, %v8615
        %v8617 = vrot.slane %v8559, 6
        %v8618 = vrot.slane %v8560, 6
        %v8619 = vsel %vm2375, %v8617, %v8618
        %v8620 = vrot.slane %v8561, 6
        %v8621 = vsel %vm2375, %v8618, %v8620
        %v8622 = vrot.slane %v8562, 6
        %v8623 = vrot.slane %v8563, 6
        %v8624 = vsel %vm2375, %v8622, %v8623
        %v8625 = vrot.slane %v8564, 6
        %v8626 = vsel %vm2375, %v8623, %v8625
        %v8627 = vrot.slane %v8565, 6
        %v8628 = vrot.slane %v8566, 6
        %v8629 = vsel %vm2375, %v8627, %v8628
        %v8630 = vrot.slane %v8567, 6
        %v8631 = vsel %vm2375, %v8628, %v8630
        %v8648 = vadd.f32 %v8524, %v8594
        %v8649 = vadd.f32 %v8525, %v8596
        %v8650 = vadd.f32 %v8526, %v8599
        %v8651 = vadd.f32 %v8527, %v8601
        %v8652 = vadd.f32 %v8528, %v8604
        %v8653 = vadd.f32 %v8529, %v8606
        %v8654 = vadd.f32 %v8530, %v8609
        %v8655 = vadd.f32 %v8531, %v8611
        %v8656 = vadd.f32 %v8532, %v8614
        %v8657 = vadd.f32 %v8533, %v8616
        %v8658 = vadd.f32 %v8534, %v8619
        %v8659 = vadd.f32 %v8535, %v8621
        %v8660 = vadd.f32 %v8536, %v8624
        %v8661 = vadd.f32 %v8537, %v8626
        %v8662 = vadd.f32 %v8538, %v8629
        %v8663 = vadd.f32 %v8539, %v8631
        %v8664 = vlaneseq
        %v8665 = vshrl.u32 %v8664, 7
        %v8666 = vsub.s32 0, %v8665
        %v8667 = vrot.slane %v3981, %v8666
        %v8668 = vmul.f32 %v3951, %v8667
        %v8669 = vmul.f32 %v3952, %v8667
        %v8670 = vmul.f32 %v3954, %v8667
        %v8671 = vmul.f32 %v3955, %v8667
        %v8672 = vmul.f32 %v3957, %v8667
        %v8673 = vmul.f32 %v3958, %v8667
        %v8674 = vmul.f32 %v3960, %v8667
        %v8675 = vmul.f32 %v3961, %v8667
        %v8676 = vmul.f32 %v3963, %v8667
        %v8677 = vmul.f32 %v3964, %v8667
        %v8678 = vmul.f32 %v3966, %v8667
        %v8679 = vmul.f32 %v3967, %v8667
        %v8680 = vmul.f32 %v3969, %v8667
        %v8681 = vmul.f32 %v3970, %v8667
        %v8682 = vmul.f32 %v3972, %v8667
        %v8683 = vmul.f32 %v3973, %v8667
        %v8684 = vadd.f32 %v8648, %v8668
        %v8685 = vadd.f32 %v8649, %v8669
        %v8686 = vadd.f32 %v8650, %v8670
        %v8687 = vadd.f32 %v8651, %v8671
        %v8688 = vadd.f32 %v8652, %v8672
        %v8689 = vadd.f32 %v8653, %v8673
        %v8690 = vadd.f32 %v8654, %v8674
        %v8691 = vadd.f32 %v8655, %v8675
        %v8692 = vadd.f32 %v8656, %v8676
        %v8693 = vadd.f32 %v8657, %v8677
        %v8694 = vadd.f32 %v8658, %v8678
        %v8695 = vadd.f32 %v8659, %v8679
        %v8696 = vadd.f32 %v8660, %v8680
        %v8697 = vadd.f32 %v8661, %v8681
        %v8698 = vadd.f32 %v8662, %v8682
        %v8699 = vadd.f32 %v8663, %v8683
        %v8700 = vlaneseq
        %v8701 = vshrl.u32 %v8700, 7
        %v8702 = vsub.s32 1, %v8701
        %v8703 = vrot.slane %v3981, %v8702
        %v8704 = vmul.f32 %v3951, %v8703
        %v8705 = vmul.f32 %v3952, %v8703
        %v8706 = vmul.f32 %v3953, %v8703
        %v8707 = vmul.f32 %v3954, %v8703
        %v8708 = vmul.f32 %v3955, %v8703
        %v8709 = vmul.f32 %v3956, %v8703
        %v8710 = vmul.f32 %v3957, %v8703
        %v8711 = vmul.f32 %v3958, %v8703
        %v8712 = vmul.f32 %v3959, %v8703
        %v8713 = vmul.f32 %v3960, %v8703
        %v8714 = vmul.f32 %v3961, %v8703
        %v8715 = vmul.f32 %v3962, %v8703
        %v8716 = vmul.f32 %v3963, %v8703
        %v8717 = vmul.f32 %v3964, %v8703
        %v8718 = vmul.f32 %v3965, %v8703
        %v8719 = vmul.f32 %v3966, %v8703
        %v8720 = vmul.f32 %v3967, %v8703
        %v8721 = vmul.f32 %v3968, %v8703
        %v8722 = vmul.f32 %v3969, %v8703
        %v8723 = vmul.f32 %v3970, %v8703
        %v8724 = vmul.f32 %v3971, %v8703
        %v8725 = vmul.f32 %v3972, %v8703
        %v8726 = vmul.f32 %v3973, %v8703
        %v8727 = vmul.f32 %v3974, %v8703
        %v8752 = vrot.slane %v8704, 1
        %v8753 = vrot.slane %v8705, 1
        %v8754 = vsel %vm921, %v8752, %v8753
        %v8755 = vrot.slane %v8706, 1
        %v8756 = vsel %vm921, %v8753, %v8755
        %v8757 = vrot.slane %v8707, 1
        %v8758 = vrot.slane %v8708, 1
        %v8759 = vsel %vm921, %v8757, %v8758
        %v8760 = vrot.slane %v8709, 1
        %v8761 = vsel %vm921, %v8758, %v8760
        %v8762 = vrot.slane %v8710, 1
        %v8763 = vrot.slane %v8711, 1
        %v8764 = vsel %vm921, %v8762, %v8763
        %v8765 = vrot.slane %v8712, 1
        %v8766 = vsel %vm921, %v8763, %v8765
        %v8767 = vrot.slane %v8713, 1
        %v8768 = vrot.slane %v8714, 1
        %v8769 = vsel %vm921, %v8767, %v8768
        %v8770 = vrot.slane %v8715, 1
        %v8771 = vsel %vm921, %v8768, %v8770
        %v8772 = vrot.slane %v8716, 1
        %v8773 = vrot.slane %v8717, 1
        %v8774 = vsel %vm921, %v8772, %v8773
        %v8775 = vrot.slane %v8718, 1
        %v8776 = vsel %vm921, %v8773, %v8775
        %v8777 = vrot.slane %v8719, 1
        %v8778 = vrot.slane %v8720, 1
        %v8779 = vsel %vm921, %v8777, %v8778
        %v8780 = vrot.slane %v8721, 1
        %v8781 = vsel %vm921, %v8778, %v8780
        %v8782 = vrot.slane %v8722, 1
        %v8783 = vrot.slane %v8723, 1
        %v8784 = vsel %vm921, %v8782, %v8783
        %v8785 = vrot.slane %v8724, 1
        %v8786 = vsel %vm921, %v8783, %v8785
        %v8787 = vrot.slane %v8725, 1
        %v8788 = vrot.slane %v8726, 1
        %v8789 = vsel %vm921, %v8787, %v8788
        %v8790 = vrot.slane %v8727, 1
        %v8791 = vsel %vm921, %v8788, %v8790
        %v8808 = vadd.f32 %v8684, %v8754
        %v8809 = vadd.f32 %v8685, %v8756
        %v8810 = vadd.f32 %v8686, %v8759
        %v8811 = vadd.f32 %v8687, %v8761
        %v8812 = vadd.f32 %v8688, %v8764
        %v8813 = vadd.f32 %v8689, %v8766
        %v8814 = vadd.f32 %v8690, %v8769
        %v8815 = vadd.f32 %v8691, %v8771
        %v8816 = vadd.f32 %v8692, %v8774
        %v8817 = vadd.f32 %v8693, %v8776
        %v8818 = vadd.f32 %v8694, %v8779
        %v8819 = vadd.f32 %v8695, %v8781
        %v8820 = vadd.f32 %v8696, %v8784
        %v8821 = vadd.f32 %v8697, %v8786
        %v8822 = vadd.f32 %v8698, %v8789
        %v8823 = vadd.f32 %v8699, %v8791
        %v8824 = vlaneseq
        %v8825 = vshrl.u32 %v8824, 7
        %v8826 = vsub.s32 2, %v8825
        %v8827 = vrot.slane %v3981, %v8826
        %v8828 = vmul.f32 %v3951, %v8827
        %v8829 = vmul.f32 %v3952, %v8827
        %v8830 = vmul.f32 %v3953, %v8827
        %v8831 = vmul.f32 %v3954, %v8827
        %v8832 = vmul.f32 %v3955, %v8827
        %v8833 = vmul.f32 %v3956, %v8827
        %v8834 = vmul.f32 %v3957, %v8827
        %v8835 = vmul.f32 %v3958, %v8827
        %v8836 = vmul.f32 %v3959, %v8827
        %v8837 = vmul.f32 %v3960, %v8827
        %v8838 = vmul.f32 %v3961, %v8827
        %v8839 = vmul.f32 %v3962, %v8827
        %v8840 = vmul.f32 %v3963, %v8827
        %v8841 = vmul.f32 %v3964, %v8827
        %v8842 = vmul.f32 %v3965, %v8827
        %v8843 = vmul.f32 %v3966, %v8827
        %v8844 = vmul.f32 %v3967, %v8827
        %v8845 = vmul.f32 %v3968, %v8827
        %v8846 = vmul.f32 %v3969, %v8827
        %v8847 = vmul.f32 %v3970, %v8827
        %v8848 = vmul.f32 %v3971, %v8827
        %v8849 = vmul.f32 %v3972, %v8827
        %v8850 = vmul.f32 %v3973, %v8827
        %v8851 = vmul.f32 %v3974, %v8827
        %v8876 = vrot.slane %v8828, 2
        %v8877 = vrot.slane %v8829, 2
        %v8878 = vsel %vm1302, %v8876, %v8877
        %v8879 = vrot.slane %v8830, 2
        %v8880 = vsel %vm1302, %v8877, %v8879
        %v8881 = vrot.slane %v8831, 2
        %v8882 = vrot.slane %v8832, 2
        %v8883 = vsel %vm1302, %v8881, %v8882
        %v8884 = vrot.slane %v8833, 2
        %v8885 = vsel %vm1302, %v8882, %v8884
        %v8886 = vrot.slane %v8834, 2
        %v8887 = vrot.slane %v8835, 2
        %v8888 = vsel %vm1302, %v8886, %v8887
        %v8889 = vrot.slane %v8836, 2
        %v8890 = vsel %vm1302, %v8887, %v8889
        %v8891 = vrot.slane %v8837, 2
        %v8892 = vrot.slane %v8838, 2
        %v8893 = vsel %vm1302, %v8891, %v8892
        %v8894 = vrot.slane %v8839, 2
        %v8895 = vsel %vm1302, %v8892, %v8894
        %v8896 = vrot.slane %v8840, 2
        %v8897 = vrot.slane %v8841, 2
        %v8898 = vsel %vm1302, %v8896, %v8897
        %v8899 = vrot.slane %v8842, 2
        %v8900 = vsel %vm1302, %v8897, %v8899
        %v8901 = vrot.slane %v8843, 2
        %v8902 = vrot.slane %v8844, 2
        %v8903 = vsel %vm1302, %v8901, %v8902
        %v8904 = vrot.slane %v8845, 2
        %v8905 = vsel %vm1302, %v8902, %v8904
        %v8906 = vrot.slane %v8846, 2
        %v8907 = vrot.slane %v8847, 2
        %v8908 = vsel %vm1302, %v8906, %v8907
        %v8909 = vrot.slane %v8848, 2
        %v8910 = vsel %vm1302, %v8907, %v8909
        %v8911 = vrot.slane %v8849, 2
        %v8912 = vrot.slane %v8850, 2
        %v8913 = vsel %vm1302, %v8911, %v8912
        %v8914 = vrot.slane %v8851, 2
        %v8915 = vsel %vm1302, %v8912, %v8914
        %v8932 = vadd.f32 %v8808, %v8878
        %v8933 = vadd.f32 %v8809, %v8880
        %v8934 = vadd.f32 %v8810, %v8883
        %v8935 = vadd.f32 %v8811, %v8885
        %v8936 = vadd.f32 %v8812, %v8888
        %v8937 = vadd.f32 %v8813, %v8890
        %v8938 = vadd.f32 %v8814, %v8893
        %v8939 = vadd.f32 %v8815, %v8895
        %v8940 = vadd.f32 %v8816, %v8898
        %v8941 = vadd.f32 %v8817, %v8900
        %v8942 = vadd.f32 %v8818, %v8903
        %v8943 = vadd.f32 %v8819, %v8905
        %v8944 = vadd.f32 %v8820, %v8908
        %v8945 = vadd.f32 %v8821, %v8910
        %v8946 = vadd.f32 %v8822, %v8913
        %v8947 = vadd.f32 %v8823, %v8915
        %v8948 = vlaneseq
        %v8949 = vshrl.u32 %v8948, 7
        %v8950 = vsub.s32 3, %v8949
        %v8951 = vrot.slane %v3981, %v8950
        %v8952 = vmul.f32 %v3951, %v8951
        %v8953 = vmul.f32 %v3952, %v8951
        %v8954 = vmul.f32 %v3953, %v8951
        %v8955 = vmul.f32 %v3954, %v8951
        %v8956 = vmul.f32 %v3955, %v8951
        %v8957 = vmul.f32 %v3956, %v8951
        %v8958 = vmul.f32 %v3957, %v8951
        %v8959 = vmul.f32 %v3958, %v8951
        %v8960 = vmul.f32 %v3959, %v8951
        %v8961 = vmul.f32 %v3960, %v8951
        %v8962 = vmul.f32 %v3961, %v8951
        %v8963 = vmul.f32 %v3962, %v8951
        %v8964 = vmul.f32 %v3963, %v8951
        %v8965 = vmul.f32 %v3964, %v8951
        %v8966 = vmul.f32 %v3965, %v8951
        %v8967 = vmul.f32 %v3966, %v8951
        %v8968 = vmul.f32 %v3967, %v8951
        %v8969 = vmul.f32 %v3968, %v8951
        %v8970 = vmul.f32 %v3969, %v8951
        %v8971 = vmul.f32 %v3970, %v8951
        %v8972 = vmul.f32 %v3971, %v8951
        %v8973 = vmul.f32 %v3972, %v8951
        %v8974 = vmul.f32 %v3973, %v8951
        %v8975 = vmul.f32 %v3974, %v8951
        %v9000 = vrot.slane %v8952, 3
        %v9001 = vrot.slane %v8953, 3
        %v9002 = vsel %vm4318, %v9000, %v9001
        %v9003 = vrot.slane %v8954, 3
        %v9004 = vsel %vm4318, %v9001, %v9003
        %v9005 = vrot.slane %v8955, 3
        %v9006 = vrot.slane %v8956, 3
        %v9007 = vsel %vm4318, %v9005, %v9006
        %v9008 = vrot.slane %v8957, 3
        %v9009 = vsel %vm4318, %v9006, %v9008
        %v9010 = vrot.slane %v8958, 3
        %v9011 = vrot.slane %v8959, 3
        %v9012 = vsel %vm4318, %v9010, %v9011
        %v9013 = vrot.slane %v8960, 3
        %v9014 = vsel %vm4318, %v9011, %v9013
        %v9015 = vrot.slane %v8961, 3
        %v9016 = vrot.slane %v8962, 3
        %v9017 = vsel %vm4318, %v9015, %v9016
        %v9018 = vrot.slane %v8963, 3
        %v9019 = vsel %vm4318, %v9016, %v9018
        %v9020 = vrot.slane %v8964, 3
        %v9021 = vrot.slane %v8965, 3
        %v9022 = vsel %vm4318, %v9020, %v9021
        %v9023 = vrot.slane %v8966, 3
        %v9024 = vsel %vm4318, %v9021, %v9023
        %v9025 = vrot.slane %v8967, 3
        %v9026 = vrot.slane %v8968, 3
        %v9027 = vsel %vm4318, %v9025, %v9026
        %v9028 = vrot.slane %v8969, 3
        %v9029 = vsel %vm4318, %v9026, %v9028
        %v9030 = vrot.slane %v8970, 3
        %v9031 = vrot.slane %v8971, 3
        %v9032 = vsel %vm4318, %v9030, %v9031
        %v9033 = vrot.slane %v8972, 3
        %v9034 = vsel %vm4318, %v9031, %v9033
        %v9035 = vrot.slane %v8973, 3
        %v9036 = vrot.slane %v8974, 3
        %v9037 = vsel %vm4318, %v9035, %v9036
        %v9038 = vrot.slane %v8975, 3
        %v9039 = vsel %vm4318, %v9036, %v9038
        %v9056 = vadd.f32 %v8932, %v9002
        %v9057 = vadd.f32 %v8933, %v9004
        %v9058 = vadd.f32 %v8934, %v9007
        %v9059 = vadd.f32 %v8935, %v9009
        %v9060 = vadd.f32 %v8936, %v9012
        %v9061 = vadd.f32 %v8937, %v9014
        %v9062 = vadd.f32 %v8938, %v9017
        %v9063 = vadd.f32 %v8939, %v9019
        %v9064 = vadd.f32 %v8940, %v9022
        %v9065 = vadd.f32 %v8941, %v9024
        %v9066 = vadd.f32 %v8942, %v9027
        %v9067 = vadd.f32 %v8943, %v9029
        %v9068 = vadd.f32 %v8944, %v9032
        %v9069 = vadd.f32 %v8945, %v9034
        %v9070 = vadd.f32 %v8946, %v9037
        %v9071 = vadd.f32 %v8947, %v9039
        %v9072 = vlaneseq
        %v9073 = vshrl.u32 %v9072, 7
        %v9074 = vsub.s32 4, %v9073
        %v9075 = vrot.slane %v3981, %v9074
        %v9076 = vmul.f32 %v3951, %v9075
        %v9077 = vmul.f32 %v3952, %v9075
        %v9078 = vmul.f32 %v3953, %v9075
        %v9079 = vmul.f32 %v3954, %v9075
        %v9080 = vmul.f32 %v3955, %v9075
        %v9081 = vmul.f32 %v3956, %v9075
        %v9082 = vmul.f32 %v3957, %v9075
        %v9083 = vmul.f32 %v3958, %v9075
        %v9084 = vmul.f32 %v3959, %v9075
        %v9085 = vmul.f32 %v3960, %v9075
        %v9086 = vmul.f32 %v3961, %v9075
        %v9087 = vmul.f32 %v3962, %v9075
        %v9088 = vmul.f32 %v3963, %v9075
        %v9089 = vmul.f32 %v3964, %v9075
        %v9090 = vmul.f32 %v3965, %v9075
        %v9091 = vmul.f32 %v3966, %v9075
        %v9092 = vmul.f32 %v3967, %v9075
        %v9093 = vmul.f32 %v3968, %v9075
        %v9094 = vmul.f32 %v3969, %v9075
        %v9095 = vmul.f32 %v3970, %v9075
        %v9096 = vmul.f32 %v3971, %v9075
        %v9097 = vmul.f32 %v3972, %v9075
        %v9098 = vmul.f32 %v3973, %v9075
        %v9099 = vmul.f32 %v3974, %v9075
        %v9124 = vrot.slane %v9076, 4
        %v9125 = vrot.slane %v9077, 4
        %v9126 = vsel %vm3498, %v9124, %v9125
        %v9127 = vrot.slane %v9078, 4
        %v9128 = vsel %vm3498, %v9125, %v9127
        %v9129 = vrot.slane %v9079, 4
        %v9130 = vrot.slane %v9080, 4
        %v9131 = vsel %vm3498, %v9129, %v9130
        %v9132 = vrot.slane %v9081, 4
        %v9133 = vsel %vm3498, %v9130, %v9132
        %v9134 = vrot.slane %v9082, 4
        %v9135 = vrot.slane %v9083, 4
        %v9136 = vsel %vm3498, %v9134, %v9135
        %v9137 = vrot.slane %v9084, 4
        %v9138 = vsel %vm3498, %v9135, %v9137
        %v9139 = vrot.slane %v9085, 4
        %v9140 = vrot.slane %v9086, 4
        %v9141 = vsel %vm3498, %v9139, %v9140
        %v9142 = vrot.slane %v9087, 4
        %v9143 = vsel %vm3498, %v9140, %v9142
        %v9144 = vrot.slane %v9088, 4
        %v9145 = vrot.slane %v9089, 4
        %v9146 = vsel %vm3498, %v9144, %v9145
        %v9147 = vrot.slane %v9090, 4
        %v9148 = vsel %vm3498, %v9145, %v9147
        %v9149 = vrot.slane %v9091, 4
        %v9150 = vrot.slane %v9092, 4
        %v9151 = vsel %vm3498, %v9149, %v9150
        %v9152 = vrot.slane %v9093, 4
        %v9153 = vsel %vm3498, %v9150, %v9152
        %v9154 = vrot.slane %v9094, 4
        %v9155 = vrot.slane %v9095, 4
        %v9156 = vsel %vm3498, %v9154, %v9155
        %v9157 = vrot.slane %v9096, 4
        %v9158 = vsel %vm3498, %v9155, %v9157
        %v9159 = vrot.slane %v9097, 4
        %v9160 = vrot.slane %v9098, 4
        %v9161 = vsel %vm3498, %v9159, %v9160
        %v9162 = vrot.slane %v9099, 4
        %v9163 = vsel %vm3498, %v9160, %v9162
        %v9180 = vadd.f32 %v9056, %v9126
        %v9181 = vadd.f32 %v9057, %v9128
        %v9182 = vadd.f32 %v9058, %v9131
        %v9183 = vadd.f32 %v9059, %v9133
        %v9184 = vadd.f32 %v9060, %v9136
        %v9185 = vadd.f32 %v9061, %v9138
        %v9186 = vadd.f32 %v9062, %v9141
        %v9187 = vadd.f32 %v9063, %v9143
        %v9188 = vadd.f32 %v9064, %v9146
        %v9189 = vadd.f32 %v9065, %v9148
        %v9190 = vadd.f32 %v9066, %v9151
        %v9191 = vadd.f32 %v9067, %v9153
        %v9192 = vadd.f32 %v9068, %v9156
        %v9193 = vadd.f32 %v9069, %v9158
        %v9194 = vadd.f32 %v9070, %v9161
        %v9195 = vadd.f32 %v9071, %v9163
        %v9196 = vlaneseq
        %v9197 = vshrl.u32 %v9196, 7
        %v9198 = vsub.s32 5, %v9197
        %v9199 = vrot.slane %v3981, %v9198
        %v9200 = vmul.f32 %v3951, %v9199
        %v9201 = vmul.f32 %v3952, %v9199
        %v9202 = vmul.f32 %v3953, %v9199
        %v9203 = vmul.f32 %v3954, %v9199
        %v9204 = vmul.f32 %v3955, %v9199
        %v9205 = vmul.f32 %v3956, %v9199
        %v9206 = vmul.f32 %v3957, %v9199
        %v9207 = vmul.f32 %v3958, %v9199
        %v9208 = vmul.f32 %v3959, %v9199
        %v9209 = vmul.f32 %v3960, %v9199
        %v9210 = vmul.f32 %v3961, %v9199
        %v9211 = vmul.f32 %v3962, %v9199
        %v9212 = vmul.f32 %v3963, %v9199
        %v9213 = vmul.f32 %v3964, %v9199
        %v9214 = vmul.f32 %v3965, %v9199
        %v9215 = vmul.f32 %v3966, %v9199
        %v9216 = vmul.f32 %v3967, %v9199
        %v9217 = vmul.f32 %v3968, %v9199
        %v9218 = vmul.f32 %v3969, %v9199
        %v9219 = vmul.f32 %v3970, %v9199
        %v9220 = vmul.f32 %v3971, %v9199
        %v9221 = vmul.f32 %v3972, %v9199
        %v9222 = vmul.f32 %v3973, %v9199
        %v9223 = vmul.f32 %v3974, %v9199
        %v9248 = vrot.slane %v9200, 5
        %v9249 = vrot.slane %v9201, 5
        %v9250 = vsel %vm4567, %v9248, %v9249
        %v9251 = vrot.slane %v9202, 5
        %v9252 = vsel %vm4567, %v9249, %v9251
        %v9253 = vrot.slane %v9203, 5
        %v9254 = vrot.slane %v9204, 5
        %v9255 = vsel %vm4567, %v9253, %v9254
        %v9256 = vrot.slane %v9205, 5
        %v9257 = vsel %vm4567, %v9254, %v9256
        %v9258 = vrot.slane %v9206, 5
        %v9259 = vrot.slane %v9207, 5
        %v9260 = vsel %vm4567, %v9258, %v9259
        %v9261 = vrot.slane %v9208, 5
        %v9262 = vsel %vm4567, %v9259, %v9261
        %v9263 = vrot.slane %v9209, 5
        %v9264 = vrot.slane %v9210, 5
        %v9265 = vsel %vm4567, %v9263, %v9264
        %v9266 = vrot.slane %v9211, 5
        %v9267 = vsel %vm4567, %v9264, %v9266
        %v9268 = vrot.slane %v9212, 5
        %v9269 = vrot.slane %v9213, 5
        %v9270 = vsel %vm4567, %v9268, %v9269
        %v9271 = vrot.slane %v9214, 5
        %v9272 = vsel %vm4567, %v9269, %v9271
        %v9273 = vrot.slane %v9215, 5
        %v9274 = vrot.slane %v9216, 5
        %v9275 = vsel %vm4567, %v9273, %v9274
        %v9276 = vrot.slane %v9217, 5
        %v9277 = vsel %vm4567, %v9274, %v9276
        %v9278 = vrot.slane %v9218, 5
        %v9279 = vrot.slane %v9219, 5
        %v9280 = vsel %vm4567, %v9278, %v9279
        %v9281 = vrot.slane %v9220, 5
        %v9282 = vsel %vm4567, %v9279, %v9281
        %v9283 = vrot.slane %v9221, 5
        %v9284 = vrot.slane %v9222, 5
        %v9285 = vsel %vm4567, %v9283, %v9284
        %v9286 = vrot.slane %v9223, 5
        %v9287 = vsel %vm4567, %v9284, %v9286
        %v9304 = vadd.f32 %v9180, %v9250
        %v9305 = vadd.f32 %v9181, %v9252
        %v9306 = vadd.f32 %v9182, %v9255
        %v9307 = vadd.f32 %v9183, %v9257
        %v9308 = vadd.f32 %v9184, %v9260
        %v9309 = vadd.f32 %v9185, %v9262
        %v9310 = vadd.f32 %v9186, %v9265
        %v9311 = vadd.f32 %v9187, %v9267
        %v9312 = vadd.f32 %v9188, %v9270
        %v9313 = vadd.f32 %v9189, %v9272
        %v9314 = vadd.f32 %v9190, %v9275
        %v9315 = vadd.f32 %v9191, %v9277
        %v9316 = vadd.f32 %v9192, %v9280
        %v9317 = vadd.f32 %v9193, %v9282
        %v9318 = vadd.f32 %v9194, %v9285
        %v9319 = vadd.f32 %v9195, %v9287
        %v9320 = vlaneseq
        %v9321 = vshrl.u32 %v9320, 7
        %v9322 = vsub.s32 6, %v9321
        %v9323 = vrot.slane %v3981, %v9322
        %v9324 = vmul.f32 %v3951, %v9323
        %v9325 = vmul.f32 %v3952, %v9323
        %v9326 = vmul.f32 %v3953, %v9323
        %v9327 = vmul.f32 %v3954, %v9323
        %v9328 = vmul.f32 %v3955, %v9323
        %v9329 = vmul.f32 %v3956, %v9323
        %v9330 = vmul.f32 %v3957, %v9323
        %v9331 = vmul.f32 %v3958, %v9323
        %v9332 = vmul.f32 %v3959, %v9323
        %v9333 = vmul.f32 %v3960, %v9323
        %v9334 = vmul.f32 %v3961, %v9323
        %v9335 = vmul.f32 %v3962, %v9323
        %v9336 = vmul.f32 %v3963, %v9323
        %v9337 = vmul.f32 %v3964, %v9323
        %v9338 = vmul.f32 %v3965, %v9323
        %v9339 = vmul.f32 %v3966, %v9323
        %v9340 = vmul.f32 %v3967, %v9323
        %v9341 = vmul.f32 %v3968, %v9323
        %v9342 = vmul.f32 %v3969, %v9323
        %v9343 = vmul.f32 %v3970, %v9323
        %v9344 = vmul.f32 %v3971, %v9323
        %v9345 = vmul.f32 %v3972, %v9323
        %v9346 = vmul.f32 %v3973, %v9323
        %v9347 = vmul.f32 %v3974, %v9323
        %v9372 = vrot.slane %v9324, 6
        %v9373 = vrot.slane %v9325, 6
        %v9374 = vsel %vm2375, %v9372, %v9373
        %v9375 = vrot.slane %v9326, 6
        %v9376 = vsel %vm2375, %v9373, %v9375
        %v9377 = vrot.slane %v9327, 6
        %v9378 = vrot.slane %v9328, 6
        %v9379 = vsel %vm2375, %v9377, %v9378
        %v9380 = vrot.slane %v9329, 6
        %v9381 = vsel %vm2375, %v9378, %v9380
        %v9382 = vrot.slane %v9330, 6
        %v9383 = vrot.slane %v9331, 6
        %v9384 = vsel %vm2375, %v9382, %v9383
        %v9385 = vrot.slane %v9332, 6
        %v9386 = vsel %vm2375, %v9383, %v9385
        %v9387 = vrot.slane %v9333, 6
        %v9388 = vrot.slane %v9334, 6
        %v9389 = vsel %vm2375, %v9387, %v9388
        %v9390 = vrot.slane %v9335, 6
        %v9391 = vsel %vm2375, %v9388, %v9390
        %v9392 = vrot.slane %v9336, 6
        %v9393 = vrot.slane %v9337, 6
        %v9394 = vsel %vm2375, %v9392, %v9393
        %v9395 = vrot.slane %v9338, 6
        %v9396 = vsel %vm2375, %v9393, %v9395
        %v9397 = vrot.slane %v9339, 6
        %v9398 = vrot.slane %v9340, 6
        %v9399 = vsel %vm2375, %v9397, %v9398
        %v9400 = vrot.slane %v9341, 6
        %v9401 = vsel %vm2375, %v9398, %v9400
        %v9402 = vrot.slane %v9342, 6
        %v9403 = vrot.slane %v9343, 6
        %v9404 = vsel %vm2375, %v9402, %v9403
        %v9405 = vrot.slane %v9344, 6
        %v9406 = vsel %vm2375, %v9403, %v9405
        %v9407 = vrot.slane %v9345, 6
        %v9408 = vrot.slane %v9346, 6
        %v9409 = vsel %vm2375, %v9407, %v9408
        %v9410 = vrot.slane %v9347, 6
        %v9411 = vsel %vm2375, %v9408, %v9410
        %v9428 = vadd.f32 %v9304, %v9374
        %v9429 = vadd.f32 %v9305, %v9376
        %v9430 = vadd.f32 %v9306, %v9379
        %v9431 = vadd.f32 %v9307, %v9381
        %v9432 = vadd.f32 %v9308, %v9384
        %v9433 = vadd.f32 %v9309, %v9386
        %v9434 = vadd.f32 %v9310, %v9389
        %v9435 = vadd.f32 %v9311, %v9391
        %v9436 = vadd.f32 %v9312, %v9394
        %v9437 = vadd.f32 %v9313, %v9396
        %v9438 = vadd.f32 %v9314, %v9399
        %v9439 = vadd.f32 %v9315, %v9401
        %v9440 = vadd.f32 %v9316, %v9404
        %v9441 = vadd.f32 %v9317, %v9406
        %v9442 = vadd.f32 %v9318, %v9409
        %v9443 = vadd.f32 %v9319, %v9411
        %v9444 = vld [vmem:[%s13] sm:$0x1]
        %v9446 = vlaneseq
        %v9447 = vshrl.u32 %v9446, 7
        %v9448 = vsub.s32 0, %v9447
        %v9449 = vrot.slane %v9444, %v9448
        %v9451 = vadd.f32 %v9428, %v9449
        %v9452 = vadd.f32 %v9429, %v9449
        %v9453 = vadd.f32 %v9430, %v9449
        %v9454 = vadd.f32 %v9431, %v9449
        %v9455 = vadd.f32 %v9432, %v9449
        %v9456 = vadd.f32 %v9433, %v9449
        %v9457 = vadd.f32 %v9434, %v9449
        %v9458 = vadd.f32 %v9435, %v9449
        %v9459 = vadd.f32 %v9436, %v9449
        %v9460 = vadd.f32 %v9437, %v9449
        %v9461 = vadd.f32 %v9438, %v9449
        %v9462 = vadd.f32 %v9439, %v9449
        %v9463 = vadd.f32 %v9440, %v9449
        %v9464 = vadd.f32 %v9441, %v9449
        %v9465 = vadd.f32 %v9442, %v9449
        %v9466 = vadd.f32 %v9443, %v9449
        %v9467 = vadd.f32 %v3537, %v9451
        %v9468 = vadd.f32 %v3540, %v9452
        %v9469 = vadd.f32 %v3545, %v9453
        %v9470 = vadd.f32 %v3548, %v9454
        %v9471 = vadd.f32 %v3553, %v9455
        %v9472 = vadd.f32 %v3556, %v9456
        %v9473 = vadd.f32 %v3561, %v9457
        %v9474 = vadd.f32 %v3564, %v9458
        %v9475 = vadd.f32 %v3569, %v9459
        %v9476 = vadd.f32 %v3572, %v9460
        %v9477 = vadd.f32 %v3577, %v9461
        %v9478 = vadd.f32 %v3580, %v9462
        %v9479 = vadd.f32 %v3585, %v9463
        %v9480 = vadd.f32 %v3588, %v9464
        %v9481 = vadd.f32 %v3593, %v9465
        %v9482 = vadd.f32 %v3596, %v9466
        %9483 = vxpose.xlu0.b32.start [1/16] %v9467, 128
        %9484 = vxpose.xlu0.b32.cont [2/16] %v9468, 128
        %9485 = vxpose.xlu0.b32.cont [3/16] %v9469, 128
        %9486 = vxpose.xlu0.b32.cont [4/16] %v9470, 128
        %9487 = vxpose.xlu0.b32.cont [5/16] %v9471, 128
        %9488 = vxpose.xlu0.b32.cont [6/16] %v9472, 128
        %9489 = vxpose.xlu0.b32.cont [7/16] %v9473, 128
        %9490 = vxpose.xlu0.b32.cont [8/16] %v9474, 128
        %9491 = vxpose.xlu0.b32.cont [9/16] %v9475, 128
        %9492 = vxpose.xlu0.b32.cont [10/16] %v9476, 128
        %9493 = vxpose.xlu0.b32.cont [11/16] %v9477, 128
        %9494 = vxpose.xlu0.b32.cont [12/16] %v9478, 128
        %9495 = vxpose.xlu0.b32.cont [13/16] %v9479, 128
        %9496 = vxpose.xlu0.b32.cont [14/16] %v9480, 128
        %9497 = vxpose.xlu0.b32.cont [15/16] %v9481, 128
        %9498 = vxpose.xlu0.b32.end [16/16] %v9482, 128
        %v9499 = vpop.trf.xlu0
        %v9500 = vpop.trf.xlu0
        %v9501 = vpop.trf.xlu0
        %v9502 = vpop.trf.xlu0
        %v9503 = vpop.trf.xlu0
        %v9504 = vpop.trf.xlu0
        %v9505 = vpop.trf.xlu0
        %v9506 = vpop.trf.xlu0
        %v9507 = vpop.trf.xlu0
        %v9508 = vpop.trf.xlu0
        %v9509 = vpop.trf.xlu0
        %v9510 = vpop.trf.xlu0
        %v9511 = vpop.trf.xlu0
        %v9512 = vpop.trf.xlu0
        %v9513 = vpop.trf.xlu0
        %v9514 = vpop.trf.xlu0
        %9515 = vst [vmem:[%s489] sm:$0xff] %v9499
        %s9516 = sand.u32 %s354, 1
        %s9517 = scalar_lea.sflag [#allocation3], %s9516
        %s9518 = sand.u32 %s354, 1
        %s9519 = smul.addr %s9518, 8
        %s9520 = scalar_lea.vmem [#allocation2], %s9519
        // Predicated region
        $region77: #{tpu_custom_call.1} parent=75 // pred_check
          %p9521 = pneg %p364
        $region78: #{tpu_custom_call.1} parent=75 // pred_check_branch
          %9523 = sbr.rel (%p9521) target = $region80
        $region79: #{tpu_custom_call.1} parent=75 // pred_region
          %s9525 = ssub.s32 128, 128
          %9526 = vsyncadd %s9517, %s9525
          %s9527 = smul.addr %s32, 2
          %s9528 = sadd.s32 %s33, %s9527
          %s9529 = smul.addr %s9528, 128
          %s9530 = scalar_lea.hbm %s14, %s9529
          %s9532 = sshll.u32 %s9520, 4
          %s9533 = int_to_ptr.vmem [resolvable:$true] %s9532
          %9535 = dma.vmem_to_hbm [thread:$0]  %s9533, 128, %s9530, %s9517
        $region80: #{tpu_custom_call.1} parent=75 // pred_fallthru
          _
      $region76: #{tpu_custom_call.1} parent=5 // pred_fallthru
        _
      %p9536 = scmp.le.s32.totalorder 2, %s23
      // Predicated region
      $region81: #{tpu_custom_call.1} parent=5 // pred_check
        %p9537 = pneg %p9536
      $region82: #{tpu_custom_call.1} parent=5 // pred_check_branch
        %9539 = sbr.rel (%p9537) target = $region84
      $region83: #{tpu_custom_call.1} parent=5 // pred_region
        %s9540 = ssub.s32 %s23, 2
        // Predicated region
        $region85: #{tpu_custom_call.1} parent=83 // pred_check
          %p9541 = pneg %p370
        $region86: #{tpu_custom_call.1} parent=83 // pred_check_branch
          %9543 = sbr.rel (%p9541) target = $region88
        $region87: #{tpu_custom_call.1} parent=83 // pred_region
          %s9544 = sand.u32 %s355, 1
          %s9545 = scalar_lea.sflag [#allocation3], %s9544
          %s9546 = sand.u32 %s355, 1
          %s9547 = smul.addr %s9546, 8
          %s9548 = scalar_lea.vmem [#allocation2], %s9547
          %9549 = dma.done %s9545, 128
        $region88: #{tpu_custom_call.1} parent=83 // pred_fallthru
          _
      $region84: #{tpu_custom_call.1} parent=5 // pred_fallthru
        _
    $region6: #{tpu_custom_call.1} parent=1 // loop_footer
      %s27 = sadd.s32 1, %s23
    $region7: #{tpu_custom_call.1} parent=1 // loop_footer_branch
      %22 = sbr.rel target = $region3
    $region8: #{tpu_custom_call.1} parent=1 // loop_exit
      _
    %9550 = vsyncpa [#allocation3], 1
    %s9551 = scalar_lea.sflag [#allocation3], 1
    %9552 = vsyncpa %s9551, 1

</llo_original>
